<compile_context>
chip_gen: v6e
topology: v6e:2x2x1
jax: 0.10.0
libtpu: 0.0.40
codegen_flags: <defaults>
</compile_context>

<pallas_src>
import functools

import jax
import jax.numpy as jnp
from jax.experimental import pallas as pl
from jax.experimental.pallas import tpu as pltpu


_COMPUTE_DTYPE = jnp.bfloat16   # MXU inputs / HBM intermediates; f32 accum + stats
_GROUPS = 32
_EPS = 1e-5


def _tpu_vmem_bytes():
    try:
        return int(pltpu.get_tpu_info().vmem_capacity_bytes)
    except Exception:
        return 64 * 1024 * 1024          # conservative: v7x per-core VMEM


_VMEM_CAP = _tpu_vmem_bytes()
if _VMEM_CAP >= 96 * 1024 * 1024:        # v5e / v6e: 128 MiB per core
    _TILE_BUDGET = 40 * 1024 * 1024
    _VMEM_LIMIT = 96 * 1024 * 1024
else:                                    # v7x: 64 MiB per core
    _TILE_BUDGET = 16 * 1024 * 1024
    _VMEM_LIMIT = 44 * 1024 * 1024       # leave compiler scratch headroom


def _pick_row_tile(H, W, cin, cout, budget, nbatch):
    """Largest even row tile dividing H whose working set fits the VMEM budget.

    Prefers a tile that yields a grid of >= 2 steps so both v7x TensorCores
    get work when the grid is megacore-sharded.
    """
    c = max(cin, cout)                    # stage 2 has cin == cout

    def est(th):
        halo = th + 4
        return (2 * th * W * c * 2                 # double-buffered bf16 mid tile
                + 2 * 2 * 2 * W * c * 2            # double-buffered 2-row halos (top+bot)
                + 2 * th * W * cout * 2            # double-buffered bf16 output tile
                + th * W * cout * 4                # f32 accumulator
                + halo * (W + 4) * c * (2 + 4)     # padded xp (bf16) + f32 pre-act temp
                + 2 * th * W * c * 2               # live per-tap slice temporaries
                + 2 * 9 * c * cout * 2             # weights (double-buffered)
                + (1 << 20))                       # misc headroom

    best = None
    for th in range(H, 0, -1):
        if H % th or th % 2:
            continue
        if est(th) > budget:
            continue
        if best is None:
            best = th                     # largest fitting tile (fallback)
        if nbatch * (H // th) >= 2:       # keep both TensorCores busy (v7x)
            return th
    return best if best is not None else 2


# ----------------------------------------------------------------------------
# Kernel: [optional fused GN1-affine + ReLU on the input tile] -> dilated 3x3
# conv as 9 accumulating MXU dots + bias -> store conv output (bf16) and
# per-(sample, tile) per-channel sum / sum-of-squares of the stored values.
# ----------------------------------------------------------------------------
def _conv_gn_stats_kernel(*refs, pre_act):
    if pre_act:
        (top_ref, mid_ref, bot_ref, scale_ref, shift_ref,
         w_ref, b_ref, y_ref, stats_ref) = refs
    else:
        (top_ref, mid_ref, bot_ref, w_ref, b_ref, y_ref, stats_ref) = refs

    _, th, wdim, cin = mid_ref.shape
    cout = w_ref.shape[-1]
    cdtype = w_ref.dtype

    t = pl.program_id(1)
    t_last = pl.num_programs(1) - 1
    top_live = t > 0
    bot_live = t < t_last

    if pre_act:                                  # fused GN1 affine + ReLU (f32 math)
        scale = scale_ref[...]                   # (1, 1, Cin) f32
        shift = shift_ref[...]

        def act(v):
            return jnp.maximum(v.astype(jnp.float32) * scale + shift, 0.0)

        # Row halo; out-of-image rows (first/last tile) become conv zero padding.
        # Mask AFTER the affine (shift may make zeros nonzero).
        top = (act(top_ref[0]) * top_live.astype(jnp.float32)).astype(cdtype)
        mid = act(mid_ref[0]).astype(cdtype)
        bot = (act(bot_ref[0]) * bot_live.astype(jnp.float32)).astype(cdtype)
    else:                                        # conv1: no f32 round trip
        top = top_ref[0] * top_live.astype(cdtype)
        mid = mid_ref[0]
        bot = bot_ref[0] * bot_live.astype(cdtype)

    rows = jnp.concatenate([top, mid, bot], axis=0)          # (th+4, W, Cin)

    # Column (W) zero padding in VMEM (no HBM pad pass).
    zcol = jnp.zeros((th + 4, 2, cin), cdtype)
    xp = jnp.concatenate([zcol, rows, zcol], axis=1)          # (th+4, W+4, Cin)

    # Dilation-2 3x3 conv: 9 accumulating MXU dots (no im2col patch matrix).
    acc = jnp.broadcast_to(b_ref[...], (th * wdim, cout)).astype(jnp.float32)
    for kh in range(3):
        for kw in range(3):
            tap = xp[2 * kh:2 * kh + th, 2 * kw:2 * kw + wdim, :]
            tap = tap.reshape(th * wdim, cin)
            acc = acc + jnp.dot(tap, w_ref[kh * 3 + kw],
                                preferred_element_type=jnp.float32)

    yq = acc.astype(y_ref.dtype)                              # bf16 stored values
    y_ref[...] = yq.reshape(1, th, wdim, cout)

    # Per-channel partial GroupNorm statistics of the STORED (bf16-rounded)
    # values, so scale/shift exactly normalizes what is read back next pass.
    yf = yq.astype(jnp.float32)
    ch_sum = jnp.sum(yf, axis=0, keepdims=True)
    ch_ssq = jnp.sum(yf * yf, axis=0, keepdims=True)
    stats_ref[...] = jnp.concatenate([ch_sum, ch_ssq], axis=0).reshape(1, 1, 2, cout)


def _conv_gn_stage(x, w, b, th, *, scale=None, shift=None):
    """x: (N,H,W,Cin) bf16 -> (conv out (N,H,W,Cout) bf16, stats (N,T,2,Cout) f32)."""
    N, H, W, Cin = x.shape
    Cout = w.shape[-1]
    T = H // th
    HB = H // 2                                  # number of 2-row halo blocks
    pre_act = scale is not None

    def mid_map(n, t):
        return (n, t, 0, 0)

    def top_map(n, t):
        return (n, jnp.maximum(t * (th // 2) - 1, 0), 0, 0)

    def bot_map(n, t):
        return (n, jnp.minimum((t + 1) * (th // 2), HB - 1), 0, 0)

    in_specs = [pl.BlockSpec((1, 2, W, Cin), top_map),
                pl.BlockSpec((1, th, W, Cin), mid_map),
                pl.BlockSpec((1, 2, W, Cin), bot_map)]
    args = [x, x, x]
    if pre_act:
        in_specs += [pl.BlockSpec((1, 1, Cin), lambda n, t: (n, 0, 0)),
                     pl.BlockSpec((1, 1, Cin), lambda n, t: (n, 0, 0))]
        args += [scale, shift]
    in_specs += [pl.BlockSpec((9, Cin, Cout), lambda n, t: (0, 0, 0)),
                 pl.BlockSpec((1, Cout), lambda n, t: (0, 0))]
    args += [w, b]

    kernel = functools.partial(_conv_gn_stats_kernel, pre_act=pre_act)

    flops = 2 * N * H * W * 9 * Cin * Cout
    bytes_accessed = (N * H * W * Cin * 2        # bf16 input
                      + N * H * W * Cout * 2     # bf16 output
                      + N * T * 2 * Cout * 4     # f32 stats
                      + 9 * Cin * Cout * 2       # bf16 weights
                      + (N * Cin * 8 if pre_act else 0)
                      + Cout * 4)
    cost = pl.CostEstimate(flops=flops, transcendentals=0,
                           bytes_accessed=bytes_accessed)

    y, stats = pl.pallas_call(
        kernel,
        out_shape=(jax.ShapeDtypeStruct((N, H, W, Cout), _COMPUTE_DTYPE),
                   jax.ShapeDtypeStruct((N, T, 2, Cout), jnp.float32)),
        grid_spec=pltpu.PrefetchScalarGridSpec(
            num_scalar_prefetch=0,
            grid=(N, T),
            in_specs=in_specs,
            out_specs=(pl.BlockSpec((1, th, W, Cout), mid_map),
                       pl.BlockSpec((1, 1, 2, Cout), lambda n, t: (n, t, 0, 0)))),
        compiler_params=pltpu.CompilerParams(
            dimension_semantics=("parallel", "parallel"),
            vmem_limit_bytes=_VMEM_LIMIT),
        cost_estimate=cost,
    )(*args)
    return y, stats


# ----------------------------------------------------------------------------
# Tiny XLA glue: per-tile per-channel (sum, sumsq) -> per-channel GN scale/shift.
# ----------------------------------------------------------------------------
def _gn_scale_shift(stats_tiled, gamma, beta, hw, groups, eps):
    stats = stats_tiled.sum(axis=1)                      # (N, 2, C)
    N, _, C = stats.shape
    gs = C // groups
    cnt = float(hw * gs)
    gsum = stats[:, 0, :].reshape(N, groups, gs).sum(-1)
    gssq = stats[:, 1, :].reshape(N, groups, gs).sum(-1)
    mean = gsum / cnt
    var = jnp.maximum(gssq / cnt - mean * mean, 0.0)     # biased var (PyTorch GN)
    rstd = jax.lax.rsqrt(var + eps)
    mean_c = jnp.repeat(mean, gs, axis=-1)               # (N, C)
    rstd_c = jnp.repeat(rstd, gs, axis=-1)
    scale = gamma.reshape(1, C) * rstd_c
    shift = beta.reshape(1, C) - mean_c * scale
    return (scale.reshape(N, 1, C).astype(jnp.float32),
            shift.reshape(N, 1, C).astype(jnp.float32))


# ----------------------------------------------------------------------------
# Module-equivalent wrapper (NCHW in / NCHW out, like the PyTorch module).
# ----------------------------------------------------------------------------
def rru_double_conv(x_nchw, params, row_tile=None):
    N, Cin, H, W = x_nchw.shape
    Cout = params["w1"].shape[-1]
    assert H % 2 == 0, "row-halo tiling assumes even H (UNet feature maps)"

    th = row_tile if row_tile is not None else _pick_row_tile(
        H, W, Cin, Cout, _TILE_BUDGET, N)
    assert th % 2 == 0 and H % th == 0, "row_tile must be even and divide H"

    x = jnp.transpose(x_nchw, (0, 2, 3, 1)).astype(_COMPUTE_DTYPE)   # NHWC bf16
    w1 = params["w1"].reshape(9, Cin, Cout).astype(_COMPUTE_DTYPE)   # (tap, Cin, Cout)
    w2 = params["w2"].reshape(9, Cout, Cout).astype(_COMPUTE_DTYPE)
    b1 = params["b1"].reshape(1, Cout).astype(jnp.float32)
    b2 = params["b2"].reshape(1, Cout).astype(jnp.float32)

    # conv1 (+ GN1 partial stats)
    y1, st1 = _conv_gn_stage(x, w1, b1, th)
    s1, sh1 = _gn_scale_shift(st1, params["g1"], params["be1"], H * W, _GROUPS, _EPS)
    # GN1 affine + ReLU fused into conv2's input path (+ GN2 partial stats)
    y2, st2 = _conv_gn_stage(y1, w2, b2, th, scale=s1, shift=sh1)
    s2, sh2 = _gn_scale_shift(st2, params["g2"], params["be2"], H * W, _GROUPS, _EPS)

    # GN2 affine fused (by XLA) with the NHWC->NCHW transpose: one bf16 read of
    # y2, one f32 write of the final result -- no extra Pallas pass / HBM pass.
    out = (y2.astype(jnp.float32) * s2.reshape(N, 1, 1, Cout)
           + sh2.reshape(N, 1, 1, Cout))
    return jnp.transpose(out, (0, 3, 1, 2))               # NHWC -> NCHW, f32


def init_params(key, in_ch, out_ch):
    k = jax.random.split(key, 6)
    s1 = 1.0 / jnp.sqrt(in_ch * 9.0)
    s2 = 1.0 / jnp.sqrt(out_ch * 9.0)
    return {
        # HWIO conv weights (PyTorch OIHW (out,in,3,3) transposed)
        "w1": jax.random.normal(k[0], (3, 3, in_ch, out_ch), jnp.float32) * s1,
        "b1": jax.random.normal(k[1], (1, out_ch), jnp.float32) * s1,
        "g1": 1.0 + 0.1 * jax.random.normal(k[2], (1, out_ch), jnp.float32),
        "be1": jnp.zeros((1, out_ch), jnp.float32),
        "w2": jax.random.normal(k[3], (3, 3, out_ch, out_ch), jnp.float32) * s2,
        "b2": jax.random.normal(k[4], (1, out_ch), jnp.float32) * s2,
        "g2": 1.0 + 0.1 * jax.random.normal(k[5], (1, out_ch), jnp.float32),
        "be2": jnp.zeros((1, out_ch), jnp.float32),
    }


# ----------------------------------------------------------------------------
# Pure-JAX reference (mirrors the kernel's bf16 quantization points).
# ----------------------------------------------------------------------------
def _reference(x_nchw, params, groups=_GROUPS, eps=_EPS):
    cd = _COMPUTE_DTYPE

    def q(a):
        return a.astype(cd).astype(jnp.float32)

    def conv(x, w, b):
        y = jax.lax.conv_general_dilated(
            q(x), q(w), window_strides=(1, 1), padding=((2, 2), (2, 2)),
            rhs_dilation=(2, 2), dimension_numbers=("NCHW", "HWIO", "NCHW"))
        return y + b.reshape(1, -1, 1, 1).astype(jnp.float32)

    def gn(y, gamma, beta):
        Nb, C, Hh, Ww = y.shape
        gs = C // groups
        yg = y.reshape(Nb, groups, gs * Hh * Ww)
        mean = yg.mean(-1, keepdims=True)
        var = yg.var(-1, keepdims=True)
        yn = ((yg - mean) * jax.lax.rsqrt(var + eps)).reshape(Nb, C, Hh, Ww)
        return yn * gamma.reshape(1, C, 1, 1) + beta.reshape(1, C, 1, 1)

    y = q(conv(x_nchw, params["w1"], params["b1"]))       # y1 stored as bf16
    y = jnp.maximum(gn(y, params["g1"], params["be1"]), 0.0)
    y = q(conv(y, params["w2"], params["b2"]))            # y2 stored as bf16
    return gn(y, params["g2"], params["be2"])


if __name__ == "__main__":
    key = jax.random.PRNGKey(0)
    kx, kp = jax.random.split(key)

    N, in_ch, H, W = 2, 4, 16, 16
    out_ch = 32          # GroupNorm(32, out_ch) requires out_ch % 32 == 0

    x = jax.random.normal(kx, (N, in_ch, H, W), jnp.float32)
    params = init_params(kp, in_ch, out_ch)

    out = jax.jit(rru_double_conv)(x, params)
    jax.block_until_ready(out)
    assert out.shape == (N, out_ch, H, W)

    # Numerical check against the pure-JAX reference (same bf16 quantization points).
    ref = _reference(x, params)
    err = float(jnp.max(jnp.abs(out - ref)))
    assert err < 0.2, f"mismatch vs reference: max abs err {err}"

    # Exercise the multi-tile (row-halo) path and check it matches the 1-tile path.
    out_tiled = jax.jit(functools.partial(rru_double_conv, row_tile=4))(x, params)
    jax.block_until_ready(out_tiled)
    err_t = float(jnp.max(jnp.abs(out - out_tiled)))
    assert err_t < 0.1, f"tiled/untiled mismatch: max abs err {err_t}"

    print("KERNEL_OK")
</pallas_src>

<mosaic_0001>
module attributes {stable_mosaic.version = 11 : i64} {
  func.func @_conv_gn_stats_kernel(%arg0: i32, %arg1: i32, %arg2: memref<1x2x16x32xbf16, #tpu.memory_space<vmem>>, %arg3: memref<1x16x16x32xbf16, #tpu.memory_space<vmem>>, %arg4: memref<1x2x16x32xbf16, #tpu.memory_space<vmem>>, %arg5: memref<1x1x32xf32, #tpu.memory_space<vmem>>, %arg6: memref<1x1x32xf32, #tpu.memory_space<vmem>>, %arg7: memref<9x32x32xbf16, #tpu.memory_space<vmem>>, %arg8: memref<1x32xf32, #tpu.memory_space<vmem>>, %arg9: memref<1x16x16x32xbf16, #tpu.memory_space<vmem>>, %arg10: memref<1x1x2x32xf32, #tpu.memory_space<vmem>>) attributes {dimension_semantics = [#tpu.dimension_semantics<parallel>, #tpu.dimension_semantics<parallel>], iteration_bounds = array<i64: 2, 1>, scalar_prefetch = 0 : i64, scratch_operands = 0 : i64, tpu.core_type = #tpu.core_type<tc>, window_params = [{transform_indices = @transform_0, window_bounds = array<i64: 1, 2, 16, 32>}, {transform_indices = @transform_1, window_bounds = array<i64: 1, 16, 16, 32>}, {transform_indices = @transform_2, window_bounds = array<i64: 1, 2, 16, 32>}, {transform_indices = @transform_3, window_bounds = array<i64: 1, 1, 32>}, {transform_indices = @transform_4, window_bounds = array<i64: 1, 1, 32>}, {pipeline_mode = #tpu.pipeline_mode<synchronous>, transform_indices = @transform_5, window_bounds = array<i64: 9, 32, 32>}, {pipeline_mode = #tpu.pipeline_mode<synchronous>, transform_indices = @transform_6, window_bounds = array<i64: 1, 32>}, {transform_indices = @transform_7, window_bounds = array<i64: 1, 16, 16, 32>}, {transform_indices = @transform_8, window_bounds = array<i64: 1, 1, 2, 32>}]} {
    %c0_i32 = arith.constant 0 : i32
    %0 = arith.cmpi sgt, %arg1, %c0_i32 : i32
    %c0_i32_0 = arith.constant 0 : i32
    %1 = arith.cmpi slt, %arg1, %c0_i32_0 : i32
    %c0 = arith.constant 0 : index
    %c0_1 = arith.constant 0 : index
    %c0_2 = arith.constant 0 : index
    %2 = vector.load %arg5[%c0, %c0_1, %c0_2] : memref<1x1x32xf32, #tpu.memory_space<vmem>>, vector<1x1x32xf32>
    %c0_3 = arith.constant 0 : index
    %c0_4 = arith.constant 0 : index
    %c0_5 = arith.constant 0 : index
    %3 = vector.load %arg6[%c0_3, %c0_4, %c0_5] : memref<1x1x32xf32, #tpu.memory_space<vmem>>, vector<1x1x32xf32>
    %c0_6 = arith.constant 0 : index
    %c0_7 = arith.constant 0 : index
    %c0_8 = arith.constant 0 : index
    %c0_9 = arith.constant 0 : index
    %4 = vector.load %arg2[%c0_6, %c0_7, %c0_8, %c0_9] : memref<1x2x16x32xbf16, #tpu.memory_space<vmem>>, vector<1x2x16x32xbf16>
    %5 = vector.shape_cast %4 : vector<1x2x16x32xbf16> to vector<2x16x32xbf16>
    %6 = arith.extf %5 : vector<2x16x32xbf16> to vector<2x16x32xf32>
    %7 = vector.broadcast %2 : vector<1x1x32xf32> to vector<2x16x32xf32>
    %8 = arith.mulf %6, %7 : vector<2x16x32xf32>
    %9 = vector.broadcast %3 : vector<1x1x32xf32> to vector<2x16x32xf32>
    %10 = arith.addf %8, %9 : vector<2x16x32xf32>
    %cst = arith.constant 0.000000e+00 : f32
    %11 = vector.broadcast %cst : f32 to vector<2x16x32xf32>
    %12 = arith.maximumf %10, %11 : vector<2x16x32xf32>
    %13 = arith.extui %0 : i1 to i32
    %14 = arith.sitofp %13 : i32 to f32
    %15 = vector.broadcast %14 : f32 to vector<2x16x32xf32>
    %16 = arith.mulf %12, %15 : vector<2x16x32xf32>
    %17 = arith.truncf %16 : vector<2x16x32xf32> to vector<2x16x32xbf16>
    %c0_10 = arith.constant 0 : index
    %c0_11 = arith.constant 0 : index
    %c0_12 = arith.constant 0 : index
    %c0_13 = arith.constant 0 : index
    %18 = vector.load %arg3[%c0_10, %c0_11, %c0_12, %c0_13] : memref<1x16x16x32xbf16, #tpu.memory_space<vmem>>, vector<1x16x16x32xbf16>
    %19 = vector.shape_cast %18 : vector<1x16x16x32xbf16> to vector<16x16x32xbf16>
    %20 = arith.extf %19 : vector<16x16x32xbf16> to vector<16x16x32xf32>
    %21 = vector.broadcast %2 : vector<1x1x32xf32> to vector<16x16x32xf32>
    %22 = arith.mulf %20, %21 : vector<16x16x32xf32>
    %23 = vector.broadcast %3 : vector<1x1x32xf32> to vector<16x16x32xf32>
    %24 = arith.addf %22, %23 : vector<16x16x32xf32>
    %cst_14 = arith.constant 0.000000e+00 : f32
    %25 = vector.broadcast %cst_14 : f32 to vector<16x16x32xf32>
    %26 = arith.maximumf %24, %25 : vector<16x16x32xf32>
    %27 = arith.truncf %26 : vector<16x16x32xf32> to vector<16x16x32xbf16>
    %c0_15 = arith.constant 0 : index
    %c0_16 = arith.constant 0 : index
    %c0_17 = arith.constant 0 : index
    %c0_18 = arith.constant 0 : index
    %28 = vector.load %arg4[%c0_15, %c0_16, %c0_17, %c0_18] : memref<1x2x16x32xbf16, #tpu.memory_space<vmem>>, vector<1x2x16x32xbf16>
    %29 = vector.shape_cast %28 : vector<1x2x16x32xbf16> to vector<2x16x32xbf16>
    %30 = arith.extf %29 : vector<2x16x32xbf16> to vector<2x16x32xf32>
    %31 = vector.broadcast %2 : vector<1x1x32xf32> to vector<2x16x32xf32>
    %32 = arith.mulf %30, %31 : vector<2x16x32xf32>
    %33 = vector.broadcast %3 : vector<1x1x32xf32> to vector<2x16x32xf32>
    %34 = arith.addf %32, %33 : vector<2x16x32xf32>
    %cst_19 = arith.constant 0.000000e+00 : f32
    %35 = vector.broadcast %cst_19 : f32 to vector<2x16x32xf32>
    %36 = arith.maximumf %34, %35 : vector<2x16x32xf32>
    %37 = arith.extui %1 : i1 to i32
    %38 = arith.sitofp %37 : i32 to f32
    %39 = vector.broadcast %38 : f32 to vector<2x16x32xf32>
    %40 = arith.mulf %36, %39 : vector<2x16x32xf32>
    %41 = arith.truncf %40 : vector<2x16x32xf32> to vector<2x16x32xbf16>
    %42 = tpu.concatenate %17, %27, %41 in 0 : vector<2x16x32xbf16>, vector<16x16x32xbf16>, vector<2x16x32xbf16> -> vector<20x16x32xbf16>
    %cst_20 = arith.constant 0.000000e+00 : bf16
    %43 = vector.broadcast %cst_20 : bf16 to vector<20x2x32xbf16>
    %44 = tpu.concatenate %43, %42, %43 in 1 : vector<20x2x32xbf16>, vector<20x16x32xbf16>, vector<20x2x32xbf16> -> vector<20x20x32xbf16>
    %c0_21 = arith.constant 0 : index
    %c0_22 = arith.constant 0 : index
    %45 = vector.load %arg8[%c0_21, %c0_22] : memref<1x32xf32, #tpu.memory_space<vmem>>, vector<1x32xf32>
    %46 = vector.shape_cast %45 : vector<1x32xf32> to vector<1x32xf32>
    %47 = vector.broadcast %46 : vector<1x32xf32> to vector<256x32xf32>
    %48 = vector.extract_strided_slice %44 {offsets = [0, 0, 0], sizes = [16, 16, 32], strides = [1, 1, 1]} : vector<20x20x32xbf16> to vector<16x16x32xbf16>
    %49 = vector.shape_cast %48 : vector<16x16x32xbf16> to vector<256x32xbf16>
    %c0_23 = arith.constant 0 : index
    %c0_24 = arith.constant 0 : index
    %c0_25 = arith.constant 0 : index
    %50 = vector.load %arg7[%c0_23, %c0_24, %c0_25] : memref<9x32x32xbf16, #tpu.memory_space<vmem>>, vector<1x32x32xbf16>
    %51 = vector.shape_cast %50 : vector<1x32x32xbf16> to vector<32x32xbf16>
    %cst_26 = arith.constant dense<0.000000e+00> : vector<256x32xf32>
    %52 = tpu.matmul %49, %51, %cst_26 {dimension_numbers = #tpu.dot_dimension_numbers<[1], [0], [0], [1], [0, 0, 1, 1], [], []>} : vector<256x32xbf16>, vector<32x32xbf16>, vector<256x32xf32> -> vector<256x32xf32>
    %53 = arith.addf %47, %52 : vector<256x32xf32>
    %54 = vector.extract_strided_slice %44 {offsets = [0, 2, 0], sizes = [16, 16, 32], strides = [1, 1, 1]} : vector<20x20x32xbf16> to vector<16x16x32xbf16>
    %55 = vector.shape_cast %54 : vector<16x16x32xbf16> to vector<256x32xbf16>
    %c1 = arith.constant 1 : index
    %c0_27 = arith.constant 0 : index
    %c0_28 = arith.constant 0 : index
    %56 = vector.load %arg7[%c1, %c0_27, %c0_28] : memref<9x32x32xbf16, #tpu.memory_space<vmem>>, vector<1x32x32xbf16>
    %57 = vector.shape_cast %56 : vector<1x32x32xbf16> to vector<32x32xbf16>
    %cst_29 = arith.constant dense<0.000000e+00> : vector<256x32xf32>
    %58 = tpu.matmul %55, %57, %cst_29 {dimension_numbers = #tpu.dot_dimension_numbers<[1], [0], [0], [1], [0, 0, 1, 1], [], []>} : vector<256x32xbf16>, vector<32x32xbf16>, vector<256x32xf32> -> vector<256x32xf32>
    %59 = arith.addf %53, %58 : vector<256x32xf32>
    %60 = vector.extract_strided_slice %44 {offsets = [0, 4, 0], sizes = [16, 16, 32], strides = [1, 1, 1]} : vector<20x20x32xbf16> to vector<16x16x32xbf16>
    %61 = vector.shape_cast %60 : vector<16x16x32xbf16> to vector<256x32xbf16>
    %c2 = arith.constant 2 : index
    %c0_30 = arith.constant 0 : index
    %c0_31 = arith.constant 0 : index
    %62 = vector.load %arg7[%c2, %c0_30, %c0_31] : memref<9x32x32xbf16, #tpu.memory_space<vmem>>, vector<1x32x32xbf16>
    %63 = vector.shape_cast %62 : vector<1x32x32xbf16> to vector<32x32xbf16>
    %cst_32 = arith.constant dense<0.000000e+00> : vector<256x32xf32>
    %64 = tpu.matmul %61, %63, %cst_32 {dimension_numbers = #tpu.dot_dimension_numbers<[1], [0], [0], [1], [0, 0, 1, 1], [], []>} : vector<256x32xbf16>, vector<32x32xbf16>, vector<256x32xf32> -> vector<256x32xf32>
    %65 = arith.addf %59, %64 : vector<256x32xf32>
    %66 = vector.extract_strided_slice %44 {offsets = [2, 0, 0], sizes = [16, 16, 32], strides = [1, 1, 1]} : vector<20x20x32xbf16> to vector<16x16x32xbf16>
    %67 = vector.shape_cast %66 : vector<16x16x32xbf16> to vector<256x32xbf16>
    %c3 = arith.constant 3 : index
    %c0_33 = arith.constant 0 : index
    %c0_34 = arith.constant 0 : index
    %68 = vector.load %arg7[%c3, %c0_33, %c0_34] : memref<9x32x32xbf16, #tpu.memory_space<vmem>>, vector<1x32x32xbf16>
    %69 = vector.shape_cast %68 : vector<1x32x32xbf16> to vector<32x32xbf16>
    %cst_35 = arith.constant dense<0.000000e+00> : vector<256x32xf32>
    %70 = tpu.matmul %67, %69, %cst_35 {dimension_numbers = #tpu.dot_dimension_numbers<[1], [0], [0], [1], [0, 0, 1, 1], [], []>} : vector<256x32xbf16>, vector<32x32xbf16>, vector<256x32xf32> -> vector<256x32xf32>
    %71 = arith.addf %65, %70 : vector<256x32xf32>
    %72 = vector.extract_strided_slice %44 {offsets = [2, 2, 0], sizes = [16, 16, 32], strides = [1, 1, 1]} : vector<20x20x32xbf16> to vector<16x16x32xbf16>
    %73 = vector.shape_cast %72 : vector<16x16x32xbf16> to vector<256x32xbf16>
    %c4 = arith.constant 4 : index
    %c0_36 = arith.constant 0 : index
    %c0_37 = arith.constant 0 : index
    %74 = vector.load %arg7[%c4, %c0_36, %c0_37] : memref<9x32x32xbf16, #tpu.memory_space<vmem>>, vector<1x32x32xbf16>
    %75 = vector.shape_cast %74 : vector<1x32x32xbf16> to vector<32x32xbf16>
    %cst_38 = arith.constant dense<0.000000e+00> : vector<256x32xf32>
    %76 = tpu.matmul %73, %75, %cst_38 {dimension_numbers = #tpu.dot_dimension_numbers<[1], [0], [0], [1], [0, 0, 1, 1], [], []>} : vector<256x32xbf16>, vector<32x32xbf16>, vector<256x32xf32> -> vector<256x32xf32>
    %77 = arith.addf %71, %76 : vector<256x32xf32>
    %78 = vector.extract_strided_slice %44 {offsets = [2, 4, 0], sizes = [16, 16, 32], strides = [1, 1, 1]} : vector<20x20x32xbf16> to vector<16x16x32xbf16>
    %79 = vector.shape_cast %78 : vector<16x16x32xbf16> to vector<256x32xbf16>
    %c5 = arith.constant 5 : index
    %c0_39 = arith.constant 0 : index
    %c0_40 = arith.constant 0 : index
    %80 = vector.load %arg7[%c5, %c0_39, %c0_40] : memref<9x32x32xbf16, #tpu.memory_space<vmem>>, vector<1x32x32xbf16>
    %81 = vector.shape_cast %80 : vector<1x32x32xbf16> to vector<32x32xbf16>
    %cst_41 = arith.constant dense<0.000000e+00> : vector<256x32xf32>
    %82 = tpu.matmul %79, %81, %cst_41 {dimension_numbers = #tpu.dot_dimension_numbers<[1], [0], [0], [1], [0, 0, 1, 1], [], []>} : vector<256x32xbf16>, vector<32x32xbf16>, vector<256x32xf32> -> vector<256x32xf32>
    %83 = arith.addf %77, %82 : vector<256x32xf32>
    %84 = vector.extract_strided_slice %44 {offsets = [4, 0, 0], sizes = [16, 16, 32], strides = [1, 1, 1]} : vector<20x20x32xbf16> to vector<16x16x32xbf16>
    %85 = vector.shape_cast %84 : vector<16x16x32xbf16> to vector<256x32xbf16>
    %c6 = arith.constant 6 : index
    %c0_42 = arith.constant 0 : index
    %c0_43 = arith.constant 0 : index
    %86 = vector.load %arg7[%c6, %c0_42, %c0_43] : memref<9x32x32xbf16, #tpu.memory_space<vmem>>, vector<1x32x32xbf16>
    %87 = vector.shape_cast %86 : vector<1x32x32xbf16> to vector<32x32xbf16>
    %cst_44 = arith.constant dense<0.000000e+00> : vector<256x32xf32>
    %88 = tpu.matmul %85, %87, %cst_44 {dimension_numbers = #tpu.dot_dimension_numbers<[1], [0], [0], [1], [0, 0, 1, 1], [], []>} : vector<256x32xbf16>, vector<32x32xbf16>, vector<256x32xf32> -> vector<256x32xf32>
    %89 = arith.addf %83, %88 : vector<256x32xf32>
    %90 = vector.extract_strided_slice %44 {offsets = [4, 2, 0], sizes = [16, 16, 32], strides = [1, 1, 1]} : vector<20x20x32xbf16> to vector<16x16x32xbf16>
    %91 = vector.shape_cast %90 : vector<16x16x32xbf16> to vector<256x32xbf16>
    %c7 = arith.constant 7 : index
    %c0_45 = arith.constant 0 : index
    %c0_46 = arith.constant 0 : index
    %92 = vector.load %arg7[%c7, %c0_45, %c0_46] : memref<9x32x32xbf16, #tpu.memory_space<vmem>>, vector<1x32x32xbf16>
    %93 = vector.shape_cast %92 : vector<1x32x32xbf16> to vector<32x32xbf16>
    %cst_47 = arith.constant dense<0.000000e+00> : vector<256x32xf32>
    %94 = tpu.matmul %91, %93, %cst_47 {dimension_numbers = #tpu.dot_dimension_numbers<[1], [0], [0], [1], [0, 0, 1, 1], [], []>} : vector<256x32xbf16>, vector<32x32xbf16>, vector<256x32xf32> -> vector<256x32xf32>
    %95 = arith.addf %89, %94 : vector<256x32xf32>
    %96 = vector.extract_strided_slice %44 {offsets = [4, 4, 0], sizes = [16, 16, 32], strides = [1, 1, 1]} : vector<20x20x32xbf16> to vector<16x16x32xbf16>
    %97 = vector.shape_cast %96 : vector<16x16x32xbf16> to vector<256x32xbf16>
    %c8 = arith.constant 8 : index
    %c0_48 = arith.constant 0 : index
    %c0_49 = arith.constant 0 : index
    %98 = vector.load %arg7[%c8, %c0_48, %c0_49] : memref<9x32x32xbf16, #tpu.memory_space<vmem>>, vector<1x32x32xbf16>
    %99 = vector.shape_cast %98 : vector<1x32x32xbf16> to vector<32x32xbf16>
    %cst_50 = arith.constant dense<0.000000e+00> : vector<256x32xf32>
    %100 = tpu.matmul %97, %99, %cst_50 {dimension_numbers = #tpu.dot_dimension_numbers<[1], [0], [0], [1], [0, 0, 1, 1], [], []>} : vector<256x32xbf16>, vector<32x32xbf16>, vector<256x32xf32> -> vector<256x32xf32>
    %101 = arith.addf %95, %100 : vector<256x32xf32>
    %102 = arith.truncf %101 : vector<256x32xf32> to vector<256x32xbf16>
    %103 = vector.shape_cast %102 : vector<256x32xbf16> to vector<1x16x16x32xbf16>
    %c0_51 = arith.constant 0 : index
    %c0_52 = arith.constant 0 : index
    %c0_53 = arith.constant 0 : index
    %c0_54 = arith.constant 0 : index
    %104 = vector.load %arg9[%c0_51, %c0_52, %c0_53, %c0_54] : memref<1x16x16x32xbf16, #tpu.memory_space<vmem>>, vector<1x16x16x32xbf16>
    tpu.vector_store %arg9[%c0_51, %c0_52, %c0_53, %c0_54], %103 {strides = array<i32>} : memref<1x16x16x32xbf16, #tpu.memory_space<vmem>>, vector<1x16x16x32xbf16>,
    %105 = arith.extf %102 : vector<256x32xbf16> to vector<256x32xf32>
    %cst_55 = arith.constant dense<0.000000e+00> : vector<32xf32>
    %106 = vector.multi_reduction <add>, %105, %cst_55 [0] : vector<256x32xf32> to vector<32xf32>
    %107 = vector.shape_cast %106 : vector<32xf32> to vector<1x32xf32>
    %108 = arith.mulf %105, %105 : vector<256x32xf32>
    %cst_56 = arith.constant dense<0.000000e+00> : vector<32xf32>
    %109 = vector.multi_reduction <add>, %108, %cst_56 [0] : vector<256x32xf32> to vector<32xf32>
    %110 = vector.shape_cast %109 : vector<32xf32> to vector<1x32xf32>
    %111 = tpu.concatenate %107, %110 in 0 : vector<1x32xf32>, vector<1x32xf32> -> vector<2x32xf32>
    %112 = vector.shape_cast %111 : vector<2x32xf32> to vector<1x1x2x32xf32>
    %c0_57 = arith.constant 0 : index
    %c0_58 = arith.constant 0 : index
    %c0_59 = arith.constant 0 : index
    %c0_60 = arith.constant 0 : index
    %113 = vector.load %arg10[%c0_57, %c0_58, %c0_59, %c0_60] : memref<1x1x2x32xf32, #tpu.memory_space<vmem>>, vector<1x1x2x32xf32>
    tpu.vector_store %arg10[%c0_57, %c0_58, %c0_59, %c0_60], %112 {strides = array<i32>} : memref<1x1x2x32xf32, #tpu.memory_space<vmem>>, vector<1x1x2x32xf32>,
    return
  }
  func.func @transform_0(%arg0: i32, %arg1: i32) -> (i32, i32, i32, i32) {
    %c8_i32 = arith.constant 8 : i32
    %0 = arith.muli %arg1, %c8_i32 : i32
    %c1_i32 = arith.constant 1 : i32
    %1 = arith.subi %0, %c1_i32 : i32
    %c0_i32 = arith.constant 0 : i32
    %2 = arith.maxsi %1, %c0_i32 : i32
    %c0_i32_0 = arith.constant 0 : i32
    %c0_i32_1 = arith.constant 0 : i32
    %c0_i32_2 = arith.constant 0 : i32
    return %arg0, %2, %c0_i32_0, %c0_i32_1 : i32, i32, i32, i32
  }
  func.func @transform_1(%arg0: i32, %arg1: i32) -> (i32, i32, i32, i32) {
    %c0_i32 = arith.constant 0 : i32
    %c0_i32_0 = arith.constant 0 : i32
    %c0_i32_1 = arith.constant 0 : i32
    return %arg0, %arg1, %c0_i32, %c0_i32_0 : i32, i32, i32, i32
  }
  func.func @transform_2(%arg0: i32, %arg1: i32) -> (i32, i32, i32, i32) {
    %c1_i32 = arith.constant 1 : i32
    %0 = arith.addi %arg1, %c1_i32 : i32
    %c8_i32 = arith.constant 8 : i32
    %1 = arith.muli %0, %c8_i32 : i32
    %c7_i32 = arith.constant 7 : i32
    %2 = arith.minsi %1, %c7_i32 : i32
    %c0_i32 = arith.constant 0 : i32
    %c0_i32_0 = arith.constant 0 : i32
    %c0_i32_1 = arith.constant 0 : i32
    return %arg0, %2, %c0_i32, %c0_i32_0 : i32, i32, i32, i32
  }
  func.func @transform_3(%arg0: i32, %arg1: i32) -> (i32, i32, i32) {
    %c0_i32 = arith.constant 0 : i32
    %c0_i32_0 = arith.constant 0 : i32
    %c0_i32_1 = arith.constant 0 : i32
    return %arg0, %c0_i32, %c0_i32_0 : i32, i32, i32
  }
  func.func @transform_4(%arg0: i32, %arg1: i32) -> (i32, i32, i32) {
    %c0_i32 = arith.constant 0 : i32
    %c0_i32_0 = arith.constant 0 : i32
    %c0_i32_1 = arith.constant 0 : i32
    return %arg0, %c0_i32, %c0_i32_0 : i32, i32, i32
  }
  func.func @transform_5(%arg0: i32, %arg1: i32) -> (i32, i32, i32) {
    %c0_i32 = arith.constant 0 : i32
    %c0_i32_0 = arith.constant 0 : i32
    %c0_i32_1 = arith.constant 0 : i32
    %c0_i32_2 = arith.constant 0 : i32
    return %c0_i32, %c0_i32_0, %c0_i32_1 : i32, i32, i32
  }
  func.func @transform_6(%arg0: i32, %arg1: i32) -> (i32, i32) {
    %c0_i32 = arith.constant 0 : i32
    %c0_i32_0 = arith.constant 0 : i32
    %c0_i32_1 = arith.constant 0 : i32
    return %c0_i32, %c0_i32_0 : i32, i32
  }
  func.func @transform_7(%arg0: i32, %arg1: i32) -> (i32, i32, i32, i32) {
    %c0_i32 = arith.constant 0 : i32
    %c0_i32_0 = arith.constant 0 : i32
    %c0_i32_1 = arith.constant 0 : i32
    return %arg0, %arg1, %c0_i32, %c0_i32_0 : i32, i32, i32, i32
  }
  func.func @transform_8(%arg0: i32, %arg1: i32) -> (i32, i32, i32, i32) {
    %c0_i32 = arith.constant 0 : i32
    %c0_i32_0 = arith.constant 0 : i32
    %c0_i32_1 = arith.constant 0 : i32
    return %arg0, %arg1, %c0_i32, %c0_i32_0 : i32, i32, i32, i32
  }
}

module attributes {stable_mosaic.version = 11 : i64} {
  func.func @_conv_gn_stats_kernel(%arg0: i32, %arg1: i32, %arg2: memref<1x2x16x4xbf16, #tpu.memory_space<vmem>>, %arg3: memref<1x16x16x4xbf16, #tpu.memory_space<vmem>>, %arg4: memref<1x2x16x4xbf16, #tpu.memory_space<vmem>>, %arg5: memref<9x4x32xbf16, #tpu.memory_space<vmem>>, %arg6: memref<1x32xf32, #tpu.memory_space<vmem>>, %arg7: memref<1x16x16x32xbf16, #tpu.memory_space<vmem>>, %arg8: memref<1x1x2x32xf32, #tpu.memory_space<vmem>>) attributes {dimension_semantics = [#tpu.dimension_semantics<parallel>, #tpu.dimension_semantics<parallel>], iteration_bounds = array<i64: 2, 1>, scalar_prefetch = 0 : i64, scratch_operands = 0 : i64, tpu.core_type = #tpu.core_type<tc>, window_params = [{transform_indices = @transform_0, window_bounds = array<i64: 1, 2, 16, 4>}, {transform_indices = @transform_1, window_bounds = array<i64: 1, 16, 16, 4>}, {transform_indices = @transform_2, window_bounds = array<i64: 1, 2, 16, 4>}, {pipeline_mode = #tpu.pipeline_mode<synchronous>, transform_indices = @transform_3, window_bounds = array<i64: 9, 4, 32>}, {pipeline_mode = #tpu.pipeline_mode<synchronous>, transform_indices = @transform_4, window_bounds = array<i64: 1, 32>}, {transform_indices = @transform_5, window_bounds = array<i64: 1, 16, 16, 32>}, {transform_indices = @transform_6, window_bounds = array<i64: 1, 1, 2, 32>}]} {
    %c0_i32 = arith.constant 0 : i32
    %0 = arith.cmpi sgt, %arg1, %c0_i32 : i32
    %c0_i32_0 = arith.constant 0 : i32
    %1 = arith.cmpi slt, %arg1, %c0_i32_0 : i32
    %c0 = arith.constant 0 : index
    %c0_1 = arith.constant 0 : index
    %c0_2 = arith.constant 0 : index
    %c0_3 = arith.constant 0 : index
    %2 = vector.load %arg2[%c0, %c0_1, %c0_2, %c0_3] : memref<1x2x16x4xbf16, #tpu.memory_space<vmem>>, vector<1x2x16x4xbf16>
    %3 = vector.shape_cast %2 : vector<1x2x16x4xbf16> to vector<2x16x4xbf16>
    %4 = arith.extui %0 : i1 to i32
    %5 = arith.sitofp %4 : i32 to f32
    %6 = arith.truncf %5 : f32 to bf16
    %7 = vector.broadcast %6 : bf16 to vector<2x16x4xbf16>
    %8 = arith.mulf %3, %7 : vector<2x16x4xbf16>
    %c0_4 = arith.constant 0 : index
    %c0_5 = arith.constant 0 : index
    %c0_6 = arith.constant 0 : index
    %c0_7 = arith.constant 0 : index
    %9 = vector.load %arg3[%c0_4, %c0_5, %c0_6, %c0_7] : memref<1x16x16x4xbf16, #tpu.memory_space<vmem>>, vector<1x16x16x4xbf16>
    %10 = vector.shape_cast %9 : vector<1x16x16x4xbf16> to vector<16x16x4xbf16>
    %c0_8 = arith.constant 0 : index
    %c0_9 = arith.constant 0 : index
    %c0_10 = arith.constant 0 : index
    %c0_11 = arith.constant 0 : index
    %11 = vector.load %arg4[%c0_8, %c0_9, %c0_10, %c0_11] : memref<1x2x16x4xbf16, #tpu.memory_space<vmem>>, vector<1x2x16x4xbf16>
    %12 = vector.shape_cast %11 : vector<1x2x16x4xbf16> to vector<2x16x4xbf16>
    %13 = arith.extui %1 : i1 to i32
    %14 = arith.sitofp %13 : i32 to f32
    %15 = arith.truncf %14 : f32 to bf16
    %16 = vector.broadcast %15 : bf16 to vector<2x16x4xbf16>
    %17 = arith.mulf %12, %16 : vector<2x16x4xbf16>
    %18 = tpu.concatenate %8, %10, %17 in 0 : vector<2x16x4xbf16>, vector<16x16x4xbf16>, vector<2x16x4xbf16> -> vector<20x16x4xbf16>
    %cst = arith.constant 0.000000e+00 : bf16
    %19 = vector.broadcast %cst : bf16 to vector<20x2x4xbf16>
    %20 = tpu.concatenate %19, %18, %19 in 1 : vector<20x2x4xbf16>, vector<20x16x4xbf16>, vector<20x2x4xbf16> -> vector<20x20x4xbf16>
    %c0_12 = arith.constant 0 : index
    %c0_13 = arith.constant 0 : index
    %21 = vector.load %arg6[%c0_12, %c0_13] : memref<1x32xf32, #tpu.memory_space<vmem>>, vector<1x32xf32>
    %22 = vector.shape_cast %21 : vector<1x32xf32> to vector<1x32xf32>
    %23 = vector.broadcast %22 : vector<1x32xf32> to vector<256x32xf32>
    %24 = vector.extract_strided_slice %20 {offsets = [0, 0, 0], sizes = [16, 16, 4], strides = [1, 1, 1]} : vector<20x20x4xbf16> to vector<16x16x4xbf16>
    %25 = vector.shape_cast %24 : vector<16x16x4xbf16> to vector<256x4xbf16>
    %c0_14 = arith.constant 0 : index
    %c0_15 = arith.constant 0 : index
    %c0_16 = arith.constant 0 : index
    %26 = vector.load %arg5[%c0_14, %c0_15, %c0_16] : memref<9x4x32xbf16, #tpu.memory_space<vmem>>, vector<1x4x32xbf16>
    %27 = vector.shape_cast %26 : vector<1x4x32xbf16> to vector<4x32xbf16>
    %cst_17 = arith.constant dense<0.000000e+00> : vector<256x32xf32>
    %28 = tpu.matmul %25, %27, %cst_17 {dimension_numbers = #tpu.dot_dimension_numbers<[1], [0], [0], [1], [0, 0, 1, 1], [], []>} : vector<256x4xbf16>, vector<4x32xbf16>, vector<256x32xf32> -> vector<256x32xf32>
    %29 = arith.addf %23, %28 : vector<256x32xf32>
    %30 = vector.extract_strided_slice %20 {offsets = [0, 2, 0], sizes = [16, 16, 4], strides = [1, 1, 1]} : vector<20x20x4xbf16> to vector<16x16x4xbf16>
    %31 = vector.shape_cast %30 : vector<16x16x4xbf16> to vector<256x4xbf16>
    %c1 = arith.constant 1 : index
    %c0_18 = arith.constant 0 : index
    %c0_19 = arith.constant 0 : index
    %32 = vector.load %arg5[%c1, %c0_18, %c0_19] : memref<9x4x32xbf16, #tpu.memory_space<vmem>>, vector<1x4x32xbf16>
    %33 = vector.shape_cast %32 : vector<1x4x32xbf16> to vector<4x32xbf16>
    %cst_20 = arith.constant dense<0.000000e+00> : vector<256x32xf32>
    %34 = tpu.matmul %31, %33, %cst_20 {dimension_numbers = #tpu.dot_dimension_numbers<[1], [0], [0], [1], [0, 0, 1, 1], [], []>} : vector<256x4xbf16>, vector<4x32xbf16>, vector<256x32xf32> -> vector<256x32xf32>
    %35 = arith.addf %29, %34 : vector<256x32xf32>
    %36 = vector.extract_strided_slice %20 {offsets = [0, 4, 0], sizes = [16, 16, 4], strides = [1, 1, 1]} : vector<20x20x4xbf16> to vector<16x16x4xbf16>
    %37 = vector.shape_cast %36 : vector<16x16x4xbf16> to vector<256x4xbf16>
    %c2 = arith.constant 2 : index
    %c0_21 = arith.constant 0 : index
    %c0_22 = arith.constant 0 : index
    %38 = vector.load %arg5[%c2, %c0_21, %c0_22] : memref<9x4x32xbf16, #tpu.memory_space<vmem>>, vector<1x4x32xbf16>
    %39 = vector.shape_cast %38 : vector<1x4x32xbf16> to vector<4x32xbf16>
    %cst_23 = arith.constant dense<0.000000e+00> : vector<256x32xf32>
    %40 = tpu.matmul %37, %39, %cst_23 {dimension_numbers = #tpu.dot_dimension_numbers<[1], [0], [0], [1], [0, 0, 1, 1], [], []>} : vector<256x4xbf16>, vector<4x32xbf16>, vector<256x32xf32> -> vector<256x32xf32>
    %41 = arith.addf %35, %40 : vector<256x32xf32>
    %42 = vector.extract_strided_slice %20 {offsets = [2, 0, 0], sizes = [16, 16, 4], strides = [1, 1, 1]} : vector<20x20x4xbf16> to vector<16x16x4xbf16>
    %43 = vector.shape_cast %42 : vector<16x16x4xbf16> to vector<256x4xbf16>
    %c3 = arith.constant 3 : index
    %c0_24 = arith.constant 0 : index
    %c0_25 = arith.constant 0 : index
    %44 = vector.load %arg5[%c3, %c0_24, %c0_25] : memref<9x4x32xbf16, #tpu.memory_space<vmem>>, vector<1x4x32xbf16>
    %45 = vector.shape_cast %44 : vector<1x4x32xbf16> to vector<4x32xbf16>
    %cst_26 = arith.constant dense<0.000000e+00> : vector<256x32xf32>
    %46 = tpu.matmul %43, %45, %cst_26 {dimension_numbers = #tpu.dot_dimension_numbers<[1], [0], [0], [1], [0, 0, 1, 1], [], []>} : vector<256x4xbf16>, vector<4x32xbf16>, vector<256x32xf32> -> vector<256x32xf32>
    %47 = arith.addf %41, %46 : vector<256x32xf32>
    %48 = vector.extract_strided_slice %20 {offsets = [2, 2, 0], sizes = [16, 16, 4], strides = [1, 1, 1]} : vector<20x20x4xbf16> to vector<16x16x4xbf16>
    %49 = vector.shape_cast %48 : vector<16x16x4xbf16> to vector<256x4xbf16>
    %c4 = arith.constant 4 : index
    %c0_27 = arith.constant 0 : index
    %c0_28 = arith.constant 0 : index
    %50 = vector.load %arg5[%c4, %c0_27, %c0_28] : memref<9x4x32xbf16, #tpu.memory_space<vmem>>, vector<1x4x32xbf16>
    %51 = vector.shape_cast %50 : vector<1x4x32xbf16> to vector<4x32xbf16>
    %cst_29 = arith.constant dense<0.000000e+00> : vector<256x32xf32>
    %52 = tpu.matmul %49, %51, %cst_29 {dimension_numbers = #tpu.dot_dimension_numbers<[1], [0], [0], [1], [0, 0, 1, 1], [], []>} : vector<256x4xbf16>, vector<4x32xbf16>, vector<256x32xf32> -> vector<256x32xf32>
    %53 = arith.addf %47, %52 : vector<256x32xf32>
    %54 = vector.extract_strided_slice %20 {offsets = [2, 4, 0], sizes = [16, 16, 4], strides = [1, 1, 1]} : vector<20x20x4xbf16> to vector<16x16x4xbf16>
    %55 = vector.shape_cast %54 : vector<16x16x4xbf16> to vector<256x4xbf16>
    %c5 = arith.constant 5 : index
    %c0_30 = arith.constant 0 : index
    %c0_31 = arith.constant 0 : index
    %56 = vector.load %arg5[%c5, %c0_30, %c0_31] : memref<9x4x32xbf16, #tpu.memory_space<vmem>>, vector<1x4x32xbf16>
    %57 = vector.shape_cast %56 : vector<1x4x32xbf16> to vector<4x32xbf16>
    %cst_32 = arith.constant dense<0.000000e+00> : vector<256x32xf32>
    %58 = tpu.matmul %55, %57, %cst_32 {dimension_numbers = #tpu.dot_dimension_numbers<[1], [0], [0], [1], [0, 0, 1, 1], [], []>} : vector<256x4xbf16>, vector<4x32xbf16>, vector<256x32xf32> -> vector<256x32xf32>
    %59 = arith.addf %53, %58 : vector<256x32xf32>
    %60 = vector.extract_strided_slice %20 {offsets = [4, 0, 0], sizes = [16, 16, 4], strides = [1, 1, 1]} : vector<20x20x4xbf16> to vector<16x16x4xbf16>
    %61 = vector.shape_cast %60 : vector<16x16x4xbf16> to vector<256x4xbf16>
    %c6 = arith.constant 6 : index
    %c0_33 = arith.constant 0 : index
    %c0_34 = arith.constant 0 : index
    %62 = vector.load %arg5[%c6, %c0_33, %c0_34] : memref<9x4x32xbf16, #tpu.memory_space<vmem>>, vector<1x4x32xbf16>
    %63 = vector.shape_cast %62 : vector<1x4x32xbf16> to vector<4x32xbf16>
    %cst_35 = arith.constant dense<0.000000e+00> : vector<256x32xf32>
    %64 = tpu.matmul %61, %63, %cst_35 {dimension_numbers = #tpu.dot_dimension_numbers<[1], [0], [0], [1], [0, 0, 1, 1], [], []>} : vector<256x4xbf16>, vector<4x32xbf16>, vector<256x32xf32> -> vector<256x32xf32>
    %65 = arith.addf %59, %64 : vector<256x32xf32>
    %66 = vector.extract_strided_slice %20 {offsets = [4, 2, 0], sizes = [16, 16, 4], strides = [1, 1, 1]} : vector<20x20x4xbf16> to vector<16x16x4xbf16>
    %67 = vector.shape_cast %66 : vector<16x16x4xbf16> to vector<256x4xbf16>
    %c7 = arith.constant 7 : index
    %c0_36 = arith.constant 0 : index
    %c0_37 = arith.constant 0 : index
    %68 = vector.load %arg5[%c7, %c0_36, %c0_37] : memref<9x4x32xbf16, #tpu.memory_space<vmem>>, vector<1x4x32xbf16>
    %69 = vector.shape_cast %68 : vector<1x4x32xbf16> to vector<4x32xbf16>
    %cst_38 = arith.constant dense<0.000000e+00> : vector<256x32xf32>
    %70 = tpu.matmul %67, %69, %cst_38 {dimension_numbers = #tpu.dot_dimension_numbers<[1], [0], [0], [1], [0, 0, 1, 1], [], []>} : vector<256x4xbf16>, vector<4x32xbf16>, vector<256x32xf32> -> vector<256x32xf32>
    %71 = arith.addf %65, %70 : vector<256x32xf32>
    %72 = vector.extract_strided_slice %20 {offsets = [4, 4, 0], sizes = [16, 16, 4], strides = [1, 1, 1]} : vector<20x20x4xbf16> to vector<16x16x4xbf16>
    %73 = vector.shape_cast %72 : vector<16x16x4xbf16> to vector<256x4xbf16>
    %c8 = arith.constant 8 : index
    %c0_39 = arith.constant 0 : index
    %c0_40 = arith.constant 0 : index
    %74 = vector.load %arg5[%c8, %c0_39, %c0_40] : memref<9x4x32xbf16, #tpu.memory_space<vmem>>, vector<1x4x32xbf16>
    %75 = vector.shape_cast %74 : vector<1x4x32xbf16> to vector<4x32xbf16>
    %cst_41 = arith.constant dense<0.000000e+00> : vector<256x32xf32>
    %76 = tpu.matmul %73, %75, %cst_41 {dimension_numbers = #tpu.dot_dimension_numbers<[1], [0], [0], [1], [0, 0, 1, 1], [], []>} : vector<256x4xbf16>, vector<4x32xbf16>, vector<256x32xf32> -> vector<256x32xf32>
    %77 = arith.addf %71, %76 : vector<256x32xf32>
    %78 = arith.truncf %77 : vector<256x32xf32> to vector<256x32xbf16>
    %79 = vector.shape_cast %78 : vector<256x32xbf16> to vector<1x16x16x32xbf16>
    %c0_42 = arith.constant 0 : index
    %c0_43 = arith.constant 0 : index
    %c0_44 = arith.constant 0 : index
    %c0_45 = arith.constant 0 : index
    %80 = vector.load %arg7[%c0_42, %c0_43, %c0_44, %c0_45] : memref<1x16x16x32xbf16, #tpu.memory_space<vmem>>, vector<1x16x16x32xbf16>
    tpu.vector_store %arg7[%c0_42, %c0_43, %c0_44, %c0_45], %79 {strides = array<i32>} : memref<1x16x16x32xbf16, #tpu.memory_space<vmem>>, vector<1x16x16x32xbf16>,
    %81 = arith.extf %78 : vector<256x32xbf16> to vector<256x32xf32>
    %cst_46 = arith.constant dense<0.000000e+00> : vector<32xf32>
    %82 = vector.multi_reduction <add>, %81, %cst_46 [0] : vector<256x32xf32> to vector<32xf32>
    %83 = vector.shape_cast %82 : vector<32xf32> to vector<1x32xf32>
    %84 = arith.mulf %81, %81 : vector<256x32xf32>
    %cst_47 = arith.constant dense<0.000000e+00> : vector<32xf32>
    %85 = vector.multi_reduction <add>, %84, %cst_47 [0] : vector<256x32xf32> to vector<32xf32>
    %86 = vector.shape_cast %85 : vector<32xf32> to vector<1x32xf32>
    %87 = tpu.concatenate %83, %86 in 0 : vector<1x32xf32>, vector<1x32xf32> -> vector<2x32xf32>
    %88 = vector.shape_cast %87 : vector<2x32xf32> to vector<1x1x2x32xf32>
    %c0_48 = arith.constant 0 : index
    %c0_49 = arith.constant 0 : index
    %c0_50 = arith.constant 0 : index
    %c0_51 = arith.constant 0 : index
    %89 = vector.load %arg8[%c0_48, %c0_49, %c0_50, %c0_51] : memref<1x1x2x32xf32, #tpu.memory_space<vmem>>, vector<1x1x2x32xf32>
    tpu.vector_store %arg8[%c0_48, %c0_49, %c0_50, %c0_51], %88 {strides = array<i32>} : memref<1x1x2x32xf32, #tpu.memory_space<vmem>>, vector<1x1x2x32xf32>,
    return
  }
  func.func @transform_0(%arg0: i32, %arg1: i32) -> (i32, i32, i32, i32) {
    %c8_i32 = arith.constant 8 : i32
    %0 = arith.muli %arg1, %c8_i32 : i32
    %c1_i32 = arith.constant 1 : i32
    %1 = arith.subi %0, %c1_i32 : i32
    %c0_i32 = arith.constant 0 : i32
    %2 = arith.maxsi %1, %c0_i32 : i32
    %c0_i32_0 = arith.constant 0 : i32
    %c0_i32_1 = arith.constant 0 : i32
    %c0_i32_2 = arith.constant 0 : i32
    return %arg0, %2, %c0_i32_0, %c0_i32_1 : i32, i32, i32, i32
  }
  func.func @transform_1(%arg0: i32, %arg1: i32) -> (i32, i32, i32, i32) {
    %c0_i32 = arith.constant 0 : i32
    %c0_i32_0 = arith.constant 0 : i32
    %c0_i32_1 = arith.constant 0 : i32
    return %arg0, %arg1, %c0_i32, %c0_i32_0 : i32, i32, i32, i32
  }
  func.func @transform_2(%arg0: i32, %arg1: i32) -> (i32, i32, i32, i32) {
    %c1_i32 = arith.constant 1 : i32
    %0 = arith.addi %arg1, %c1_i32 : i32
    %c8_i32 = arith.constant 8 : i32
    %1 = arith.muli %0, %c8_i32 : i32
    %c7_i32 = arith.constant 7 : i32
    %2 = arith.minsi %1, %c7_i32 : i32
    %c0_i32 = arith.constant 0 : i32
    %c0_i32_0 = arith.constant 0 : i32
    %c0_i32_1 = arith.constant 0 : i32
    return %arg0, %2, %c0_i32, %c0_i32_0 : i32, i32, i32, i32
  }
  func.func @transform_3(%arg0: i32, %arg1: i32) -> (i32, i32, i32) {
    %c0_i32 = arith.constant 0 : i32
    %c0_i32_0 = arith.constant 0 : i32
    %c0_i32_1 = arith.constant 0 : i32
    %c0_i32_2 = arith.constant 0 : i32
    return %c0_i32, %c0_i32_0, %c0_i32_1 : i32, i32, i32
  }
  func.func @transform_4(%arg0: i32, %arg1: i32) -> (i32, i32) {
    %c0_i32 = arith.constant 0 : i32
    %c0_i32_0 = arith.constant 0 : i32
    %c0_i32_1 = arith.constant 0 : i32
    return %c0_i32, %c0_i32_0 : i32, i32
  }
  func.func @transform_5(%arg0: i32, %arg1: i32) -> (i32, i32, i32, i32) {
    %c0_i32 = arith.constant 0 : i32
    %c0_i32_0 = arith.constant 0 : i32
    %c0_i32_1 = arith.constant 0 : i32
    return %arg0, %arg1, %c0_i32, %c0_i32_0 : i32, i32, i32, i32
  }
  func.func @transform_6(%arg0: i32, %arg1: i32) -> (i32, i32, i32, i32) {
    %c0_i32 = arith.constant 0 : i32
    %c0_i32_0 = arith.constant 0 : i32
    %c0_i32_1 = arith.constant 0 : i32
    return %arg0, %arg1, %c0_i32, %c0_i32_0 : i32, i32, i32, i32
  }
}

</mosaic_0001>

<llo_original>
// kernel: rru_double_conv.2
$region0: #{rru_double_conv.2}
  #allocation0 [shape = 'u32[]', space=smem, size = 0x4, offset = 0x4, fixed_abs, tag = 'smem constant byte address 0x4 - core index']
  #allocation1 [shape = 'u32[144,128]{1,0:T(1,128)}', space=vmem, size = 0x12000, scoped, tag = 'internal scratch']
  %s0 = inlined_call_operand.vmem [shape: bf16[2,16,16,4], index: 0, kind: input, shape index: {}, may-alias: {0,1,2}]
  %s1 = inlined_call_operand.vmem [shape: bf16[2,16,16,4], index: 1, kind: input, shape index: {}, may-alias: {0,1,2}]
  %s2 = inlined_call_operand.vmem [shape: bf16[2,16,16,4], index: 2, kind: input, shape index: {}, may-alias: {0,1,2}]
  %s3 = inlined_call_operand.vmem [shape: bf16[9,4,32], index: 3, kind: input, shape index: {}]
  %s4 = inlined_call_operand.vmem [shape: f32[1,32], index: 4, kind: input, shape index: {}]
  %s5 = inlined_call_operand.vmem [shape: bf16[2,16,16,32], index: 5, kind: output, shape index: {0}]
  %s6 = inlined_call_operand.vmem [shape: f32[2,1,2,32], index: 6, kind: output, shape index: {1}]
  %7 = xla_tuple %s5, %s6
  %s8 = sld [smem:[#allocation0]]
  $region61: #{rru_double_conv.2} parent=0
    _
  %s10 = ssub.s32 1, %s8
  %s11 = scalar_select 0, %s10, %s8
  loop: start=0, step=1, limit=4
  $region2: #{rru_double_conv.2} parent=0 // loop_pre_header
    _
  $region3: #{rru_double_conv.2} parent=0 // loop_header
    %s13 = sphi 0, %s17
    %p14 = scmp.ge.s32.totalorder %s13, 4
    %s20 = sphi 0, %s32
    %s21 = sphi 0, %s28
    %s22 = sphi 0, %s20
    %s23 = sphi 0, %s21
    %s24 = sphi 0, %s22
    %s25 = sphi 0, %s23
    %s45 = sphi 0, %s47
    %s48 = sphi 0, %s45
    %s49 = sphi 0, %s48
    %s65 = sphi 0, %s49
    %s73 = sphi 0, %s75
    %s76 = sphi 0, %s73
    %s77 = sphi 0, %s76
    %s93 = sphi 0, %s77
    %s109 = sphi 0, %s111
    %s112 = sphi 0, %s109
    %s113 = sphi 0, %s112
    %s129 = sphi 0, %s113
    %s133 = sphi 0, %s133
    %s135 = sphi 0, %s133
    %s136 = sphi 0, %s135
    %s150 = sphi 0, %s136
    %s154 = sphi 0, %s154
    %s156 = sphi 0, %s154
    %s157 = sphi 0, %s156
    %s171 = sphi 0, %s157
    %s179 = sphi 0, %s181
    %s182 = sphi 0, %s179
    %s183 = sphi 0, %s182
    %s199 = sphi 0, %s183
    %s207 = sphi 0, %s209
    %s210 = sphi 0, %s207
    %s211 = sphi 0, %s210
    %s227 = sphi 0, %s211
  $region4: #{rru_double_conv.2} parent=0 // loop_header_branch
    %16 = sbr.rel (%p14) target = $region8
  $region5: #{rru_double_conv.2} parent=0 // loop_body
    %s18 = ssub.s32 %s13, 1
    %s19 = ssub.s32 %s13, 2
    %s26 = sadd.s32 1, %s21
    %p27 = scmp.ge.s32.totalorder %s26, 1
    %s28 = scalar_select %p27, 0, %s26
    %s29 = sadd.s32 1, %s20
    %s30 = scalar_select %p27, %s29, %s20
    %p31 = scmp.ge.s32.totalorder %s30, 2
    %s32 = scalar_select %p31, 0, %s30
    %s33 = smul.u32 %s21, 8
    %s34 = ssub.s32 %s33, 1
    %p35 = scmp.gt.s32.totalorder %s34, 0
    %s36 = scalar_select %p35, %s34, 0
    %s37 = smul.u32 %s28, 8
    %s38 = ssub.s32 %s37, 1
    %p39 = scmp.gt.s32.totalorder %s38, 0
    %s40 = scalar_select %p39, %s38, 0
    %s41 = ssub.s32 %s20, %s32
    %s42 = ssub.s32 %s36, %s40
    %s43 = sor.u32 %s41, %s42
    %p44 = scmp.eq.s32.totalorder %s43, 0
    %s46 = sadd.s32 %s45, 1
    %s47 = scalar_select %p44, %s45, %s46
    %p50 = pneg %p44
    %p51 = scmp.eq.s32.totalorder %s13, 1
    %p52 = por %p50, %p51
    %p53 = scmp.ne.s32.totalorder %s45, %s48
    %p54 = scmp.eq.s32.totalorder %s13, 0
    %p55 = por %p53, %p54
    %p56 = scmp.ne.s32.totalorder %s45, %s48
    %p57 = scmp.eq.s32.totalorder %s18, 1
    %p58 = por %p56, %p57
    %p59 = scmp.ne.s32.totalorder %s48, %s49
    %p60 = scmp.eq.s32.totalorder %s18, 0
    %p61 = por %p59, %p60
    %p62 = scmp.ne.s32.totalorder %s48, %s49
    %p63 = scmp.eq.s32.totalorder %s19, 1
    %p64 = por %p62, %p63
    %p66 = scmp.ne.s32.totalorder %s49, %s65
    %p67 = scmp.eq.s32.totalorder %s19, 0
    %p68 = por %p66, %p67
    %s69 = ssub.s32 %s20, %s32
    %s70 = ssub.s32 %s21, %s28
    %s71 = sor.u32 %s69, %s70
    %p72 = scmp.eq.s32.totalorder %s71, 0
    %s74 = sadd.s32 %s73, 1
    %s75 = scalar_select %p72, %s73, %s74
    %p78 = pneg %p72
    %p79 = scmp.eq.s32.totalorder %s13, 1
    %p80 = por %p78, %p79
    %p81 = scmp.ne.s32.totalorder %s73, %s76
    %p82 = scmp.eq.s32.totalorder %s13, 0
    %p83 = por %p81, %p82
    %p84 = scmp.ne.s32.totalorder %s73, %s76
    %p85 = scmp.eq.s32.totalorder %s18, 1
    %p86 = por %p84, %p85
    %p87 = scmp.ne.s32.totalorder %s76, %s77
    %p88 = scmp.eq.s32.totalorder %s18, 0
    %p89 = por %p87, %p88
    %p90 = scmp.ne.s32.totalorder %s76, %s77
    %p91 = scmp.eq.s32.totalorder %s19, 1
    %p92 = por %p90, %p91
    %p94 = scmp.ne.s32.totalorder %s77, %s93
    %p95 = scmp.eq.s32.totalorder %s19, 0
    %p96 = por %p94, %p95
    %s97 = sadd.s32 %s21, 1
    %s98 = smul.u32 %s97, 8
    %p99 = scmp.lt.s32.totalorder %s98, 7
    %s100 = scalar_select %p99, %s98, 7
    %s101 = sadd.s32 %s28, 1
    %s102 = smul.u32 %s101, 8
    %p103 = scmp.lt.s32.totalorder %s102, 7
    %s104 = scalar_select %p103, %s102, 7
    %s105 = ssub.s32 %s20, %s32
    %s106 = ssub.s32 %s100, %s104
    %s107 = sor.u32 %s105, %s106
    %p108 = scmp.eq.s32.totalorder %s107, 0
    %s110 = sadd.s32 %s109, 1
    %s111 = scalar_select %p108, %s109, %s110
    %p114 = pneg %p108
    %p115 = scmp.eq.s32.totalorder %s13, 1
    %p116 = por %p114, %p115
    %p117 = scmp.ne.s32.totalorder %s109, %s112
    %p118 = scmp.eq.s32.totalorder %s13, 0
    %p119 = por %p117, %p118
    %p120 = scmp.ne.s32.totalorder %s109, %s112
    %p121 = scmp.eq.s32.totalorder %s18, 1
    %p122 = por %p120, %p121
    %p123 = scmp.ne.s32.totalorder %s112, %s113
    %p124 = scmp.eq.s32.totalorder %s18, 0
    %p125 = por %p123, %p124
    %p126 = scmp.ne.s32.totalorder %s112, %s113
    %p127 = scmp.eq.s32.totalorder %s19, 1
    %p128 = por %p126, %p127
    %p130 = scmp.ne.s32.totalorder %s113, %s129
    %p131 = scmp.eq.s32.totalorder %s19, 0
    %p132 = por %p130, %p131
    %s134 = sadd.s32 %s133, 1
    %p137 = scmp.eq.s32.totalorder %s13, 1
    %p138 = scmp.ne.s32.totalorder %s133, %s135
    %p139 = scmp.eq.s32.totalorder %s13, 0
    %p140 = por %p138, %p139
    %p141 = scmp.ne.s32.totalorder %s133, %s135
    %p142 = scmp.eq.s32.totalorder %s18, 1
    %p143 = por %p141, %p142
    %p144 = scmp.ne.s32.totalorder %s135, %s136
    %p145 = scmp.eq.s32.totalorder %s18, 0
    %p146 = por %p144, %p145
    %p147 = scmp.ne.s32.totalorder %s135, %s136
    %p148 = scmp.eq.s32.totalorder %s19, 1
    %p149 = por %p147, %p148
    %p151 = scmp.ne.s32.totalorder %s136, %s150
    %p152 = scmp.eq.s32.totalorder %s19, 0
    %p153 = por %p151, %p152
    %s155 = sadd.s32 %s154, 1
    %p158 = scmp.eq.s32.totalorder %s13, 1
    %p159 = scmp.ne.s32.totalorder %s154, %s156
    %p160 = scmp.eq.s32.totalorder %s13, 0
    %p161 = por %p159, %p160
    %p162 = scmp.ne.s32.totalorder %s154, %s156
    %p163 = scmp.eq.s32.totalorder %s18, 1
    %p164 = por %p162, %p163
    %p165 = scmp.ne.s32.totalorder %s156, %s157
    %p166 = scmp.eq.s32.totalorder %s18, 0
    %p167 = por %p165, %p166
    %p168 = scmp.ne.s32.totalorder %s156, %s157
    %p169 = scmp.eq.s32.totalorder %s19, 1
    %p170 = por %p168, %p169
    %p172 = scmp.ne.s32.totalorder %s157, %s171
    %p173 = scmp.eq.s32.totalorder %s19, 0
    %p174 = por %p172, %p173
    %s175 = ssub.s32 %s20, %s32
    %s176 = ssub.s32 %s21, %s28
    %s177 = sor.u32 %s175, %s176
    %p178 = scmp.eq.s32.totalorder %s177, 0
    %s180 = sadd.s32 %s179, 1
    %s181 = scalar_select %p178, %s179, %s180
    %p184 = pneg %p178
    %p185 = scmp.eq.s32.totalorder %s13, 1
    %p186 = por %p184, %p185
    %p187 = scmp.ne.s32.totalorder %s179, %s182
    %p188 = scmp.eq.s32.totalorder %s13, 0
    %p189 = por %p187, %p188
    %p190 = scmp.ne.s32.totalorder %s179, %s182
    %p191 = scmp.eq.s32.totalorder %s18, 1
    %p192 = por %p190, %p191
    %p193 = scmp.ne.s32.totalorder %s182, %s183
    %p194 = scmp.eq.s32.totalorder %s18, 0
    %p195 = por %p193, %p194
    %p196 = scmp.ne.s32.totalorder %s182, %s183
    %p197 = scmp.eq.s32.totalorder %s19, 1
    %p198 = por %p196, %p197
    %p200 = scmp.ne.s32.totalorder %s183, %s199
    %p201 = scmp.eq.s32.totalorder %s19, 0
    %p202 = por %p200, %p201
    %s203 = ssub.s32 %s20, %s32
    %s204 = ssub.s32 %s21, %s28
    %s205 = sor.u32 %s203, %s204
    %p206 = scmp.eq.s32.totalorder %s205, 0
    %s208 = sadd.s32 %s207, 1
    %s209 = scalar_select %p206, %s207, %s208
    %p212 = pneg %p206
    %p213 = scmp.eq.s32.totalorder %s13, 1
    %p214 = por %p212, %p213
    %p215 = scmp.ne.s32.totalorder %s207, %s210
    %p216 = scmp.eq.s32.totalorder %s13, 0
    %p217 = por %p215, %p216
    %p218 = scmp.ne.s32.totalorder %s207, %s210
    %p219 = scmp.eq.s32.totalorder %s18, 1
    %p220 = por %p218, %p219
    %p221 = scmp.ne.s32.totalorder %s210, %s211
    %p222 = scmp.eq.s32.totalorder %s18, 0
    %p223 = por %p221, %p222
    %p224 = scmp.ne.s32.totalorder %s210, %s211
    %p225 = scmp.eq.s32.totalorder %s19, 1
    %p226 = por %p224, %p225
    %p228 = scmp.ne.s32.totalorder %s211, %s227
    %p229 = scmp.eq.s32.totalorder %s19, 0
    %p230 = por %p228, %p229
    %p231 = scmp.le.s32.totalorder 1, %s13
    %p232 = scmp.lt.s32.totalorder %s13, 3
    %p233 = pnand %p231, %p232
    %p234 = pneg %p233
    // Predicated region
    $region9: #{rru_double_conv.2} parent=5 // pred_check
      _
    $region10: #{rru_double_conv.2} parent=5 // pred_check_branch
      %236 = sbr.rel (%p233) target = $region12
    $region11: #{rru_double_conv.2} parent=5 // pred_region
      %s237 = ssub.s32 %s13, 1
      // Predicated region
      $region13: #{rru_double_conv.2} parent=11 // pred_check
        %p238 = pneg %p146
      $region14: #{rru_double_conv.2} parent=11 // pred_check_branch
        %240 = sbr.rel (%p238) target = $region16
      $region15: #{rru_double_conv.2} parent=11 // pred_region
        _
      $region16: #{rru_double_conv.2} parent=11 // pred_fallthru
        _
      // Predicated region
      $region17: #{rru_double_conv.2} parent=11 // pred_check
        %p241 = pneg %p167
      $region18: #{rru_double_conv.2} parent=11 // pred_check_branch
        %243 = sbr.rel (%p241) target = $region20
      $region19: #{rru_double_conv.2} parent=11 // pred_region
        _
      $region20: #{rru_double_conv.2} parent=11 // pred_fallthru
        _
    $region12: #{rru_double_conv.2} parent=5 // pred_fallthru
      _
    %p244 = scmp.lt.s32.totalorder %s13, 2
    // Predicated region
    $region21: #{rru_double_conv.2} parent=5 // pred_check
      %p245 = pneg %p244
    $region22: #{rru_double_conv.2} parent=5 // pred_check_branch
      %247 = sbr.rel (%p245) target = $region24
    $region23: #{rru_double_conv.2} parent=5 // pred_region
      // Predicated region
      $region25: #{rru_double_conv.2} parent=23 // pred_check
        %p248 = pneg %p55
      $region26: #{rru_double_conv.2} parent=23 // pred_check_branch
        %250 = sbr.rel (%p248) target = $region28
      $region27: #{rru_double_conv.2} parent=23 // pred_region
        %s251 = smul.u32 %s21, 8
        %s252 = ssub.s32 %s251, 1
        %p253 = scmp.gt.s32.totalorder %s252, 0
        %s254 = scalar_select %p253, %s252, 0
        %s255 = smul.u32 2, %s254
        %p256 = scmp.lt.s32.totalorder %s20, 1
        %s257 = scalar_select %p256, %s20, 1
        %p258 = scmp.lt.s32.totalorder %s255, 15
        %s259 = scalar_select %p258, %s255, 15
        %s260 = smul.addr %s259, 2
        %s261 = smul.addr %s257, 32
        %s262 = sadd.s32 %s260, %s261
        %s263 = smul.addr %s262, 4
        %s264 = scalar_lea.vmem %s0, %s263
        %s265 = smul.u32 %s21, 8
        %s266 = ssub.s32 %s265, 1
        %p267 = scmp.gt.s32.totalorder %s266, 0
        %s268 = scalar_select %p267, %s266, 0
        %s269 = smul.u32 2, %s268
      $region28: #{rru_double_conv.2} parent=23 // pred_fallthru
        _
      // Predicated region
      $region29: #{rru_double_conv.2} parent=23 // pred_check
        %p270 = pneg %p83
      $region30: #{rru_double_conv.2} parent=23 // pred_check_branch
        %272 = sbr.rel (%p270) target = $region32
      $region31: #{rru_double_conv.2} parent=23 // pred_region
        %s273 = smul.u32 16, %s21
        %p274 = scmp.lt.s32.totalorder %s20, 1
        %s275 = scalar_select %p274, %s20, 1
        %p276 = scmp.lt.s32.totalorder %s273, 15
        %s277 = scalar_select %p276, %s273, 15
        %s278 = smul.addr %s277, 2
        %s279 = smul.addr %s275, 32
        %s280 = sadd.s32 %s278, %s279
        %s281 = smul.addr %s280, 4
        %s282 = scalar_lea.vmem %s1, %s281
        %s283 = smul.u32 16, %s21
      $region32: #{rru_double_conv.2} parent=23 // pred_fallthru
        _
      // Predicated region
      $region33: #{rru_double_conv.2} parent=23 // pred_check
        %p284 = pneg %p119
      $region34: #{rru_double_conv.2} parent=23 // pred_check_branch
        %286 = sbr.rel (%p284) target = $region36
      $region35: #{rru_double_conv.2} parent=23 // pred_region
        %s287 = sadd.s32 %s21, 1
        %s288 = smul.u32 %s287, 8
        %p289 = scmp.lt.s32.totalorder %s288, 7
        %s290 = scalar_select %p289, %s288, 7
        %s291 = smul.u32 2, %s290
        %p292 = scmp.lt.s32.totalorder %s20, 1
        %s293 = scalar_select %p292, %s20, 1
        %p294 = scmp.lt.s32.totalorder %s291, 15
        %s295 = scalar_select %p294, %s291, 15
        %s296 = smul.addr %s295, 2
        %s297 = smul.addr %s293, 32
        %s298 = sadd.s32 %s296, %s297
        %s299 = smul.addr %s298, 4
        %s300 = scalar_lea.vmem %s2, %s299
        %s301 = sadd.s32 %s21, 1
        %s302 = smul.u32 %s301, 8
        %p303 = scmp.lt.s32.totalorder %s302, 7
        %s304 = scalar_select %p303, %s302, 7
        %s305 = smul.u32 2, %s304
      $region36: #{rru_double_conv.2} parent=23 // pred_fallthru
        _
    $region24: #{rru_double_conv.2} parent=5 // pred_fallthru
      _
    %p306 = scmp.le.s32.totalorder 1, %s13
    %p307 = scmp.lt.s32.totalorder %s13, 3
    %p308 = pnand %p306, %p307
    %p309 = pneg %p308
    // Predicated region
    $region37: #{rru_double_conv.2} parent=5 // pred_check
      _
    $region38: #{rru_double_conv.2} parent=5 // pred_check_branch
      %311 = sbr.rel (%p308) target = $region40
    $region39: #{rru_double_conv.2} parent=5 // pred_region
      %s312 = ssub.s32 %s13, 1
      %s313 = smul.u32 %s23, 8
      %s314 = ssub.s32 %s313, 1
      %p315 = scmp.gt.s32.totalorder %s314, 0
      %s316 = scalar_select %p315, %s314, 0
      %s317 = smul.u32 2, %s316
      %p318 = scmp.lt.s32.totalorder %s22, 1
      %s319 = scalar_select %p318, %s22, 1
      %p320 = scmp.lt.s32.totalorder %s317, 15
      %s321 = scalar_select %p320, %s317, 15
      %s322 = smul.addr %s321, 2
      %s323 = smul.addr %s319, 32
      %s324 = sadd.s32 %s322, %s323
      %s325 = smul.addr %s324, 4
      %s326 = scalar_lea.vmem %s0, %s325
      %p327 = pneg %p61
      %p328 = pneg %p58
      %s329 = smul.u32 16, %s23
      %p330 = scmp.lt.s32.totalorder %s22, 1
      %s331 = scalar_select %p330, %s22, 1
      %p332 = scmp.lt.s32.totalorder %s329, 15
      %s333 = scalar_select %p332, %s329, 15
      %s334 = smul.addr %s333, 2
      %s335 = smul.addr %s331, 32
      %s336 = sadd.s32 %s334, %s335
      %s337 = smul.addr %s336, 4
      %s338 = scalar_lea.vmem %s1, %s337
      %p339 = pneg %p89
      %p340 = pneg %p86
      %s341 = sadd.s32 %s23, 1
      %s342 = smul.u32 %s341, 8
      %p343 = scmp.lt.s32.totalorder %s342, 7
      %s344 = scalar_select %p343, %s342, 7
      %s345 = smul.u32 2, %s344
      %p346 = scmp.lt.s32.totalorder %s22, 1
      %s347 = scalar_select %p346, %s22, 1
      %p348 = scmp.lt.s32.totalorder %s345, 15
      %s349 = scalar_select %p348, %s345, 15
      %s350 = smul.addr %s349, 2
      %s351 = smul.addr %s347, 32
      %s352 = sadd.s32 %s350, %s351
      %s353 = smul.addr %s352, 4
      %s354 = scalar_lea.vmem %s2, %s353
      %p355 = pneg %p125
      %p356 = pneg %p122
      %p357 = pneg %p146
      %p358 = pneg %p143
      %p359 = pneg %p167
      %p360 = pneg %p164
      %p361 = pneg %p195
      %p362 = pneg %p192
      %s363 = smul.u32 16, %s23
      %p364 = scmp.lt.s32.totalorder %s22, 1
      %s365 = scalar_select %p364, %s22, 1
      %p366 = scmp.lt.s32.totalorder %s363, 15
      %s367 = scalar_select %p366, %s363, 15
      %s368 = smul.addr %s367, 2
      %s369 = smul.addr %s365, 32
      %s370 = sadd.s32 %s368, %s369
      %s371 = smul.addr %s370, 4
      %s372 = scalar_lea.vmem %s5, %s371
      %p373 = pneg %p223
      %p374 = pneg %p220
      %p375 = scmp.lt.s32.totalorder %s22, 1
      %s376 = scalar_select %p375, %s22, 1
      %p377 = scmp.lt.s32.totalorder %s23, 0
      %s378 = scalar_select %p377, %s23, 0
      %s379 = sadd.s32 %s378, %s376
      %s380 = smul.addr %s379, 2
      %s381 = scalar_lea.vmem %s6, %s380
      %s382 = smul.u32 %s23, 8
      %s383 = ssub.s32 %s382, 1
      %p384 = scmp.gt.s32.totalorder %s383, 0
      %s385 = scalar_select %p384, %s383, 0
      %s386 = smul.u32 2, %s385
      %p387 = scmp.lt.s32.totalorder %s22, 1
      %s388 = scalar_select %p387, %s22, 1
      %p389 = scmp.lt.s32.totalorder %s386, 15
      %s390 = scalar_select %p389, %s386, 15
      %s391 = smul.addr %s390, 2
      %s392 = smul.addr %s388, 32
      %s393 = sadd.s32 %s391, %s392
      %s394 = smul.addr %s393, 4
      %s395 = scalar_lea.vmem %s0, %s394
      %s396 = smul.u32 %s23, 8
      %s397 = ssub.s32 %s396, 1
      %p398 = scmp.gt.s32.totalorder %s397, 0
      %s399 = scalar_select %p398, %s397, 0
      %s400 = smul.u32 2, %s399
      %s401 = smul.u32 16, %s23
      %p402 = scmp.lt.s32.totalorder %s22, 1
      %s403 = scalar_select %p402, %s22, 1
      %p404 = scmp.lt.s32.totalorder %s401, 15
      %s405 = scalar_select %p404, %s401, 15
      %s406 = smul.addr %s405, 2
      %s407 = smul.addr %s403, 32
      %s408 = sadd.s32 %s406, %s407
      %s409 = smul.addr %s408, 4
      %s410 = scalar_lea.vmem %s1, %s409
      %s411 = smul.u32 16, %s23
      %s412 = sadd.s32 %s23, 1
      %s413 = smul.u32 %s412, 8
      %p414 = scmp.lt.s32.totalorder %s413, 7
      %s415 = scalar_select %p414, %s413, 7
      %s416 = smul.u32 2, %s415
      %p417 = scmp.lt.s32.totalorder %s22, 1
      %s418 = scalar_select %p417, %s22, 1
      %p419 = scmp.lt.s32.totalorder %s416, 15
      %s420 = scalar_select %p419, %s416, 15
      %s421 = smul.addr %s420, 2
      %s422 = smul.addr %s418, 32
      %s423 = sadd.s32 %s421, %s422
      %s424 = smul.addr %s423, 4
      %s425 = scalar_lea.vmem %s2, %s424
      %s426 = sadd.s32 %s23, 1
      %s427 = smul.u32 %s426, 8
      %p428 = scmp.lt.s32.totalorder %s427, 7
      %s429 = scalar_select %p428, %s427, 7
      %s430 = smul.u32 2, %s429
      %s431 = smul.u32 16, %s23
      %p432 = scmp.lt.s32.totalorder %s22, 1
      %s433 = scalar_select %p432, %s22, 1
      %p434 = scmp.lt.s32.totalorder %s431, 15
      %s435 = scalar_select %p434, %s431, 15
      %s436 = smul.addr %s435, 2
      %s437 = smul.addr %s433, 32
      %s438 = sadd.s32 %s436, %s437
      %s439 = smul.addr %s438, 4
      %s440 = scalar_lea.vmem %s5, %s439
      %s441 = smul.u32 16, %s23
      %p442 = scmp.lt.s32.totalorder %s22, 1
      %s443 = scalar_select %p442, %s22, 1
      %p444 = scmp.lt.s32.totalorder %s23, 0
      %s445 = scalar_select %p444, %s23, 0
      %s446 = sadd.s32 %s445, %s443
      %s447 = smul.addr %s446, 2
      %s448 = scalar_lea.vmem %s6, %s447
      %p450 = scmp.gt.s32.totalorder %s23, 0
      %p451 = scmp.lt.s32.totalorder %s23, 0
      %v452 = vld [vmem:[%s395] sm:$0xf]
      %v453 = vld [vmem:[%s395 + $0x4] sm:$0xf]
      %v454 = vld [vmem:[%s395 + $0x8] sm:$0xf]
      %v455 = vld [vmem:[%s395 + $0xc] sm:$0xf]
      %s456 = scalar_select %p450, 1, 0
      %s457 = scvt.s32.f32 %s456
      %p459 = scmp.ne.f32.partialorder %s457, %s457
      %s460 = sshrl.u32 %s457, 16
      %s461 = sand.u32 %s460, 1
      %s462 = sadd.s32 32767, %s461
      %s463 = sadd.s32 %s457, %s462
      %s464 = sand.u32 %s463, 4294901760
      %s465 = scalar_select %p459, 2143289344, %s464
      %s467 = sshrl.u32 %s465, 16
      %s468 = sshll.u32 %s467, 16
      %s469 = sor.u32 %s467, %s468
      %v470 = vstv %s469
      %v472 = vmul.bf16 %v452, %v470
      %v473 = vmul.bf16 %v453, %v470
      %v474 = vmul.bf16 %v454, %v470
      %v475 = vmul.bf16 %v455, %v470
      %v476 = vld [vmem:[%s410] sm:$0xf]
      %v477 = vld [vmem:[%s410 + $0x4] sm:$0xf]
      %v478 = vld [vmem:[%s410 + $0x8] sm:$0xf]
      %v479 = vld [vmem:[%s410 + $0xc] sm:$0xf]
      %v480 = vld [vmem:[%s410 + $0x10] sm:$0xf]
      %v481 = vld [vmem:[%s410 + $0x14] sm:$0xf]
      %v482 = vld [vmem:[%s410 + $0x18] sm:$0xf]
      %v483 = vld [vmem:[%s410 + $0x1c] sm:$0xf]
      %v484 = vld [vmem:[%s410 + $0x20] sm:$0xf]
      %v485 = vld [vmem:[%s410 + $0x24] sm:$0xf]
      %v486 = vld [vmem:[%s410 + $0x28] sm:$0xf]
      %v487 = vld [vmem:[%s410 + $0x2c] sm:$0xf]
      %v488 = vld [vmem:[%s410 + $0x30] sm:$0xf]
      %v489 = vld [vmem:[%s410 + $0x34] sm:$0xf]
      %v490 = vld [vmem:[%s410 + $0x38] sm:$0xf]
      %v491 = vld [vmem:[%s410 + $0x3c] sm:$0xf]
      %v492 = vld [vmem:[%s410 + $0x40] sm:$0xf]
      %v493 = vld [vmem:[%s410 + $0x44] sm:$0xf]
      %v494 = vld [vmem:[%s410 + $0x48] sm:$0xf]
      %v495 = vld [vmem:[%s410 + $0x4c] sm:$0xf]
      %v496 = vld [vmem:[%s410 + $0x50] sm:$0xf]
      %v497 = vld [vmem:[%s410 + $0x54] sm:$0xf]
      %v498 = vld [vmem:[%s410 + $0x58] sm:$0xf]
      %v499 = vld [vmem:[%s410 + $0x5c] sm:$0xf]
      %v500 = vld [vmem:[%s410 + $0x60] sm:$0xf]
      %v501 = vld [vmem:[%s410 + $0x64] sm:$0xf]
      %v502 = vld [vmem:[%s410 + $0x68] sm:$0xf]
      %v503 = vld [vmem:[%s410 + $0x6c] sm:$0xf]
      %v504 = vld [vmem:[%s410 + $0x70] sm:$0xf]
      %v505 = vld [vmem:[%s410 + $0x74] sm:$0xf]
      %v506 = vld [vmem:[%s410 + $0x78] sm:$0xf]
      %v507 = vld [vmem:[%s410 + $0x7c] sm:$0xf]
      %v508 = vld [vmem:[%s425] sm:$0xf]
      %v509 = vld [vmem:[%s425 + $0x4] sm:$0xf]
      %v510 = vld [vmem:[%s425 + $0x8] sm:$0xf]
      %v511 = vld [vmem:[%s425 + $0xc] sm:$0xf]
      %s512 = scalar_select %p451, 1, 0
      %s513 = scvt.s32.f32 %s512
      %p515 = scmp.ne.f32.partialorder %s513, %s513
      %s516 = sshrl.u32 %s513, 16
      %s517 = sand.u32 %s516, 1
      %s518 = sadd.s32 32767, %s517
      %s519 = sadd.s32 %s513, %s518
      %s520 = sand.u32 %s519, 4294901760
      %s521 = scalar_select %p515, 2143289344, %s520
      %s523 = sshrl.u32 %s521, 16
      %s524 = sshll.u32 %s523, 16
      %s525 = sor.u32 %s523, %s524
      %v526 = vstv %s525
      %v528 = vmul.bf16 %v508, %v526
      %v529 = vmul.bf16 %v509, %v526
      %v530 = vmul.bf16 %v510, %v526
      %v531 = vmul.bf16 %v511, %v526
      %v572 = vunpack.c.l.b16 %v472
      %v573 = vunpack.c.l.b16 %v473
      %v574 = vunpack.c.l.b16 %v474
      %v575 = vunpack.c.l.b16 %v475
      %v576 = vunpack.c.l.b16 %v476
      %v577 = vunpack.c.l.b16 %v477
      %v578 = vunpack.c.l.b16 %v478
      %v579 = vunpack.c.l.b16 %v479
      %v580 = vunpack.c.l.b16 %v480
      %v581 = vunpack.c.l.b16 %v481
      %v582 = vunpack.c.l.b16 %v482
      %v583 = vunpack.c.l.b16 %v483
      %v584 = vunpack.c.l.b16 %v484
      %v585 = vunpack.c.l.b16 %v485
      %v586 = vunpack.c.l.b16 %v486
      %v587 = vunpack.c.l.b16 %v487
      %v588 = vunpack.c.l.b16 %v488
      %v589 = vunpack.c.l.b16 %v489
      %v590 = vunpack.c.l.b16 %v490
      %v591 = vunpack.c.l.b16 %v491
      %v592 = vunpack.c.l.b16 %v492
      %v593 = vunpack.c.l.b16 %v493
      %v594 = vunpack.c.l.b16 %v494
      %v595 = vunpack.c.l.b16 %v495
      %v596 = vunpack.c.l.b16 %v496
      %v597 = vunpack.c.l.b16 %v497
      %v598 = vunpack.c.l.b16 %v498
      %v599 = vunpack.c.l.b16 %v499
      %v600 = vunpack.c.l.b16 %v500
      %v601 = vunpack.c.l.b16 %v501
      %v602 = vunpack.c.l.b16 %v502
      %v603 = vunpack.c.l.b16 %v503
      %v604 = vunpack.c.l.b16 %v504
      %v605 = vunpack.c.l.b16 %v505
      %v606 = vunpack.c.l.b16 %v506
      %v607 = vunpack.c.l.b16 %v507
      %v608 = vunpack.c.l.b16 %v528
      %v609 = vunpack.c.l.b16 %v529
      %v610 = vunpack.c.l.b16 %v530
      %v611 = vunpack.c.l.b16 %v531
      %v612 = vpack.c.b16 %v573, %v572
      %v613 = vpack.c.b16 %v575, %v574
      %v614 = vpack.c.b16 %v577, %v576
      %v615 = vpack.c.b16 %v579, %v578
      %v616 = vpack.c.b16 %v581, %v580
      %v617 = vpack.c.b16 %v583, %v582
      %v618 = vpack.c.b16 %v585, %v584
      %v619 = vpack.c.b16 %v587, %v586
      %v620 = vpack.c.b16 %v589, %v588
      %v621 = vpack.c.b16 %v591, %v590
      %v622 = vpack.c.b16 %v593, %v592
      %v623 = vpack.c.b16 %v595, %v594
      %v624 = vpack.c.b16 %v597, %v596
      %v625 = vpack.c.b16 %v599, %v598
      %v626 = vpack.c.b16 %v601, %v600
      %v627 = vpack.c.b16 %v603, %v602
      %v628 = vpack.c.b16 %v605, %v604
      %v629 = vpack.c.b16 %v607, %v606
      %v630 = vpack.c.b16 %v609, %v608
      %v631 = vpack.c.b16 %v611, %v610
      %v632 = vrot.slane %v612, 7
      %v633 = vrot.slane %v613, 7
      %v634 = vrot.slane %v614, 7
      %v635 = vrot.slane %v615, 7
      %v636 = vrot.slane %v616, 7
      %v637 = vrot.slane %v617, 7
      %v638 = vrot.slane %v618, 7
      %v639 = vrot.slane %v619, 7
      %v640 = vrot.slane %v620, 7
      %v641 = vrot.slane %v621, 7
      %v642 = vrot.slane %v622, 7
      %v643 = vrot.slane %v623, 7
      %v644 = vrot.slane %v624, 7
      %v645 = vrot.slane %v625, 7
      %v646 = vrot.slane %v626, 7
      %v647 = vrot.slane %v627, 7
      %v648 = vrot.slane %v628, 7
      %v649 = vrot.slane %v629, 7
      %v650 = vrot.slane %v630, 7
      %v651 = vrot.slane %v631, 7
      %vm652 = vcmask 1040384
      %v655 = vsel %vm652, 0, %v632
      %v657 = vsel %vm652, 0, %v633
      %v659 = vsel %vm652, 0, %v634
      %v661 = vsel %vm652, 0, %v635
      %v663 = vsel %vm652, 0, %v636
      %v665 = vsel %vm652, 0, %v637
      %v667 = vsel %vm652, 0, %v638
      %v669 = vsel %vm652, 0, %v639
      %v671 = vsel %vm652, 0, %v640
      %v673 = vsel %vm652, 0, %v641
      %v675 = vsel %vm652, 0, %v642
      %v677 = vsel %vm652, 0, %v643
      %v679 = vsel %vm652, 0, %v644
      %v681 = vsel %vm652, 0, %v645
      %v683 = vsel %vm652, 0, %v646
      %v685 = vsel %vm652, 0, %v647
      %v687 = vsel %vm652, 0, %v648
      %v689 = vsel %vm652, 0, %v649
      %v691 = vsel %vm652, 0, %v650
      %v693 = vsel %vm652, 0, %v651
      %v694 = vsel %vm652, %v632, 0
      %v695 = vsel %vm652, %v633, 0
      %v696 = vsel %vm652, %v634, 0
      %v697 = vsel %vm652, %v635, 0
      %v698 = vsel %vm652, %v636, 0
      %v699 = vsel %vm652, %v637, 0
      %v700 = vsel %vm652, %v638, 0
      %v701 = vsel %vm652, %v639, 0
      %v702 = vsel %vm652, %v640, 0
      %v703 = vsel %vm652, %v641, 0
      %v704 = vsel %vm652, %v642, 0
      %v705 = vsel %vm652, %v643, 0
      %v706 = vsel %vm652, %v644, 0
      %v707 = vsel %vm652, %v645, 0
      %v708 = vsel %vm652, %v646, 0
      %v709 = vsel %vm652, %v647, 0
      %v710 = vsel %vm652, %v648, 0
      %v711 = vsel %vm652, %v649, 0
      %v712 = vsel %vm652, %v650, 0
      %v713 = vsel %vm652, %v651, 0
      %v714 = vld [vmem:[%s4] sm:$0x1]
      %v716 = vlaneseq
      %v717 = vshrl.u32 %v716, 7
      %v718 = vsub.s32 0, %v717
      %v719 = vrot.slane %v714, %v718
      %v721 = vld [vmem:[%s3] sm:$0x3]
      %vm722 = vcmask 31744
      %v723 = vsel %vm722, %v655, 0
      %v725 = vsel %vm722, %v657, 0
      %v727 = vsel %vm722, %v659, 0
      %v729 = vsel %vm722, %v661, 0
      %v731 = vsel %vm722, %v663, 0
      %v733 = vsel %vm722, %v665, 0
      %v735 = vsel %vm722, %v667, 0
      %v737 = vsel %vm722, %v669, 0
      %v739 = vsel %vm722, %v671, 0
      %v741 = vsel %vm722, %v673, 0
      %v743 = vsel %vm722, %v675, 0
      %v745 = vsel %vm722, %v677, 0
      %v747 = vsel %vm722, %v679, 0
      %v749 = vsel %vm722, %v681, 0
      %v751 = vsel %vm722, %v683, 0
      %v753 = vsel %vm722, %v685, 0
      %vm755 = vcmask 1041408
      %v757 = vsel %vm755, %v721, 0
      %759 = vmatprep.subr.bf16.mxu0 0
      %760 = vmatpush1.bf16.msra.mxu0 0
      %761 = vmatprep.subr.bf16.mxu0 0
      %762 = vmatpush1.bf16.msra.mxu0 0
      %763 = vmatprep.subr.bf16.mxu0 0
      %764 = vmatpush1.bf16.msra.mxu0 0
      %765 = vmatprep.subr.bf16.mxu0 0
      %766 = vmatpush1.bf16.msra.mxu0 0
      %767 = vmatprep.subr.bf16.mxu0 0
      %768 = vmatpush1.bf16.msra.mxu0 0
      %769 = vmatprep.subr.bf16.mxu0 0
      %770 = vmatpush1.bf16.msra.mxu0 0
      %771 = vmatprep.subr.bf16.mxu0 0
      %772 = vmatpush1.bf16.msra.mxu0 0
      %773 = vmatprep.subr.bf16.mxu0 0
      %774 = vmatpush1.bf16.msra.mxu0 %v757
      %775 = vmatprep.subr.bf16.mxu0 0
      %776 = vmatpush2.bf16.msra.mxu0 0
      %777 = vmatprep.subr.bf16.mxu0 0
      %778 = vmatpush2.bf16.msra.mxu0 0
      %779 = vmatprep.subr.bf16.mxu0 0
      %780 = vmatpush2.bf16.msra.mxu0 0
      %781 = vmatprep.subr.bf16.mxu0 0
      %782 = vmatpush2.bf16.msra.mxu0 0
      %783 = vmatprep.subr.bf16.mxu0 0
      %784 = vmatpush2.bf16.msra.mxu0 0
      %785 = vmatprep.subr.bf16.mxu0 0
      %786 = vmatpush2.bf16.msra.mxu0 0
      %787 = vmatprep.subr.bf16.mxu0 0
      %788 = vmatpush2.bf16.msra.mxu0 0
      %789 = vmatprep.subr.bf16.mxu0 0
      %790 = vmatpush2.bf16.msra.mxu0 0
      %791 = vmatprep.mubr.bf16.mxu0 0
      %792 = vmatmul.mubr.bf16.gmra.mxu0 %v723
      %v793 = vpop.f32.mrf.mxu0
      %v794 = vadd.f32 0.0, %v793
      %v795 = vpop.f32.mrf.mxu0
      %v796 = vpop.f32.mrf.mxu0
      %v797 = vadd.f32 0.0, %v796
      %v798 = vpop.f32.mrf.mxu0
      %799 = vmatprep.mubr.bf16.mxu0 0
      %800 = vmatmul.mubr.bf16.gmra.mxu0 %v725
      %v801 = vpop.f32.mrf.mxu0
      %v802 = vadd.f32 0.0, %v801
      %v803 = vpop.f32.mrf.mxu0
      %v804 = vpop.f32.mrf.mxu0
      %v805 = vadd.f32 0.0, %v804
      %v806 = vpop.f32.mrf.mxu0
      %807 = vmatprep.mubr.bf16.mxu0 0
      %808 = vmatmul.mubr.bf16.gmra.mxu0 %v727
      %v809 = vpop.f32.mrf.mxu0
      %v810 = vadd.f32 0.0, %v809
      %v811 = vpop.f32.mrf.mxu0
      %v812 = vpop.f32.mrf.mxu0
      %v813 = vadd.f32 0.0, %v812
      %v814 = vpop.f32.mrf.mxu0
      %815 = vmatprep.mubr.bf16.mxu0 0
      %816 = vmatmul.mubr.bf16.gmra.mxu0 %v729
      %v817 = vpop.f32.mrf.mxu0
      %v818 = vadd.f32 0.0, %v817
      %v819 = vpop.f32.mrf.mxu0
      %v820 = vpop.f32.mrf.mxu0
      %v821 = vadd.f32 0.0, %v820
      %v822 = vpop.f32.mrf.mxu0
      %823 = vmatprep.mubr.bf16.mxu0 0
      %824 = vmatmul.mubr.bf16.gmra.mxu0 %v731
      %v825 = vpop.f32.mrf.mxu0
      %v826 = vadd.f32 0.0, %v825
      %v827 = vpop.f32.mrf.mxu0
      %v828 = vpop.f32.mrf.mxu0
      %v829 = vadd.f32 0.0, %v828
      %v830 = vpop.f32.mrf.mxu0
      %831 = vmatprep.mubr.bf16.mxu0 0
      %832 = vmatmul.mubr.bf16.gmra.mxu0 %v733
      %v833 = vpop.f32.mrf.mxu0
      %v834 = vadd.f32 0.0, %v833
      %v835 = vpop.f32.mrf.mxu0
      %v836 = vpop.f32.mrf.mxu0
      %v837 = vadd.f32 0.0, %v836
      %v838 = vpop.f32.mrf.mxu0
      %839 = vmatprep.mubr.bf16.mxu0 0
      %840 = vmatmul.mubr.bf16.gmra.mxu0 %v735
      %v841 = vpop.f32.mrf.mxu0
      %v842 = vadd.f32 0.0, %v841
      %v843 = vpop.f32.mrf.mxu0
      %v844 = vpop.f32.mrf.mxu0
      %v845 = vadd.f32 0.0, %v844
      %v846 = vpop.f32.mrf.mxu0
      %847 = vmatprep.mubr.bf16.mxu0 0
      %848 = vmatmul.mubr.bf16.gmra.mxu0 %v737
      %v849 = vpop.f32.mrf.mxu0
      %v850 = vadd.f32 0.0, %v849
      %v851 = vpop.f32.mrf.mxu0
      %v852 = vpop.f32.mrf.mxu0
      %v853 = vadd.f32 0.0, %v852
      %v854 = vpop.f32.mrf.mxu0
      %855 = vmatprep.mubr.bf16.mxu0 0
      %856 = vmatmul.mubr.bf16.gmra.mxu0 %v739
      %v857 = vpop.f32.mrf.mxu0
      %v858 = vadd.f32 0.0, %v857
      %v859 = vpop.f32.mrf.mxu0
      %v860 = vpop.f32.mrf.mxu0
      %v861 = vadd.f32 0.0, %v860
      %v862 = vpop.f32.mrf.mxu0
      %863 = vmatprep.mubr.bf16.mxu0 0
      %864 = vmatmul.mubr.bf16.gmra.mxu0 %v741
      %v865 = vpop.f32.mrf.mxu0
      %v866 = vadd.f32 0.0, %v865
      %v867 = vpop.f32.mrf.mxu0
      %v868 = vpop.f32.mrf.mxu0
      %v869 = vadd.f32 0.0, %v868
      %v870 = vpop.f32.mrf.mxu0
      %871 = vmatprep.mubr.bf16.mxu0 0
      %872 = vmatmul.mubr.bf16.gmra.mxu0 %v743
      %v873 = vpop.f32.mrf.mxu0
      %v874 = vadd.f32 0.0, %v873
      %v875 = vpop.f32.mrf.mxu0
      %v876 = vpop.f32.mrf.mxu0
      %v877 = vadd.f32 0.0, %v876
      %v878 = vpop.f32.mrf.mxu0
      %879 = vmatprep.mubr.bf16.mxu0 0
      %880 = vmatmul.mubr.bf16.gmra.mxu0 %v745
      %v881 = vpop.f32.mrf.mxu0
      %v882 = vadd.f32 0.0, %v881
      %v883 = vpop.f32.mrf.mxu0
      %v884 = vpop.f32.mrf.mxu0
      %v885 = vadd.f32 0.0, %v884
      %v886 = vpop.f32.mrf.mxu0
      %887 = vmatprep.mubr.bf16.mxu0 0
      %888 = vmatmul.mubr.bf16.gmra.mxu0 %v747
      %v889 = vpop.f32.mrf.mxu0
      %v890 = vadd.f32 0.0, %v889
      %v891 = vpop.f32.mrf.mxu0
      %v892 = vpop.f32.mrf.mxu0
      %v893 = vadd.f32 0.0, %v892
      %v894 = vpop.f32.mrf.mxu0
      %895 = vmatprep.mubr.bf16.mxu0 0
      %896 = vmatmul.mubr.bf16.gmra.mxu0 %v749
      %v897 = vpop.f32.mrf.mxu0
      %v898 = vadd.f32 0.0, %v897
      %v899 = vpop.f32.mrf.mxu0
      %v900 = vpop.f32.mrf.mxu0
      %v901 = vadd.f32 0.0, %v900
      %v902 = vpop.f32.mrf.mxu0
      %903 = vmatprep.mubr.bf16.mxu0 0
      %904 = vmatmul.mubr.bf16.gmra.mxu0 %v751
      %v905 = vpop.f32.mrf.mxu0
      %v906 = vadd.f32 0.0, %v905
      %v907 = vpop.f32.mrf.mxu0
      %v908 = vpop.f32.mrf.mxu0
      %v909 = vadd.f32 0.0, %v908
      %v910 = vpop.f32.mrf.mxu0
      %911 = vmatprep.mubr.bf16.mxu0 0
      %912 = vmatmul.mubr.bf16.gmra.mxu0 %v753
      %v913 = vpop.f32.mrf.mxu0
      %v914 = vadd.f32 0.0, %v913
      %v915 = vpop.f32.mrf.mxu0
      %v916 = vpop.f32.mrf.mxu0
      %v917 = vadd.f32 0.0, %v916
      %v918 = vpop.f32.mrf.mxu0
      %919 = vdwg.mxu0
      %v920 = vadd.f32 %v719, %v794
      %v921 = vadd.f32 %v719, %v797
      %v922 = vadd.f32 %v719, %v802
      %v923 = vadd.f32 %v719, %v805
      %v924 = vadd.f32 %v719, %v810
      %v925 = vadd.f32 %v719, %v813
      %v926 = vadd.f32 %v719, %v818
      %v927 = vadd.f32 %v719, %v821
      %v928 = vadd.f32 %v719, %v826
      %v929 = vadd.f32 %v719, %v829
      %v930 = vadd.f32 %v719, %v834
      %v931 = vadd.f32 %v719, %v837
      %v932 = vadd.f32 %v719, %v842
      %v933 = vadd.f32 %v719, %v845
      %v934 = vadd.f32 %v719, %v850
      %v935 = vadd.f32 %v719, %v853
      %v936 = vadd.f32 %v719, %v858
      %v937 = vadd.f32 %v719, %v861
      %v938 = vadd.f32 %v719, %v866
      %v939 = vadd.f32 %v719, %v869
      %v940 = vadd.f32 %v719, %v874
      %v941 = vadd.f32 %v719, %v877
      %v942 = vadd.f32 %v719, %v882
      %v943 = vadd.f32 %v719, %v885
      %v944 = vadd.f32 %v719, %v890
      %v945 = vadd.f32 %v719, %v893
      %v946 = vadd.f32 %v719, %v898
      %v947 = vadd.f32 %v719, %v901
      %v948 = vadd.f32 %v719, %v906
      %v949 = vadd.f32 %v719, %v909
      %v950 = vadd.f32 %v719, %v914
      %v951 = vadd.f32 %v719, %v917
      %vm984 = vcmask 1046528
      %v985 = vrot.slane %v655, 1
      %v986 = vrot.slane %v694, 1
      %v987 = vsel %vm984, %v985, %v986
      %v988 = vrot.slane %v657, 1
      %v989 = vrot.slane %v695, 1
      %v990 = vsel %vm984, %v988, %v989
      %v991 = vrot.slane %v659, 1
      %v992 = vrot.slane %v696, 1
      %v993 = vsel %vm984, %v991, %v992
      %v994 = vrot.slane %v661, 1
      %v995 = vrot.slane %v697, 1
      %v996 = vsel %vm984, %v994, %v995
      %v997 = vrot.slane %v663, 1
      %v998 = vrot.slane %v698, 1
      %v999 = vsel %vm984, %v997, %v998
      %v1000 = vrot.slane %v665, 1
      %v1001 = vrot.slane %v699, 1
      %v1002 = vsel %vm984, %v1000, %v1001
      %v1003 = vrot.slane %v667, 1
      %v1004 = vrot.slane %v700, 1
      %v1005 = vsel %vm984, %v1003, %v1004
      %v1006 = vrot.slane %v669, 1
      %v1007 = vrot.slane %v701, 1
      %v1008 = vsel %vm984, %v1006, %v1007
      %v1009 = vrot.slane %v671, 1
      %v1010 = vrot.slane %v702, 1
      %v1011 = vsel %vm984, %v1009, %v1010
      %v1012 = vrot.slane %v673, 1
      %v1013 = vrot.slane %v703, 1
      %v1014 = vsel %vm984, %v1012, %v1013
      %v1015 = vrot.slane %v675, 1
      %v1016 = vrot.slane %v704, 1
      %v1017 = vsel %vm984, %v1015, %v1016
      %v1018 = vrot.slane %v677, 1
      %v1019 = vrot.slane %v705, 1
      %v1020 = vsel %vm984, %v1018, %v1019
      %v1021 = vrot.slane %v679, 1
      %v1022 = vrot.slane %v706, 1
      %v1023 = vsel %vm984, %v1021, %v1022
      %v1024 = vrot.slane %v681, 1
      %v1025 = vrot.slane %v707, 1
      %v1026 = vsel %vm984, %v1024, %v1025
      %v1027 = vrot.slane %v683, 1
      %v1028 = vrot.slane %v708, 1
      %v1029 = vsel %vm984, %v1027, %v1028
      %v1030 = vrot.slane %v685, 1
      %v1031 = vrot.slane %v709, 1
      %v1032 = vsel %vm984, %v1030, %v1031
      %s1033 = scalar_lea.vmem %s3, 2
      %v1034 = vld [vmem:[%s1033] sm:$0x3]
      %v1036 = vsel %vm722, %v987, 0
      %v1039 = vsel %vm722, %v990, 0
      %v1042 = vsel %vm722, %v993, 0
      %v1045 = vsel %vm722, %v996, 0
      %v1048 = vsel %vm722, %v999, 0
      %v1051 = vsel %vm722, %v1002, 0
      %v1054 = vsel %vm722, %v1005, 0
      %v1057 = vsel %vm722, %v1008, 0
      %v1060 = vsel %vm722, %v1011, 0
      %v1063 = vsel %vm722, %v1014, 0
      %v1066 = vsel %vm722, %v1017, 0
      %v1069 = vsel %vm722, %v1020, 0
      %v1072 = vsel %vm722, %v1023, 0
      %v1075 = vsel %vm722, %v1026, 0
      %v1078 = vsel %vm722, %v1029, 0
      %v1081 = vsel %vm722, %v1032, 0
      %v1084 = vsel %vm755, %v1034, 0
      %1086 = vmatprep.subr.bf16.mxu0 0
      %1087 = vmatpush1.bf16.msra.mxu0 0
      %1088 = vmatprep.subr.bf16.mxu0 0
      %1089 = vmatpush1.bf16.msra.mxu0 0
      %1090 = vmatprep.subr.bf16.mxu0 0
      %1091 = vmatpush1.bf16.msra.mxu0 0
      %1092 = vmatprep.subr.bf16.mxu0 0
      %1093 = vmatpush1.bf16.msra.mxu0 0
      %1094 = vmatprep.subr.bf16.mxu0 0
      %1095 = vmatpush1.bf16.msra.mxu0 0
      %1096 = vmatprep.subr.bf16.mxu0 0
      %1097 = vmatpush1.bf16.msra.mxu0 0
      %1098 = vmatprep.subr.bf16.mxu0 0
      %1099 = vmatpush1.bf16.msra.mxu0 0
      %1100 = vmatprep.subr.bf16.mxu0 0
      %1101 = vmatpush1.bf16.msra.mxu0 %v1084
      %1102 = vmatprep.subr.bf16.mxu0 0
      %1103 = vmatpush2.bf16.msra.mxu0 0
      %1104 = vmatprep.subr.bf16.mxu0 0
      %1105 = vmatpush2.bf16.msra.mxu0 0
      %1106 = vmatprep.subr.bf16.mxu0 0
      %1107 = vmatpush2.bf16.msra.mxu0 0
      %1108 = vmatprep.subr.bf16.mxu0 0
      %1109 = vmatpush2.bf16.msra.mxu0 0
      %1110 = vmatprep.subr.bf16.mxu0 0
      %1111 = vmatpush2.bf16.msra.mxu0 0
      %1112 = vmatprep.subr.bf16.mxu0 0
      %1113 = vmatpush2.bf16.msra.mxu0 0
      %1114 = vmatprep.subr.bf16.mxu0 0
      %1115 = vmatpush2.bf16.msra.mxu0 0
      %1116 = vmatprep.subr.bf16.mxu0 0
      %1117 = vmatpush2.bf16.msra.mxu0 0
      %1118 = vmatprep.mubr.bf16.mxu0 0
      %1119 = vmatmul.mubr.bf16.gmra.mxu0 %v1036
      %v1120 = vpop.f32.mrf.mxu0
      %v1121 = vadd.f32 0.0, %v1120
      %v1122 = vpop.f32.mrf.mxu0
      %v1123 = vpop.f32.mrf.mxu0
      %v1124 = vadd.f32 0.0, %v1123
      %v1125 = vpop.f32.mrf.mxu0
      %1126 = vmatprep.mubr.bf16.mxu0 0
      %1127 = vmatmul.mubr.bf16.gmra.mxu0 %v1039
      %v1128 = vpop.f32.mrf.mxu0
      %v1129 = vadd.f32 0.0, %v1128
      %v1130 = vpop.f32.mrf.mxu0
      %v1131 = vpop.f32.mrf.mxu0
      %v1132 = vadd.f32 0.0, %v1131
      %v1133 = vpop.f32.mrf.mxu0
      %1134 = vmatprep.mubr.bf16.mxu0 0
      %1135 = vmatmul.mubr.bf16.gmra.mxu0 %v1042
      %v1136 = vpop.f32.mrf.mxu0
      %v1137 = vadd.f32 0.0, %v1136
      %v1138 = vpop.f32.mrf.mxu0
      %v1139 = vpop.f32.mrf.mxu0
      %v1140 = vadd.f32 0.0, %v1139
      %v1141 = vpop.f32.mrf.mxu0
      %1142 = vmatprep.mubr.bf16.mxu0 0
      %1143 = vmatmul.mubr.bf16.gmra.mxu0 %v1045
      %v1144 = vpop.f32.mrf.mxu0
      %v1145 = vadd.f32 0.0, %v1144
      %v1146 = vpop.f32.mrf.mxu0
      %v1147 = vpop.f32.mrf.mxu0
      %v1148 = vadd.f32 0.0, %v1147
      %v1149 = vpop.f32.mrf.mxu0
      %1150 = vmatprep.mubr.bf16.mxu0 0
      %1151 = vmatmul.mubr.bf16.gmra.mxu0 %v1048
      %v1152 = vpop.f32.mrf.mxu0
      %v1153 = vadd.f32 0.0, %v1152
      %v1154 = vpop.f32.mrf.mxu0
      %v1155 = vpop.f32.mrf.mxu0
      %v1156 = vadd.f32 0.0, %v1155
      %v1157 = vpop.f32.mrf.mxu0
      %1158 = vmatprep.mubr.bf16.mxu0 0
      %1159 = vmatmul.mubr.bf16.gmra.mxu0 %v1051
      %v1160 = vpop.f32.mrf.mxu0
      %v1161 = vadd.f32 0.0, %v1160
      %v1162 = vpop.f32.mrf.mxu0
      %v1163 = vpop.f32.mrf.mxu0
      %v1164 = vadd.f32 0.0, %v1163
      %v1165 = vpop.f32.mrf.mxu0
      %1166 = vmatprep.mubr.bf16.mxu0 0
      %1167 = vmatmul.mubr.bf16.gmra.mxu0 %v1054
      %v1168 = vpop.f32.mrf.mxu0
      %v1169 = vadd.f32 0.0, %v1168
      %v1170 = vpop.f32.mrf.mxu0
      %v1171 = vpop.f32.mrf.mxu0
      %v1172 = vadd.f32 0.0, %v1171
      %v1173 = vpop.f32.mrf.mxu0
      %1174 = vmatprep.mubr.bf16.mxu0 0
      %1175 = vmatmul.mubr.bf16.gmra.mxu0 %v1057
      %v1176 = vpop.f32.mrf.mxu0
      %v1177 = vadd.f32 0.0, %v1176
      %v1178 = vpop.f32.mrf.mxu0
      %v1179 = vpop.f32.mrf.mxu0
      %v1180 = vadd.f32 0.0, %v1179
      %v1181 = vpop.f32.mrf.mxu0
      %1182 = vmatprep.mubr.bf16.mxu0 0
      %1183 = vmatmul.mubr.bf16.gmra.mxu0 %v1060
      %v1184 = vpop.f32.mrf.mxu0
      %v1185 = vadd.f32 0.0, %v1184
      %v1186 = vpop.f32.mrf.mxu0
      %v1187 = vpop.f32.mrf.mxu0
      %v1188 = vadd.f32 0.0, %v1187
      %v1189 = vpop.f32.mrf.mxu0
      %1190 = vmatprep.mubr.bf16.mxu0 0
      %1191 = vmatmul.mubr.bf16.gmra.mxu0 %v1063
      %v1192 = vpop.f32.mrf.mxu0
      %v1193 = vadd.f32 0.0, %v1192
      %v1194 = vpop.f32.mrf.mxu0
      %v1195 = vpop.f32.mrf.mxu0
      %v1196 = vadd.f32 0.0, %v1195
      %v1197 = vpop.f32.mrf.mxu0
      %1198 = vmatprep.mubr.bf16.mxu0 0
      %1199 = vmatmul.mubr.bf16.gmra.mxu0 %v1066
      %v1200 = vpop.f32.mrf.mxu0
      %v1201 = vadd.f32 0.0, %v1200
      %v1202 = vpop.f32.mrf.mxu0
      %v1203 = vpop.f32.mrf.mxu0
      %v1204 = vadd.f32 0.0, %v1203
      %v1205 = vpop.f32.mrf.mxu0
      %1206 = vmatprep.mubr.bf16.mxu0 0
      %1207 = vmatmul.mubr.bf16.gmra.mxu0 %v1069
      %v1208 = vpop.f32.mrf.mxu0
      %v1209 = vadd.f32 0.0, %v1208
      %v1210 = vpop.f32.mrf.mxu0
      %v1211 = vpop.f32.mrf.mxu0
      %v1212 = vadd.f32 0.0, %v1211
      %v1213 = vpop.f32.mrf.mxu0
      %1214 = vmatprep.mubr.bf16.mxu0 0
      %1215 = vmatmul.mubr.bf16.gmra.mxu0 %v1072
      %v1216 = vpop.f32.mrf.mxu0
      %v1217 = vadd.f32 0.0, %v1216
      %v1218 = vpop.f32.mrf.mxu0
      %v1219 = vpop.f32.mrf.mxu0
      %v1220 = vadd.f32 0.0, %v1219
      %v1221 = vpop.f32.mrf.mxu0
      %1222 = vmatprep.mubr.bf16.mxu0 0
      %1223 = vmatmul.mubr.bf16.gmra.mxu0 %v1075
      %v1224 = vpop.f32.mrf.mxu0
      %v1225 = vadd.f32 0.0, %v1224
      %v1226 = vpop.f32.mrf.mxu0
      %v1227 = vpop.f32.mrf.mxu0
      %v1228 = vadd.f32 0.0, %v1227
      %v1229 = vpop.f32.mrf.mxu0
      %1230 = vmatprep.mubr.bf16.mxu0 0
      %1231 = vmatmul.mubr.bf16.gmra.mxu0 %v1078
      %v1232 = vpop.f32.mrf.mxu0
      %v1233 = vadd.f32 0.0, %v1232
      %v1234 = vpop.f32.mrf.mxu0
      %v1235 = vpop.f32.mrf.mxu0
      %v1236 = vadd.f32 0.0, %v1235
      %v1237 = vpop.f32.mrf.mxu0
      %1238 = vmatprep.mubr.bf16.mxu0 0
      %1239 = vmatmul.mubr.bf16.gmra.mxu0 %v1081
      %v1240 = vpop.f32.mrf.mxu0
      %v1241 = vadd.f32 0.0, %v1240
      %v1242 = vpop.f32.mrf.mxu0
      %v1243 = vpop.f32.mrf.mxu0
      %v1244 = vadd.f32 0.0, %v1243
      %v1245 = vpop.f32.mrf.mxu0
      %1246 = vdwg.mxu0
      %v1247 = vadd.f32 %v920, %v1121
      %v1248 = vadd.f32 %v921, %v1124
      %v1249 = vadd.f32 %v922, %v1129
      %v1250 = vadd.f32 %v923, %v1132
      %v1251 = vadd.f32 %v924, %v1137
      %v1252 = vadd.f32 %v925, %v1140
      %v1253 = vadd.f32 %v926, %v1145
      %v1254 = vadd.f32 %v927, %v1148
      %v1255 = vadd.f32 %v928, %v1153
      %v1256 = vadd.f32 %v929, %v1156
      %v1257 = vadd.f32 %v930, %v1161
      %v1258 = vadd.f32 %v931, %v1164
      %v1259 = vadd.f32 %v932, %v1169
      %v1260 = vadd.f32 %v933, %v1172
      %v1261 = vadd.f32 %v934, %v1177
      %v1262 = vadd.f32 %v935, %v1180
      %v1263 = vadd.f32 %v936, %v1185
      %v1264 = vadd.f32 %v937, %v1188
      %v1265 = vadd.f32 %v938, %v1193
      %v1266 = vadd.f32 %v939, %v1196
      %v1267 = vadd.f32 %v940, %v1201
      %v1268 = vadd.f32 %v941, %v1204
      %v1269 = vadd.f32 %v942, %v1209
      %v1270 = vadd.f32 %v943, %v1212
      %v1271 = vadd.f32 %v944, %v1217
      %v1272 = vadd.f32 %v945, %v1220
      %v1273 = vadd.f32 %v946, %v1225
      %v1274 = vadd.f32 %v947, %v1228
      %v1275 = vadd.f32 %v948, %v1233
      %v1276 = vadd.f32 %v949, %v1236
      %v1277 = vadd.f32 %v950, %v1241
      %v1278 = vadd.f32 %v951, %v1244
      %vm1279 = vcmask 1045504
      %v1280 = vrot.slane %v655, 2
      %v1281 = vrot.slane %v694, 2
      %v1282 = vsel %vm1279, %v1280, %v1281
      %v1283 = vrot.slane %v657, 2
      %v1284 = vrot.slane %v695, 2
      %v1285 = vsel %vm1279, %v1283, %v1284
      %v1286 = vrot.slane %v659, 2
      %v1287 = vrot.slane %v696, 2
      %v1288 = vsel %vm1279, %v1286, %v1287
      %v1289 = vrot.slane %v661, 2
      %v1290 = vrot.slane %v697, 2
      %v1291 = vsel %vm1279, %v1289, %v1290
      %v1292 = vrot.slane %v663, 2
      %v1293 = vrot.slane %v698, 2
      %v1294 = vsel %vm1279, %v1292, %v1293
      %v1295 = vrot.slane %v665, 2
      %v1296 = vrot.slane %v699, 2
      %v1297 = vsel %vm1279, %v1295, %v1296
      %v1298 = vrot.slane %v667, 2
      %v1299 = vrot.slane %v700, 2
      %v1300 = vsel %vm1279, %v1298, %v1299
      %v1301 = vrot.slane %v669, 2
      %v1302 = vrot.slane %v701, 2
      %v1303 = vsel %vm1279, %v1301, %v1302
      %v1304 = vrot.slane %v671, 2
      %v1305 = vrot.slane %v702, 2
      %v1306 = vsel %vm1279, %v1304, %v1305
      %v1307 = vrot.slane %v673, 2
      %v1308 = vrot.slane %v703, 2
      %v1309 = vsel %vm1279, %v1307, %v1308
      %v1310 = vrot.slane %v675, 2
      %v1311 = vrot.slane %v704, 2
      %v1312 = vsel %vm1279, %v1310, %v1311
      %v1313 = vrot.slane %v677, 2
      %v1314 = vrot.slane %v705, 2
      %v1315 = vsel %vm1279, %v1313, %v1314
      %v1316 = vrot.slane %v679, 2
      %v1317 = vrot.slane %v706, 2
      %v1318 = vsel %vm1279, %v1316, %v1317
      %v1319 = vrot.slane %v681, 2
      %v1320 = vrot.slane %v707, 2
      %v1321 = vsel %vm1279, %v1319, %v1320
      %v1322 = vrot.slane %v683, 2
      %v1323 = vrot.slane %v708, 2
      %v1324 = vsel %vm1279, %v1322, %v1323
      %v1325 = vrot.slane %v685, 2
      %v1326 = vrot.slane %v709, 2
      %v1327 = vsel %vm1279, %v1325, %v1326
      %s1328 = scalar_lea.vmem %s3, 4
      %v1329 = vld [vmem:[%s1328] sm:$0x3]
      %v1331 = vsel %vm722, %v1282, 0
      %v1334 = vsel %vm722, %v1285, 0
      %v1337 = vsel %vm722, %v1288, 0
      %v1340 = vsel %vm722, %v1291, 0
      %v1343 = vsel %vm722, %v1294, 0
      %v1346 = vsel %vm722, %v1297, 0
      %v1349 = vsel %vm722, %v1300, 0
      %v1352 = vsel %vm722, %v1303, 0
      %v1355 = vsel %vm722, %v1306, 0
      %v1358 = vsel %vm722, %v1309, 0
      %v1361 = vsel %vm722, %v1312, 0
      %v1364 = vsel %vm722, %v1315, 0
      %v1367 = vsel %vm722, %v1318, 0
      %v1370 = vsel %vm722, %v1321, 0
      %v1373 = vsel %vm722, %v1324, 0
      %v1376 = vsel %vm722, %v1327, 0
      %v1379 = vsel %vm755, %v1329, 0
      %1381 = vmatprep.subr.bf16.mxu0 0
      %1382 = vmatpush1.bf16.msra.mxu0 0
      %1383 = vmatprep.subr.bf16.mxu0 0
      %1384 = vmatpush1.bf16.msra.mxu0 0
      %1385 = vmatprep.subr.bf16.mxu0 0
      %1386 = vmatpush1.bf16.msra.mxu0 0
      %1387 = vmatprep.subr.bf16.mxu0 0
      %1388 = vmatpush1.bf16.msra.mxu0 0
      %1389 = vmatprep.subr.bf16.mxu0 0
      %1390 = vmatpush1.bf16.msra.mxu0 0
      %1391 = vmatprep.subr.bf16.mxu0 0
      %1392 = vmatpush1.bf16.msra.mxu0 0
      %1393 = vmatprep.subr.bf16.mxu0 0
      %1394 = vmatpush1.bf16.msra.mxu0 0
      %1395 = vmatprep.subr.bf16.mxu0 0
      %1396 = vmatpush1.bf16.msra.mxu0 %v1379
      %1397 = vmatprep.subr.bf16.mxu0 0
      %1398 = vmatpush2.bf16.msra.mxu0 0
      %1399 = vmatprep.subr.bf16.mxu0 0
      %1400 = vmatpush2.bf16.msra.mxu0 0
      %1401 = vmatprep.subr.bf16.mxu0 0
      %1402 = vmatpush2.bf16.msra.mxu0 0
      %1403 = vmatprep.subr.bf16.mxu0 0
      %1404 = vmatpush2.bf16.msra.mxu0 0
      %1405 = vmatprep.subr.bf16.mxu0 0
      %1406 = vmatpush2.bf16.msra.mxu0 0
      %1407 = vmatprep.subr.bf16.mxu0 0
      %1408 = vmatpush2.bf16.msra.mxu0 0
      %1409 = vmatprep.subr.bf16.mxu0 0
      %1410 = vmatpush2.bf16.msra.mxu0 0
      %1411 = vmatprep.subr.bf16.mxu0 0
      %1412 = vmatpush2.bf16.msra.mxu0 0
      %1413 = vmatprep.mubr.bf16.mxu0 0
      %1414 = vmatmul.mubr.bf16.gmra.mxu0 %v1331
      %v1415 = vpop.f32.mrf.mxu0
      %v1416 = vadd.f32 0.0, %v1415
      %v1417 = vpop.f32.mrf.mxu0
      %v1418 = vpop.f32.mrf.mxu0
      %v1419 = vadd.f32 0.0, %v1418
      %v1420 = vpop.f32.mrf.mxu0
      %1421 = vmatprep.mubr.bf16.mxu0 0
      %1422 = vmatmul.mubr.bf16.gmra.mxu0 %v1334
      %v1423 = vpop.f32.mrf.mxu0
      %v1424 = vadd.f32 0.0, %v1423
      %v1425 = vpop.f32.mrf.mxu0
      %v1426 = vpop.f32.mrf.mxu0
      %v1427 = vadd.f32 0.0, %v1426
      %v1428 = vpop.f32.mrf.mxu0
      %1429 = vmatprep.mubr.bf16.mxu0 0
      %1430 = vmatmul.mubr.bf16.gmra.mxu0 %v1337
      %v1431 = vpop.f32.mrf.mxu0
      %v1432 = vadd.f32 0.0, %v1431
      %v1433 = vpop.f32.mrf.mxu0
      %v1434 = vpop.f32.mrf.mxu0
      %v1435 = vadd.f32 0.0, %v1434
      %v1436 = vpop.f32.mrf.mxu0
      %1437 = vmatprep.mubr.bf16.mxu0 0
      %1438 = vmatmul.mubr.bf16.gmra.mxu0 %v1340
      %v1439 = vpop.f32.mrf.mxu0
      %v1440 = vadd.f32 0.0, %v1439
      %v1441 = vpop.f32.mrf.mxu0
      %v1442 = vpop.f32.mrf.mxu0
      %v1443 = vadd.f32 0.0, %v1442
      %v1444 = vpop.f32.mrf.mxu0
      %1445 = vmatprep.mubr.bf16.mxu0 0
      %1446 = vmatmul.mubr.bf16.gmra.mxu0 %v1343
      %v1447 = vpop.f32.mrf.mxu0
      %v1448 = vadd.f32 0.0, %v1447
      %v1449 = vpop.f32.mrf.mxu0
      %v1450 = vpop.f32.mrf.mxu0
      %v1451 = vadd.f32 0.0, %v1450
      %v1452 = vpop.f32.mrf.mxu0
      %1453 = vmatprep.mubr.bf16.mxu0 0
      %1454 = vmatmul.mubr.bf16.gmra.mxu0 %v1346
      %v1455 = vpop.f32.mrf.mxu0
      %v1456 = vadd.f32 0.0, %v1455
      %v1457 = vpop.f32.mrf.mxu0
      %v1458 = vpop.f32.mrf.mxu0
      %v1459 = vadd.f32 0.0, %v1458
      %v1460 = vpop.f32.mrf.mxu0
      %1461 = vmatprep.mubr.bf16.mxu0 0
      %1462 = vmatmul.mubr.bf16.gmra.mxu0 %v1349
      %v1463 = vpop.f32.mrf.mxu0
      %v1464 = vadd.f32 0.0, %v1463
      %v1465 = vpop.f32.mrf.mxu0
      %v1466 = vpop.f32.mrf.mxu0
      %v1467 = vadd.f32 0.0, %v1466
      %v1468 = vpop.f32.mrf.mxu0
      %1469 = vmatprep.mubr.bf16.mxu0 0
      %1470 = vmatmul.mubr.bf16.gmra.mxu0 %v1352
      %v1471 = vpop.f32.mrf.mxu0
      %v1472 = vadd.f32 0.0, %v1471
      %v1473 = vpop.f32.mrf.mxu0
      %v1474 = vpop.f32.mrf.mxu0
      %v1475 = vadd.f32 0.0, %v1474
      %v1476 = vpop.f32.mrf.mxu0
      %1477 = vmatprep.mubr.bf16.mxu0 0
      %1478 = vmatmul.mubr.bf16.gmra.mxu0 %v1355
      %v1479 = vpop.f32.mrf.mxu0
      %v1480 = vadd.f32 0.0, %v1479
      %v1481 = vpop.f32.mrf.mxu0
      %v1482 = vpop.f32.mrf.mxu0
      %v1483 = vadd.f32 0.0, %v1482
      %v1484 = vpop.f32.mrf.mxu0
      %1485 = vmatprep.mubr.bf16.mxu0 0
      %1486 = vmatmul.mubr.bf16.gmra.mxu0 %v1358
      %v1487 = vpop.f32.mrf.mxu0
      %v1488 = vadd.f32 0.0, %v1487
      %v1489 = vpop.f32.mrf.mxu0
      %v1490 = vpop.f32.mrf.mxu0
      %v1491 = vadd.f32 0.0, %v1490
      %v1492 = vpop.f32.mrf.mxu0
      %1493 = vmatprep.mubr.bf16.mxu0 0
      %1494 = vmatmul.mubr.bf16.gmra.mxu0 %v1361
      %v1495 = vpop.f32.mrf.mxu0
      %v1496 = vadd.f32 0.0, %v1495
      %v1497 = vpop.f32.mrf.mxu0
      %v1498 = vpop.f32.mrf.mxu0
      %v1499 = vadd.f32 0.0, %v1498
      %v1500 = vpop.f32.mrf.mxu0
      %1501 = vmatprep.mubr.bf16.mxu0 0
      %1502 = vmatmul.mubr.bf16.gmra.mxu0 %v1364
      %v1503 = vpop.f32.mrf.mxu0
      %v1504 = vadd.f32 0.0, %v1503
      %v1505 = vpop.f32.mrf.mxu0
      %v1506 = vpop.f32.mrf.mxu0
      %v1507 = vadd.f32 0.0, %v1506
      %v1508 = vpop.f32.mrf.mxu0
      %1509 = vmatprep.mubr.bf16.mxu0 0
      %1510 = vmatmul.mubr.bf16.gmra.mxu0 %v1367
      %v1511 = vpop.f32.mrf.mxu0
      %v1512 = vadd.f32 0.0, %v1511
      %v1513 = vpop.f32.mrf.mxu0
      %v1514 = vpop.f32.mrf.mxu0
      %v1515 = vadd.f32 0.0, %v1514
      %v1516 = vpop.f32.mrf.mxu0
      %1517 = vmatprep.mubr.bf16.mxu0 0
      %1518 = vmatmul.mubr.bf16.gmra.mxu0 %v1370
      %v1519 = vpop.f32.mrf.mxu0
      %v1520 = vadd.f32 0.0, %v1519
      %v1521 = vpop.f32.mrf.mxu0
      %v1522 = vpop.f32.mrf.mxu0
      %v1523 = vadd.f32 0.0, %v1522
      %v1524 = vpop.f32.mrf.mxu0
      %1525 = vmatprep.mubr.bf16.mxu0 0
      %1526 = vmatmul.mubr.bf16.gmra.mxu0 %v1373
      %v1527 = vpop.f32.mrf.mxu0
      %v1528 = vadd.f32 0.0, %v1527
      %v1529 = vpop.f32.mrf.mxu0
      %v1530 = vpop.f32.mrf.mxu0
      %v1531 = vadd.f32 0.0, %v1530
      %v1532 = vpop.f32.mrf.mxu0
      %1533 = vmatprep.mubr.bf16.mxu0 0
      %1534 = vmatmul.mubr.bf16.gmra.mxu0 %v1376
      %v1535 = vpop.f32.mrf.mxu0
      %v1536 = vadd.f32 0.0, %v1535
      %v1537 = vpop.f32.mrf.mxu0
      %v1538 = vpop.f32.mrf.mxu0
      %v1539 = vadd.f32 0.0, %v1538
      %v1540 = vpop.f32.mrf.mxu0
      %1541 = vdwg.mxu0
      %v1542 = vadd.f32 %v1247, %v1416
      %v1543 = vadd.f32 %v1248, %v1419
      %v1544 = vadd.f32 %v1249, %v1424
      %v1545 = vadd.f32 %v1250, %v1427
      %v1546 = vadd.f32 %v1251, %v1432
      %v1547 = vadd.f32 %v1252, %v1435
      %v1548 = vadd.f32 %v1253, %v1440
      %v1549 = vadd.f32 %v1254, %v1443
      %v1550 = vadd.f32 %v1255, %v1448
      %v1551 = vadd.f32 %v1256, %v1451
      %v1552 = vadd.f32 %v1257, %v1456
      %v1553 = vadd.f32 %v1258, %v1459
      %v1554 = vadd.f32 %v1259, %v1464
      %v1555 = vadd.f32 %v1260, %v1467
      %v1556 = vadd.f32 %v1261, %v1472
      %v1557 = vadd.f32 %v1262, %v1475
      %v1558 = vadd.f32 %v1263, %v1480
      %v1559 = vadd.f32 %v1264, %v1483
      %v1560 = vadd.f32 %v1265, %v1488
      %v1561 = vadd.f32 %v1266, %v1491
      %v1562 = vadd.f32 %v1267, %v1496
      %v1563 = vadd.f32 %v1268, %v1499
      %v1564 = vadd.f32 %v1269, %v1504
      %v1565 = vadd.f32 %v1270, %v1507
      %v1566 = vadd.f32 %v1271, %v1512
      %v1567 = vadd.f32 %v1272, %v1515
      %v1568 = vadd.f32 %v1273, %v1520
      %v1569 = vadd.f32 %v1274, %v1523
      %v1570 = vadd.f32 %v1275, %v1528
      %v1571 = vadd.f32 %v1276, %v1531
      %v1572 = vadd.f32 %v1277, %v1536
      %v1573 = vadd.f32 %v1278, %v1539
      %s1574 = scalar_lea.vmem %s3, 6
      %v1575 = vld [vmem:[%s1574] sm:$0x3]
      %v1576 = vsel %vm722, %v687, 0
      %v1578 = vsel %vm722, %v689, 0
      %v1581 = vsel %vm755, %v1575, 0
      %1583 = vmatprep.subr.bf16.mxu0 0
      %1584 = vmatpush1.bf16.msra.mxu0 0
      %1585 = vmatprep.subr.bf16.mxu0 0
      %1586 = vmatpush1.bf16.msra.mxu0 0
      %1587 = vmatprep.subr.bf16.mxu0 0
      %1588 = vmatpush1.bf16.msra.mxu0 0
      %1589 = vmatprep.subr.bf16.mxu0 0
      %1590 = vmatpush1.bf16.msra.mxu0 0
      %1591 = vmatprep.subr.bf16.mxu0 0
      %1592 = vmatpush1.bf16.msra.mxu0 0
      %1593 = vmatprep.subr.bf16.mxu0 0
      %1594 = vmatpush1.bf16.msra.mxu0 0
      %1595 = vmatprep.subr.bf16.mxu0 0
      %1596 = vmatpush1.bf16.msra.mxu0 0
      %1597 = vmatprep.subr.bf16.mxu0 0
      %1598 = vmatpush1.bf16.msra.mxu0 %v1581
      %1599 = vmatprep.subr.bf16.mxu0 0
      %1600 = vmatpush2.bf16.msra.mxu0 0
      %1601 = vmatprep.subr.bf16.mxu0 0
      %1602 = vmatpush2.bf16.msra.mxu0 0
      %1603 = vmatprep.subr.bf16.mxu0 0
      %1604 = vmatpush2.bf16.msra.mxu0 0
      %1605 = vmatprep.subr.bf16.mxu0 0
      %1606 = vmatpush2.bf16.msra.mxu0 0
      %1607 = vmatprep.subr.bf16.mxu0 0
      %1608 = vmatpush2.bf16.msra.mxu0 0
      %1609 = vmatprep.subr.bf16.mxu0 0
      %1610 = vmatpush2.bf16.msra.mxu0 0
      %1611 = vmatprep.subr.bf16.mxu0 0
      %1612 = vmatpush2.bf16.msra.mxu0 0
      %1613 = vmatprep.subr.bf16.mxu0 0
      %1614 = vmatpush2.bf16.msra.mxu0 0
      %1615 = vmatprep.mubr.bf16.mxu0 0
      %1616 = vmatmul.mubr.bf16.gmra.mxu0 %v727
      %v1617 = vpop.f32.mrf.mxu0
      %v1618 = vadd.f32 0.0, %v1617
      %v1619 = vpop.f32.mrf.mxu0
      %v1620 = vpop.f32.mrf.mxu0
      %v1621 = vadd.f32 0.0, %v1620
      %v1622 = vpop.f32.mrf.mxu0
      %1623 = vmatprep.mubr.bf16.mxu0 0
      %1624 = vmatmul.mubr.bf16.gmra.mxu0 %v729
      %v1625 = vpop.f32.mrf.mxu0
      %v1626 = vadd.f32 0.0, %v1625
      %v1627 = vpop.f32.mrf.mxu0
      %v1628 = vpop.f32.mrf.mxu0
      %v1629 = vadd.f32 0.0, %v1628
      %v1630 = vpop.f32.mrf.mxu0
      %1631 = vmatprep.mubr.bf16.mxu0 0
      %1632 = vmatmul.mubr.bf16.gmra.mxu0 %v731
      %v1633 = vpop.f32.mrf.mxu0
      %v1634 = vadd.f32 0.0, %v1633
      %v1635 = vpop.f32.mrf.mxu0
      %v1636 = vpop.f32.mrf.mxu0
      %v1637 = vadd.f32 0.0, %v1636
      %v1638 = vpop.f32.mrf.mxu0
      %1639 = vmatprep.mubr.bf16.mxu0 0
      %1640 = vmatmul.mubr.bf16.gmra.mxu0 %v733
      %v1641 = vpop.f32.mrf.mxu0
      %v1642 = vadd.f32 0.0, %v1641
      %v1643 = vpop.f32.mrf.mxu0
      %v1644 = vpop.f32.mrf.mxu0
      %v1645 = vadd.f32 0.0, %v1644
      %v1646 = vpop.f32.mrf.mxu0
      %1647 = vmatprep.mubr.bf16.mxu0 0
      %1648 = vmatmul.mubr.bf16.gmra.mxu0 %v735
      %v1649 = vpop.f32.mrf.mxu0
      %v1650 = vadd.f32 0.0, %v1649
      %v1651 = vpop.f32.mrf.mxu0
      %v1652 = vpop.f32.mrf.mxu0
      %v1653 = vadd.f32 0.0, %v1652
      %v1654 = vpop.f32.mrf.mxu0
      %1655 = vmatprep.mubr.bf16.mxu0 0
      %1656 = vmatmul.mubr.bf16.gmra.mxu0 %v737
      %v1657 = vpop.f32.mrf.mxu0
      %v1658 = vadd.f32 0.0, %v1657
      %v1659 = vpop.f32.mrf.mxu0
      %v1660 = vpop.f32.mrf.mxu0
      %v1661 = vadd.f32 0.0, %v1660
      %v1662 = vpop.f32.mrf.mxu0
      %1663 = vmatprep.mubr.bf16.mxu0 0
      %1664 = vmatmul.mubr.bf16.gmra.mxu0 %v739
      %v1665 = vpop.f32.mrf.mxu0
      %v1666 = vadd.f32 0.0, %v1665
      %v1667 = vpop.f32.mrf.mxu0
      %v1668 = vpop.f32.mrf.mxu0
      %v1669 = vadd.f32 0.0, %v1668
      %v1670 = vpop.f32.mrf.mxu0
      %1671 = vmatprep.mubr.bf16.mxu0 0
      %1672 = vmatmul.mubr.bf16.gmra.mxu0 %v741
      %v1673 = vpop.f32.mrf.mxu0
      %v1674 = vadd.f32 0.0, %v1673
      %v1675 = vpop.f32.mrf.mxu0
      %v1676 = vpop.f32.mrf.mxu0
      %v1677 = vadd.f32 0.0, %v1676
      %v1678 = vpop.f32.mrf.mxu0
      %1679 = vmatprep.mubr.bf16.mxu0 0
      %1680 = vmatmul.mubr.bf16.gmra.mxu0 %v743
      %v1681 = vpop.f32.mrf.mxu0
      %v1682 = vadd.f32 0.0, %v1681
      %v1683 = vpop.f32.mrf.mxu0
      %v1684 = vpop.f32.mrf.mxu0
      %v1685 = vadd.f32 0.0, %v1684
      %v1686 = vpop.f32.mrf.mxu0
      %1687 = vmatprep.mubr.bf16.mxu0 0
      %1688 = vmatmul.mubr.bf16.gmra.mxu0 %v745
      %v1689 = vpop.f32.mrf.mxu0
      %v1690 = vadd.f32 0.0, %v1689
      %v1691 = vpop.f32.mrf.mxu0
      %v1692 = vpop.f32.mrf.mxu0
      %v1693 = vadd.f32 0.0, %v1692
      %v1694 = vpop.f32.mrf.mxu0
      %1695 = vmatprep.mubr.bf16.mxu0 0
      %1696 = vmatmul.mubr.bf16.gmra.mxu0 %v747
      %v1697 = vpop.f32.mrf.mxu0
      %v1698 = vadd.f32 0.0, %v1697
      %v1699 = vpop.f32.mrf.mxu0
      %v1700 = vpop.f32.mrf.mxu0
      %v1701 = vadd.f32 0.0, %v1700
      %v1702 = vpop.f32.mrf.mxu0
      %1703 = vmatprep.mubr.bf16.mxu0 0
      %1704 = vmatmul.mubr.bf16.gmra.mxu0 %v749
      %v1705 = vpop.f32.mrf.mxu0
      %v1706 = vadd.f32 0.0, %v1705
      %v1707 = vpop.f32.mrf.mxu0
      %v1708 = vpop.f32.mrf.mxu0
      %v1709 = vadd.f32 0.0, %v1708
      %v1710 = vpop.f32.mrf.mxu0
      %1711 = vmatprep.mubr.bf16.mxu0 0
      %1712 = vmatmul.mubr.bf16.gmra.mxu0 %v751
      %v1713 = vpop.f32.mrf.mxu0
      %v1714 = vadd.f32 0.0, %v1713
      %v1715 = vpop.f32.mrf.mxu0
      %v1716 = vpop.f32.mrf.mxu0
      %v1717 = vadd.f32 0.0, %v1716
      %v1718 = vpop.f32.mrf.mxu0
      %1719 = vmatprep.mubr.bf16.mxu0 0
      %1720 = vmatmul.mubr.bf16.gmra.mxu0 %v753
      %v1721 = vpop.f32.mrf.mxu0
      %v1722 = vadd.f32 0.0, %v1721
      %v1723 = vpop.f32.mrf.mxu0
      %v1724 = vpop.f32.mrf.mxu0
      %v1725 = vadd.f32 0.0, %v1724
      %v1726 = vpop.f32.mrf.mxu0
      %1727 = vmatprep.mubr.bf16.mxu0 0
      %1728 = vmatmul.mubr.bf16.gmra.mxu0 %v1576
      %v1729 = vpop.f32.mrf.mxu0
      %v1730 = vadd.f32 0.0, %v1729
      %v1731 = vpop.f32.mrf.mxu0
      %v1732 = vpop.f32.mrf.mxu0
      %v1733 = vadd.f32 0.0, %v1732
      %v1734 = vpop.f32.mrf.mxu0
      %1735 = vmatprep.mubr.bf16.mxu0 0
      %1736 = vmatmul.mubr.bf16.gmra.mxu0 %v1578
      %v1737 = vpop.f32.mrf.mxu0
      %v1738 = vadd.f32 0.0, %v1737
      %v1739 = vpop.f32.mrf.mxu0
      %v1740 = vpop.f32.mrf.mxu0
      %v1741 = vadd.f32 0.0, %v1740
      %v1742 = vpop.f32.mrf.mxu0
      %1743 = vdwg.mxu0
      %v1744 = vadd.f32 %v1542, %v1618
      %v1745 = vadd.f32 %v1543, %v1621
      %v1746 = vadd.f32 %v1544, %v1626
      %v1747 = vadd.f32 %v1545, %v1629
      %v1748 = vadd.f32 %v1546, %v1634
      %v1749 = vadd.f32 %v1547, %v1637
      %v1750 = vadd.f32 %v1548, %v1642
      %v1751 = vadd.f32 %v1549, %v1645
      %v1752 = vadd.f32 %v1550, %v1650
      %v1753 = vadd.f32 %v1551, %v1653
      %v1754 = vadd.f32 %v1552, %v1658
      %v1755 = vadd.f32 %v1553, %v1661
      %v1756 = vadd.f32 %v1554, %v1666
      %v1757 = vadd.f32 %v1555, %v1669
      %v1758 = vadd.f32 %v1556, %v1674
      %v1759 = vadd.f32 %v1557, %v1677
      %v1760 = vadd.f32 %v1558, %v1682
      %v1761 = vadd.f32 %v1559, %v1685
      %v1762 = vadd.f32 %v1560, %v1690
      %v1763 = vadd.f32 %v1561, %v1693
      %v1764 = vadd.f32 %v1562, %v1698
      %v1765 = vadd.f32 %v1563, %v1701
      %v1766 = vadd.f32 %v1564, %v1706
      %v1767 = vadd.f32 %v1565, %v1709
      %v1768 = vadd.f32 %v1566, %v1714
      %v1769 = vadd.f32 %v1567, %v1717
      %v1770 = vadd.f32 %v1568, %v1722
      %v1771 = vadd.f32 %v1569, %v1725
      %v1772 = vadd.f32 %v1570, %v1730
      %v1773 = vadd.f32 %v1571, %v1733
      %v1774 = vadd.f32 %v1572, %v1738
      %v1775 = vadd.f32 %v1573, %v1741
      %v1780 = vrot.slane %v687, 1
      %v1781 = vrot.slane %v710, 1
      %v1782 = vsel %vm984, %v1780, %v1781
      %v1783 = vrot.slane %v689, 1
      %v1784 = vrot.slane %v711, 1
      %v1785 = vsel %vm984, %v1783, %v1784
      %s1786 = scalar_lea.vmem %s3, 8
      %v1787 = vld [vmem:[%s1786] sm:$0x3]
      %v1789 = vsel %vm722, %v1782, 0
      %v1792 = vsel %vm722, %v1785, 0
      %v1795 = vsel %vm755, %v1787, 0
      %1797 = vmatprep.subr.bf16.mxu0 0
      %1798 = vmatpush1.bf16.msra.mxu0 0
      %1799 = vmatprep.subr.bf16.mxu0 0
      %1800 = vmatpush1.bf16.msra.mxu0 0
      %1801 = vmatprep.subr.bf16.mxu0 0
      %1802 = vmatpush1.bf16.msra.mxu0 0
      %1803 = vmatprep.subr.bf16.mxu0 0
      %1804 = vmatpush1.bf16.msra.mxu0 0
      %1805 = vmatprep.subr.bf16.mxu0 0
      %1806 = vmatpush1.bf16.msra.mxu0 0
      %1807 = vmatprep.subr.bf16.mxu0 0
      %1808 = vmatpush1.bf16.msra.mxu0 0
      %1809 = vmatprep.subr.bf16.mxu0 0
      %1810 = vmatpush1.bf16.msra.mxu0 0
      %1811 = vmatprep.subr.bf16.mxu0 0
      %1812 = vmatpush1.bf16.msra.mxu0 %v1795
      %1813 = vmatprep.subr.bf16.mxu0 0
      %1814 = vmatpush2.bf16.msra.mxu0 0
      %1815 = vmatprep.subr.bf16.mxu0 0
      %1816 = vmatpush2.bf16.msra.mxu0 0
      %1817 = vmatprep.subr.bf16.mxu0 0
      %1818 = vmatpush2.bf16.msra.mxu0 0
      %1819 = vmatprep.subr.bf16.mxu0 0
      %1820 = vmatpush2.bf16.msra.mxu0 0
      %1821 = vmatprep.subr.bf16.mxu0 0
      %1822 = vmatpush2.bf16.msra.mxu0 0
      %1823 = vmatprep.subr.bf16.mxu0 0
      %1824 = vmatpush2.bf16.msra.mxu0 0
      %1825 = vmatprep.subr.bf16.mxu0 0
      %1826 = vmatpush2.bf16.msra.mxu0 0
      %1827 = vmatprep.subr.bf16.mxu0 0
      %1828 = vmatpush2.bf16.msra.mxu0 0
      %1829 = vmatprep.mubr.bf16.mxu0 0
      %1830 = vmatmul.mubr.bf16.gmra.mxu0 %v1042
      %v1831 = vpop.f32.mrf.mxu0
      %v1832 = vadd.f32 0.0, %v1831
      %v1833 = vpop.f32.mrf.mxu0
      %v1834 = vpop.f32.mrf.mxu0
      %v1835 = vadd.f32 0.0, %v1834
      %v1836 = vpop.f32.mrf.mxu0
      %1837 = vmatprep.mubr.bf16.mxu0 0
      %1838 = vmatmul.mubr.bf16.gmra.mxu0 %v1045
      %v1839 = vpop.f32.mrf.mxu0
      %v1840 = vadd.f32 0.0, %v1839
      %v1841 = vpop.f32.mrf.mxu0
      %v1842 = vpop.f32.mrf.mxu0
      %v1843 = vadd.f32 0.0, %v1842
      %v1844 = vpop.f32.mrf.mxu0
      %1845 = vmatprep.mubr.bf16.mxu0 0
      %1846 = vmatmul.mubr.bf16.gmra.mxu0 %v1048
      %v1847 = vpop.f32.mrf.mxu0
      %v1848 = vadd.f32 0.0, %v1847
      %v1849 = vpop.f32.mrf.mxu0
      %v1850 = vpop.f32.mrf.mxu0
      %v1851 = vadd.f32 0.0, %v1850
      %v1852 = vpop.f32.mrf.mxu0
      %1853 = vmatprep.mubr.bf16.mxu0 0
      %1854 = vmatmul.mubr.bf16.gmra.mxu0 %v1051
      %v1855 = vpop.f32.mrf.mxu0
      %v1856 = vadd.f32 0.0, %v1855
      %v1857 = vpop.f32.mrf.mxu0
      %v1858 = vpop.f32.mrf.mxu0
      %v1859 = vadd.f32 0.0, %v1858
      %v1860 = vpop.f32.mrf.mxu0
      %1861 = vmatprep.mubr.bf16.mxu0 0
      %1862 = vmatmul.mubr.bf16.gmra.mxu0 %v1054
      %v1863 = vpop.f32.mrf.mxu0
      %v1864 = vadd.f32 0.0, %v1863
      %v1865 = vpop.f32.mrf.mxu0
      %v1866 = vpop.f32.mrf.mxu0
      %v1867 = vadd.f32 0.0, %v1866
      %v1868 = vpop.f32.mrf.mxu0
      %1869 = vmatprep.mubr.bf16.mxu0 0
      %1870 = vmatmul.mubr.bf16.gmra.mxu0 %v1057
      %v1871 = vpop.f32.mrf.mxu0
      %v1872 = vadd.f32 0.0, %v1871
      %v1873 = vpop.f32.mrf.mxu0
      %v1874 = vpop.f32.mrf.mxu0
      %v1875 = vadd.f32 0.0, %v1874
      %v1876 = vpop.f32.mrf.mxu0
      %1877 = vmatprep.mubr.bf16.mxu0 0
      %1878 = vmatmul.mubr.bf16.gmra.mxu0 %v1060
      %v1879 = vpop.f32.mrf.mxu0
      %v1880 = vadd.f32 0.0, %v1879
      %v1881 = vpop.f32.mrf.mxu0
      %v1882 = vpop.f32.mrf.mxu0
      %v1883 = vadd.f32 0.0, %v1882
      %v1884 = vpop.f32.mrf.mxu0
      %1885 = vmatprep.mubr.bf16.mxu0 0
      %1886 = vmatmul.mubr.bf16.gmra.mxu0 %v1063
      %v1887 = vpop.f32.mrf.mxu0
      %v1888 = vadd.f32 0.0, %v1887
      %v1889 = vpop.f32.mrf.mxu0
      %v1890 = vpop.f32.mrf.mxu0
      %v1891 = vadd.f32 0.0, %v1890
      %v1892 = vpop.f32.mrf.mxu0
      %1893 = vmatprep.mubr.bf16.mxu0 0
      %1894 = vmatmul.mubr.bf16.gmra.mxu0 %v1066
      %v1895 = vpop.f32.mrf.mxu0
      %v1896 = vadd.f32 0.0, %v1895
      %v1897 = vpop.f32.mrf.mxu0
      %v1898 = vpop.f32.mrf.mxu0
      %v1899 = vadd.f32 0.0, %v1898
      %v1900 = vpop.f32.mrf.mxu0
      %1901 = vmatprep.mubr.bf16.mxu0 0
      %1902 = vmatmul.mubr.bf16.gmra.mxu0 %v1069
      %v1903 = vpop.f32.mrf.mxu0
      %v1904 = vadd.f32 0.0, %v1903
      %v1905 = vpop.f32.mrf.mxu0
      %v1906 = vpop.f32.mrf.mxu0
      %v1907 = vadd.f32 0.0, %v1906
      %v1908 = vpop.f32.mrf.mxu0
      %1909 = vmatprep.mubr.bf16.mxu0 0
      %1910 = vmatmul.mubr.bf16.gmra.mxu0 %v1072
      %v1911 = vpop.f32.mrf.mxu0
      %v1912 = vadd.f32 0.0, %v1911
      %v1913 = vpop.f32.mrf.mxu0
      %v1914 = vpop.f32.mrf.mxu0
      %v1915 = vadd.f32 0.0, %v1914
      %v1916 = vpop.f32.mrf.mxu0
      %1917 = vmatprep.mubr.bf16.mxu0 0
      %1918 = vmatmul.mubr.bf16.gmra.mxu0 %v1075
      %v1919 = vpop.f32.mrf.mxu0
      %v1920 = vadd.f32 0.0, %v1919
      %v1921 = vpop.f32.mrf.mxu0
      %v1922 = vpop.f32.mrf.mxu0
      %v1923 = vadd.f32 0.0, %v1922
      %v1924 = vpop.f32.mrf.mxu0
      %1925 = vmatprep.mubr.bf16.mxu0 0
      %1926 = vmatmul.mubr.bf16.gmra.mxu0 %v1078
      %v1927 = vpop.f32.mrf.mxu0
      %v1928 = vadd.f32 0.0, %v1927
      %v1929 = vpop.f32.mrf.mxu0
      %v1930 = vpop.f32.mrf.mxu0
      %v1931 = vadd.f32 0.0, %v1930
      %v1932 = vpop.f32.mrf.mxu0
      %1933 = vmatprep.mubr.bf16.mxu0 0
      %1934 = vmatmul.mubr.bf16.gmra.mxu0 %v1081
      %v1935 = vpop.f32.mrf.mxu0
      %v1936 = vadd.f32 0.0, %v1935
      %v1937 = vpop.f32.mrf.mxu0
      %v1938 = vpop.f32.mrf.mxu0
      %v1939 = vadd.f32 0.0, %v1938
      %v1940 = vpop.f32.mrf.mxu0
      %1941 = vmatprep.mubr.bf16.mxu0 0
      %1942 = vmatmul.mubr.bf16.gmra.mxu0 %v1789
      %v1943 = vpop.f32.mrf.mxu0
      %v1944 = vadd.f32 0.0, %v1943
      %v1945 = vpop.f32.mrf.mxu0
      %v1946 = vpop.f32.mrf.mxu0
      %v1947 = vadd.f32 0.0, %v1946
      %v1948 = vpop.f32.mrf.mxu0
      %1949 = vmatprep.mubr.bf16.mxu0 0
      %1950 = vmatmul.mubr.bf16.gmra.mxu0 %v1792
      %v1951 = vpop.f32.mrf.mxu0
      %v1952 = vadd.f32 0.0, %v1951
      %v1953 = vpop.f32.mrf.mxu0
      %v1954 = vpop.f32.mrf.mxu0
      %v1955 = vadd.f32 0.0, %v1954
      %v1956 = vpop.f32.mrf.mxu0
      %1957 = vdwg.mxu0
      %v1958 = vadd.f32 %v1744, %v1832
      %v1959 = vadd.f32 %v1745, %v1835
      %v1960 = vadd.f32 %v1746, %v1840
      %v1961 = vadd.f32 %v1747, %v1843
      %v1962 = vadd.f32 %v1748, %v1848
      %v1963 = vadd.f32 %v1749, %v1851
      %v1964 = vadd.f32 %v1750, %v1856
      %v1965 = vadd.f32 %v1751, %v1859
      %v1966 = vadd.f32 %v1752, %v1864
      %v1967 = vadd.f32 %v1753, %v1867
      %v1968 = vadd.f32 %v1754, %v1872
      %v1969 = vadd.f32 %v1755, %v1875
      %v1970 = vadd.f32 %v1756, %v1880
      %v1971 = vadd.f32 %v1757, %v1883
      %v1972 = vadd.f32 %v1758, %v1888
      %v1973 = vadd.f32 %v1759, %v1891
      %v1974 = vadd.f32 %v1760, %v1896
      %v1975 = vadd.f32 %v1761, %v1899
      %v1976 = vadd.f32 %v1762, %v1904
      %v1977 = vadd.f32 %v1763, %v1907
      %v1978 = vadd.f32 %v1764, %v1912
      %v1979 = vadd.f32 %v1765, %v1915
      %v1980 = vadd.f32 %v1766, %v1920
      %v1981 = vadd.f32 %v1767, %v1923
      %v1982 = vadd.f32 %v1768, %v1928
      %v1983 = vadd.f32 %v1769, %v1931
      %v1984 = vadd.f32 %v1770, %v1936
      %v1985 = vadd.f32 %v1771, %v1939
      %v1986 = vadd.f32 %v1772, %v1944
      %v1987 = vadd.f32 %v1773, %v1947
      %v1988 = vadd.f32 %v1774, %v1952
      %v1989 = vadd.f32 %v1775, %v1955
      %v1990 = vrot.slane %v687, 2
      %v1991 = vrot.slane %v710, 2
      %v1992 = vsel %vm1279, %v1990, %v1991
      %v1993 = vrot.slane %v689, 2
      %v1994 = vrot.slane %v711, 2
      %v1995 = vsel %vm1279, %v1993, %v1994
      %s1996 = scalar_lea.vmem %s3, 10
      %v1997 = vld [vmem:[%s1996] sm:$0x3]
      %v1999 = vsel %vm722, %v1992, 0
      %v2002 = vsel %vm722, %v1995, 0
      %v2005 = vsel %vm755, %v1997, 0
      %2007 = vmatprep.subr.bf16.mxu0 0
      %2008 = vmatpush1.bf16.msra.mxu0 0
      %2009 = vmatprep.subr.bf16.mxu0 0
      %2010 = vmatpush1.bf16.msra.mxu0 0
      %2011 = vmatprep.subr.bf16.mxu0 0
      %2012 = vmatpush1.bf16.msra.mxu0 0
      %2013 = vmatprep.subr.bf16.mxu0 0
      %2014 = vmatpush1.bf16.msra.mxu0 0
      %2015 = vmatprep.subr.bf16.mxu0 0
      %2016 = vmatpush1.bf16.msra.mxu0 0
      %2017 = vmatprep.subr.bf16.mxu0 0
      %2018 = vmatpush1.bf16.msra.mxu0 0
      %2019 = vmatprep.subr.bf16.mxu0 0
      %2020 = vmatpush1.bf16.msra.mxu0 0
      %2021 = vmatprep.subr.bf16.mxu0 0
      %2022 = vmatpush1.bf16.msra.mxu0 %v2005
      %2023 = vmatprep.subr.bf16.mxu0 0
      %2024 = vmatpush2.bf16.msra.mxu0 0
      %2025 = vmatprep.subr.bf16.mxu0 0
      %2026 = vmatpush2.bf16.msra.mxu0 0
      %2027 = vmatprep.subr.bf16.mxu0 0
      %2028 = vmatpush2.bf16.msra.mxu0 0
      %2029 = vmatprep.subr.bf16.mxu0 0
      %2030 = vmatpush2.bf16.msra.mxu0 0
      %2031 = vmatprep.subr.bf16.mxu0 0
      %2032 = vmatpush2.bf16.msra.mxu0 0
      %2033 = vmatprep.subr.bf16.mxu0 0
      %2034 = vmatpush2.bf16.msra.mxu0 0
      %2035 = vmatprep.subr.bf16.mxu0 0
      %2036 = vmatpush2.bf16.msra.mxu0 0
      %2037 = vmatprep.subr.bf16.mxu0 0
      %2038 = vmatpush2.bf16.msra.mxu0 0
      %2039 = vmatprep.mubr.bf16.mxu0 0
      %2040 = vmatmul.mubr.bf16.gmra.mxu0 %v1337
      %v2041 = vpop.f32.mrf.mxu0
      %v2042 = vadd.f32 0.0, %v2041
      %v2043 = vpop.f32.mrf.mxu0
      %v2044 = vpop.f32.mrf.mxu0
      %v2045 = vadd.f32 0.0, %v2044
      %v2046 = vpop.f32.mrf.mxu0
      %2047 = vmatprep.mubr.bf16.mxu0 0
      %2048 = vmatmul.mubr.bf16.gmra.mxu0 %v1340
      %v2049 = vpop.f32.mrf.mxu0
      %v2050 = vadd.f32 0.0, %v2049
      %v2051 = vpop.f32.mrf.mxu0
      %v2052 = vpop.f32.mrf.mxu0
      %v2053 = vadd.f32 0.0, %v2052
      %v2054 = vpop.f32.mrf.mxu0
      %2055 = vmatprep.mubr.bf16.mxu0 0
      %2056 = vmatmul.mubr.bf16.gmra.mxu0 %v1343
      %v2057 = vpop.f32.mrf.mxu0
      %v2058 = vadd.f32 0.0, %v2057
      %v2059 = vpop.f32.mrf.mxu0
      %v2060 = vpop.f32.mrf.mxu0
      %v2061 = vadd.f32 0.0, %v2060
      %v2062 = vpop.f32.mrf.mxu0
      %2063 = vmatprep.mubr.bf16.mxu0 0
      %2064 = vmatmul.mubr.bf16.gmra.mxu0 %v1346
      %v2065 = vpop.f32.mrf.mxu0
      %v2066 = vadd.f32 0.0, %v2065
      %v2067 = vpop.f32.mrf.mxu0
      %v2068 = vpop.f32.mrf.mxu0
      %v2069 = vadd.f32 0.0, %v2068
      %v2070 = vpop.f32.mrf.mxu0
      %2071 = vmatprep.mubr.bf16.mxu0 0
      %2072 = vmatmul.mubr.bf16.gmra.mxu0 %v1349
      %v2073 = vpop.f32.mrf.mxu0
      %v2074 = vadd.f32 0.0, %v2073
      %v2075 = vpop.f32.mrf.mxu0
      %v2076 = vpop.f32.mrf.mxu0
      %v2077 = vadd.f32 0.0, %v2076
      %v2078 = vpop.f32.mrf.mxu0
      %2079 = vmatprep.mubr.bf16.mxu0 0
      %2080 = vmatmul.mubr.bf16.gmra.mxu0 %v1352
      %v2081 = vpop.f32.mrf.mxu0
      %v2082 = vadd.f32 0.0, %v2081
      %v2083 = vpop.f32.mrf.mxu0
      %v2084 = vpop.f32.mrf.mxu0
      %v2085 = vadd.f32 0.0, %v2084
      %v2086 = vpop.f32.mrf.mxu0
      %2087 = vmatprep.mubr.bf16.mxu0 0
      %2088 = vmatmul.mubr.bf16.gmra.mxu0 %v1355
      %v2089 = vpop.f32.mrf.mxu0
      %v2090 = vadd.f32 0.0, %v2089
      %v2091 = vpop.f32.mrf.mxu0
      %v2092 = vpop.f32.mrf.mxu0
      %v2093 = vadd.f32 0.0, %v2092
      %v2094 = vpop.f32.mrf.mxu0
      %2095 = vmatprep.mubr.bf16.mxu0 0
      %2096 = vmatmul.mubr.bf16.gmra.mxu0 %v1358
      %v2097 = vpop.f32.mrf.mxu0
      %v2098 = vadd.f32 0.0, %v2097
      %v2099 = vpop.f32.mrf.mxu0
      %v2100 = vpop.f32.mrf.mxu0
      %v2101 = vadd.f32 0.0, %v2100
      %v2102 = vpop.f32.mrf.mxu0
      %2103 = vmatprep.mubr.bf16.mxu0 0
      %2104 = vmatmul.mubr.bf16.gmra.mxu0 %v1361
      %v2105 = vpop.f32.mrf.mxu0
      %v2106 = vadd.f32 0.0, %v2105
      %v2107 = vpop.f32.mrf.mxu0
      %v2108 = vpop.f32.mrf.mxu0
      %v2109 = vadd.f32 0.0, %v2108
      %v2110 = vpop.f32.mrf.mxu0
      %2111 = vmatprep.mubr.bf16.mxu0 0
      %2112 = vmatmul.mubr.bf16.gmra.mxu0 %v1364
      %v2113 = vpop.f32.mrf.mxu0
      %v2114 = vadd.f32 0.0, %v2113
      %v2115 = vpop.f32.mrf.mxu0
      %v2116 = vpop.f32.mrf.mxu0
      %v2117 = vadd.f32 0.0, %v2116
      %v2118 = vpop.f32.mrf.mxu0
      %2119 = vmatprep.mubr.bf16.mxu0 0
      %2120 = vmatmul.mubr.bf16.gmra.mxu0 %v1367
      %v2121 = vpop.f32.mrf.mxu0
      %v2122 = vadd.f32 0.0, %v2121
      %v2123 = vpop.f32.mrf.mxu0
      %v2124 = vpop.f32.mrf.mxu0
      %v2125 = vadd.f32 0.0, %v2124
      %v2126 = vpop.f32.mrf.mxu0
      %2127 = vmatprep.mubr.bf16.mxu0 0
      %2128 = vmatmul.mubr.bf16.gmra.mxu0 %v1370
      %v2129 = vpop.f32.mrf.mxu0
      %v2130 = vadd.f32 0.0, %v2129
      %v2131 = vpop.f32.mrf.mxu0
      %v2132 = vpop.f32.mrf.mxu0
      %v2133 = vadd.f32 0.0, %v2132
      %v2134 = vpop.f32.mrf.mxu0
      %2135 = vmatprep.mubr.bf16.mxu0 0
      %2136 = vmatmul.mubr.bf16.gmra.mxu0 %v1373
      %v2137 = vpop.f32.mrf.mxu0
      %v2138 = vadd.f32 0.0, %v2137
      %v2139 = vpop.f32.mrf.mxu0
      %v2140 = vpop.f32.mrf.mxu0
      %v2141 = vadd.f32 0.0, %v2140
      %v2142 = vpop.f32.mrf.mxu0
      %2143 = vmatprep.mubr.bf16.mxu0 0
      %2144 = vmatmul.mubr.bf16.gmra.mxu0 %v1376
      %v2145 = vpop.f32.mrf.mxu0
      %v2146 = vadd.f32 0.0, %v2145
      %v2147 = vpop.f32.mrf.mxu0
      %v2148 = vpop.f32.mrf.mxu0
      %v2149 = vadd.f32 0.0, %v2148
      %v2150 = vpop.f32.mrf.mxu0
      %2151 = vmatprep.mubr.bf16.mxu0 0
      %2152 = vmatmul.mubr.bf16.gmra.mxu0 %v1999
      %v2153 = vpop.f32.mrf.mxu0
      %v2154 = vadd.f32 0.0, %v2153
      %v2155 = vpop.f32.mrf.mxu0
      %v2156 = vpop.f32.mrf.mxu0
      %v2157 = vadd.f32 0.0, %v2156
      %v2158 = vpop.f32.mrf.mxu0
      %2159 = vmatprep.mubr.bf16.mxu0 0
      %2160 = vmatmul.mubr.bf16.gmra.mxu0 %v2002
      %v2161 = vpop.f32.mrf.mxu0
      %v2162 = vadd.f32 0.0, %v2161
      %v2163 = vpop.f32.mrf.mxu0
      %v2164 = vpop.f32.mrf.mxu0
      %v2165 = vadd.f32 0.0, %v2164
      %v2166 = vpop.f32.mrf.mxu0
      %2167 = vdwg.mxu0
      %v2168 = vadd.f32 %v1958, %v2042
      %v2169 = vadd.f32 %v1959, %v2045
      %v2170 = vadd.f32 %v1960, %v2050
      %v2171 = vadd.f32 %v1961, %v2053
      %v2172 = vadd.f32 %v1962, %v2058
      %v2173 = vadd.f32 %v1963, %v2061
      %v2174 = vadd.f32 %v1964, %v2066
      %v2175 = vadd.f32 %v1965, %v2069
      %v2176 = vadd.f32 %v1966, %v2074
      %v2177 = vadd.f32 %v1967, %v2077
      %v2178 = vadd.f32 %v1968, %v2082
      %v2179 = vadd.f32 %v1969, %v2085
      %v2180 = vadd.f32 %v1970, %v2090
      %v2181 = vadd.f32 %v1971, %v2093
      %v2182 = vadd.f32 %v1972, %v2098
      %v2183 = vadd.f32 %v1973, %v2101
      %v2184 = vadd.f32 %v1974, %v2106
      %v2185 = vadd.f32 %v1975, %v2109
      %v2186 = vadd.f32 %v1976, %v2114
      %v2187 = vadd.f32 %v1977, %v2117
      %v2188 = vadd.f32 %v1978, %v2122
      %v2189 = vadd.f32 %v1979, %v2125
      %v2190 = vadd.f32 %v1980, %v2130
      %v2191 = vadd.f32 %v1981, %v2133
      %v2192 = vadd.f32 %v1982, %v2138
      %v2193 = vadd.f32 %v1983, %v2141
      %v2194 = vadd.f32 %v1984, %v2146
      %v2195 = vadd.f32 %v1985, %v2149
      %v2196 = vadd.f32 %v1986, %v2154
      %v2197 = vadd.f32 %v1987, %v2157
      %v2198 = vadd.f32 %v1988, %v2162
      %v2199 = vadd.f32 %v1989, %v2165
      %s2200 = scalar_lea.vmem %s3, 12
      %v2201 = vld [vmem:[%s2200] sm:$0x3]
      %v2202 = vsel %vm722, %v691, 0
      %v2204 = vsel %vm722, %v693, 0
      %v2207 = vsel %vm755, %v2201, 0
      %2209 = vmatprep.subr.bf16.mxu0 0
      %2210 = vmatpush1.bf16.msra.mxu0 0
      %2211 = vmatprep.subr.bf16.mxu0 0
      %2212 = vmatpush1.bf16.msra.mxu0 0
      %2213 = vmatprep.subr.bf16.mxu0 0
      %2214 = vmatpush1.bf16.msra.mxu0 0
      %2215 = vmatprep.subr.bf16.mxu0 0
      %2216 = vmatpush1.bf16.msra.mxu0 0
      %2217 = vmatprep.subr.bf16.mxu0 0
      %2218 = vmatpush1.bf16.msra.mxu0 0
      %2219 = vmatprep.subr.bf16.mxu0 0
      %2220 = vmatpush1.bf16.msra.mxu0 0
      %2221 = vmatprep.subr.bf16.mxu0 0
      %2222 = vmatpush1.bf16.msra.mxu0 0
      %2223 = vmatprep.subr.bf16.mxu0 0
      %2224 = vmatpush1.bf16.msra.mxu0 %v2207
      %2225 = vmatprep.subr.bf16.mxu0 0
      %2226 = vmatpush2.bf16.msra.mxu0 0
      %2227 = vmatprep.subr.bf16.mxu0 0
      %2228 = vmatpush2.bf16.msra.mxu0 0
      %2229 = vmatprep.subr.bf16.mxu0 0
      %2230 = vmatpush2.bf16.msra.mxu0 0
      %2231 = vmatprep.subr.bf16.mxu0 0
      %2232 = vmatpush2.bf16.msra.mxu0 0
      %2233 = vmatprep.subr.bf16.mxu0 0
      %2234 = vmatpush2.bf16.msra.mxu0 0
      %2235 = vmatprep.subr.bf16.mxu0 0
      %2236 = vmatpush2.bf16.msra.mxu0 0
      %2237 = vmatprep.subr.bf16.mxu0 0
      %2238 = vmatpush2.bf16.msra.mxu0 0
      %2239 = vmatprep.subr.bf16.mxu0 0
      %2240 = vmatpush2.bf16.msra.mxu0 0
      %2241 = vmatprep.mubr.bf16.mxu0 0
      %2242 = vmatmul.mubr.bf16.gmra.mxu0 %v731
      %v2243 = vpop.f32.mrf.mxu0
      %v2244 = vadd.f32 0.0, %v2243
      %v2245 = vpop.f32.mrf.mxu0
      %v2246 = vpop.f32.mrf.mxu0
      %v2247 = vadd.f32 0.0, %v2246
      %v2248 = vpop.f32.mrf.mxu0
      %2249 = vmatprep.mubr.bf16.mxu0 0
      %2250 = vmatmul.mubr.bf16.gmra.mxu0 %v733
      %v2251 = vpop.f32.mrf.mxu0
      %v2252 = vadd.f32 0.0, %v2251
      %v2253 = vpop.f32.mrf.mxu0
      %v2254 = vpop.f32.mrf.mxu0
      %v2255 = vadd.f32 0.0, %v2254
      %v2256 = vpop.f32.mrf.mxu0
      %2257 = vmatprep.mubr.bf16.mxu0 0
      %2258 = vmatmul.mubr.bf16.gmra.mxu0 %v735
      %v2259 = vpop.f32.mrf.mxu0
      %v2260 = vadd.f32 0.0, %v2259
      %v2261 = vpop.f32.mrf.mxu0
      %v2262 = vpop.f32.mrf.mxu0
      %v2263 = vadd.f32 0.0, %v2262
      %v2264 = vpop.f32.mrf.mxu0
      %2265 = vmatprep.mubr.bf16.mxu0 0
      %2266 = vmatmul.mubr.bf16.gmra.mxu0 %v737
      %v2267 = vpop.f32.mrf.mxu0
      %v2268 = vadd.f32 0.0, %v2267
      %v2269 = vpop.f32.mrf.mxu0
      %v2270 = vpop.f32.mrf.mxu0
      %v2271 = vadd.f32 0.0, %v2270
      %v2272 = vpop.f32.mrf.mxu0
      %2273 = vmatprep.mubr.bf16.mxu0 0
      %2274 = vmatmul.mubr.bf16.gmra.mxu0 %v739
      %v2275 = vpop.f32.mrf.mxu0
      %v2276 = vadd.f32 0.0, %v2275
      %v2277 = vpop.f32.mrf.mxu0
      %v2278 = vpop.f32.mrf.mxu0
      %v2279 = vadd.f32 0.0, %v2278
      %v2280 = vpop.f32.mrf.mxu0
      %2281 = vmatprep.mubr.bf16.mxu0 0
      %2282 = vmatmul.mubr.bf16.gmra.mxu0 %v741
      %v2283 = vpop.f32.mrf.mxu0
      %v2284 = vadd.f32 0.0, %v2283
      %v2285 = vpop.f32.mrf.mxu0
      %v2286 = vpop.f32.mrf.mxu0
      %v2287 = vadd.f32 0.0, %v2286
      %v2288 = vpop.f32.mrf.mxu0
      %2289 = vmatprep.mubr.bf16.mxu0 0
      %2290 = vmatmul.mubr.bf16.gmra.mxu0 %v743
      %v2291 = vpop.f32.mrf.mxu0
      %v2292 = vadd.f32 0.0, %v2291
      %v2293 = vpop.f32.mrf.mxu0
      %v2294 = vpop.f32.mrf.mxu0
      %v2295 = vadd.f32 0.0, %v2294
      %v2296 = vpop.f32.mrf.mxu0
      %2297 = vmatprep.mubr.bf16.mxu0 0
      %2298 = vmatmul.mubr.bf16.gmra.mxu0 %v745
      %v2299 = vpop.f32.mrf.mxu0
      %v2300 = vadd.f32 0.0, %v2299
      %v2301 = vpop.f32.mrf.mxu0
      %v2302 = vpop.f32.mrf.mxu0
      %v2303 = vadd.f32 0.0, %v2302
      %v2304 = vpop.f32.mrf.mxu0
      %2305 = vmatprep.mubr.bf16.mxu0 0
      %2306 = vmatmul.mubr.bf16.gmra.mxu0 %v747
      %v2307 = vpop.f32.mrf.mxu0
      %v2308 = vadd.f32 0.0, %v2307
      %v2309 = vpop.f32.mrf.mxu0
      %v2310 = vpop.f32.mrf.mxu0
      %v2311 = vadd.f32 0.0, %v2310
      %v2312 = vpop.f32.mrf.mxu0
      %2313 = vmatprep.mubr.bf16.mxu0 0
      %2314 = vmatmul.mubr.bf16.gmra.mxu0 %v749
      %v2315 = vpop.f32.mrf.mxu0
      %v2316 = vadd.f32 0.0, %v2315
      %v2317 = vpop.f32.mrf.mxu0
      %v2318 = vpop.f32.mrf.mxu0
      %v2319 = vadd.f32 0.0, %v2318
      %v2320 = vpop.f32.mrf.mxu0
      %2321 = vmatprep.mubr.bf16.mxu0 0
      %2322 = vmatmul.mubr.bf16.gmra.mxu0 %v751
      %v2323 = vpop.f32.mrf.mxu0
      %v2324 = vadd.f32 0.0, %v2323
      %v2325 = vpop.f32.mrf.mxu0
      %v2326 = vpop.f32.mrf.mxu0
      %v2327 = vadd.f32 0.0, %v2326
      %v2328 = vpop.f32.mrf.mxu0
      %2329 = vmatprep.mubr.bf16.mxu0 0
      %2330 = vmatmul.mubr.bf16.gmra.mxu0 %v753
      %v2331 = vpop.f32.mrf.mxu0
      %v2332 = vadd.f32 0.0, %v2331
      %v2333 = vpop.f32.mrf.mxu0
      %v2334 = vpop.f32.mrf.mxu0
      %v2335 = vadd.f32 0.0, %v2334
      %v2336 = vpop.f32.mrf.mxu0
      %2337 = vmatprep.mubr.bf16.mxu0 0
      %2338 = vmatmul.mubr.bf16.gmra.mxu0 %v1576
      %v2339 = vpop.f32.mrf.mxu0
      %v2340 = vadd.f32 0.0, %v2339
      %v2341 = vpop.f32.mrf.mxu0
      %v2342 = vpop.f32.mrf.mxu0
      %v2343 = vadd.f32 0.0, %v2342
      %v2344 = vpop.f32.mrf.mxu0
      %2345 = vmatprep.mubr.bf16.mxu0 0
      %2346 = vmatmul.mubr.bf16.gmra.mxu0 %v1578
      %v2347 = vpop.f32.mrf.mxu0
      %v2348 = vadd.f32 0.0, %v2347
      %v2349 = vpop.f32.mrf.mxu0
      %v2350 = vpop.f32.mrf.mxu0
      %v2351 = vadd.f32 0.0, %v2350
      %v2352 = vpop.f32.mrf.mxu0
      %2353 = vmatprep.mubr.bf16.mxu0 0
      %2354 = vmatmul.mubr.bf16.gmra.mxu0 %v2202
      %v2355 = vpop.f32.mrf.mxu0
      %v2356 = vadd.f32 0.0, %v2355
      %v2357 = vpop.f32.mrf.mxu0
      %v2358 = vpop.f32.mrf.mxu0
      %v2359 = vadd.f32 0.0, %v2358
      %v2360 = vpop.f32.mrf.mxu0
      %2361 = vmatprep.mubr.bf16.mxu0 0
      %2362 = vmatmul.mubr.bf16.gmra.mxu0 %v2204
      %v2363 = vpop.f32.mrf.mxu0
      %v2364 = vadd.f32 0.0, %v2363
      %v2365 = vpop.f32.mrf.mxu0
      %v2366 = vpop.f32.mrf.mxu0
      %v2367 = vadd.f32 0.0, %v2366
      %v2368 = vpop.f32.mrf.mxu0
      %2369 = vdwg.mxu0
      %v2370 = vadd.f32 %v2168, %v2244
      %v2371 = vadd.f32 %v2169, %v2247
      %v2372 = vadd.f32 %v2170, %v2252
      %v2373 = vadd.f32 %v2171, %v2255
      %v2374 = vadd.f32 %v2172, %v2260
      %v2375 = vadd.f32 %v2173, %v2263
      %v2376 = vadd.f32 %v2174, %v2268
      %v2377 = vadd.f32 %v2175, %v2271
      %v2378 = vadd.f32 %v2176, %v2276
      %v2379 = vadd.f32 %v2177, %v2279
      %v2380 = vadd.f32 %v2178, %v2284
      %v2381 = vadd.f32 %v2179, %v2287
      %v2382 = vadd.f32 %v2180, %v2292
      %v2383 = vadd.f32 %v2181, %v2295
      %v2384 = vadd.f32 %v2182, %v2300
      %v2385 = vadd.f32 %v2183, %v2303
      %v2386 = vadd.f32 %v2184, %v2308
      %v2387 = vadd.f32 %v2185, %v2311
      %v2388 = vadd.f32 %v2186, %v2316
      %v2389 = vadd.f32 %v2187, %v2319
      %v2390 = vadd.f32 %v2188, %v2324
      %v2391 = vadd.f32 %v2189, %v2327
      %v2392 = vadd.f32 %v2190, %v2332
      %v2393 = vadd.f32 %v2191, %v2335
      %v2394 = vadd.f32 %v2192, %v2340
      %v2395 = vadd.f32 %v2193, %v2343
      %v2396 = vadd.f32 %v2194, %v2348
      %v2397 = vadd.f32 %v2195, %v2351
      %v2398 = vadd.f32 %v2196, %v2356
      %v2399 = vadd.f32 %v2197, %v2359
      %v2400 = vadd.f32 %v2198, %v2364
      %v2401 = vadd.f32 %v2199, %v2367
      %v2406 = vrot.slane %v691, 1
      %v2407 = vrot.slane %v712, 1
      %v2408 = vsel %vm984, %v2406, %v2407
      %v2409 = vrot.slane %v693, 1
      %v2410 = vrot.slane %v713, 1
      %v2411 = vsel %vm984, %v2409, %v2410
      %s2412 = scalar_lea.vmem %s3, 14
      %v2413 = vld [vmem:[%s2412] sm:$0x3]
      %v2415 = vsel %vm722, %v2408, 0
      %v2418 = vsel %vm722, %v2411, 0
      %v2421 = vsel %vm755, %v2413, 0
      %2423 = vmatprep.subr.bf16.mxu0 0
      %2424 = vmatpush1.bf16.msra.mxu0 0
      %2425 = vmatprep.subr.bf16.mxu0 0
      %2426 = vmatpush1.bf16.msra.mxu0 0
      %2427 = vmatprep.subr.bf16.mxu0 0
      %2428 = vmatpush1.bf16.msra.mxu0 0
      %2429 = vmatprep.subr.bf16.mxu0 0
      %2430 = vmatpush1.bf16.msra.mxu0 0
      %2431 = vmatprep.subr.bf16.mxu0 0
      %2432 = vmatpush1.bf16.msra.mxu0 0
      %2433 = vmatprep.subr.bf16.mxu0 0
      %2434 = vmatpush1.bf16.msra.mxu0 0
      %2435 = vmatprep.subr.bf16.mxu0 0
      %2436 = vmatpush1.bf16.msra.mxu0 0
      %2437 = vmatprep.subr.bf16.mxu0 0
      %2438 = vmatpush1.bf16.msra.mxu0 %v2421
      %2439 = vmatprep.subr.bf16.mxu0 0
      %2440 = vmatpush2.bf16.msra.mxu0 0
      %2441 = vmatprep.subr.bf16.mxu0 0
      %2442 = vmatpush2.bf16.msra.mxu0 0
      %2443 = vmatprep.subr.bf16.mxu0 0
      %2444 = vmatpush2.bf16.msra.mxu0 0
      %2445 = vmatprep.subr.bf16.mxu0 0
      %2446 = vmatpush2.bf16.msra.mxu0 0
      %2447 = vmatprep.subr.bf16.mxu0 0
      %2448 = vmatpush2.bf16.msra.mxu0 0
      %2449 = vmatprep.subr.bf16.mxu0 0
      %2450 = vmatpush2.bf16.msra.mxu0 0
      %2451 = vmatprep.subr.bf16.mxu0 0
      %2452 = vmatpush2.bf16.msra.mxu0 0
      %2453 = vmatprep.subr.bf16.mxu0 0
      %2454 = vmatpush2.bf16.msra.mxu0 0
      %2455 = vmatprep.mubr.bf16.mxu0 0
      %2456 = vmatmul.mubr.bf16.gmra.mxu0 %v1048
      %v2457 = vpop.f32.mrf.mxu0
      %v2458 = vadd.f32 0.0, %v2457
      %v2459 = vpop.f32.mrf.mxu0
      %v2460 = vpop.f32.mrf.mxu0
      %v2461 = vadd.f32 0.0, %v2460
      %v2462 = vpop.f32.mrf.mxu0
      %2463 = vmatprep.mubr.bf16.mxu0 0
      %2464 = vmatmul.mubr.bf16.gmra.mxu0 %v1051
      %v2465 = vpop.f32.mrf.mxu0
      %v2466 = vadd.f32 0.0, %v2465
      %v2467 = vpop.f32.mrf.mxu0
      %v2468 = vpop.f32.mrf.mxu0
      %v2469 = vadd.f32 0.0, %v2468
      %v2470 = vpop.f32.mrf.mxu0
      %2471 = vmatprep.mubr.bf16.mxu0 0
      %2472 = vmatmul.mubr.bf16.gmra.mxu0 %v1054
      %v2473 = vpop.f32.mrf.mxu0
      %v2474 = vadd.f32 0.0, %v2473
      %v2475 = vpop.f32.mrf.mxu0
      %v2476 = vpop.f32.mrf.mxu0
      %v2477 = vadd.f32 0.0, %v2476
      %v2478 = vpop.f32.mrf.mxu0
      %2479 = vmatprep.mubr.bf16.mxu0 0
      %2480 = vmatmul.mubr.bf16.gmra.mxu0 %v1057
      %v2481 = vpop.f32.mrf.mxu0
      %v2482 = vadd.f32 0.0, %v2481
      %v2483 = vpop.f32.mrf.mxu0
      %v2484 = vpop.f32.mrf.mxu0
      %v2485 = vadd.f32 0.0, %v2484
      %v2486 = vpop.f32.mrf.mxu0
      %2487 = vmatprep.mubr.bf16.mxu0 0
      %2488 = vmatmul.mubr.bf16.gmra.mxu0 %v1060
      %v2489 = vpop.f32.mrf.mxu0
      %v2490 = vadd.f32 0.0, %v2489
      %v2491 = vpop.f32.mrf.mxu0
      %v2492 = vpop.f32.mrf.mxu0
      %v2493 = vadd.f32 0.0, %v2492
      %v2494 = vpop.f32.mrf.mxu0
      %2495 = vmatprep.mubr.bf16.mxu0 0
      %2496 = vmatmul.mubr.bf16.gmra.mxu0 %v1063
      %v2497 = vpop.f32.mrf.mxu0
      %v2498 = vadd.f32 0.0, %v2497
      %v2499 = vpop.f32.mrf.mxu0
      %v2500 = vpop.f32.mrf.mxu0
      %v2501 = vadd.f32 0.0, %v2500
      %v2502 = vpop.f32.mrf.mxu0
      %2503 = vmatprep.mubr.bf16.mxu0 0
      %2504 = vmatmul.mubr.bf16.gmra.mxu0 %v1066
      %v2505 = vpop.f32.mrf.mxu0
      %v2506 = vadd.f32 0.0, %v2505
      %v2507 = vpop.f32.mrf.mxu0
      %v2508 = vpop.f32.mrf.mxu0
      %v2509 = vadd.f32 0.0, %v2508
      %v2510 = vpop.f32.mrf.mxu0
      %2511 = vmatprep.mubr.bf16.mxu0 0
      %2512 = vmatmul.mubr.bf16.gmra.mxu0 %v1069
      %v2513 = vpop.f32.mrf.mxu0
      %v2514 = vadd.f32 0.0, %v2513
      %v2515 = vpop.f32.mrf.mxu0
      %v2516 = vpop.f32.mrf.mxu0
      %v2517 = vadd.f32 0.0, %v2516
      %v2518 = vpop.f32.mrf.mxu0
      %2519 = vmatprep.mubr.bf16.mxu0 0
      %2520 = vmatmul.mubr.bf16.gmra.mxu0 %v1072
      %v2521 = vpop.f32.mrf.mxu0
      %v2522 = vadd.f32 0.0, %v2521
      %v2523 = vpop.f32.mrf.mxu0
      %v2524 = vpop.f32.mrf.mxu0
      %v2525 = vadd.f32 0.0, %v2524
      %v2526 = vpop.f32.mrf.mxu0
      %2527 = vmatprep.mubr.bf16.mxu0 0
      %2528 = vmatmul.mubr.bf16.gmra.mxu0 %v1075
      %v2529 = vpop.f32.mrf.mxu0
      %v2530 = vadd.f32 0.0, %v2529
      %v2531 = vpop.f32.mrf.mxu0
      %v2532 = vpop.f32.mrf.mxu0
      %v2533 = vadd.f32 0.0, %v2532
      %v2534 = vpop.f32.mrf.mxu0
      %2535 = vmatprep.mubr.bf16.mxu0 0
      %2536 = vmatmul.mubr.bf16.gmra.mxu0 %v1078
      %v2537 = vpop.f32.mrf.mxu0
      %v2538 = vadd.f32 0.0, %v2537
      %v2539 = vpop.f32.mrf.mxu0
      %v2540 = vpop.f32.mrf.mxu0
      %v2541 = vadd.f32 0.0, %v2540
      %v2542 = vpop.f32.mrf.mxu0
      %2543 = vmatprep.mubr.bf16.mxu0 0
      %2544 = vmatmul.mubr.bf16.gmra.mxu0 %v1081
      %v2545 = vpop.f32.mrf.mxu0
      %v2546 = vadd.f32 0.0, %v2545
      %v2547 = vpop.f32.mrf.mxu0
      %v2548 = vpop.f32.mrf.mxu0
      %v2549 = vadd.f32 0.0, %v2548
      %v2550 = vpop.f32.mrf.mxu0
      %2551 = vmatprep.mubr.bf16.mxu0 0
      %2552 = vmatmul.mubr.bf16.gmra.mxu0 %v1789
      %v2553 = vpop.f32.mrf.mxu0
      %v2554 = vadd.f32 0.0, %v2553
      %v2555 = vpop.f32.mrf.mxu0
      %v2556 = vpop.f32.mrf.mxu0
      %v2557 = vadd.f32 0.0, %v2556
      %v2558 = vpop.f32.mrf.mxu0
      %2559 = vmatprep.mubr.bf16.mxu0 0
      %2560 = vmatmul.mubr.bf16.gmra.mxu0 %v1792
      %v2561 = vpop.f32.mrf.mxu0
      %v2562 = vadd.f32 0.0, %v2561
      %v2563 = vpop.f32.mrf.mxu0
      %v2564 = vpop.f32.mrf.mxu0
      %v2565 = vadd.f32 0.0, %v2564
      %v2566 = vpop.f32.mrf.mxu0
      %2567 = vmatprep.mubr.bf16.mxu0 0
      %2568 = vmatmul.mubr.bf16.gmra.mxu0 %v2415
      %v2569 = vpop.f32.mrf.mxu0
      %v2570 = vadd.f32 0.0, %v2569
      %v2571 = vpop.f32.mrf.mxu0
      %v2572 = vpop.f32.mrf.mxu0
      %v2573 = vadd.f32 0.0, %v2572
      %v2574 = vpop.f32.mrf.mxu0
      %2575 = vmatprep.mubr.bf16.mxu0 0
      %2576 = vmatmul.mubr.bf16.gmra.mxu0 %v2418
      %v2577 = vpop.f32.mrf.mxu0
      %v2578 = vadd.f32 0.0, %v2577
      %v2579 = vpop.f32.mrf.mxu0
      %v2580 = vpop.f32.mrf.mxu0
      %v2581 = vadd.f32 0.0, %v2580
      %v2582 = vpop.f32.mrf.mxu0
      %2583 = vdwg.mxu0
      %v2584 = vadd.f32 %v2370, %v2458
      %v2585 = vadd.f32 %v2371, %v2461
      %v2586 = vadd.f32 %v2372, %v2466
      %v2587 = vadd.f32 %v2373, %v2469
      %v2588 = vadd.f32 %v2374, %v2474
      %v2589 = vadd.f32 %v2375, %v2477
      %v2590 = vadd.f32 %v2376, %v2482
      %v2591 = vadd.f32 %v2377, %v2485
      %v2592 = vadd.f32 %v2378, %v2490
      %v2593 = vadd.f32 %v2379, %v2493
      %v2594 = vadd.f32 %v2380, %v2498
      %v2595 = vadd.f32 %v2381, %v2501
      %v2596 = vadd.f32 %v2382, %v2506
      %v2597 = vadd.f32 %v2383, %v2509
      %v2598 = vadd.f32 %v2384, %v2514
      %v2599 = vadd.f32 %v2385, %v2517
      %v2600 = vadd.f32 %v2386, %v2522
      %v2601 = vadd.f32 %v2387, %v2525
      %v2602 = vadd.f32 %v2388, %v2530
      %v2603 = vadd.f32 %v2389, %v2533
      %v2604 = vadd.f32 %v2390, %v2538
      %v2605 = vadd.f32 %v2391, %v2541
      %v2606 = vadd.f32 %v2392, %v2546
      %v2607 = vadd.f32 %v2393, %v2549
      %v2608 = vadd.f32 %v2394, %v2554
      %v2609 = vadd.f32 %v2395, %v2557
      %v2610 = vadd.f32 %v2396, %v2562
      %v2611 = vadd.f32 %v2397, %v2565
      %v2612 = vadd.f32 %v2398, %v2570
      %v2613 = vadd.f32 %v2399, %v2573
      %v2614 = vadd.f32 %v2400, %v2578
      %v2615 = vadd.f32 %v2401, %v2581
      %v2616 = vrot.slane %v691, 2
      %v2617 = vrot.slane %v712, 2
      %v2618 = vsel %vm1279, %v2616, %v2617
      %v2619 = vrot.slane %v693, 2
      %v2620 = vrot.slane %v713, 2
      %v2621 = vsel %vm1279, %v2619, %v2620
      %s2622 = scalar_lea.vmem %s3, 16
      %v2623 = vld [vmem:[%s2622] sm:$0x3]
      %v2625 = vsel %vm722, %v2618, 0
      %v2628 = vsel %vm722, %v2621, 0
      %v2631 = vsel %vm755, %v2623, 0
      %2633 = vmatprep.subr.bf16.mxu0 0
      %2634 = vmatpush1.bf16.msra.mxu0 0
      %2635 = vmatprep.subr.bf16.mxu0 0
      %2636 = vmatpush1.bf16.msra.mxu0 0
      %2637 = vmatprep.subr.bf16.mxu0 0
      %2638 = vmatpush1.bf16.msra.mxu0 0
      %2639 = vmatprep.subr.bf16.mxu0 0
      %2640 = vmatpush1.bf16.msra.mxu0 0
      %2641 = vmatprep.subr.bf16.mxu0 0
      %2642 = vmatpush1.bf16.msra.mxu0 0
      %2643 = vmatprep.subr.bf16.mxu0 0
      %2644 = vmatpush1.bf16.msra.mxu0 0
      %2645 = vmatprep.subr.bf16.mxu0 0
      %2646 = vmatpush1.bf16.msra.mxu0 0
      %2647 = vmatprep.subr.bf16.mxu0 0
      %2648 = vmatpush1.bf16.msra.mxu0 %v2631
      %2649 = vmatprep.subr.bf16.mxu0 0
      %2650 = vmatpush2.bf16.msra.mxu0 0
      %2651 = vmatprep.subr.bf16.mxu0 0
      %2652 = vmatpush2.bf16.msra.mxu0 0
      %2653 = vmatprep.subr.bf16.mxu0 0
      %2654 = vmatpush2.bf16.msra.mxu0 0
      %2655 = vmatprep.subr.bf16.mxu0 0
      %2656 = vmatpush2.bf16.msra.mxu0 0
      %2657 = vmatprep.subr.bf16.mxu0 0
      %2658 = vmatpush2.bf16.msra.mxu0 0
      %2659 = vmatprep.subr.bf16.mxu0 0
      %2660 = vmatpush2.bf16.msra.mxu0 0
      %2661 = vmatprep.subr.bf16.mxu0 0
      %2662 = vmatpush2.bf16.msra.mxu0 0
      %2663 = vmatprep.subr.bf16.mxu0 0
      %2664 = vmatpush2.bf16.msra.mxu0 0
      %2665 = vmatprep.mubr.bf16.mxu0 0
      %2666 = vmatmul.mubr.bf16.gmra.mxu0 %v1343
      %v2667 = vpop.f32.mrf.mxu0
      %v2668 = vadd.f32 0.0, %v2667
      %v2669 = vpop.f32.mrf.mxu0
      %v2670 = vpop.f32.mrf.mxu0
      %v2671 = vadd.f32 0.0, %v2670
      %v2672 = vpop.f32.mrf.mxu0
      %2673 = vmatprep.mubr.bf16.mxu0 0
      %2674 = vmatmul.mubr.bf16.gmra.mxu0 %v1346
      %v2675 = vpop.f32.mrf.mxu0
      %v2676 = vadd.f32 0.0, %v2675
      %v2677 = vpop.f32.mrf.mxu0
      %v2678 = vpop.f32.mrf.mxu0
      %v2679 = vadd.f32 0.0, %v2678
      %v2680 = vpop.f32.mrf.mxu0
      %2681 = vmatprep.mubr.bf16.mxu0 0
      %2682 = vmatmul.mubr.bf16.gmra.mxu0 %v1349
      %v2683 = vpop.f32.mrf.mxu0
      %v2684 = vadd.f32 0.0, %v2683
      %v2685 = vpop.f32.mrf.mxu0
      %v2686 = vpop.f32.mrf.mxu0
      %v2687 = vadd.f32 0.0, %v2686
      %v2688 = vpop.f32.mrf.mxu0
      %2689 = vmatprep.mubr.bf16.mxu0 0
      %2690 = vmatmul.mubr.bf16.gmra.mxu0 %v1352
      %v2691 = vpop.f32.mrf.mxu0
      %v2692 = vadd.f32 0.0, %v2691
      %v2693 = vpop.f32.mrf.mxu0
      %v2694 = vpop.f32.mrf.mxu0
      %v2695 = vadd.f32 0.0, %v2694
      %v2696 = vpop.f32.mrf.mxu0
      %2697 = vmatprep.mubr.bf16.mxu0 0
      %2698 = vmatmul.mubr.bf16.gmra.mxu0 %v1355
      %v2699 = vpop.f32.mrf.mxu0
      %v2700 = vadd.f32 0.0, %v2699
      %v2701 = vpop.f32.mrf.mxu0
      %v2702 = vpop.f32.mrf.mxu0
      %v2703 = vadd.f32 0.0, %v2702
      %v2704 = vpop.f32.mrf.mxu0
      %2705 = vmatprep.mubr.bf16.mxu0 0
      %2706 = vmatmul.mubr.bf16.gmra.mxu0 %v1358
      %v2707 = vpop.f32.mrf.mxu0
      %v2708 = vadd.f32 0.0, %v2707
      %v2709 = vpop.f32.mrf.mxu0
      %v2710 = vpop.f32.mrf.mxu0
      %v2711 = vadd.f32 0.0, %v2710
      %v2712 = vpop.f32.mrf.mxu0
      %2713 = vmatprep.mubr.bf16.mxu0 0
      %2714 = vmatmul.mubr.bf16.gmra.mxu0 %v1361
      %v2715 = vpop.f32.mrf.mxu0
      %v2716 = vadd.f32 0.0, %v2715
      %v2717 = vpop.f32.mrf.mxu0
      %v2718 = vpop.f32.mrf.mxu0
      %v2719 = vadd.f32 0.0, %v2718
      %v2720 = vpop.f32.mrf.mxu0
      %2721 = vmatprep.mubr.bf16.mxu0 0
      %2722 = vmatmul.mubr.bf16.gmra.mxu0 %v1364
      %v2723 = vpop.f32.mrf.mxu0
      %v2724 = vadd.f32 0.0, %v2723
      %v2725 = vpop.f32.mrf.mxu0
      %v2726 = vpop.f32.mrf.mxu0
      %v2727 = vadd.f32 0.0, %v2726
      %v2728 = vpop.f32.mrf.mxu0
      %2729 = vmatprep.mubr.bf16.mxu0 0
      %2730 = vmatmul.mubr.bf16.gmra.mxu0 %v1367
      %v2731 = vpop.f32.mrf.mxu0
      %v2732 = vadd.f32 0.0, %v2731
      %v2733 = vpop.f32.mrf.mxu0
      %v2734 = vpop.f32.mrf.mxu0
      %v2735 = vadd.f32 0.0, %v2734
      %v2736 = vpop.f32.mrf.mxu0
      %2737 = vmatprep.mubr.bf16.mxu0 0
      %2738 = vmatmul.mubr.bf16.gmra.mxu0 %v1370
      %v2739 = vpop.f32.mrf.mxu0
      %v2740 = vadd.f32 0.0, %v2739
      %v2741 = vpop.f32.mrf.mxu0
      %v2742 = vpop.f32.mrf.mxu0
      %v2743 = vadd.f32 0.0, %v2742
      %v2744 = vpop.f32.mrf.mxu0
      %2745 = vmatprep.mubr.bf16.mxu0 0
      %2746 = vmatmul.mubr.bf16.gmra.mxu0 %v1373
      %v2747 = vpop.f32.mrf.mxu0
      %v2748 = vadd.f32 0.0, %v2747
      %v2749 = vpop.f32.mrf.mxu0
      %v2750 = vpop.f32.mrf.mxu0
      %v2751 = vadd.f32 0.0, %v2750
      %v2752 = vpop.f32.mrf.mxu0
      %2753 = vmatprep.mubr.bf16.mxu0 0
      %2754 = vmatmul.mubr.bf16.gmra.mxu0 %v1376
      %v2755 = vpop.f32.mrf.mxu0
      %v2756 = vadd.f32 0.0, %v2755
      %v2757 = vpop.f32.mrf.mxu0
      %v2758 = vpop.f32.mrf.mxu0
      %v2759 = vadd.f32 0.0, %v2758
      %v2760 = vpop.f32.mrf.mxu0
      %2761 = vmatprep.mubr.bf16.mxu0 0
      %2762 = vmatmul.mubr.bf16.gmra.mxu0 %v1999
      %v2763 = vpop.f32.mrf.mxu0
      %v2764 = vadd.f32 0.0, %v2763
      %v2765 = vpop.f32.mrf.mxu0
      %v2766 = vpop.f32.mrf.mxu0
      %v2767 = vadd.f32 0.0, %v2766
      %v2768 = vpop.f32.mrf.mxu0
      %2769 = vmatprep.mubr.bf16.mxu0 0
      %2770 = vmatmul.mubr.bf16.gmra.mxu0 %v2002
      %v2771 = vpop.f32.mrf.mxu0
      %v2772 = vadd.f32 0.0, %v2771
      %v2773 = vpop.f32.mrf.mxu0
      %v2774 = vpop.f32.mrf.mxu0
      %v2775 = vadd.f32 0.0, %v2774
      %v2776 = vpop.f32.mrf.mxu0
      %2777 = vmatprep.mubr.bf16.mxu0 0
      %2778 = vmatmul.mubr.bf16.gmra.mxu0 %v2625
      %v2779 = vpop.f32.mrf.mxu0
      %v2780 = vadd.f32 0.0, %v2779
      %v2781 = vpop.f32.mrf.mxu0
      %v2782 = vpop.f32.mrf.mxu0
      %v2783 = vadd.f32 0.0, %v2782
      %v2784 = vpop.f32.mrf.mxu0
      %2785 = vmatprep.mubr.bf16.mxu0 0
      %2786 = vmatmul.mubr.bf16.gmra.mxu0 %v2628
      %v2787 = vpop.f32.mrf.mxu0
      %v2788 = vadd.f32 0.0, %v2787
      %v2789 = vpop.f32.mrf.mxu0
      %v2790 = vpop.f32.mrf.mxu0
      %v2791 = vadd.f32 0.0, %v2790
      %v2792 = vpop.f32.mrf.mxu0
      %2793 = vdwg.mxu0
      %v2794 = vadd.f32 %v2584, %v2668
      %v2795 = vadd.f32 %v2585, %v2671
      %v2796 = vadd.f32 %v2586, %v2676
      %v2797 = vadd.f32 %v2587, %v2679
      %v2798 = vadd.f32 %v2588, %v2684
      %v2799 = vadd.f32 %v2589, %v2687
      %v2800 = vadd.f32 %v2590, %v2692
      %v2801 = vadd.f32 %v2591, %v2695
      %v2802 = vadd.f32 %v2592, %v2700
      %v2803 = vadd.f32 %v2593, %v2703
      %v2804 = vadd.f32 %v2594, %v2708
      %v2805 = vadd.f32 %v2595, %v2711
      %v2806 = vadd.f32 %v2596, %v2716
      %v2807 = vadd.f32 %v2597, %v2719
      %v2808 = vadd.f32 %v2598, %v2724
      %v2809 = vadd.f32 %v2599, %v2727
      %v2810 = vadd.f32 %v2600, %v2732
      %v2811 = vadd.f32 %v2601, %v2735
      %v2812 = vadd.f32 %v2602, %v2740
      %v2813 = vadd.f32 %v2603, %v2743
      %v2814 = vadd.f32 %v2604, %v2748
      %v2815 = vadd.f32 %v2605, %v2751
      %v2816 = vadd.f32 %v2606, %v2756
      %v2817 = vadd.f32 %v2607, %v2759
      %v2818 = vadd.f32 %v2608, %v2764
      %v2819 = vadd.f32 %v2609, %v2767
      %v2820 = vadd.f32 %v2610, %v2772
      %v2821 = vadd.f32 %v2611, %v2775
      %v2822 = vadd.f32 %v2612, %v2780
      %v2823 = vadd.f32 %v2613, %v2783
      %v2824 = vadd.f32 %v2614, %v2788
      %v2825 = vadd.f32 %v2615, %v2791
      %v2826 = vpack.c.bf16 %v2795, %v2794
      %v2827 = vpack.c.bf16 %v2797, %v2796
      %v2828 = vpack.c.bf16 %v2799, %v2798
      %v2829 = vpack.c.bf16 %v2801, %v2800
      %v2830 = vpack.c.bf16 %v2803, %v2802
      %v2831 = vpack.c.bf16 %v2805, %v2804
      %v2832 = vpack.c.bf16 %v2807, %v2806
      %v2833 = vpack.c.bf16 %v2809, %v2808
      %v2834 = vpack.c.bf16 %v2811, %v2810
      %v2835 = vpack.c.bf16 %v2813, %v2812
      %v2836 = vpack.c.bf16 %v2815, %v2814
      %v2837 = vpack.c.bf16 %v2817, %v2816
      %v2838 = vpack.c.bf16 %v2819, %v2818
      %v2839 = vpack.c.bf16 %v2821, %v2820
      %v2840 = vpack.c.bf16 %v2823, %v2822
      %v2841 = vpack.c.bf16 %v2825, %v2824
      %v2858 = vunpack.c.l.b16 %v2826
      %v2859 = vunpack.c.h.b16 %v2826
      %v2860 = vunpack.c.l.b16 %v2827
      %v2861 = vunpack.c.h.b16 %v2827
      %v2862 = vunpack.c.l.b16 %v2828
      %v2863 = vunpack.c.h.b16 %v2828
      %v2864 = vunpack.c.l.b16 %v2829
      %v2865 = vunpack.c.h.b16 %v2829
      %v2866 = vunpack.c.l.b16 %v2830
      %v2867 = vunpack.c.h.b16 %v2830
      %v2868 = vunpack.c.l.b16 %v2831
      %v2869 = vunpack.c.h.b16 %v2831
      %v2870 = vunpack.c.l.b16 %v2832
      %v2871 = vunpack.c.h.b16 %v2832
      %v2872 = vunpack.c.l.b16 %v2833
      %v2873 = vunpack.c.h.b16 %v2833
      %v2874 = vunpack.c.l.b16 %v2834
      %v2875 = vunpack.c.h.b16 %v2834
      %v2876 = vunpack.c.l.b16 %v2835
      %v2877 = vunpack.c.h.b16 %v2835
      %v2878 = vunpack.c.l.b16 %v2836
      %v2879 = vunpack.c.h.b16 %v2836
      %v2880 = vunpack.c.l.b16 %v2837
      %v2881 = vunpack.c.h.b16 %v2837
      %v2882 = vunpack.c.l.b16 %v2838
      %v2883 = vunpack.c.h.b16 %v2838
      %v2884 = vunpack.c.l.b16 %v2839
      %v2885 = vunpack.c.h.b16 %v2839
      %v2886 = vunpack.c.l.b16 %v2840
      %v2887 = vunpack.c.h.b16 %v2840
      %v2888 = vunpack.c.l.b16 %v2841
      %v2889 = vunpack.c.h.b16 %v2841
      %v2890 = vpack.c.b16 %v2858, %v2858
      %v2891 = vpack.c.b16 %v2859, %v2859
      %v2892 = vpack.c.b16 %v2860, %v2860
      %v2893 = vpack.c.b16 %v2861, %v2861
      %v2894 = vpack.c.b16 %v2862, %v2862
      %v2895 = vpack.c.b16 %v2863, %v2863
      %v2896 = vpack.c.b16 %v2864, %v2864
      %v2897 = vpack.c.b16 %v2865, %v2865
      %v2898 = vpack.c.b16 %v2866, %v2866
      %v2899 = vpack.c.b16 %v2867, %v2867
      %v2900 = vpack.c.b16 %v2868, %v2868
      %v2901 = vpack.c.b16 %v2869, %v2869
      %v2902 = vpack.c.b16 %v2870, %v2870
      %v2903 = vpack.c.b16 %v2871, %v2871
      %v2904 = vpack.c.b16 %v2872, %v2872
      %v2905 = vpack.c.b16 %v2873, %v2873
      %v2906 = vpack.c.b16 %v2874, %v2874
      %v2907 = vpack.c.b16 %v2875, %v2875
      %v2908 = vpack.c.b16 %v2876, %v2876
      %v2909 = vpack.c.b16 %v2877, %v2877
      %v2910 = vpack.c.b16 %v2878, %v2878
      %v2911 = vpack.c.b16 %v2879, %v2879
      %v2912 = vpack.c.b16 %v2880, %v2880
      %v2913 = vpack.c.b16 %v2881, %v2881
      %v2914 = vpack.c.b16 %v2882, %v2882
      %v2915 = vpack.c.b16 %v2883, %v2883
      %v2916 = vpack.c.b16 %v2884, %v2884
      %v2917 = vpack.c.b16 %v2885, %v2885
      %v2918 = vpack.c.b16 %v2886, %v2886
      %v2919 = vpack.c.b16 %v2887, %v2887
      %v2920 = vpack.c.b16 %v2888, %v2888
      %v2921 = vpack.c.b16 %v2889, %v2889
      %vm2954 = vcmask 257024
      %2955 = vst.msk [vmem:[%s440] sm:$0xf] %vm2954, %v2890
      %2956 = vst.msk [vmem:[%s440 + $0x4] sm:$0xf] %vm2954, %v2891
      %2957 = vst.msk [vmem:[%s440 + $0x8] sm:$0xf] %vm2954, %v2892
      %2958 = vst.msk [vmem:[%s440 + $0xc] sm:$0xf] %vm2954, %v2893
      %2959 = vst.msk [vmem:[%s440 + $0x10] sm:$0xf] %vm2954, %v2894
      %2960 = vst.msk [vmem:[%s440 + $0x14] sm:$0xf] %vm2954, %v2895
      %2961 = vst.msk [vmem:[%s440 + $0x18] sm:$0xf] %vm2954, %v2896
      %2962 = vst.msk [vmem:[%s440 + $0x1c] sm:$0xf] %vm2954, %v2897
      %2963 = vst.msk [vmem:[%s440 + $0x20] sm:$0xf] %vm2954, %v2898
      %2964 = vst.msk [vmem:[%s440 + $0x24] sm:$0xf] %vm2954, %v2899
      %2965 = vst.msk [vmem:[%s440 + $0x28] sm:$0xf] %vm2954, %v2900
      %2966 = vst.msk [vmem:[%s440 + $0x2c] sm:$0xf] %vm2954, %v2901
      %2967 = vst.msk [vmem:[%s440 + $0x30] sm:$0xf] %vm2954, %v2902
      %2968 = vst.msk [vmem:[%s440 + $0x34] sm:$0xf] %vm2954, %v2903
      %2969 = vst.msk [vmem:[%s440 + $0x38] sm:$0xf] %vm2954, %v2904
      %2970 = vst.msk [vmem:[%s440 + $0x3c] sm:$0xf] %vm2954, %v2905
      %2971 = vst.msk [vmem:[%s440 + $0x40] sm:$0xf] %vm2954, %v2906
      %2972 = vst.msk [vmem:[%s440 + $0x44] sm:$0xf] %vm2954, %v2907
      %2973 = vst.msk [vmem:[%s440 + $0x48] sm:$0xf] %vm2954, %v2908
      %2974 = vst.msk [vmem:[%s440 + $0x4c] sm:$0xf] %vm2954, %v2909
      %2975 = vst.msk [vmem:[%s440 + $0x50] sm:$0xf] %vm2954, %v2910
      %2976 = vst.msk [vmem:[%s440 + $0x54] sm:$0xf] %vm2954, %v2911
      %2977 = vst.msk [vmem:[%s440 + $0x58] sm:$0xf] %vm2954, %v2912
      %2978 = vst.msk [vmem:[%s440 + $0x5c] sm:$0xf] %vm2954, %v2913
      %2979 = vst.msk [vmem:[%s440 + $0x60] sm:$0xf] %vm2954, %v2914
      %2980 = vst.msk [vmem:[%s440 + $0x64] sm:$0xf] %vm2954, %v2915
      %2981 = vst.msk [vmem:[%s440 + $0x68] sm:$0xf] %vm2954, %v2916
      %2982 = vst.msk [vmem:[%s440 + $0x6c] sm:$0xf] %vm2954, %v2917
      %2983 = vst.msk [vmem:[%s440 + $0x70] sm:$0xf] %vm2954, %v2918
      %2984 = vst.msk [vmem:[%s440 + $0x74] sm:$0xf] %vm2954, %v2919
      %2985 = vst.msk [vmem:[%s440 + $0x78] sm:$0xf] %vm2954, %v2920
      %2986 = vst.msk [vmem:[%s440 + $0x7c] sm:$0xf] %vm2954, %v2921
      %v2987 = vunpack.c.l.bf16 %v2826
      %v2988 = vunpack.c.h.bf16 %v2826
      %v2989 = vunpack.c.l.bf16 %v2827
      %v2990 = vunpack.c.h.bf16 %v2827
      %v2991 = vunpack.c.l.bf16 %v2828
      %v2992 = vunpack.c.h.bf16 %v2828
      %v2993 = vunpack.c.l.bf16 %v2829
      %v2994 = vunpack.c.h.bf16 %v2829
      %v2995 = vunpack.c.l.bf16 %v2830
      %v2996 = vunpack.c.h.bf16 %v2830
      %v2997 = vunpack.c.l.bf16 %v2831
      %v2998 = vunpack.c.h.bf16 %v2831
      %v2999 = vunpack.c.l.bf16 %v2832
      %v3000 = vunpack.c.h.bf16 %v2832
      %v3001 = vunpack.c.l.bf16 %v2833
      %v3002 = vunpack.c.h.bf16 %v2833
      %v3003 = vunpack.c.l.bf16 %v2834
      %v3004 = vunpack.c.h.bf16 %v2834
      %v3005 = vunpack.c.l.bf16 %v2835
      %v3006 = vunpack.c.h.bf16 %v2835
      %v3007 = vunpack.c.l.bf16 %v2836
      %v3008 = vunpack.c.h.bf16 %v2836
      %v3009 = vunpack.c.l.bf16 %v2837
      %v3010 = vunpack.c.h.bf16 %v2837
      %v3011 = vunpack.c.l.bf16 %v2838
      %v3012 = vunpack.c.h.bf16 %v2838
      %v3013 = vunpack.c.l.bf16 %v2839
      %v3014 = vunpack.c.h.bf16 %v2839
      %v3015 = vunpack.c.l.bf16 %v2840
      %v3016 = vunpack.c.h.bf16 %v2840
      %v3017 = vunpack.c.l.bf16 %v2841
      %v3018 = vunpack.c.h.bf16 %v2841
      %vm3019 = vcmask 261120
      %v3020 = vsel %vm3019, %v2987, 0.0
      %v3021 = vsel %vm3019, %v2988, 0.0
      %v3022 = vadd.f32 %v3020, %v3021
      %v3023 = vsel %vm3019, %v2989, 0.0
      %v3024 = vadd.f32 %v3022, %v3023
      %v3025 = vsel %vm3019, %v2990, 0.0
      %v3026 = vadd.f32 %v3024, %v3025
      %v3027 = vsel %vm3019, %v2991, 0.0
      %v3028 = vadd.f32 %v3026, %v3027
      %v3029 = vsel %vm3019, %v2992, 0.0
      %v3030 = vadd.f32 %v3028, %v3029
      %v3031 = vsel %vm3019, %v2993, 0.0
      %v3032 = vadd.f32 %v3030, %v3031
      %v3033 = vsel %vm3019, %v2994, 0.0
      %v3034 = vadd.f32 %v3032, %v3033
      %v3035 = vsel %vm3019, %v2995, 0.0
      %v3036 = vadd.f32 %v3034, %v3035
      %v3037 = vsel %vm3019, %v2996, 0.0
      %v3038 = vadd.f32 %v3036, %v3037
      %v3039 = vsel %vm3019, %v2997, 0.0
      %v3040 = vadd.f32 %v3038, %v3039
      %v3041 = vsel %vm3019, %v2998, 0.0
      %v3042 = vadd.f32 %v3040, %v3041
      %v3043 = vsel %vm3019, %v2999, 0.0
      %v3044 = vadd.f32 %v3042, %v3043
      %v3045 = vsel %vm3019, %v3000, 0.0
      %v3046 = vadd.f32 %v3044, %v3045
      %v3047 = vsel %vm3019, %v3001, 0.0
      %v3048 = vadd.f32 %v3046, %v3047
      %v3049 = vsel %vm3019, %v3002, 0.0
      %v3050 = vadd.f32 %v3048, %v3049
      %v3051 = vsel %vm3019, %v3003, 0.0
      %v3052 = vadd.f32 %v3050, %v3051
      %v3053 = vsel %vm3019, %v3004, 0.0
      %v3054 = vadd.f32 %v3052, %v3053
      %v3055 = vsel %vm3019, %v3005, 0.0
      %v3056 = vadd.f32 %v3054, %v3055
      %v3057 = vsel %vm3019, %v3006, 0.0
      %v3058 = vadd.f32 %v3056, %v3057
      %v3059 = vsel %vm3019, %v3007, 0.0
      %v3060 = vadd.f32 %v3058, %v3059
      %v3061 = vsel %vm3019, %v3008, 0.0
      %v3062 = vadd.f32 %v3060, %v3061
      %v3063 = vsel %vm3019, %v3009, 0.0
      %v3064 = vadd.f32 %v3062, %v3063
      %v3065 = vsel %vm3019, %v3010, 0.0
      %v3066 = vadd.f32 %v3064, %v3065
      %v3067 = vsel %vm3019, %v3011, 0.0
      %v3068 = vadd.f32 %v3066, %v3067
      %v3069 = vsel %vm3019, %v3012, 0.0
      %v3070 = vadd.f32 %v3068, %v3069
      %v3071 = vsel %vm3019, %v3013, 0.0
      %v3072 = vadd.f32 %v3070, %v3071
      %v3073 = vsel %vm3019, %v3014, 0.0
      %v3074 = vadd.f32 %v3072, %v3073
      %v3075 = vsel %vm3019, %v3015, 0.0
      %v3076 = vadd.f32 %v3074, %v3075
      %v3077 = vsel %vm3019, %v3016, 0.0
      %v3078 = vadd.f32 %v3076, %v3077
      %v3079 = vsel %vm3019, %v3017, 0.0
      %v3080 = vadd.f32 %v3078, %v3079
      %v3081 = vsel %vm3019, %v3018, 0.0
      %v3082 = vadd.f32 %v3080, %v3081
      %v3083 = vrot.slane %v3082, 4
      %v3084 = vadd.f32 %v3082, %v3083
      %v3085 = vrot.slane %v3084, 2
      %v3086 = vadd.f32 %v3084, %v3085
      %v3087 = vrot.slane %v3086, 1
      %v3088 = vadd.f32 %v3086, %v3087
      %v3089 = vmul.f32 %v2987, %v2987
      %v3090 = vmul.f32 %v2988, %v2988
      %v3091 = vmul.f32 %v2989, %v2989
      %v3092 = vmul.f32 %v2990, %v2990
      %v3093 = vmul.f32 %v2991, %v2991
      %v3094 = vmul.f32 %v2992, %v2992
      %v3095 = vmul.f32 %v2993, %v2993
      %v3096 = vmul.f32 %v2994, %v2994
      %v3097 = vmul.f32 %v2995, %v2995
      %v3098 = vmul.f32 %v2996, %v2996
      %v3099 = vmul.f32 %v2997, %v2997
      %v3100 = vmul.f32 %v2998, %v2998
      %v3101 = vmul.f32 %v2999, %v2999
      %v3102 = vmul.f32 %v3000, %v3000
      %v3103 = vmul.f32 %v3001, %v3001
      %v3104 = vmul.f32 %v3002, %v3002
      %v3105 = vmul.f32 %v3003, %v3003
      %v3106 = vmul.f32 %v3004, %v3004
      %v3107 = vmul.f32 %v3005, %v3005
      %v3108 = vmul.f32 %v3006, %v3006
      %v3109 = vmul.f32 %v3007, %v3007
      %v3110 = vmul.f32 %v3008, %v3008
      %v3111 = vmul.f32 %v3009, %v3009
      %v3112 = vmul.f32 %v3010, %v3010
      %v3113 = vmul.f32 %v3011, %v3011
      %v3114 = vmul.f32 %v3012, %v3012
      %v3115 = vmul.f32 %v3013, %v3013
      %v3116 = vmul.f32 %v3014, %v3014
      %v3117 = vmul.f32 %v3015, %v3015
      %v3118 = vmul.f32 %v3016, %v3016
      %v3119 = vmul.f32 %v3017, %v3017
      %v3120 = vmul.f32 %v3018, %v3018
      %v3121 = vsel %vm3019, %v3089, 0.0
      %v3122 = vsel %vm3019, %v3090, 0.0
      %v3123 = vadd.f32 %v3121, %v3122
      %v3124 = vsel %vm3019, %v3091, 0.0
      %v3125 = vadd.f32 %v3123, %v3124
      %v3126 = vsel %vm3019, %v3092, 0.0
      %v3127 = vadd.f32 %v3125, %v3126
      %v3128 = vsel %vm3019, %v3093, 0.0
      %v3129 = vadd.f32 %v3127, %v3128
      %v3130 = vsel %vm3019, %v3094, 0.0
      %v3131 = vadd.f32 %v3129, %v3130
      %v3132 = vsel %vm3019, %v3095, 0.0
      %v3133 = vadd.f32 %v3131, %v3132
      %v3134 = vsel %vm3019, %v3096, 0.0
      %v3135 = vadd.f32 %v3133, %v3134
      %v3136 = vsel %vm3019, %v3097, 0.0
      %v3137 = vadd.f32 %v3135, %v3136
      %v3138 = vsel %vm3019, %v3098, 0.0
      %v3139 = vadd.f32 %v3137, %v3138
      %v3140 = vsel %vm3019, %v3099, 0.0
      %v3141 = vadd.f32 %v3139, %v3140
      %v3142 = vsel %vm3019, %v3100, 0.0
      %v3143 = vadd.f32 %v3141, %v3142
      %v3144 = vsel %vm3019, %v3101, 0.0
      %v3145 = vadd.f32 %v3143, %v3144
      %v3146 = vsel %vm3019, %v3102, 0.0
      %v3147 = vadd.f32 %v3145, %v3146
      %v3148 = vsel %vm3019, %v3103, 0.0
      %v3149 = vadd.f32 %v3147, %v3148
      %v3150 = vsel %vm3019, %v3104, 0.0
      %v3151 = vadd.f32 %v3149, %v3150
      %v3152 = vsel %vm3019, %v3105, 0.0
      %v3153 = vadd.f32 %v3151, %v3152
      %v3154 = vsel %vm3019, %v3106, 0.0
      %v3155 = vadd.f32 %v3153, %v3154
      %v3156 = vsel %vm3019, %v3107, 0.0
      %v3157 = vadd.f32 %v3155, %v3156
      %v3158 = vsel %vm3019, %v3108, 0.0
      %v3159 = vadd.f32 %v3157, %v3158
      %v3160 = vsel %vm3019, %v3109, 0.0
      %v3161 = vadd.f32 %v3159, %v3160
      %v3162 = vsel %vm3019, %v3110, 0.0
      %v3163 = vadd.f32 %v3161, %v3162
      %v3164 = vsel %vm3019, %v3111, 0.0
      %v3165 = vadd.f32 %v3163, %v3164
      %v3166 = vsel %vm3019, %v3112, 0.0
      %v3167 = vadd.f32 %v3165, %v3166
      %v3168 = vsel %vm3019, %v3113, 0.0
      %v3169 = vadd.f32 %v3167, %v3168
      %v3170 = vsel %vm3019, %v3114, 0.0
      %v3171 = vadd.f32 %v3169, %v3170
      %v3172 = vsel %vm3019, %v3115, 0.0
      %v3173 = vadd.f32 %v3171, %v3172
      %v3174 = vsel %vm3019, %v3116, 0.0
      %v3175 = vadd.f32 %v3173, %v3174
      %v3176 = vsel %vm3019, %v3117, 0.0
      %v3177 = vadd.f32 %v3175, %v3176
      %v3178 = vsel %vm3019, %v3118, 0.0
      %v3179 = vadd.f32 %v3177, %v3178
      %v3180 = vsel %vm3019, %v3119, 0.0
      %v3181 = vadd.f32 %v3179, %v3180
      %v3182 = vsel %vm3019, %v3120, 0.0
      %v3183 = vadd.f32 %v3181, %v3182
      %v3184 = vrot.slane %v3183, 4
      %v3185 = vadd.f32 %v3183, %v3184
      %v3186 = vrot.slane %v3185, 2
      %v3187 = vadd.f32 %v3185, %v3186
      %v3188 = vrot.slane %v3187, 1
      %v3189 = vadd.f32 %v3187, %v3188
      %v3190 = vsel %vm652, %v3088, %v3189
      %vm3191 = vcmask 254976
      %3192 = vst.msk [vmem:[%s448] sm:$0x3] %vm3191, %v3190
      %s3193 = smul.u32 16, %s23
      %p3194 = scmp.lt.s32.totalorder %s22, 1
      %s3195 = scalar_select %p3194, %s22, 1
      %p3196 = scmp.lt.s32.totalorder %s3193, 15
      %s3197 = scalar_select %p3196, %s3193, 15
      %s3198 = smul.addr %s3197, 2
      %s3199 = smul.addr %s3195, 32
      %s3200 = sadd.s32 %s3198, %s3199
      %s3201 = smul.addr %s3200, 4
      %s3202 = scalar_lea.vmem %s5, %s3201
      %p3203 = scmp.lt.s32.totalorder %s22, 1
      %s3204 = scalar_select %p3203, %s22, 1
      %p3205 = scmp.lt.s32.totalorder %s23, 0
      %s3206 = scalar_select %p3205, %s23, 0
      %s3207 = sadd.s32 %s3206, %s3204
      %s3208 = smul.addr %s3207, 2
      %s3209 = scalar_lea.vmem %s6, %s3208
      // Predicated region
      $region41: #{rru_double_conv.2} parent=39 // pred_check
        %p3210 = pneg %p192
      $region42: #{rru_double_conv.2} parent=39 // pred_check_branch
        %3212 = sbr.rel (%p3210) target = $region44
      $region43: #{rru_double_conv.2} parent=39 // pred_region
        %s3213 = smul.u32 16, %s23
      $region44: #{rru_double_conv.2} parent=39 // pred_fallthru
        _
      // Predicated region
      $region45: #{rru_double_conv.2} parent=39 // pred_check
        %p3214 = pneg %p220
      $region46: #{rru_double_conv.2} parent=39 // pred_check_branch
        %3216 = sbr.rel (%p3214) target = $region48
      $region47: #{rru_double_conv.2} parent=39 // pred_region
        _
      $region48: #{rru_double_conv.2} parent=39 // pred_fallthru
        _
    $region40: #{rru_double_conv.2} parent=5 // pred_fallthru
      _
    %p3217 = scmp.le.s32.totalorder 2, %s13
    // Predicated region
    $region49: #{rru_double_conv.2} parent=5 // pred_check
      %p3218 = pneg %p3217
    $region50: #{rru_double_conv.2} parent=5 // pred_check_branch
      %3220 = sbr.rel (%p3218) target = $region52
    $region51: #{rru_double_conv.2} parent=5 // pred_region
      %s3221 = ssub.s32 %s13, 2
      // Predicated region
      $region53: #{rru_double_conv.2} parent=51 // pred_check
        %p3222 = pneg %p198
      $region54: #{rru_double_conv.2} parent=51 // pred_check_branch
        %3224 = sbr.rel (%p3222) target = $region56
      $region55: #{rru_double_conv.2} parent=51 // pred_region
        %s3225 = smul.u32 16, %s25
        %p3226 = scmp.lt.s32.totalorder %s24, 1
        %s3227 = scalar_select %p3226, %s24, 1
        %p3228 = scmp.lt.s32.totalorder %s3225, 15
        %s3229 = scalar_select %p3228, %s3225, 15
        %s3230 = smul.addr %s3229, 2
        %s3231 = smul.addr %s3227, 32
        %s3232 = sadd.s32 %s3230, %s3231
        %s3233 = smul.addr %s3232, 4
        %s3234 = scalar_lea.vmem %s5, %s3233
      $region56: #{rru_double_conv.2} parent=51 // pred_fallthru
        _
      // Predicated region
      $region57: #{rru_double_conv.2} parent=51 // pred_check
        %p3235 = pneg %p226
      $region58: #{rru_double_conv.2} parent=51 // pred_check_branch
        %3237 = sbr.rel (%p3235) target = $region60
      $region59: #{rru_double_conv.2} parent=51 // pred_region
        %p3238 = scmp.lt.s32.totalorder %s24, 1
        %s3239 = scalar_select %p3238, %s24, 1
        %p3240 = scmp.lt.s32.totalorder %s25, 0
        %s3241 = scalar_select %p3240, %s25, 0
        %s3242 = sadd.s32 %s3241, %s3239
        %s3243 = smul.addr %s3242, 2
        %s3244 = scalar_lea.vmem %s6, %s3243
      $region60: #{rru_double_conv.2} parent=51 // pred_fallthru
        _
    $region52: #{rru_double_conv.2} parent=5 // pred_fallthru
      _
  $region6: #{rru_double_conv.2} parent=0 // loop_footer
    %s17 = sadd.s32 1, %s13
  $region7: #{rru_double_conv.2} parent=0 // loop_footer_branch
    %12 = sbr.rel target = $region3
  $region8: #{rru_double_conv.2} parent=0 // loop_exit
    _

// kernel: rru_double_conv.3
$region0: #{rru_double_conv.3}
  #allocation0 [shape = 'u32[]', space=smem, size = 0x4, offset = 0x4, fixed_abs, tag = 'smem constant byte address 0x4 - core index']
  #allocation1 [shape = 'u32[144,128]{1,0:T(1,128)}', space=vmem, size = 0x12000, scoped, tag = 'internal scratch']
  %s0 = inlined_call_operand.vmem [shape: bf16[2,16,16,32], index: 0, kind: input, shape index: {}, may-alias: {0,1,2}]
  %s1 = inlined_call_operand.vmem [shape: bf16[2,16,16,32], index: 1, kind: input, shape index: {}, may-alias: {0,1,2}]
  %s2 = inlined_call_operand.vmem [shape: bf16[2,16,16,32], index: 2, kind: input, shape index: {}, may-alias: {0,1,2}]
  %s3 = inlined_call_operand.vmem [shape: f32[2,1,32], index: 3, kind: input, shape index: {}]
  %s4 = inlined_call_operand.vmem [shape: f32[2,1,32], index: 4, kind: input, shape index: {}]
  %s5 = inlined_call_operand.vmem [shape: bf16[9,32,32], index: 5, kind: input, shape index: {}]
  %s6 = inlined_call_operand.vmem [shape: f32[1,32], index: 6, kind: input, shape index: {}]
  %s7 = inlined_call_operand.vmem [shape: bf16[2,16,16,32], index: 7, kind: output, shape index: {0}]
  %s8 = inlined_call_operand.vmem [shape: f32[2,1,2,32], index: 8, kind: output, shape index: {1}]
  %9 = xla_tuple %s7, %s8
  %s10 = sld [smem:[#allocation0]]
  $region69: #{rru_double_conv.3} parent=0
    _
  %s12 = ssub.s32 1, %s10
  %s13 = scalar_select 0, %s12, %s10
  loop: start=0, step=1, limit=4
  $region2: #{rru_double_conv.3} parent=0 // loop_pre_header
    _
  $region3: #{rru_double_conv.3} parent=0 // loop_header
    %s15 = sphi 0, %s19
    %p16 = scmp.ge.s32.totalorder %s15, 4
    %s22 = sphi 0, %s34
    %s23 = sphi 0, %s30
    %s24 = sphi 0, %s22
    %s25 = sphi 0, %s23
    %s26 = sphi 0, %s24
    %s27 = sphi 0, %s25
    %s47 = sphi 0, %s49
    %s50 = sphi 0, %s47
    %s51 = sphi 0, %s50
    %s67 = sphi 0, %s51
    %s75 = sphi 0, %s77
    %s78 = sphi 0, %s75
    %s79 = sphi 0, %s78
    %s95 = sphi 0, %s79
    %s111 = sphi 0, %s113
    %s114 = sphi 0, %s111
    %s115 = sphi 0, %s114
    %s131 = sphi 0, %s115
    %s137 = sphi 0, %s139
    %s140 = sphi 0, %s137
    %s141 = sphi 0, %s140
    %s157 = sphi 0, %s141
    %s163 = sphi 0, %s165
    %s166 = sphi 0, %s163
    %s167 = sphi 0, %s166
    %s183 = sphi 0, %s167
    %s187 = sphi 0, %s187
    %s189 = sphi 0, %s187
    %s190 = sphi 0, %s189
    %s204 = sphi 0, %s190
    %s208 = sphi 0, %s208
    %s210 = sphi 0, %s208
    %s211 = sphi 0, %s210
    %s225 = sphi 0, %s211
    %s233 = sphi 0, %s235
    %s236 = sphi 0, %s233
    %s237 = sphi 0, %s236
    %s253 = sphi 0, %s237
    %s261 = sphi 0, %s263
    %s264 = sphi 0, %s261
    %s265 = sphi 0, %s264
    %s281 = sphi 0, %s265
  $region4: #{rru_double_conv.3} parent=0 // loop_header_branch
    %18 = sbr.rel (%p16) target = $region8
  $region5: #{rru_double_conv.3} parent=0 // loop_body
    %s20 = ssub.s32 %s15, 1
    %s21 = ssub.s32 %s15, 2
    %s28 = sadd.s32 1, %s23
    %p29 = scmp.ge.s32.totalorder %s28, 1
    %s30 = scalar_select %p29, 0, %s28
    %s31 = sadd.s32 1, %s22
    %s32 = scalar_select %p29, %s31, %s22
    %p33 = scmp.ge.s32.totalorder %s32, 2
    %s34 = scalar_select %p33, 0, %s32
    %s35 = smul.u32 %s23, 8
    %s36 = ssub.s32 %s35, 1
    %p37 = scmp.gt.s32.totalorder %s36, 0
    %s38 = scalar_select %p37, %s36, 0
    %s39 = smul.u32 %s30, 8
    %s40 = ssub.s32 %s39, 1
    %p41 = scmp.gt.s32.totalorder %s40, 0
    %s42 = scalar_select %p41, %s40, 0
    %s43 = ssub.s32 %s22, %s34
    %s44 = ssub.s32 %s38, %s42
    %s45 = sor.u32 %s43, %s44
    %p46 = scmp.eq.s32.totalorder %s45, 0
    %s48 = sadd.s32 %s47, 1
    %s49 = scalar_select %p46, %s47, %s48
    %p52 = pneg %p46
    %p53 = scmp.eq.s32.totalorder %s15, 1
    %p54 = por %p52, %p53
    %p55 = scmp.ne.s32.totalorder %s47, %s50
    %p56 = scmp.eq.s32.totalorder %s15, 0
    %p57 = por %p55, %p56
    %p58 = scmp.ne.s32.totalorder %s47, %s50
    %p59 = scmp.eq.s32.totalorder %s20, 1
    %p60 = por %p58, %p59
    %p61 = scmp.ne.s32.totalorder %s50, %s51
    %p62 = scmp.eq.s32.totalorder %s20, 0
    %p63 = por %p61, %p62
    %p64 = scmp.ne.s32.totalorder %s50, %s51
    %p65 = scmp.eq.s32.totalorder %s21, 1
    %p66 = por %p64, %p65
    %p68 = scmp.ne.s32.totalorder %s51, %s67
    %p69 = scmp.eq.s32.totalorder %s21, 0
    %p70 = por %p68, %p69
    %s71 = ssub.s32 %s22, %s34
    %s72 = ssub.s32 %s23, %s30
    %s73 = sor.u32 %s71, %s72
    %p74 = scmp.eq.s32.totalorder %s73, 0
    %s76 = sadd.s32 %s75, 1
    %s77 = scalar_select %p74, %s75, %s76
    %p80 = pneg %p74
    %p81 = scmp.eq.s32.totalorder %s15, 1
    %p82 = por %p80, %p81
    %p83 = scmp.ne.s32.totalorder %s75, %s78
    %p84 = scmp.eq.s32.totalorder %s15, 0
    %p85 = por %p83, %p84
    %p86 = scmp.ne.s32.totalorder %s75, %s78
    %p87 = scmp.eq.s32.totalorder %s20, 1
    %p88 = por %p86, %p87
    %p89 = scmp.ne.s32.totalorder %s78, %s79
    %p90 = scmp.eq.s32.totalorder %s20, 0
    %p91 = por %p89, %p90
    %p92 = scmp.ne.s32.totalorder %s78, %s79
    %p93 = scmp.eq.s32.totalorder %s21, 1
    %p94 = por %p92, %p93
    %p96 = scmp.ne.s32.totalorder %s79, %s95
    %p97 = scmp.eq.s32.totalorder %s21, 0
    %p98 = por %p96, %p97
    %s99 = sadd.s32 %s23, 1
    %s100 = smul.u32 %s99, 8
    %p101 = scmp.lt.s32.totalorder %s100, 7
    %s102 = scalar_select %p101, %s100, 7
    %s103 = sadd.s32 %s30, 1
    %s104 = smul.u32 %s103, 8
    %p105 = scmp.lt.s32.totalorder %s104, 7
    %s106 = scalar_select %p105, %s104, 7
    %s107 = ssub.s32 %s22, %s34
    %s108 = ssub.s32 %s102, %s106
    %s109 = sor.u32 %s107, %s108
    %p110 = scmp.eq.s32.totalorder %s109, 0
    %s112 = sadd.s32 %s111, 1
    %s113 = scalar_select %p110, %s111, %s112
    %p116 = pneg %p110
    %p117 = scmp.eq.s32.totalorder %s15, 1
    %p118 = por %p116, %p117
    %p119 = scmp.ne.s32.totalorder %s111, %s114
    %p120 = scmp.eq.s32.totalorder %s15, 0
    %p121 = por %p119, %p120
    %p122 = scmp.ne.s32.totalorder %s111, %s114
    %p123 = scmp.eq.s32.totalorder %s20, 1
    %p124 = por %p122, %p123
    %p125 = scmp.ne.s32.totalorder %s114, %s115
    %p126 = scmp.eq.s32.totalorder %s20, 0
    %p127 = por %p125, %p126
    %p128 = scmp.ne.s32.totalorder %s114, %s115
    %p129 = scmp.eq.s32.totalorder %s21, 1
    %p130 = por %p128, %p129
    %p132 = scmp.ne.s32.totalorder %s115, %s131
    %p133 = scmp.eq.s32.totalorder %s21, 0
    %p134 = por %p132, %p133
    %s135 = ssub.s32 %s22, %s34
    %p136 = scmp.eq.s32.totalorder %s135, 0
    %s138 = sadd.s32 %s137, 1
    %s139 = scalar_select %p136, %s137, %s138
    %p142 = pneg %p136
    %p143 = scmp.eq.s32.totalorder %s15, 1
    %p144 = por %p142, %p143
    %p145 = scmp.ne.s32.totalorder %s137, %s140
    %p146 = scmp.eq.s32.totalorder %s15, 0
    %p147 = por %p145, %p146
    %p148 = scmp.ne.s32.totalorder %s137, %s140
    %p149 = scmp.eq.s32.totalorder %s20, 1
    %p150 = por %p148, %p149
    %p151 = scmp.ne.s32.totalorder %s140, %s141
    %p152 = scmp.eq.s32.totalorder %s20, 0
    %p153 = por %p151, %p152
    %p154 = scmp.ne.s32.totalorder %s140, %s141
    %p155 = scmp.eq.s32.totalorder %s21, 1
    %p156 = por %p154, %p155
    %p158 = scmp.ne.s32.totalorder %s141, %s157
    %p159 = scmp.eq.s32.totalorder %s21, 0
    %p160 = por %p158, %p159
    %s161 = ssub.s32 %s22, %s34
    %p162 = scmp.eq.s32.totalorder %s161, 0
    %s164 = sadd.s32 %s163, 1
    %s165 = scalar_select %p162, %s163, %s164
    %p168 = pneg %p162
    %p169 = scmp.eq.s32.totalorder %s15, 1
    %p170 = por %p168, %p169
    %p171 = scmp.ne.s32.totalorder %s163, %s166
    %p172 = scmp.eq.s32.totalorder %s15, 0
    %p173 = por %p171, %p172
    %p174 = scmp.ne.s32.totalorder %s163, %s166
    %p175 = scmp.eq.s32.totalorder %s20, 1
    %p176 = por %p174, %p175
    %p177 = scmp.ne.s32.totalorder %s166, %s167
    %p178 = scmp.eq.s32.totalorder %s20, 0
    %p179 = por %p177, %p178
    %p180 = scmp.ne.s32.totalorder %s166, %s167
    %p181 = scmp.eq.s32.totalorder %s21, 1
    %p182 = por %p180, %p181
    %p184 = scmp.ne.s32.totalorder %s167, %s183
    %p185 = scmp.eq.s32.totalorder %s21, 0
    %p186 = por %p184, %p185
    %s188 = sadd.s32 %s187, 1
    %p191 = scmp.eq.s32.totalorder %s15, 1
    %p192 = scmp.ne.s32.totalorder %s187, %s189
    %p193 = scmp.eq.s32.totalorder %s15, 0
    %p194 = por %p192, %p193
    %p195 = scmp.ne.s32.totalorder %s187, %s189
    %p196 = scmp.eq.s32.totalorder %s20, 1
    %p197 = por %p195, %p196
    %p198 = scmp.ne.s32.totalorder %s189, %s190
    %p199 = scmp.eq.s32.totalorder %s20, 0
    %p200 = por %p198, %p199
    %p201 = scmp.ne.s32.totalorder %s189, %s190
    %p202 = scmp.eq.s32.totalorder %s21, 1
    %p203 = por %p201, %p202
    %p205 = scmp.ne.s32.totalorder %s190, %s204
    %p206 = scmp.eq.s32.totalorder %s21, 0
    %p207 = por %p205, %p206
    %s209 = sadd.s32 %s208, 1
    %p212 = scmp.eq.s32.totalorder %s15, 1
    %p213 = scmp.ne.s32.totalorder %s208, %s210
    %p214 = scmp.eq.s32.totalorder %s15, 0
    %p215 = por %p213, %p214
    %p216 = scmp.ne.s32.totalorder %s208, %s210
    %p217 = scmp.eq.s32.totalorder %s20, 1
    %p218 = por %p216, %p217
    %p219 = scmp.ne.s32.totalorder %s210, %s211
    %p220 = scmp.eq.s32.totalorder %s20, 0
    %p221 = por %p219, %p220
    %p222 = scmp.ne.s32.totalorder %s210, %s211
    %p223 = scmp.eq.s32.totalorder %s21, 1
    %p224 = por %p222, %p223
    %p226 = scmp.ne.s32.totalorder %s211, %s225
    %p227 = scmp.eq.s32.totalorder %s21, 0
    %p228 = por %p226, %p227
    %s229 = ssub.s32 %s22, %s34
    %s230 = ssub.s32 %s23, %s30
    %s231 = sor.u32 %s229, %s230
    %p232 = scmp.eq.s32.totalorder %s231, 0
    %s234 = sadd.s32 %s233, 1
    %s235 = scalar_select %p232, %s233, %s234
    %p238 = pneg %p232
    %p239 = scmp.eq.s32.totalorder %s15, 1
    %p240 = por %p238, %p239
    %p241 = scmp.ne.s32.totalorder %s233, %s236
    %p242 = scmp.eq.s32.totalorder %s15, 0
    %p243 = por %p241, %p242
    %p244 = scmp.ne.s32.totalorder %s233, %s236
    %p245 = scmp.eq.s32.totalorder %s20, 1
    %p246 = por %p244, %p245
    %p247 = scmp.ne.s32.totalorder %s236, %s237
    %p248 = scmp.eq.s32.totalorder %s20, 0
    %p249 = por %p247, %p248
    %p250 = scmp.ne.s32.totalorder %s236, %s237
    %p251 = scmp.eq.s32.totalorder %s21, 1
    %p252 = por %p250, %p251
    %p254 = scmp.ne.s32.totalorder %s237, %s253
    %p255 = scmp.eq.s32.totalorder %s21, 0
    %p256 = por %p254, %p255
    %s257 = ssub.s32 %s22, %s34
    %s258 = ssub.s32 %s23, %s30
    %s259 = sor.u32 %s257, %s258
    %p260 = scmp.eq.s32.totalorder %s259, 0
    %s262 = sadd.s32 %s261, 1
    %s263 = scalar_select %p260, %s261, %s262
    %p266 = pneg %p260
    %p267 = scmp.eq.s32.totalorder %s15, 1
    %p268 = por %p266, %p267
    %p269 = scmp.ne.s32.totalorder %s261, %s264
    %p270 = scmp.eq.s32.totalorder %s15, 0
    %p271 = por %p269, %p270
    %p272 = scmp.ne.s32.totalorder %s261, %s264
    %p273 = scmp.eq.s32.totalorder %s20, 1
    %p274 = por %p272, %p273
    %p275 = scmp.ne.s32.totalorder %s264, %s265
    %p276 = scmp.eq.s32.totalorder %s20, 0
    %p277 = por %p275, %p276
    %p278 = scmp.ne.s32.totalorder %s264, %s265
    %p279 = scmp.eq.s32.totalorder %s21, 1
    %p280 = por %p278, %p279
    %p282 = scmp.ne.s32.totalorder %s265, %s281
    %p283 = scmp.eq.s32.totalorder %s21, 0
    %p284 = por %p282, %p283
    %p285 = scmp.le.s32.totalorder 1, %s15
    %p286 = scmp.lt.s32.totalorder %s15, 3
    %p287 = pnand %p285, %p286
    %p288 = pneg %p287
    // Predicated region
    $region9: #{rru_double_conv.3} parent=5 // pred_check
      _
    $region10: #{rru_double_conv.3} parent=5 // pred_check_branch
      %290 = sbr.rel (%p287) target = $region12
    $region11: #{rru_double_conv.3} parent=5 // pred_region
      %s291 = ssub.s32 %s15, 1
      // Predicated region
      $region13: #{rru_double_conv.3} parent=11 // pred_check
        %p292 = pneg %p200
      $region14: #{rru_double_conv.3} parent=11 // pred_check_branch
        %294 = sbr.rel (%p292) target = $region16
      $region15: #{rru_double_conv.3} parent=11 // pred_region
        _
      $region16: #{rru_double_conv.3} parent=11 // pred_fallthru
        _
      // Predicated region
      $region17: #{rru_double_conv.3} parent=11 // pred_check
        %p295 = pneg %p221
      $region18: #{rru_double_conv.3} parent=11 // pred_check_branch
        %297 = sbr.rel (%p295) target = $region20
      $region19: #{rru_double_conv.3} parent=11 // pred_region
        _
      $region20: #{rru_double_conv.3} parent=11 // pred_fallthru
        _
    $region12: #{rru_double_conv.3} parent=5 // pred_fallthru
      _
    %p298 = scmp.lt.s32.totalorder %s15, 2
    // Predicated region
    $region21: #{rru_double_conv.3} parent=5 // pred_check
      %p299 = pneg %p298
    $region22: #{rru_double_conv.3} parent=5 // pred_check_branch
      %301 = sbr.rel (%p299) target = $region24
    $region23: #{rru_double_conv.3} parent=5 // pred_region
      // Predicated region
      $region25: #{rru_double_conv.3} parent=23 // pred_check
        %p302 = pneg %p57
      $region26: #{rru_double_conv.3} parent=23 // pred_check_branch
        %304 = sbr.rel (%p302) target = $region28
      $region27: #{rru_double_conv.3} parent=23 // pred_region
        %s305 = smul.u32 %s23, 8
        %s306 = ssub.s32 %s305, 1
        %p307 = scmp.gt.s32.totalorder %s306, 0
        %s308 = scalar_select %p307, %s306, 0
        %s309 = smul.u32 2, %s308
        %p310 = scmp.lt.s32.totalorder %s22, 1
        %s311 = scalar_select %p310, %s22, 1
        %p312 = scmp.lt.s32.totalorder %s309, 15
        %s313 = scalar_select %p312, %s309, 15
        %s314 = smul.addr %s313, 2
        %s315 = smul.addr %s311, 32
        %s316 = sadd.s32 %s314, %s315
        %s317 = smul.addr %s316, 4
        %s318 = scalar_lea.vmem %s0, %s317
        %s319 = smul.u32 %s23, 8
        %s320 = ssub.s32 %s319, 1
        %p321 = scmp.gt.s32.totalorder %s320, 0
        %s322 = scalar_select %p321, %s320, 0
        %s323 = smul.u32 2, %s322
      $region28: #{rru_double_conv.3} parent=23 // pred_fallthru
        _
      // Predicated region
      $region29: #{rru_double_conv.3} parent=23 // pred_check
        %p324 = pneg %p85
      $region30: #{rru_double_conv.3} parent=23 // pred_check_branch
        %326 = sbr.rel (%p324) target = $region32
      $region31: #{rru_double_conv.3} parent=23 // pred_region
        %s327 = smul.u32 16, %s23
        %p328 = scmp.lt.s32.totalorder %s22, 1
        %s329 = scalar_select %p328, %s22, 1
        %p330 = scmp.lt.s32.totalorder %s327, 15
        %s331 = scalar_select %p330, %s327, 15
        %s332 = smul.addr %s331, 2
        %s333 = smul.addr %s329, 32
        %s334 = sadd.s32 %s332, %s333
        %s335 = smul.addr %s334, 4
        %s336 = scalar_lea.vmem %s1, %s335
        %s337 = smul.u32 16, %s23
      $region32: #{rru_double_conv.3} parent=23 // pred_fallthru
        _
      // Predicated region
      $region33: #{rru_double_conv.3} parent=23 // pred_check
        %p338 = pneg %p121
      $region34: #{rru_double_conv.3} parent=23 // pred_check_branch
        %340 = sbr.rel (%p338) target = $region36
      $region35: #{rru_double_conv.3} parent=23 // pred_region
        %s341 = sadd.s32 %s23, 1
        %s342 = smul.u32 %s341, 8
        %p343 = scmp.lt.s32.totalorder %s342, 7
        %s344 = scalar_select %p343, %s342, 7
        %s345 = smul.u32 2, %s344
        %p346 = scmp.lt.s32.totalorder %s22, 1
        %s347 = scalar_select %p346, %s22, 1
        %p348 = scmp.lt.s32.totalorder %s345, 15
        %s349 = scalar_select %p348, %s345, 15
        %s350 = smul.addr %s349, 2
        %s351 = smul.addr %s347, 32
        %s352 = sadd.s32 %s350, %s351
        %s353 = smul.addr %s352, 4
        %s354 = scalar_lea.vmem %s2, %s353
        %s355 = sadd.s32 %s23, 1
        %s356 = smul.u32 %s355, 8
        %p357 = scmp.lt.s32.totalorder %s356, 7
        %s358 = scalar_select %p357, %s356, 7
        %s359 = smul.u32 2, %s358
      $region36: #{rru_double_conv.3} parent=23 // pred_fallthru
        _
      // Predicated region
      $region37: #{rru_double_conv.3} parent=23 // pred_check
        %p360 = pneg %p147
      $region38: #{rru_double_conv.3} parent=23 // pred_check_branch
        %362 = sbr.rel (%p360) target = $region40
      $region39: #{rru_double_conv.3} parent=23 // pred_region
        %p363 = scmp.lt.s32.totalorder %s22, 1
        %s364 = scalar_select %p363, %s22, 1
        %s365 = scalar_lea.vmem %s3, %s364
      $region40: #{rru_double_conv.3} parent=23 // pred_fallthru
        _
      // Predicated region
      $region41: #{rru_double_conv.3} parent=23 // pred_check
        %p366 = pneg %p173
      $region42: #{rru_double_conv.3} parent=23 // pred_check_branch
        %368 = sbr.rel (%p366) target = $region44
      $region43: #{rru_double_conv.3} parent=23 // pred_region
        %p369 = scmp.lt.s32.totalorder %s22, 1
        %s370 = scalar_select %p369, %s22, 1
        %s371 = scalar_lea.vmem %s4, %s370
      $region44: #{rru_double_conv.3} parent=23 // pred_fallthru
        _
    $region24: #{rru_double_conv.3} parent=5 // pred_fallthru
      _
    %p372 = scmp.le.s32.totalorder 1, %s15
    %p373 = scmp.lt.s32.totalorder %s15, 3
    %p374 = pnand %p372, %p373
    %p375 = pneg %p374
    // Predicated region
    $region45: #{rru_double_conv.3} parent=5 // pred_check
      _
    $region46: #{rru_double_conv.3} parent=5 // pred_check_branch
      %377 = sbr.rel (%p374) target = $region48
    $region47: #{rru_double_conv.3} parent=5 // pred_region
      %s378 = ssub.s32 %s15, 1
      %s379 = smul.u32 %s25, 8
      %s380 = ssub.s32 %s379, 1
      %p381 = scmp.gt.s32.totalorder %s380, 0
      %s382 = scalar_select %p381, %s380, 0
      %s383 = smul.u32 2, %s382
      %p384 = scmp.lt.s32.totalorder %s24, 1
      %s385 = scalar_select %p384, %s24, 1
      %p386 = scmp.lt.s32.totalorder %s383, 15
      %s387 = scalar_select %p386, %s383, 15
      %s388 = smul.addr %s387, 2
      %s389 = smul.addr %s385, 32
      %s390 = sadd.s32 %s388, %s389
      %s391 = smul.addr %s390, 4
      %s392 = scalar_lea.vmem %s0, %s391
      %p393 = pneg %p63
      %p394 = pneg %p60
      %s395 = smul.u32 16, %s25
      %p396 = scmp.lt.s32.totalorder %s24, 1
      %s397 = scalar_select %p396, %s24, 1
      %p398 = scmp.lt.s32.totalorder %s395, 15
      %s399 = scalar_select %p398, %s395, 15
      %s400 = smul.addr %s399, 2
      %s401 = smul.addr %s397, 32
      %s402 = sadd.s32 %s400, %s401
      %s403 = smul.addr %s402, 4
      %s404 = scalar_lea.vmem %s1, %s403
      %p405 = pneg %p91
      %p406 = pneg %p88
      %s407 = sadd.s32 %s25, 1
      %s408 = smul.u32 %s407, 8
      %p409 = scmp.lt.s32.totalorder %s408, 7
      %s410 = scalar_select %p409, %s408, 7
      %s411 = smul.u32 2, %s410
      %p412 = scmp.lt.s32.totalorder %s24, 1
      %s413 = scalar_select %p412, %s24, 1
      %p414 = scmp.lt.s32.totalorder %s411, 15
      %s415 = scalar_select %p414, %s411, 15
      %s416 = smul.addr %s415, 2
      %s417 = smul.addr %s413, 32
      %s418 = sadd.s32 %s416, %s417
      %s419 = smul.addr %s418, 4
      %s420 = scalar_lea.vmem %s2, %s419
      %p421 = pneg %p127
      %p422 = pneg %p124
      %p423 = scmp.lt.s32.totalorder %s24, 1
      %s424 = scalar_select %p423, %s24, 1
      %s425 = scalar_lea.vmem %s3, %s424
      %p426 = pneg %p153
      %p427 = pneg %p150
      %p428 = scmp.lt.s32.totalorder %s24, 1
      %s429 = scalar_select %p428, %s24, 1
      %s430 = scalar_lea.vmem %s4, %s429
      %p431 = pneg %p179
      %p432 = pneg %p176
      %p433 = pneg %p200
      %p434 = pneg %p197
      %p435 = pneg %p221
      %p436 = pneg %p218
      %p437 = pneg %p249
      %p438 = pneg %p246
      %s439 = smul.u32 16, %s25
      %p440 = scmp.lt.s32.totalorder %s24, 1
      %s441 = scalar_select %p440, %s24, 1
      %p442 = scmp.lt.s32.totalorder %s439, 15
      %s443 = scalar_select %p442, %s439, 15
      %s444 = smul.addr %s443, 2
      %s445 = smul.addr %s441, 32
      %s446 = sadd.s32 %s444, %s445
      %s447 = smul.addr %s446, 4
      %s448 = scalar_lea.vmem %s7, %s447
      %p449 = pneg %p277
      %p450 = pneg %p274
      %p451 = scmp.lt.s32.totalorder %s24, 1
      %s452 = scalar_select %p451, %s24, 1
      %p453 = scmp.lt.s32.totalorder %s25, 0
      %s454 = scalar_select %p453, %s25, 0
      %s455 = sadd.s32 %s454, %s452
      %s456 = smul.addr %s455, 2
      %s457 = scalar_lea.vmem %s8, %s456
      %s458 = smul.u32 %s25, 8
      %s459 = ssub.s32 %s458, 1
      %p460 = scmp.gt.s32.totalorder %s459, 0
      %s461 = scalar_select %p460, %s459, 0
      %s462 = smul.u32 2, %s461
      %p463 = scmp.lt.s32.totalorder %s24, 1
      %s464 = scalar_select %p463, %s24, 1
      %p465 = scmp.lt.s32.totalorder %s462, 15
      %s466 = scalar_select %p465, %s462, 15
      %s467 = smul.addr %s466, 2
      %s468 = smul.addr %s464, 32
      %s469 = sadd.s32 %s467, %s468
      %s470 = smul.addr %s469, 4
      %s471 = scalar_lea.vmem %s0, %s470
      %s472 = smul.u32 %s25, 8
      %s473 = ssub.s32 %s472, 1
      %p474 = scmp.gt.s32.totalorder %s473, 0
      %s475 = scalar_select %p474, %s473, 0
      %s476 = smul.u32 2, %s475
      %s477 = smul.u32 16, %s25
      %p478 = scmp.lt.s32.totalorder %s24, 1
      %s479 = scalar_select %p478, %s24, 1
      %p480 = scmp.lt.s32.totalorder %s477, 15
      %s481 = scalar_select %p480, %s477, 15
      %s482 = smul.addr %s481, 2
      %s483 = smul.addr %s479, 32
      %s484 = sadd.s32 %s482, %s483
      %s485 = smul.addr %s484, 4
      %s486 = scalar_lea.vmem %s1, %s485
      %s487 = smul.u32 16, %s25
      %s488 = sadd.s32 %s25, 1
      %s489 = smul.u32 %s488, 8
      %p490 = scmp.lt.s32.totalorder %s489, 7
      %s491 = scalar_select %p490, %s489, 7
      %s492 = smul.u32 2, %s491
      %p493 = scmp.lt.s32.totalorder %s24, 1
      %s494 = scalar_select %p493, %s24, 1
      %p495 = scmp.lt.s32.totalorder %s492, 15
      %s496 = scalar_select %p495, %s492, 15
      %s497 = smul.addr %s496, 2
      %s498 = smul.addr %s494, 32
      %s499 = sadd.s32 %s497, %s498
      %s500 = smul.addr %s499, 4
      %s501 = scalar_lea.vmem %s2, %s500
      %s502 = sadd.s32 %s25, 1
      %s503 = smul.u32 %s502, 8
      %p504 = scmp.lt.s32.totalorder %s503, 7
      %s505 = scalar_select %p504, %s503, 7
      %s506 = smul.u32 2, %s505
      %p507 = scmp.lt.s32.totalorder %s24, 1
      %s508 = scalar_select %p507, %s24, 1
      %s509 = scalar_lea.vmem %s3, %s508
      %p510 = scmp.lt.s32.totalorder %s24, 1
      %s511 = scalar_select %p510, %s24, 1
      %s512 = scalar_lea.vmem %s4, %s511
      %s513 = smul.u32 16, %s25
      %p514 = scmp.lt.s32.totalorder %s24, 1
      %s515 = scalar_select %p514, %s24, 1
      %p516 = scmp.lt.s32.totalorder %s513, 15
      %s517 = scalar_select %p516, %s513, 15
      %s518 = smul.addr %s517, 2
      %s519 = smul.addr %s515, 32
      %s520 = sadd.s32 %s518, %s519
      %s521 = smul.addr %s520, 4
      %s522 = scalar_lea.vmem %s7, %s521
      %s523 = smul.u32 16, %s25
      %p524 = scmp.lt.s32.totalorder %s24, 1
      %s525 = scalar_select %p524, %s24, 1
      %p526 = scmp.lt.s32.totalorder %s25, 0
      %s527 = scalar_select %p526, %s25, 0
      %s528 = sadd.s32 %s527, %s525
      %s529 = smul.addr %s528, 2
      %s530 = scalar_lea.vmem %s8, %s529
      %p532 = scmp.gt.s32.totalorder %s25, 0
      %p533 = scmp.lt.s32.totalorder %s25, 0
      %v534 = vld [vmem:[%s509] sm:$0x1]
      %v535 = vld [vmem:[%s512] sm:$0x1]
      %v536 = vld [vmem:[%s471] sm:$0xf]
      %v537 = vld [vmem:[%s471 + $0x4] sm:$0xf]
      %v538 = vld [vmem:[%s471 + $0x8] sm:$0xf]
      %v539 = vld [vmem:[%s471 + $0xc] sm:$0xf]
      %v540 = vunpack.c.l.bf16 %v536
      %v541 = vunpack.c.l.bf16 %v537
      %v542 = vunpack.c.l.bf16 %v538
      %v543 = vunpack.c.l.bf16 %v539
      %v545 = vlaneseq
      %v546 = vshrl.u32 %v545, 7
      %v547 = vsub.s32 0, %v546
      %v548 = vrot.slane %v534, %v547
      %v550 = vmul.f32 %v540, %v548
      %v551 = vmul.f32 %v541, %v548
      %v552 = vmul.f32 %v542, %v548
      %v553 = vmul.f32 %v543, %v548
      %v555 = vlaneseq
      %v556 = vshrl.u32 %v555, 7
      %v557 = vsub.s32 0, %v556
      %v558 = vrot.slane %v535, %v557
      %v560 = vadd.f32 %v550, %v558
      %v561 = vadd.f32 %v551, %v558
      %v562 = vadd.f32 %v552, %v558
      %v563 = vadd.f32 %v553, %v558
      %v564 = vmax.f32 %v560, 0.0
      %v565 = vmax.f32 %v561, 0.0
      %v566 = vmax.f32 %v562, 0.0
      %v567 = vmax.f32 %v563, 0.0
      %s568 = scalar_select %p532, 1, 0
      %s569 = scvt.s32.f32 %s568
      %v570 = vstv %s569
      %v571 = vmul.f32 %v564, %v570
      %v572 = vmul.f32 %v565, %v570
      %v573 = vmul.f32 %v566, %v570
      %v574 = vmul.f32 %v567, %v570
      %v575 = vpack.c.bf16 %v572, %v571
      %v576 = vpack.c.bf16 %v574, %v573
      %v577 = vld [vmem:[%s486] sm:$0xf]
      %v578 = vld [vmem:[%s486 + $0x4] sm:$0xf]
      %v579 = vld [vmem:[%s486 + $0x8] sm:$0xf]
      %v580 = vld [vmem:[%s486 + $0xc] sm:$0xf]
      %v581 = vld [vmem:[%s486 + $0x10] sm:$0xf]
      %v582 = vld [vmem:[%s486 + $0x14] sm:$0xf]
      %v583 = vld [vmem:[%s486 + $0x18] sm:$0xf]
      %v584 = vld [vmem:[%s486 + $0x1c] sm:$0xf]
      %v585 = vld [vmem:[%s486 + $0x20] sm:$0xf]
      %v586 = vld [vmem:[%s486 + $0x24] sm:$0xf]
      %v587 = vld [vmem:[%s486 + $0x28] sm:$0xf]
      %v588 = vld [vmem:[%s486 + $0x2c] sm:$0xf]
      %v589 = vld [vmem:[%s486 + $0x30] sm:$0xf]
      %v590 = vld [vmem:[%s486 + $0x34] sm:$0xf]
      %v591 = vld [vmem:[%s486 + $0x38] sm:$0xf]
      %v592 = vld [vmem:[%s486 + $0x3c] sm:$0xf]
      %v593 = vld [vmem:[%s486 + $0x40] sm:$0xf]
      %v594 = vld [vmem:[%s486 + $0x44] sm:$0xf]
      %v595 = vld [vmem:[%s486 + $0x48] sm:$0xf]
      %v596 = vld [vmem:[%s486 + $0x4c] sm:$0xf]
      %v597 = vld [vmem:[%s486 + $0x50] sm:$0xf]
      %v598 = vld [vmem:[%s486 + $0x54] sm:$0xf]
      %v599 = vld [vmem:[%s486 + $0x58] sm:$0xf]
      %v600 = vld [vmem:[%s486 + $0x5c] sm:$0xf]
      %v601 = vld [vmem:[%s486 + $0x60] sm:$0xf]
      %v602 = vld [vmem:[%s486 + $0x64] sm:$0xf]
      %v603 = vld [vmem:[%s486 + $0x68] sm:$0xf]
      %v604 = vld [vmem:[%s486 + $0x6c] sm:$0xf]
      %v605 = vld [vmem:[%s486 + $0x70] sm:$0xf]
      %v606 = vld [vmem:[%s486 + $0x74] sm:$0xf]
      %v607 = vld [vmem:[%s486 + $0x78] sm:$0xf]
      %v608 = vld [vmem:[%s486 + $0x7c] sm:$0xf]
      %v609 = vunpack.c.l.bf16 %v577
      %v610 = vunpack.c.l.bf16 %v578
      %v611 = vunpack.c.l.bf16 %v579
      %v612 = vunpack.c.l.bf16 %v580
      %v613 = vunpack.c.l.bf16 %v581
      %v614 = vunpack.c.l.bf16 %v582
      %v615 = vunpack.c.l.bf16 %v583
      %v616 = vunpack.c.l.bf16 %v584
      %v617 = vunpack.c.l.bf16 %v585
      %v618 = vunpack.c.l.bf16 %v586
      %v619 = vunpack.c.l.bf16 %v587
      %v620 = vunpack.c.l.bf16 %v588
      %v621 = vunpack.c.l.bf16 %v589
      %v622 = vunpack.c.l.bf16 %v590
      %v623 = vunpack.c.l.bf16 %v591
      %v624 = vunpack.c.l.bf16 %v592
      %v625 = vunpack.c.l.bf16 %v593
      %v626 = vunpack.c.l.bf16 %v594
      %v627 = vunpack.c.l.bf16 %v595
      %v628 = vunpack.c.l.bf16 %v596
      %v629 = vunpack.c.l.bf16 %v597
      %v630 = vunpack.c.l.bf16 %v598
      %v631 = vunpack.c.l.bf16 %v599
      %v632 = vunpack.c.l.bf16 %v600
      %v633 = vunpack.c.l.bf16 %v601
      %v634 = vunpack.c.l.bf16 %v602
      %v635 = vunpack.c.l.bf16 %v603
      %v636 = vunpack.c.l.bf16 %v604
      %v637 = vunpack.c.l.bf16 %v605
      %v638 = vunpack.c.l.bf16 %v606
      %v639 = vunpack.c.l.bf16 %v607
      %v640 = vunpack.c.l.bf16 %v608
      %v641 = vmul.f32 %v609, %v548
      %v642 = vmul.f32 %v610, %v548
      %v643 = vmul.f32 %v611, %v548
      %v644 = vmul.f32 %v612, %v548
      %v645 = vmul.f32 %v613, %v548
      %v646 = vmul.f32 %v614, %v548
      %v647 = vmul.f32 %v615, %v548
      %v648 = vmul.f32 %v616, %v548
      %v649 = vmul.f32 %v617, %v548
      %v650 = vmul.f32 %v618, %v548
      %v651 = vmul.f32 %v619, %v548
      %v652 = vmul.f32 %v620, %v548
      %v653 = vmul.f32 %v621, %v548
      %v654 = vmul.f32 %v622, %v548
      %v655 = vmul.f32 %v623, %v548
      %v656 = vmul.f32 %v624, %v548
      %v657 = vmul.f32 %v625, %v548
      %v658 = vmul.f32 %v626, %v548
      %v659 = vmul.f32 %v627, %v548
      %v660 = vmul.f32 %v628, %v548
      %v661 = vmul.f32 %v629, %v548
      %v662 = vmul.f32 %v630, %v548
      %v663 = vmul.f32 %v631, %v548
      %v664 = vmul.f32 %v632, %v548
      %v665 = vmul.f32 %v633, %v548
      %v666 = vmul.f32 %v634, %v548
      %v667 = vmul.f32 %v635, %v548
      %v668 = vmul.f32 %v636, %v548
      %v669 = vmul.f32 %v637, %v548
      %v670 = vmul.f32 %v638, %v548
      %v671 = vmul.f32 %v639, %v548
      %v672 = vmul.f32 %v640, %v548
      %v673 = vadd.f32 %v641, %v558
      %v674 = vadd.f32 %v642, %v558
      %v675 = vadd.f32 %v643, %v558
      %v676 = vadd.f32 %v644, %v558
      %v677 = vadd.f32 %v645, %v558
      %v678 = vadd.f32 %v646, %v558
      %v679 = vadd.f32 %v647, %v558
      %v680 = vadd.f32 %v648, %v558
      %v681 = vadd.f32 %v649, %v558
      %v682 = vadd.f32 %v650, %v558
      %v683 = vadd.f32 %v651, %v558
      %v684 = vadd.f32 %v652, %v558
      %v685 = vadd.f32 %v653, %v558
      %v686 = vadd.f32 %v654, %v558
      %v687 = vadd.f32 %v655, %v558
      %v688 = vadd.f32 %v656, %v558
      %v689 = vadd.f32 %v657, %v558
      %v690 = vadd.f32 %v658, %v558
      %v691 = vadd.f32 %v659, %v558
      %v692 = vadd.f32 %v660, %v558
      %v693 = vadd.f32 %v661, %v558
      %v694 = vadd.f32 %v662, %v558
      %v695 = vadd.f32 %v663, %v558
      %v696 = vadd.f32 %v664, %v558
      %v697 = vadd.f32 %v665, %v558
      %v698 = vadd.f32 %v666, %v558
      %v699 = vadd.f32 %v667, %v558
      %v700 = vadd.f32 %v668, %v558
      %v701 = vadd.f32 %v669, %v558
      %v702 = vadd.f32 %v670, %v558
      %v703 = vadd.f32 %v671, %v558
      %v704 = vadd.f32 %v672, %v558
      %v705 = vmax.f32 %v673, 0.0
      %v706 = vmax.f32 %v674, 0.0
      %v707 = vmax.f32 %v675, 0.0
      %v708 = vmax.f32 %v676, 0.0
      %v709 = vmax.f32 %v677, 0.0
      %v710 = vmax.f32 %v678, 0.0
      %v711 = vmax.f32 %v679, 0.0
      %v712 = vmax.f32 %v680, 0.0
      %v713 = vmax.f32 %v681, 0.0
      %v714 = vmax.f32 %v682, 0.0
      %v715 = vmax.f32 %v683, 0.0
      %v716 = vmax.f32 %v684, 0.0
      %v717 = vmax.f32 %v685, 0.0
      %v718 = vmax.f32 %v686, 0.0
      %v719 = vmax.f32 %v687, 0.0
      %v720 = vmax.f32 %v688, 0.0
      %v721 = vmax.f32 %v689, 0.0
      %v722 = vmax.f32 %v690, 0.0
      %v723 = vmax.f32 %v691, 0.0
      %v724 = vmax.f32 %v692, 0.0
      %v725 = vmax.f32 %v693, 0.0
      %v726 = vmax.f32 %v694, 0.0
      %v727 = vmax.f32 %v695, 0.0
      %v728 = vmax.f32 %v696, 0.0
      %v729 = vmax.f32 %v697, 0.0
      %v730 = vmax.f32 %v698, 0.0
      %v731 = vmax.f32 %v699, 0.0
      %v732 = vmax.f32 %v700, 0.0
      %v733 = vmax.f32 %v701, 0.0
      %v734 = vmax.f32 %v702, 0.0
      %v735 = vmax.f32 %v703, 0.0
      %v736 = vmax.f32 %v704, 0.0
      %v737 = vpack.c.bf16 %v706, %v705
      %v738 = vpack.c.bf16 %v708, %v707
      %v739 = vpack.c.bf16 %v710, %v709
      %v740 = vpack.c.bf16 %v712, %v711
      %v741 = vpack.c.bf16 %v714, %v713
      %v742 = vpack.c.bf16 %v716, %v715
      %v743 = vpack.c.bf16 %v718, %v717
      %v744 = vpack.c.bf16 %v720, %v719
      %v745 = vpack.c.bf16 %v722, %v721
      %v746 = vpack.c.bf16 %v724, %v723
      %v747 = vpack.c.bf16 %v726, %v725
      %v748 = vpack.c.bf16 %v728, %v727
      %v749 = vpack.c.bf16 %v730, %v729
      %v750 = vpack.c.bf16 %v732, %v731
      %v751 = vpack.c.bf16 %v734, %v733
      %v752 = vpack.c.bf16 %v736, %v735
      %v753 = vld [vmem:[%s501] sm:$0xf]
      %v754 = vld [vmem:[%s501 + $0x4] sm:$0xf]
      %v755 = vld [vmem:[%s501 + $0x8] sm:$0xf]
      %v756 = vld [vmem:[%s501 + $0xc] sm:$0xf]
      %v757 = vunpack.c.l.bf16 %v753
      %v758 = vunpack.c.l.bf16 %v754
      %v759 = vunpack.c.l.bf16 %v755
      %v760 = vunpack.c.l.bf16 %v756
      %v761 = vmul.f32 %v757, %v548
      %v762 = vmul.f32 %v758, %v548
      %v763 = vmul.f32 %v759, %v548
      %v764 = vmul.f32 %v760, %v548
      %v765 = vadd.f32 %v761, %v558
      %v766 = vadd.f32 %v762, %v558
      %v767 = vadd.f32 %v763, %v558
      %v768 = vadd.f32 %v764, %v558
      %v769 = vmax.f32 %v765, 0.0
      %v770 = vmax.f32 %v766, 0.0
      %v771 = vmax.f32 %v767, 0.0
      %v772 = vmax.f32 %v768, 0.0
      %s773 = scalar_select %p533, 1, 0
      %s774 = scvt.s32.f32 %s773
      %v775 = vstv %s774
      %v776 = vmul.f32 %v769, %v775
      %v777 = vmul.f32 %v770, %v775
      %v778 = vmul.f32 %v771, %v775
      %v779 = vmul.f32 %v772, %v775
      %v780 = vpack.c.bf16 %v777, %v776
      %v781 = vpack.c.bf16 %v779, %v778
      %v802 = vrot.slane %v575, 7
      %v803 = vrot.slane %v576, 7
      %v804 = vrot.slane %v737, 7
      %v805 = vrot.slane %v738, 7
      %v806 = vrot.slane %v739, 7
      %v807 = vrot.slane %v740, 7
      %v808 = vrot.slane %v741, 7
      %v809 = vrot.slane %v742, 7
      %v810 = vrot.slane %v743, 7
      %v811 = vrot.slane %v744, 7
      %v812 = vrot.slane %v745, 7
      %v813 = vrot.slane %v746, 7
      %v814 = vrot.slane %v747, 7
      %v815 = vrot.slane %v748, 7
      %v816 = vrot.slane %v749, 7
      %v817 = vrot.slane %v750, 7
      %v818 = vrot.slane %v751, 7
      %v819 = vrot.slane %v752, 7
      %v820 = vrot.slane %v780, 7
      %v821 = vrot.slane %v781, 7
      %vm822 = vcmask 1040384
      %v825 = vsel %vm822, 0, %v802
      %v827 = vsel %vm822, 0, %v803
      %v829 = vsel %vm822, 0, %v804
      %v831 = vsel %vm822, 0, %v805
      %v833 = vsel %vm822, 0, %v806
      %v835 = vsel %vm822, 0, %v807
      %v837 = vsel %vm822, 0, %v808
      %v839 = vsel %vm822, 0, %v809
      %v841 = vsel %vm822, 0, %v810
      %v843 = vsel %vm822, 0, %v811
      %v845 = vsel %vm822, 0, %v812
      %v847 = vsel %vm822, 0, %v813
      %v849 = vsel %vm822, 0, %v814
      %v851 = vsel %vm822, 0, %v815
      %v853 = vsel %vm822, 0, %v816
      %v855 = vsel %vm822, 0, %v817
      %v857 = vsel %vm822, 0, %v818
      %v859 = vsel %vm822, 0, %v819
      %v861 = vsel %vm822, 0, %v820
      %v863 = vsel %vm822, 0, %v821
      %v864 = vsel %vm822, %v802, 0
      %v865 = vsel %vm822, %v803, 0
      %v866 = vsel %vm822, %v804, 0
      %v867 = vsel %vm822, %v805, 0
      %v868 = vsel %vm822, %v806, 0
      %v869 = vsel %vm822, %v807, 0
      %v870 = vsel %vm822, %v808, 0
      %v871 = vsel %vm822, %v809, 0
      %v872 = vsel %vm822, %v810, 0
      %v873 = vsel %vm822, %v811, 0
      %v874 = vsel %vm822, %v812, 0
      %v875 = vsel %vm822, %v813, 0
      %v876 = vsel %vm822, %v814, 0
      %v877 = vsel %vm822, %v815, 0
      %v878 = vsel %vm822, %v816, 0
      %v879 = vsel %vm822, %v817, 0
      %v880 = vsel %vm822, %v818, 0
      %v881 = vsel %vm822, %v819, 0
      %v882 = vsel %vm822, %v820, 0
      %v883 = vsel %vm822, %v821, 0
      %v884 = vld [vmem:[%s6] sm:$0x1]
      %v886 = vlaneseq
      %v887 = vshrl.u32 %v886, 7
      %v888 = vsub.s32 0, %v887
      %v889 = vrot.slane %v884, %v888
      %v891 = vld [vmem:[%s5] sm:$0xf]
      %v892 = vld [vmem:[%s5 + $0x4] sm:$0xf]
      %v893 = vld [vmem:[%s5 + $0x8] sm:$0xf]
      %v894 = vld [vmem:[%s5 + $0xc] sm:$0xf]
      %v899 = vunpack.c.l.b16 %v891
      %v900 = vunpack.c.l.b16 %v892
      %v901 = vunpack.c.l.b16 %v893
      %v902 = vunpack.c.l.b16 %v894
      %v903 = vpack.c.b16 %v900, %v899
      %v904 = vpack.c.b16 %v902, %v901
      %vm907 = vcmask 261120
      %v908 = vsel %vm907, %v825, 0
      %v910 = vsel %vm907, %v827, 0
      %v912 = vsel %vm907, %v829, 0
      %v914 = vsel %vm907, %v831, 0
      %v916 = vsel %vm907, %v833, 0
      %v918 = vsel %vm907, %v835, 0
      %v920 = vsel %vm907, %v837, 0
      %v922 = vsel %vm907, %v839, 0
      %v924 = vsel %vm907, %v841, 0
      %v926 = vsel %vm907, %v843, 0
      %v928 = vsel %vm907, %v845, 0
      %v930 = vsel %vm907, %v847, 0
      %v932 = vsel %vm907, %v849, 0
      %v934 = vsel %vm907, %v851, 0
      %v936 = vsel %vm907, %v853, 0
      %v938 = vsel %vm907, %v855, 0
      %940 = vmatprep.subr.bf16.mxu0 0
      %941 = vmatpush1.bf16.msra.mxu0 0
      %942 = vmatprep.subr.bf16.mxu0 0
      %943 = vmatpush1.bf16.msra.mxu0 0
      %944 = vmatprep.subr.bf16.mxu0 0
      %945 = vmatpush1.bf16.msra.mxu0 0
      %946 = vmatprep.subr.bf16.mxu0 0
      %947 = vmatpush1.bf16.msra.mxu0 0
      %948 = vmatprep.subr.bf16.mxu0 0
      %949 = vmatpush1.bf16.msra.mxu0 0
      %950 = vmatprep.subr.bf16.mxu0 0
      %951 = vmatpush1.bf16.msra.mxu0 0
      %952 = vmatprep.subr.bf16.mxu0 0
      %953 = vmatpush1.bf16.msra.mxu0 %v904
      %954 = vmatprep.subr.bf16.mxu0 0
      %955 = vmatpush1.bf16.msra.mxu0 %v903
      %956 = vmatprep.subr.bf16.mxu0 0
      %957 = vmatpush2.bf16.msra.mxu0 0
      %958 = vmatprep.subr.bf16.mxu0 0
      %959 = vmatpush2.bf16.msra.mxu0 0
      %960 = vmatprep.subr.bf16.mxu0 0
      %961 = vmatpush2.bf16.msra.mxu0 0
      %962 = vmatprep.subr.bf16.mxu0 0
      %963 = vmatpush2.bf16.msra.mxu0 0
      %964 = vmatprep.subr.bf16.mxu0 0
      %965 = vmatpush2.bf16.msra.mxu0 0
      %966 = vmatprep.subr.bf16.mxu0 0
      %967 = vmatpush2.bf16.msra.mxu0 0
      %968 = vmatprep.subr.bf16.mxu0 0
      %969 = vmatpush2.bf16.msra.mxu0 0
      %970 = vmatprep.subr.bf16.mxu0 0
      %971 = vmatpush2.bf16.msra.mxu0 0
      %972 = vmatprep.mubr.bf16.mxu0 0
      %973 = vmatmul.mubr.bf16.gmra.mxu0 %v908
      %v974 = vpop.f32.mrf.mxu0
      %v975 = vadd.f32 0.0, %v974
      %v976 = vpop.f32.mrf.mxu0
      %v977 = vpop.f32.mrf.mxu0
      %v978 = vadd.f32 0.0, %v977
      %v979 = vpop.f32.mrf.mxu0
      %980 = vmatprep.mubr.bf16.mxu0 0
      %981 = vmatmul.mubr.bf16.gmra.mxu0 %v910
      %v982 = vpop.f32.mrf.mxu0
      %v983 = vadd.f32 0.0, %v982
      %v984 = vpop.f32.mrf.mxu0
      %v985 = vpop.f32.mrf.mxu0
      %v986 = vadd.f32 0.0, %v985
      %v987 = vpop.f32.mrf.mxu0
      %988 = vmatprep.mubr.bf16.mxu0 0
      %989 = vmatmul.mubr.bf16.gmra.mxu0 %v912
      %v990 = vpop.f32.mrf.mxu0
      %v991 = vadd.f32 0.0, %v990
      %v992 = vpop.f32.mrf.mxu0
      %v993 = vpop.f32.mrf.mxu0
      %v994 = vadd.f32 0.0, %v993
      %v995 = vpop.f32.mrf.mxu0
      %996 = vmatprep.mubr.bf16.mxu0 0
      %997 = vmatmul.mubr.bf16.gmra.mxu0 %v914
      %v998 = vpop.f32.mrf.mxu0
      %v999 = vadd.f32 0.0, %v998
      %v1000 = vpop.f32.mrf.mxu0
      %v1001 = vpop.f32.mrf.mxu0
      %v1002 = vadd.f32 0.0, %v1001
      %v1003 = vpop.f32.mrf.mxu0
      %1004 = vmatprep.mubr.bf16.mxu0 0
      %1005 = vmatmul.mubr.bf16.gmra.mxu0 %v916
      %v1006 = vpop.f32.mrf.mxu0
      %v1007 = vadd.f32 0.0, %v1006
      %v1008 = vpop.f32.mrf.mxu0
      %v1009 = vpop.f32.mrf.mxu0
      %v1010 = vadd.f32 0.0, %v1009
      %v1011 = vpop.f32.mrf.mxu0
      %1012 = vmatprep.mubr.bf16.mxu0 0
      %1013 = vmatmul.mubr.bf16.gmra.mxu0 %v918
      %v1014 = vpop.f32.mrf.mxu0
      %v1015 = vadd.f32 0.0, %v1014
      %v1016 = vpop.f32.mrf.mxu0
      %v1017 = vpop.f32.mrf.mxu0
      %v1018 = vadd.f32 0.0, %v1017
      %v1019 = vpop.f32.mrf.mxu0
      %1020 = vmatprep.mubr.bf16.mxu0 0
      %1021 = vmatmul.mubr.bf16.gmra.mxu0 %v920
      %v1022 = vpop.f32.mrf.mxu0
      %v1023 = vadd.f32 0.0, %v1022
      %v1024 = vpop.f32.mrf.mxu0
      %v1025 = vpop.f32.mrf.mxu0
      %v1026 = vadd.f32 0.0, %v1025
      %v1027 = vpop.f32.mrf.mxu0
      %1028 = vmatprep.mubr.bf16.mxu0 0
      %1029 = vmatmul.mubr.bf16.gmra.mxu0 %v922
      %v1030 = vpop.f32.mrf.mxu0
      %v1031 = vadd.f32 0.0, %v1030
      %v1032 = vpop.f32.mrf.mxu0
      %v1033 = vpop.f32.mrf.mxu0
      %v1034 = vadd.f32 0.0, %v1033
      %v1035 = vpop.f32.mrf.mxu0
      %1036 = vmatprep.mubr.bf16.mxu0 0
      %1037 = vmatmul.mubr.bf16.gmra.mxu0 %v924
      %v1038 = vpop.f32.mrf.mxu0
      %v1039 = vadd.f32 0.0, %v1038
      %v1040 = vpop.f32.mrf.mxu0
      %v1041 = vpop.f32.mrf.mxu0
      %v1042 = vadd.f32 0.0, %v1041
      %v1043 = vpop.f32.mrf.mxu0
      %1044 = vmatprep.mubr.bf16.mxu0 0
      %1045 = vmatmul.mubr.bf16.gmra.mxu0 %v926
      %v1046 = vpop.f32.mrf.mxu0
      %v1047 = vadd.f32 0.0, %v1046
      %v1048 = vpop.f32.mrf.mxu0
      %v1049 = vpop.f32.mrf.mxu0
      %v1050 = vadd.f32 0.0, %v1049
      %v1051 = vpop.f32.mrf.mxu0
      %1052 = vmatprep.mubr.bf16.mxu0 0
      %1053 = vmatmul.mubr.bf16.gmra.mxu0 %v928
      %v1054 = vpop.f32.mrf.mxu0
      %v1055 = vadd.f32 0.0, %v1054
      %v1056 = vpop.f32.mrf.mxu0
      %v1057 = vpop.f32.mrf.mxu0
      %v1058 = vadd.f32 0.0, %v1057
      %v1059 = vpop.f32.mrf.mxu0
      %1060 = vmatprep.mubr.bf16.mxu0 0
      %1061 = vmatmul.mubr.bf16.gmra.mxu0 %v930
      %v1062 = vpop.f32.mrf.mxu0
      %v1063 = vadd.f32 0.0, %v1062
      %v1064 = vpop.f32.mrf.mxu0
      %v1065 = vpop.f32.mrf.mxu0
      %v1066 = vadd.f32 0.0, %v1065
      %v1067 = vpop.f32.mrf.mxu0
      %1068 = vmatprep.mubr.bf16.mxu0 0
      %1069 = vmatmul.mubr.bf16.gmra.mxu0 %v932
      %v1070 = vpop.f32.mrf.mxu0
      %v1071 = vadd.f32 0.0, %v1070
      %v1072 = vpop.f32.mrf.mxu0
      %v1073 = vpop.f32.mrf.mxu0
      %v1074 = vadd.f32 0.0, %v1073
      %v1075 = vpop.f32.mrf.mxu0
      %1076 = vmatprep.mubr.bf16.mxu0 0
      %1077 = vmatmul.mubr.bf16.gmra.mxu0 %v934
      %v1078 = vpop.f32.mrf.mxu0
      %v1079 = vadd.f32 0.0, %v1078
      %v1080 = vpop.f32.mrf.mxu0
      %v1081 = vpop.f32.mrf.mxu0
      %v1082 = vadd.f32 0.0, %v1081
      %v1083 = vpop.f32.mrf.mxu0
      %1084 = vmatprep.mubr.bf16.mxu0 0
      %1085 = vmatmul.mubr.bf16.gmra.mxu0 %v936
      %v1086 = vpop.f32.mrf.mxu0
      %v1087 = vadd.f32 0.0, %v1086
      %v1088 = vpop.f32.mrf.mxu0
      %v1089 = vpop.f32.mrf.mxu0
      %v1090 = vadd.f32 0.0, %v1089
      %v1091 = vpop.f32.mrf.mxu0
      %1092 = vmatprep.mubr.bf16.mxu0 0
      %1093 = vmatmul.mubr.bf16.gmra.mxu0 %v938
      %v1094 = vpop.f32.mrf.mxu0
      %v1095 = vadd.f32 0.0, %v1094
      %v1096 = vpop.f32.mrf.mxu0
      %v1097 = vpop.f32.mrf.mxu0
      %v1098 = vadd.f32 0.0, %v1097
      %v1099 = vpop.f32.mrf.mxu0
      %1100 = vdwg.mxu0
      %v1101 = vadd.f32 %v889, %v975
      %v1102 = vadd.f32 %v889, %v978
      %v1103 = vadd.f32 %v889, %v983
      %v1104 = vadd.f32 %v889, %v986
      %v1105 = vadd.f32 %v889, %v991
      %v1106 = vadd.f32 %v889, %v994
      %v1107 = vadd.f32 %v889, %v999
      %v1108 = vadd.f32 %v889, %v1002
      %v1109 = vadd.f32 %v889, %v1007
      %v1110 = vadd.f32 %v889, %v1010
      %v1111 = vadd.f32 %v889, %v1015
      %v1112 = vadd.f32 %v889, %v1018
      %v1113 = vadd.f32 %v889, %v1023
      %v1114 = vadd.f32 %v889, %v1026
      %v1115 = vadd.f32 %v889, %v1031
      %v1116 = vadd.f32 %v889, %v1034
      %v1117 = vadd.f32 %v889, %v1039
      %v1118 = vadd.f32 %v889, %v1042
      %v1119 = vadd.f32 %v889, %v1047
      %v1120 = vadd.f32 %v889, %v1050
      %v1121 = vadd.f32 %v889, %v1055
      %v1122 = vadd.f32 %v889, %v1058
      %v1123 = vadd.f32 %v889, %v1063
      %v1124 = vadd.f32 %v889, %v1066
      %v1125 = vadd.f32 %v889, %v1071
      %v1126 = vadd.f32 %v889, %v1074
      %v1127 = vadd.f32 %v889, %v1079
      %v1128 = vadd.f32 %v889, %v1082
      %v1129 = vadd.f32 %v889, %v1087
      %v1130 = vadd.f32 %v889, %v1090
      %v1131 = vadd.f32 %v889, %v1095
      %v1132 = vadd.f32 %v889, %v1098
      %vm1165 = vcmask 1046528
      %v1166 = vrot.slane %v825, 1
      %v1167 = vrot.slane %v864, 1
      %v1168 = vsel %vm1165, %v1166, %v1167
      %v1169 = vrot.slane %v827, 1
      %v1170 = vrot.slane %v865, 1
      %v1171 = vsel %vm1165, %v1169, %v1170
      %v1172 = vrot.slane %v829, 1
      %v1173 = vrot.slane %v866, 1
      %v1174 = vsel %vm1165, %v1172, %v1173
      %v1175 = vrot.slane %v831, 1
      %v1176 = vrot.slane %v867, 1
      %v1177 = vsel %vm1165, %v1175, %v1176
      %v1178 = vrot.slane %v833, 1
      %v1179 = vrot.slane %v868, 1
      %v1180 = vsel %vm1165, %v1178, %v1179
      %v1181 = vrot.slane %v835, 1
      %v1182 = vrot.slane %v869, 1
      %v1183 = vsel %vm1165, %v1181, %v1182
      %v1184 = vrot.slane %v837, 1
      %v1185 = vrot.slane %v870, 1
      %v1186 = vsel %vm1165, %v1184, %v1185
      %v1187 = vrot.slane %v839, 1
      %v1188 = vrot.slane %v871, 1
      %v1189 = vsel %vm1165, %v1187, %v1188
      %v1190 = vrot.slane %v841, 1
      %v1191 = vrot.slane %v872, 1
      %v1192 = vsel %vm1165, %v1190, %v1191
      %v1193 = vrot.slane %v843, 1
      %v1194 = vrot.slane %v873, 1
      %v1195 = vsel %vm1165, %v1193, %v1194
      %v1196 = vrot.slane %v845, 1
      %v1197 = vrot.slane %v874, 1
      %v1198 = vsel %vm1165, %v1196, %v1197
      %v1199 = vrot.slane %v847, 1
      %v1200 = vrot.slane %v875, 1
      %v1201 = vsel %vm1165, %v1199, %v1200
      %v1202 = vrot.slane %v849, 1
      %v1203 = vrot.slane %v876, 1
      %v1204 = vsel %vm1165, %v1202, %v1203
      %v1205 = vrot.slane %v851, 1
      %v1206 = vrot.slane %v877, 1
      %v1207 = vsel %vm1165, %v1205, %v1206
      %v1208 = vrot.slane %v853, 1
      %v1209 = vrot.slane %v878, 1
      %v1210 = vsel %vm1165, %v1208, %v1209
      %v1211 = vrot.slane %v855, 1
      %v1212 = vrot.slane %v879, 1
      %v1213 = vsel %vm1165, %v1211, %v1212
      %s1214 = scalar_lea.vmem %s5, 16
      %v1215 = vld [vmem:[%s1214] sm:$0xf]
      %v1216 = vld [vmem:[%s1214 + $0x4] sm:$0xf]
      %v1217 = vld [vmem:[%s1214 + $0x8] sm:$0xf]
      %v1218 = vld [vmem:[%s1214 + $0xc] sm:$0xf]
      %v1223 = vunpack.c.l.b16 %v1215
      %v1224 = vunpack.c.l.b16 %v1216
      %v1225 = vunpack.c.l.b16 %v1217
      %v1226 = vunpack.c.l.b16 %v1218
      %v1227 = vpack.c.b16 %v1224, %v1223
      %v1228 = vpack.c.b16 %v1226, %v1225
      %v1232 = vsel %vm907, %v1168, 0
      %v1235 = vsel %vm907, %v1171, 0
      %v1238 = vsel %vm907, %v1174, 0
      %v1241 = vsel %vm907, %v1177, 0
      %v1244 = vsel %vm907, %v1180, 0
      %v1247 = vsel %vm907, %v1183, 0
      %v1250 = vsel %vm907, %v1186, 0
      %v1253 = vsel %vm907, %v1189, 0
      %v1256 = vsel %vm907, %v1192, 0
      %v1259 = vsel %vm907, %v1195, 0
      %v1262 = vsel %vm907, %v1198, 0
      %v1265 = vsel %vm907, %v1201, 0
      %v1268 = vsel %vm907, %v1204, 0
      %v1271 = vsel %vm907, %v1207, 0
      %v1274 = vsel %vm907, %v1210, 0
      %v1277 = vsel %vm907, %v1213, 0
      %1279 = vmatprep.subr.bf16.mxu0 0
      %1280 = vmatpush1.bf16.msra.mxu0 0
      %1281 = vmatprep.subr.bf16.mxu0 0
      %1282 = vmatpush1.bf16.msra.mxu0 0
      %1283 = vmatprep.subr.bf16.mxu0 0
      %1284 = vmatpush1.bf16.msra.mxu0 0
      %1285 = vmatprep.subr.bf16.mxu0 0
      %1286 = vmatpush1.bf16.msra.mxu0 0
      %1287 = vmatprep.subr.bf16.mxu0 0
      %1288 = vmatpush1.bf16.msra.mxu0 0
      %1289 = vmatprep.subr.bf16.mxu0 0
      %1290 = vmatpush1.bf16.msra.mxu0 0
      %1291 = vmatprep.subr.bf16.mxu0 0
      %1292 = vmatpush1.bf16.msra.mxu0 %v1228
      %1293 = vmatprep.subr.bf16.mxu0 0
      %1294 = vmatpush1.bf16.msra.mxu0 %v1227
      %1295 = vmatprep.subr.bf16.mxu0 0
      %1296 = vmatpush2.bf16.msra.mxu0 0
      %1297 = vmatprep.subr.bf16.mxu0 0
      %1298 = vmatpush2.bf16.msra.mxu0 0
      %1299 = vmatprep.subr.bf16.mxu0 0
      %1300 = vmatpush2.bf16.msra.mxu0 0
      %1301 = vmatprep.subr.bf16.mxu0 0
      %1302 = vmatpush2.bf16.msra.mxu0 0
      %1303 = vmatprep.subr.bf16.mxu0 0
      %1304 = vmatpush2.bf16.msra.mxu0 0
      %1305 = vmatprep.subr.bf16.mxu0 0
      %1306 = vmatpush2.bf16.msra.mxu0 0
      %1307 = vmatprep.subr.bf16.mxu0 0
      %1308 = vmatpush2.bf16.msra.mxu0 0
      %1309 = vmatprep.subr.bf16.mxu0 0
      %1310 = vmatpush2.bf16.msra.mxu0 0
      %1311 = vmatprep.mubr.bf16.mxu0 0
      %1312 = vmatmul.mubr.bf16.gmra.mxu0 %v1232
      %v1313 = vpop.f32.mrf.mxu0
      %v1314 = vadd.f32 0.0, %v1313
      %v1315 = vpop.f32.mrf.mxu0
      %v1316 = vpop.f32.mrf.mxu0
      %v1317 = vadd.f32 0.0, %v1316
      %v1318 = vpop.f32.mrf.mxu0
      %1319 = vmatprep.mubr.bf16.mxu0 0
      %1320 = vmatmul.mubr.bf16.gmra.mxu0 %v1235
      %v1321 = vpop.f32.mrf.mxu0
      %v1322 = vadd.f32 0.0, %v1321
      %v1323 = vpop.f32.mrf.mxu0
      %v1324 = vpop.f32.mrf.mxu0
      %v1325 = vadd.f32 0.0, %v1324
      %v1326 = vpop.f32.mrf.mxu0
      %1327 = vmatprep.mubr.bf16.mxu0 0
      %1328 = vmatmul.mubr.bf16.gmra.mxu0 %v1238
      %v1329 = vpop.f32.mrf.mxu0
      %v1330 = vadd.f32 0.0, %v1329
      %v1331 = vpop.f32.mrf.mxu0
      %v1332 = vpop.f32.mrf.mxu0
      %v1333 = vadd.f32 0.0, %v1332
      %v1334 = vpop.f32.mrf.mxu0
      %1335 = vmatprep.mubr.bf16.mxu0 0
      %1336 = vmatmul.mubr.bf16.gmra.mxu0 %v1241
      %v1337 = vpop.f32.mrf.mxu0
      %v1338 = vadd.f32 0.0, %v1337
      %v1339 = vpop.f32.mrf.mxu0
      %v1340 = vpop.f32.mrf.mxu0
      %v1341 = vadd.f32 0.0, %v1340
      %v1342 = vpop.f32.mrf.mxu0
      %1343 = vmatprep.mubr.bf16.mxu0 0
      %1344 = vmatmul.mubr.bf16.gmra.mxu0 %v1244
      %v1345 = vpop.f32.mrf.mxu0
      %v1346 = vadd.f32 0.0, %v1345
      %v1347 = vpop.f32.mrf.mxu0
      %v1348 = vpop.f32.mrf.mxu0
      %v1349 = vadd.f32 0.0, %v1348
      %v1350 = vpop.f32.mrf.mxu0
      %1351 = vmatprep.mubr.bf16.mxu0 0
      %1352 = vmatmul.mubr.bf16.gmra.mxu0 %v1247
      %v1353 = vpop.f32.mrf.mxu0
      %v1354 = vadd.f32 0.0, %v1353
      %v1355 = vpop.f32.mrf.mxu0
      %v1356 = vpop.f32.mrf.mxu0
      %v1357 = vadd.f32 0.0, %v1356
      %v1358 = vpop.f32.mrf.mxu0
      %1359 = vmatprep.mubr.bf16.mxu0 0
      %1360 = vmatmul.mubr.bf16.gmra.mxu0 %v1250
      %v1361 = vpop.f32.mrf.mxu0
      %v1362 = vadd.f32 0.0, %v1361
      %v1363 = vpop.f32.mrf.mxu0
      %v1364 = vpop.f32.mrf.mxu0
      %v1365 = vadd.f32 0.0, %v1364
      %v1366 = vpop.f32.mrf.mxu0
      %1367 = vmatprep.mubr.bf16.mxu0 0
      %1368 = vmatmul.mubr.bf16.gmra.mxu0 %v1253
      %v1369 = vpop.f32.mrf.mxu0
      %v1370 = vadd.f32 0.0, %v1369
      %v1371 = vpop.f32.mrf.mxu0
      %v1372 = vpop.f32.mrf.mxu0
      %v1373 = vadd.f32 0.0, %v1372
      %v1374 = vpop.f32.mrf.mxu0
      %1375 = vmatprep.mubr.bf16.mxu0 0
      %1376 = vmatmul.mubr.bf16.gmra.mxu0 %v1256
      %v1377 = vpop.f32.mrf.mxu0
      %v1378 = vadd.f32 0.0, %v1377
      %v1379 = vpop.f32.mrf.mxu0
      %v1380 = vpop.f32.mrf.mxu0
      %v1381 = vadd.f32 0.0, %v1380
      %v1382 = vpop.f32.mrf.mxu0
      %1383 = vmatprep.mubr.bf16.mxu0 0
      %1384 = vmatmul.mubr.bf16.gmra.mxu0 %v1259
      %v1385 = vpop.f32.mrf.mxu0
      %v1386 = vadd.f32 0.0, %v1385
      %v1387 = vpop.f32.mrf.mxu0
      %v1388 = vpop.f32.mrf.mxu0
      %v1389 = vadd.f32 0.0, %v1388
      %v1390 = vpop.f32.mrf.mxu0
      %1391 = vmatprep.mubr.bf16.mxu0 0
      %1392 = vmatmul.mubr.bf16.gmra.mxu0 %v1262
      %v1393 = vpop.f32.mrf.mxu0
      %v1394 = vadd.f32 0.0, %v1393
      %v1395 = vpop.f32.mrf.mxu0
      %v1396 = vpop.f32.mrf.mxu0
      %v1397 = vadd.f32 0.0, %v1396
      %v1398 = vpop.f32.mrf.mxu0
      %1399 = vmatprep.mubr.bf16.mxu0 0
      %1400 = vmatmul.mubr.bf16.gmra.mxu0 %v1265
      %v1401 = vpop.f32.mrf.mxu0
      %v1402 = vadd.f32 0.0, %v1401
      %v1403 = vpop.f32.mrf.mxu0
      %v1404 = vpop.f32.mrf.mxu0
      %v1405 = vadd.f32 0.0, %v1404
      %v1406 = vpop.f32.mrf.mxu0
      %1407 = vmatprep.mubr.bf16.mxu0 0
      %1408 = vmatmul.mubr.bf16.gmra.mxu0 %v1268
      %v1409 = vpop.f32.mrf.mxu0
      %v1410 = vadd.f32 0.0, %v1409
      %v1411 = vpop.f32.mrf.mxu0
      %v1412 = vpop.f32.mrf.mxu0
      %v1413 = vadd.f32 0.0, %v1412
      %v1414 = vpop.f32.mrf.mxu0
      %1415 = vmatprep.mubr.bf16.mxu0 0
      %1416 = vmatmul.mubr.bf16.gmra.mxu0 %v1271
      %v1417 = vpop.f32.mrf.mxu0
      %v1418 = vadd.f32 0.0, %v1417
      %v1419 = vpop.f32.mrf.mxu0
      %v1420 = vpop.f32.mrf.mxu0
      %v1421 = vadd.f32 0.0, %v1420
      %v1422 = vpop.f32.mrf.mxu0
      %1423 = vmatprep.mubr.bf16.mxu0 0
      %1424 = vmatmul.mubr.bf16.gmra.mxu0 %v1274
      %v1425 = vpop.f32.mrf.mxu0
      %v1426 = vadd.f32 0.0, %v1425
      %v1427 = vpop.f32.mrf.mxu0
      %v1428 = vpop.f32.mrf.mxu0
      %v1429 = vadd.f32 0.0, %v1428
      %v1430 = vpop.f32.mrf.mxu0
      %1431 = vmatprep.mubr.bf16.mxu0 0
      %1432 = vmatmul.mubr.bf16.gmra.mxu0 %v1277
      %v1433 = vpop.f32.mrf.mxu0
      %v1434 = vadd.f32 0.0, %v1433
      %v1435 = vpop.f32.mrf.mxu0
      %v1436 = vpop.f32.mrf.mxu0
      %v1437 = vadd.f32 0.0, %v1436
      %v1438 = vpop.f32.mrf.mxu0
      %1439 = vdwg.mxu0
      %v1440 = vadd.f32 %v1101, %v1314
      %v1441 = vadd.f32 %v1102, %v1317
      %v1442 = vadd.f32 %v1103, %v1322
      %v1443 = vadd.f32 %v1104, %v1325
      %v1444 = vadd.f32 %v1105, %v1330
      %v1445 = vadd.f32 %v1106, %v1333
      %v1446 = vadd.f32 %v1107, %v1338
      %v1447 = vadd.f32 %v1108, %v1341
      %v1448 = vadd.f32 %v1109, %v1346
      %v1449 = vadd.f32 %v1110, %v1349
      %v1450 = vadd.f32 %v1111, %v1354
      %v1451 = vadd.f32 %v1112, %v1357
      %v1452 = vadd.f32 %v1113, %v1362
      %v1453 = vadd.f32 %v1114, %v1365
      %v1454 = vadd.f32 %v1115, %v1370
      %v1455 = vadd.f32 %v1116, %v1373
      %v1456 = vadd.f32 %v1117, %v1378
      %v1457 = vadd.f32 %v1118, %v1381
      %v1458 = vadd.f32 %v1119, %v1386
      %v1459 = vadd.f32 %v1120, %v1389
      %v1460 = vadd.f32 %v1121, %v1394
      %v1461 = vadd.f32 %v1122, %v1397
      %v1462 = vadd.f32 %v1123, %v1402
      %v1463 = vadd.f32 %v1124, %v1405
      %v1464 = vadd.f32 %v1125, %v1410
      %v1465 = vadd.f32 %v1126, %v1413
      %v1466 = vadd.f32 %v1127, %v1418
      %v1467 = vadd.f32 %v1128, %v1421
      %v1468 = vadd.f32 %v1129, %v1426
      %v1469 = vadd.f32 %v1130, %v1429
      %v1470 = vadd.f32 %v1131, %v1434
      %v1471 = vadd.f32 %v1132, %v1437
      %vm1472 = vcmask 1045504
      %v1473 = vrot.slane %v825, 2
      %v1474 = vrot.slane %v864, 2
      %v1475 = vsel %vm1472, %v1473, %v1474
      %v1476 = vrot.slane %v827, 2
      %v1477 = vrot.slane %v865, 2
      %v1478 = vsel %vm1472, %v1476, %v1477
      %v1479 = vrot.slane %v829, 2
      %v1480 = vrot.slane %v866, 2
      %v1481 = vsel %vm1472, %v1479, %v1480
      %v1482 = vrot.slane %v831, 2
      %v1483 = vrot.slane %v867, 2
      %v1484 = vsel %vm1472, %v1482, %v1483
      %v1485 = vrot.slane %v833, 2
      %v1486 = vrot.slane %v868, 2
      %v1487 = vsel %vm1472, %v1485, %v1486
      %v1488 = vrot.slane %v835, 2
      %v1489 = vrot.slane %v869, 2
      %v1490 = vsel %vm1472, %v1488, %v1489
      %v1491 = vrot.slane %v837, 2
      %v1492 = vrot.slane %v870, 2
      %v1493 = vsel %vm1472, %v1491, %v1492
      %v1494 = vrot.slane %v839, 2
      %v1495 = vrot.slane %v871, 2
      %v1496 = vsel %vm1472, %v1494, %v1495
      %v1497 = vrot.slane %v841, 2
      %v1498 = vrot.slane %v872, 2
      %v1499 = vsel %vm1472, %v1497, %v1498
      %v1500 = vrot.slane %v843, 2
      %v1501 = vrot.slane %v873, 2
      %v1502 = vsel %vm1472, %v1500, %v1501
      %v1503 = vrot.slane %v845, 2
      %v1504 = vrot.slane %v874, 2
      %v1505 = vsel %vm1472, %v1503, %v1504
      %v1506 = vrot.slane %v847, 2
      %v1507 = vrot.slane %v875, 2
      %v1508 = vsel %vm1472, %v1506, %v1507
      %v1509 = vrot.slane %v849, 2
      %v1510 = vrot.slane %v876, 2
      %v1511 = vsel %vm1472, %v1509, %v1510
      %v1512 = vrot.slane %v851, 2
      %v1513 = vrot.slane %v877, 2
      %v1514 = vsel %vm1472, %v1512, %v1513
      %v1515 = vrot.slane %v853, 2
      %v1516 = vrot.slane %v878, 2
      %v1517 = vsel %vm1472, %v1515, %v1516
      %v1518 = vrot.slane %v855, 2
      %v1519 = vrot.slane %v879, 2
      %v1520 = vsel %vm1472, %v1518, %v1519
      %s1521 = scalar_lea.vmem %s5, 32
      %v1522 = vld [vmem:[%s1521] sm:$0xf]
      %v1523 = vld [vmem:[%s1521 + $0x4] sm:$0xf]
      %v1524 = vld [vmem:[%s1521 + $0x8] sm:$0xf]
      %v1525 = vld [vmem:[%s1521 + $0xc] sm:$0xf]
      %v1530 = vunpack.c.l.b16 %v1522
      %v1531 = vunpack.c.l.b16 %v1523
      %v1532 = vunpack.c.l.b16 %v1524
      %v1533 = vunpack.c.l.b16 %v1525
      %v1534 = vpack.c.b16 %v1531, %v1530
      %v1535 = vpack.c.b16 %v1533, %v1532
      %v1539 = vsel %vm907, %v1475, 0
      %v1542 = vsel %vm907, %v1478, 0
      %v1545 = vsel %vm907, %v1481, 0
      %v1548 = vsel %vm907, %v1484, 0
      %v1551 = vsel %vm907, %v1487, 0
      %v1554 = vsel %vm907, %v1490, 0
      %v1557 = vsel %vm907, %v1493, 0
      %v1560 = vsel %vm907, %v1496, 0
      %v1563 = vsel %vm907, %v1499, 0
      %v1566 = vsel %vm907, %v1502, 0
      %v1569 = vsel %vm907, %v1505, 0
      %v1572 = vsel %vm907, %v1508, 0
      %v1575 = vsel %vm907, %v1511, 0
      %v1578 = vsel %vm907, %v1514, 0
      %v1581 = vsel %vm907, %v1517, 0
      %v1584 = vsel %vm907, %v1520, 0
      %1586 = vmatprep.subr.bf16.mxu0 0
      %1587 = vmatpush1.bf16.msra.mxu0 0
      %1588 = vmatprep.subr.bf16.mxu0 0
      %1589 = vmatpush1.bf16.msra.mxu0 0
      %1590 = vmatprep.subr.bf16.mxu0 0
      %1591 = vmatpush1.bf16.msra.mxu0 0
      %1592 = vmatprep.subr.bf16.mxu0 0
      %1593 = vmatpush1.bf16.msra.mxu0 0
      %1594 = vmatprep.subr.bf16.mxu0 0
      %1595 = vmatpush1.bf16.msra.mxu0 0
      %1596 = vmatprep.subr.bf16.mxu0 0
      %1597 = vmatpush1.bf16.msra.mxu0 0
      %1598 = vmatprep.subr.bf16.mxu0 0
      %1599 = vmatpush1.bf16.msra.mxu0 %v1535
      %1600 = vmatprep.subr.bf16.mxu0 0
      %1601 = vmatpush1.bf16.msra.mxu0 %v1534
      %1602 = vmatprep.subr.bf16.mxu0 0
      %1603 = vmatpush2.bf16.msra.mxu0 0
      %1604 = vmatprep.subr.bf16.mxu0 0
      %1605 = vmatpush2.bf16.msra.mxu0 0
      %1606 = vmatprep.subr.bf16.mxu0 0
      %1607 = vmatpush2.bf16.msra.mxu0 0
      %1608 = vmatprep.subr.bf16.mxu0 0
      %1609 = vmatpush2.bf16.msra.mxu0 0
      %1610 = vmatprep.subr.bf16.mxu0 0
      %1611 = vmatpush2.bf16.msra.mxu0 0
      %1612 = vmatprep.subr.bf16.mxu0 0
      %1613 = vmatpush2.bf16.msra.mxu0 0
      %1614 = vmatprep.subr.bf16.mxu0 0
      %1615 = vmatpush2.bf16.msra.mxu0 0
      %1616 = vmatprep.subr.bf16.mxu0 0
      %1617 = vmatpush2.bf16.msra.mxu0 0
      %1618 = vmatprep.mubr.bf16.mxu0 0
      %1619 = vmatmul.mubr.bf16.gmra.mxu0 %v1539
      %v1620 = vpop.f32.mrf.mxu0
      %v1621 = vadd.f32 0.0, %v1620
      %v1622 = vpop.f32.mrf.mxu0
      %v1623 = vpop.f32.mrf.mxu0
      %v1624 = vadd.f32 0.0, %v1623
      %v1625 = vpop.f32.mrf.mxu0
      %1626 = vmatprep.mubr.bf16.mxu0 0
      %1627 = vmatmul.mubr.bf16.gmra.mxu0 %v1542
      %v1628 = vpop.f32.mrf.mxu0
      %v1629 = vadd.f32 0.0, %v1628
      %v1630 = vpop.f32.mrf.mxu0
      %v1631 = vpop.f32.mrf.mxu0
      %v1632 = vadd.f32 0.0, %v1631
      %v1633 = vpop.f32.mrf.mxu0
      %1634 = vmatprep.mubr.bf16.mxu0 0
      %1635 = vmatmul.mubr.bf16.gmra.mxu0 %v1545
      %v1636 = vpop.f32.mrf.mxu0
      %v1637 = vadd.f32 0.0, %v1636
      %v1638 = vpop.f32.mrf.mxu0
      %v1639 = vpop.f32.mrf.mxu0
      %v1640 = vadd.f32 0.0, %v1639
      %v1641 = vpop.f32.mrf.mxu0
      %1642 = vmatprep.mubr.bf16.mxu0 0
      %1643 = vmatmul.mubr.bf16.gmra.mxu0 %v1548
      %v1644 = vpop.f32.mrf.mxu0
      %v1645 = vadd.f32 0.0, %v1644
      %v1646 = vpop.f32.mrf.mxu0
      %v1647 = vpop.f32.mrf.mxu0
      %v1648 = vadd.f32 0.0, %v1647
      %v1649 = vpop.f32.mrf.mxu0
      %1650 = vmatprep.mubr.bf16.mxu0 0
      %1651 = vmatmul.mubr.bf16.gmra.mxu0 %v1551
      %v1652 = vpop.f32.mrf.mxu0
      %v1653 = vadd.f32 0.0, %v1652
      %v1654 = vpop.f32.mrf.mxu0
      %v1655 = vpop.f32.mrf.mxu0
      %v1656 = vadd.f32 0.0, %v1655
      %v1657 = vpop.f32.mrf.mxu0
      %1658 = vmatprep.mubr.bf16.mxu0 0
      %1659 = vmatmul.mubr.bf16.gmra.mxu0 %v1554
      %v1660 = vpop.f32.mrf.mxu0
      %v1661 = vadd.f32 0.0, %v1660
      %v1662 = vpop.f32.mrf.mxu0
      %v1663 = vpop.f32.mrf.mxu0
      %v1664 = vadd.f32 0.0, %v1663
      %v1665 = vpop.f32.mrf.mxu0
      %1666 = vmatprep.mubr.bf16.mxu0 0
      %1667 = vmatmul.mubr.bf16.gmra.mxu0 %v1557
      %v1668 = vpop.f32.mrf.mxu0
      %v1669 = vadd.f32 0.0, %v1668
      %v1670 = vpop.f32.mrf.mxu0
      %v1671 = vpop.f32.mrf.mxu0
      %v1672 = vadd.f32 0.0, %v1671
      %v1673 = vpop.f32.mrf.mxu0
      %1674 = vmatprep.mubr.bf16.mxu0 0
      %1675 = vmatmul.mubr.bf16.gmra.mxu0 %v1560
      %v1676 = vpop.f32.mrf.mxu0
      %v1677 = vadd.f32 0.0, %v1676
      %v1678 = vpop.f32.mrf.mxu0
      %v1679 = vpop.f32.mrf.mxu0
      %v1680 = vadd.f32 0.0, %v1679
      %v1681 = vpop.f32.mrf.mxu0
      %1682 = vmatprep.mubr.bf16.mxu0 0
      %1683 = vmatmul.mubr.bf16.gmra.mxu0 %v1563
      %v1684 = vpop.f32.mrf.mxu0
      %v1685 = vadd.f32 0.0, %v1684
      %v1686 = vpop.f32.mrf.mxu0
      %v1687 = vpop.f32.mrf.mxu0
      %v1688 = vadd.f32 0.0, %v1687
      %v1689 = vpop.f32.mrf.mxu0
      %1690 = vmatprep.mubr.bf16.mxu0 0
      %1691 = vmatmul.mubr.bf16.gmra.mxu0 %v1566
      %v1692 = vpop.f32.mrf.mxu0
      %v1693 = vadd.f32 0.0, %v1692
      %v1694 = vpop.f32.mrf.mxu0
      %v1695 = vpop.f32.mrf.mxu0
      %v1696 = vadd.f32 0.0, %v1695
      %v1697 = vpop.f32.mrf.mxu0
      %1698 = vmatprep.mubr.bf16.mxu0 0
      %1699 = vmatmul.mubr.bf16.gmra.mxu0 %v1569
      %v1700 = vpop.f32.mrf.mxu0
      %v1701 = vadd.f32 0.0, %v1700
      %v1702 = vpop.f32.mrf.mxu0
      %v1703 = vpop.f32.mrf.mxu0
      %v1704 = vadd.f32 0.0, %v1703
      %v1705 = vpop.f32.mrf.mxu0
      %1706 = vmatprep.mubr.bf16.mxu0 0
      %1707 = vmatmul.mubr.bf16.gmra.mxu0 %v1572
      %v1708 = vpop.f32.mrf.mxu0
      %v1709 = vadd.f32 0.0, %v1708
      %v1710 = vpop.f32.mrf.mxu0
      %v1711 = vpop.f32.mrf.mxu0
      %v1712 = vadd.f32 0.0, %v1711
      %v1713 = vpop.f32.mrf.mxu0
      %1714 = vmatprep.mubr.bf16.mxu0 0
      %1715 = vmatmul.mubr.bf16.gmra.mxu0 %v1575
      %v1716 = vpop.f32.mrf.mxu0
      %v1717 = vadd.f32 0.0, %v1716
      %v1718 = vpop.f32.mrf.mxu0
      %v1719 = vpop.f32.mrf.mxu0
      %v1720 = vadd.f32 0.0, %v1719
      %v1721 = vpop.f32.mrf.mxu0
      %1722 = vmatprep.mubr.bf16.mxu0 0
      %1723 = vmatmul.mubr.bf16.gmra.mxu0 %v1578
      %v1724 = vpop.f32.mrf.mxu0
      %v1725 = vadd.f32 0.0, %v1724
      %v1726 = vpop.f32.mrf.mxu0
      %v1727 = vpop.f32.mrf.mxu0
      %v1728 = vadd.f32 0.0, %v1727
      %v1729 = vpop.f32.mrf.mxu0
      %1730 = vmatprep.mubr.bf16.mxu0 0
      %1731 = vmatmul.mubr.bf16.gmra.mxu0 %v1581
      %v1732 = vpop.f32.mrf.mxu0
      %v1733 = vadd.f32 0.0, %v1732
      %v1734 = vpop.f32.mrf.mxu0
      %v1735 = vpop.f32.mrf.mxu0
      %v1736 = vadd.f32 0.0, %v1735
      %v1737 = vpop.f32.mrf.mxu0
      %1738 = vmatprep.mubr.bf16.mxu0 0
      %1739 = vmatmul.mubr.bf16.gmra.mxu0 %v1584
      %v1740 = vpop.f32.mrf.mxu0
      %v1741 = vadd.f32 0.0, %v1740
      %v1742 = vpop.f32.mrf.mxu0
      %v1743 = vpop.f32.mrf.mxu0
      %v1744 = vadd.f32 0.0, %v1743
      %v1745 = vpop.f32.mrf.mxu0
      %1746 = vdwg.mxu0
      %v1747 = vadd.f32 %v1440, %v1621
      %v1748 = vadd.f32 %v1441, %v1624
      %v1749 = vadd.f32 %v1442, %v1629
      %v1750 = vadd.f32 %v1443, %v1632
      %v1751 = vadd.f32 %v1444, %v1637
      %v1752 = vadd.f32 %v1445, %v1640
      %v1753 = vadd.f32 %v1446, %v1645
      %v1754 = vadd.f32 %v1447, %v1648
      %v1755 = vadd.f32 %v1448, %v1653
      %v1756 = vadd.f32 %v1449, %v1656
      %v1757 = vadd.f32 %v1450, %v1661
      %v1758 = vadd.f32 %v1451, %v1664
      %v1759 = vadd.f32 %v1452, %v1669
      %v1760 = vadd.f32 %v1453, %v1672
      %v1761 = vadd.f32 %v1454, %v1677
      %v1762 = vadd.f32 %v1455, %v1680
      %v1763 = vadd.f32 %v1456, %v1685
      %v1764 = vadd.f32 %v1457, %v1688
      %v1765 = vadd.f32 %v1458, %v1693
      %v1766 = vadd.f32 %v1459, %v1696
      %v1767 = vadd.f32 %v1460, %v1701
      %v1768 = vadd.f32 %v1461, %v1704
      %v1769 = vadd.f32 %v1462, %v1709
      %v1770 = vadd.f32 %v1463, %v1712
      %v1771 = vadd.f32 %v1464, %v1717
      %v1772 = vadd.f32 %v1465, %v1720
      %v1773 = vadd.f32 %v1466, %v1725
      %v1774 = vadd.f32 %v1467, %v1728
      %v1775 = vadd.f32 %v1468, %v1733
      %v1776 = vadd.f32 %v1469, %v1736
      %v1777 = vadd.f32 %v1470, %v1741
      %v1778 = vadd.f32 %v1471, %v1744
      %s1779 = scalar_lea.vmem %s5, 48
      %v1780 = vld [vmem:[%s1779] sm:$0xf]
      %v1781 = vld [vmem:[%s1779 + $0x4] sm:$0xf]
      %v1782 = vld [vmem:[%s1779 + $0x8] sm:$0xf]
      %v1783 = vld [vmem:[%s1779 + $0xc] sm:$0xf]
      %v1788 = vunpack.c.l.b16 %v1780
      %v1789 = vunpack.c.l.b16 %v1781
      %v1790 = vunpack.c.l.b16 %v1782
      %v1791 = vunpack.c.l.b16 %v1783
      %v1792 = vpack.c.b16 %v1789, %v1788
      %v1793 = vpack.c.b16 %v1791, %v1790
      %v1796 = vsel %vm907, %v857, 0
      %v1798 = vsel %vm907, %v859, 0
      %1800 = vmatprep.subr.bf16.mxu0 0
      %1801 = vmatpush1.bf16.msra.mxu0 0
      %1802 = vmatprep.subr.bf16.mxu0 0
      %1803 = vmatpush1.bf16.msra.mxu0 0
      %1804 = vmatprep.subr.bf16.mxu0 0
      %1805 = vmatpush1.bf16.msra.mxu0 0
      %1806 = vmatprep.subr.bf16.mxu0 0
      %1807 = vmatpush1.bf16.msra.mxu0 0
      %1808 = vmatprep.subr.bf16.mxu0 0
      %1809 = vmatpush1.bf16.msra.mxu0 0
      %1810 = vmatprep.subr.bf16.mxu0 0
      %1811 = vmatpush1.bf16.msra.mxu0 0
      %1812 = vmatprep.subr.bf16.mxu0 0
      %1813 = vmatpush1.bf16.msra.mxu0 %v1793
      %1814 = vmatprep.subr.bf16.mxu0 0
      %1815 = vmatpush1.bf16.msra.mxu0 %v1792
      %1816 = vmatprep.subr.bf16.mxu0 0
      %1817 = vmatpush2.bf16.msra.mxu0 0
      %1818 = vmatprep.subr.bf16.mxu0 0
      %1819 = vmatpush2.bf16.msra.mxu0 0
      %1820 = vmatprep.subr.bf16.mxu0 0
      %1821 = vmatpush2.bf16.msra.mxu0 0
      %1822 = vmatprep.subr.bf16.mxu0 0
      %1823 = vmatpush2.bf16.msra.mxu0 0
      %1824 = vmatprep.subr.bf16.mxu0 0
      %1825 = vmatpush2.bf16.msra.mxu0 0
      %1826 = vmatprep.subr.bf16.mxu0 0
      %1827 = vmatpush2.bf16.msra.mxu0 0
      %1828 = vmatprep.subr.bf16.mxu0 0
      %1829 = vmatpush2.bf16.msra.mxu0 0
      %1830 = vmatprep.subr.bf16.mxu0 0
      %1831 = vmatpush2.bf16.msra.mxu0 0
      %1832 = vmatprep.mubr.bf16.mxu0 0
      %1833 = vmatmul.mubr.bf16.gmra.mxu0 %v912
      %v1834 = vpop.f32.mrf.mxu0
      %v1835 = vadd.f32 0.0, %v1834
      %v1836 = vpop.f32.mrf.mxu0
      %v1837 = vpop.f32.mrf.mxu0
      %v1838 = vadd.f32 0.0, %v1837
      %v1839 = vpop.f32.mrf.mxu0
      %1840 = vmatprep.mubr.bf16.mxu0 0
      %1841 = vmatmul.mubr.bf16.gmra.mxu0 %v914
      %v1842 = vpop.f32.mrf.mxu0
      %v1843 = vadd.f32 0.0, %v1842
      %v1844 = vpop.f32.mrf.mxu0
      %v1845 = vpop.f32.mrf.mxu0
      %v1846 = vadd.f32 0.0, %v1845
      %v1847 = vpop.f32.mrf.mxu0
      %1848 = vmatprep.mubr.bf16.mxu0 0
      %1849 = vmatmul.mubr.bf16.gmra.mxu0 %v916
      %v1850 = vpop.f32.mrf.mxu0
      %v1851 = vadd.f32 0.0, %v1850
      %v1852 = vpop.f32.mrf.mxu0
      %v1853 = vpop.f32.mrf.mxu0
      %v1854 = vadd.f32 0.0, %v1853
      %v1855 = vpop.f32.mrf.mxu0
      %1856 = vmatprep.mubr.bf16.mxu0 0
      %1857 = vmatmul.mubr.bf16.gmra.mxu0 %v918
      %v1858 = vpop.f32.mrf.mxu0
      %v1859 = vadd.f32 0.0, %v1858
      %v1860 = vpop.f32.mrf.mxu0
      %v1861 = vpop.f32.mrf.mxu0
      %v1862 = vadd.f32 0.0, %v1861
      %v1863 = vpop.f32.mrf.mxu0
      %1864 = vmatprep.mubr.bf16.mxu0 0
      %1865 = vmatmul.mubr.bf16.gmra.mxu0 %v920
      %v1866 = vpop.f32.mrf.mxu0
      %v1867 = vadd.f32 0.0, %v1866
      %v1868 = vpop.f32.mrf.mxu0
      %v1869 = vpop.f32.mrf.mxu0
      %v1870 = vadd.f32 0.0, %v1869
      %v1871 = vpop.f32.mrf.mxu0
      %1872 = vmatprep.mubr.bf16.mxu0 0
      %1873 = vmatmul.mubr.bf16.gmra.mxu0 %v922
      %v1874 = vpop.f32.mrf.mxu0
      %v1875 = vadd.f32 0.0, %v1874
      %v1876 = vpop.f32.mrf.mxu0
      %v1877 = vpop.f32.mrf.mxu0
      %v1878 = vadd.f32 0.0, %v1877
      %v1879 = vpop.f32.mrf.mxu0
      %1880 = vmatprep.mubr.bf16.mxu0 0
      %1881 = vmatmul.mubr.bf16.gmra.mxu0 %v924
      %v1882 = vpop.f32.mrf.mxu0
      %v1883 = vadd.f32 0.0, %v1882
      %v1884 = vpop.f32.mrf.mxu0
      %v1885 = vpop.f32.mrf.mxu0
      %v1886 = vadd.f32 0.0, %v1885
      %v1887 = vpop.f32.mrf.mxu0
      %1888 = vmatprep.mubr.bf16.mxu0 0
      %1889 = vmatmul.mubr.bf16.gmra.mxu0 %v926
      %v1890 = vpop.f32.mrf.mxu0
      %v1891 = vadd.f32 0.0, %v1890
      %v1892 = vpop.f32.mrf.mxu0
      %v1893 = vpop.f32.mrf.mxu0
      %v1894 = vadd.f32 0.0, %v1893
      %v1895 = vpop.f32.mrf.mxu0
      %1896 = vmatprep.mubr.bf16.mxu0 0
      %1897 = vmatmul.mubr.bf16.gmra.mxu0 %v928
      %v1898 = vpop.f32.mrf.mxu0
      %v1899 = vadd.f32 0.0, %v1898
      %v1900 = vpop.f32.mrf.mxu0
      %v1901 = vpop.f32.mrf.mxu0
      %v1902 = vadd.f32 0.0, %v1901
      %v1903 = vpop.f32.mrf.mxu0
      %1904 = vmatprep.mubr.bf16.mxu0 0
      %1905 = vmatmul.mubr.bf16.gmra.mxu0 %v930
      %v1906 = vpop.f32.mrf.mxu0
      %v1907 = vadd.f32 0.0, %v1906
      %v1908 = vpop.f32.mrf.mxu0
      %v1909 = vpop.f32.mrf.mxu0
      %v1910 = vadd.f32 0.0, %v1909
      %v1911 = vpop.f32.mrf.mxu0
      %1912 = vmatprep.mubr.bf16.mxu0 0
      %1913 = vmatmul.mubr.bf16.gmra.mxu0 %v932
      %v1914 = vpop.f32.mrf.mxu0
      %v1915 = vadd.f32 0.0, %v1914
      %v1916 = vpop.f32.mrf.mxu0
      %v1917 = vpop.f32.mrf.mxu0
      %v1918 = vadd.f32 0.0, %v1917
      %v1919 = vpop.f32.mrf.mxu0
      %1920 = vmatprep.mubr.bf16.mxu0 0
      %1921 = vmatmul.mubr.bf16.gmra.mxu0 %v934
      %v1922 = vpop.f32.mrf.mxu0
      %v1923 = vadd.f32 0.0, %v1922
      %v1924 = vpop.f32.mrf.mxu0
      %v1925 = vpop.f32.mrf.mxu0
      %v1926 = vadd.f32 0.0, %v1925
      %v1927 = vpop.f32.mrf.mxu0
      %1928 = vmatprep.mubr.bf16.mxu0 0
      %1929 = vmatmul.mubr.bf16.gmra.mxu0 %v936
      %v1930 = vpop.f32.mrf.mxu0
      %v1931 = vadd.f32 0.0, %v1930
      %v1932 = vpop.f32.mrf.mxu0
      %v1933 = vpop.f32.mrf.mxu0
      %v1934 = vadd.f32 0.0, %v1933
      %v1935 = vpop.f32.mrf.mxu0
      %1936 = vmatprep.mubr.bf16.mxu0 0
      %1937 = vmatmul.mubr.bf16.gmra.mxu0 %v938
      %v1938 = vpop.f32.mrf.mxu0
      %v1939 = vadd.f32 0.0, %v1938
      %v1940 = vpop.f32.mrf.mxu0
      %v1941 = vpop.f32.mrf.mxu0
      %v1942 = vadd.f32 0.0, %v1941
      %v1943 = vpop.f32.mrf.mxu0
      %1944 = vmatprep.mubr.bf16.mxu0 0
      %1945 = vmatmul.mubr.bf16.gmra.mxu0 %v1796
      %v1946 = vpop.f32.mrf.mxu0
      %v1947 = vadd.f32 0.0, %v1946
      %v1948 = vpop.f32.mrf.mxu0
      %v1949 = vpop.f32.mrf.mxu0
      %v1950 = vadd.f32 0.0, %v1949
      %v1951 = vpop.f32.mrf.mxu0
      %1952 = vmatprep.mubr.bf16.mxu0 0
      %1953 = vmatmul.mubr.bf16.gmra.mxu0 %v1798
      %v1954 = vpop.f32.mrf.mxu0
      %v1955 = vadd.f32 0.0, %v1954
      %v1956 = vpop.f32.mrf.mxu0
      %v1957 = vpop.f32.mrf.mxu0
      %v1958 = vadd.f32 0.0, %v1957
      %v1959 = vpop.f32.mrf.mxu0
      %1960 = vdwg.mxu0
      %v1961 = vadd.f32 %v1747, %v1835
      %v1962 = vadd.f32 %v1748, %v1838
      %v1963 = vadd.f32 %v1749, %v1843
      %v1964 = vadd.f32 %v1750, %v1846
      %v1965 = vadd.f32 %v1751, %v1851
      %v1966 = vadd.f32 %v1752, %v1854
      %v1967 = vadd.f32 %v1753, %v1859
      %v1968 = vadd.f32 %v1754, %v1862
      %v1969 = vadd.f32 %v1755, %v1867
      %v1970 = vadd.f32 %v1756, %v1870
      %v1971 = vadd.f32 %v1757, %v1875
      %v1972 = vadd.f32 %v1758, %v1878
      %v1973 = vadd.f32 %v1759, %v1883
      %v1974 = vadd.f32 %v1760, %v1886
      %v1975 = vadd.f32 %v1761, %v1891
      %v1976 = vadd.f32 %v1762, %v1894
      %v1977 = vadd.f32 %v1763, %v1899
      %v1978 = vadd.f32 %v1764, %v1902
      %v1979 = vadd.f32 %v1765, %v1907
      %v1980 = vadd.f32 %v1766, %v1910
      %v1981 = vadd.f32 %v1767, %v1915
      %v1982 = vadd.f32 %v1768, %v1918
      %v1983 = vadd.f32 %v1769, %v1923
      %v1984 = vadd.f32 %v1770, %v1926
      %v1985 = vadd.f32 %v1771, %v1931
      %v1986 = vadd.f32 %v1772, %v1934
      %v1987 = vadd.f32 %v1773, %v1939
      %v1988 = vadd.f32 %v1774, %v1942
      %v1989 = vadd.f32 %v1775, %v1947
      %v1990 = vadd.f32 %v1776, %v1950
      %v1991 = vadd.f32 %v1777, %v1955
      %v1992 = vadd.f32 %v1778, %v1958
      %v1997 = vrot.slane %v857, 1
      %v1998 = vrot.slane %v880, 1
      %v1999 = vsel %vm1165, %v1997, %v1998
      %v2000 = vrot.slane %v859, 1
      %v2001 = vrot.slane %v881, 1
      %v2002 = vsel %vm1165, %v2000, %v2001
      %s2003 = scalar_lea.vmem %s5, 64
      %v2004 = vld [vmem:[%s2003] sm:$0xf]
      %v2005 = vld [vmem:[%s2003 + $0x4] sm:$0xf]
      %v2006 = vld [vmem:[%s2003 + $0x8] sm:$0xf]
      %v2007 = vld [vmem:[%s2003 + $0xc] sm:$0xf]
      %v2012 = vunpack.c.l.b16 %v2004
      %v2013 = vunpack.c.l.b16 %v2005
      %v2014 = vunpack.c.l.b16 %v2006
      %v2015 = vunpack.c.l.b16 %v2007
      %v2016 = vpack.c.b16 %v2013, %v2012
      %v2017 = vpack.c.b16 %v2015, %v2014
      %v2021 = vsel %vm907, %v1999, 0
      %v2024 = vsel %vm907, %v2002, 0
      %2026 = vmatprep.subr.bf16.mxu0 0
      %2027 = vmatpush1.bf16.msra.mxu0 0
      %2028 = vmatprep.subr.bf16.mxu0 0
      %2029 = vmatpush1.bf16.msra.mxu0 0
      %2030 = vmatprep.subr.bf16.mxu0 0
      %2031 = vmatpush1.bf16.msra.mxu0 0
      %2032 = vmatprep.subr.bf16.mxu0 0
      %2033 = vmatpush1.bf16.msra.mxu0 0
      %2034 = vmatprep.subr.bf16.mxu0 0
      %2035 = vmatpush1.bf16.msra.mxu0 0
      %2036 = vmatprep.subr.bf16.mxu0 0
      %2037 = vmatpush1.bf16.msra.mxu0 0
      %2038 = vmatprep.subr.bf16.mxu0 0
      %2039 = vmatpush1.bf16.msra.mxu0 %v2017
      %2040 = vmatprep.subr.bf16.mxu0 0
      %2041 = vmatpush1.bf16.msra.mxu0 %v2016
      %2042 = vmatprep.subr.bf16.mxu0 0
      %2043 = vmatpush2.bf16.msra.mxu0 0
      %2044 = vmatprep.subr.bf16.mxu0 0
      %2045 = vmatpush2.bf16.msra.mxu0 0
      %2046 = vmatprep.subr.bf16.mxu0 0
      %2047 = vmatpush2.bf16.msra.mxu0 0
      %2048 = vmatprep.subr.bf16.mxu0 0
      %2049 = vmatpush2.bf16.msra.mxu0 0
      %2050 = vmatprep.subr.bf16.mxu0 0
      %2051 = vmatpush2.bf16.msra.mxu0 0
      %2052 = vmatprep.subr.bf16.mxu0 0
      %2053 = vmatpush2.bf16.msra.mxu0 0
      %2054 = vmatprep.subr.bf16.mxu0 0
      %2055 = vmatpush2.bf16.msra.mxu0 0
      %2056 = vmatprep.subr.bf16.mxu0 0
      %2057 = vmatpush2.bf16.msra.mxu0 0
      %2058 = vmatprep.mubr.bf16.mxu0 0
      %2059 = vmatmul.mubr.bf16.gmra.mxu0 %v1238
      %v2060 = vpop.f32.mrf.mxu0
      %v2061 = vadd.f32 0.0, %v2060
      %v2062 = vpop.f32.mrf.mxu0
      %v2063 = vpop.f32.mrf.mxu0
      %v2064 = vadd.f32 0.0, %v2063
      %v2065 = vpop.f32.mrf.mxu0
      %2066 = vmatprep.mubr.bf16.mxu0 0
      %2067 = vmatmul.mubr.bf16.gmra.mxu0 %v1241
      %v2068 = vpop.f32.mrf.mxu0
      %v2069 = vadd.f32 0.0, %v2068
      %v2070 = vpop.f32.mrf.mxu0
      %v2071 = vpop.f32.mrf.mxu0
      %v2072 = vadd.f32 0.0, %v2071
      %v2073 = vpop.f32.mrf.mxu0
      %2074 = vmatprep.mubr.bf16.mxu0 0
      %2075 = vmatmul.mubr.bf16.gmra.mxu0 %v1244
      %v2076 = vpop.f32.mrf.mxu0
      %v2077 = vadd.f32 0.0, %v2076
      %v2078 = vpop.f32.mrf.mxu0
      %v2079 = vpop.f32.mrf.mxu0
      %v2080 = vadd.f32 0.0, %v2079
      %v2081 = vpop.f32.mrf.mxu0
      %2082 = vmatprep.mubr.bf16.mxu0 0
      %2083 = vmatmul.mubr.bf16.gmra.mxu0 %v1247
      %v2084 = vpop.f32.mrf.mxu0
      %v2085 = vadd.f32 0.0, %v2084
      %v2086 = vpop.f32.mrf.mxu0
      %v2087 = vpop.f32.mrf.mxu0
      %v2088 = vadd.f32 0.0, %v2087
      %v2089 = vpop.f32.mrf.mxu0
      %2090 = vmatprep.mubr.bf16.mxu0 0
      %2091 = vmatmul.mubr.bf16.gmra.mxu0 %v1250
      %v2092 = vpop.f32.mrf.mxu0
      %v2093 = vadd.f32 0.0, %v2092
      %v2094 = vpop.f32.mrf.mxu0
      %v2095 = vpop.f32.mrf.mxu0
      %v2096 = vadd.f32 0.0, %v2095
      %v2097 = vpop.f32.mrf.mxu0
      %2098 = vmatprep.mubr.bf16.mxu0 0
      %2099 = vmatmul.mubr.bf16.gmra.mxu0 %v1253
      %v2100 = vpop.f32.mrf.mxu0
      %v2101 = vadd.f32 0.0, %v2100
      %v2102 = vpop.f32.mrf.mxu0
      %v2103 = vpop.f32.mrf.mxu0
      %v2104 = vadd.f32 0.0, %v2103
      %v2105 = vpop.f32.mrf.mxu0
      %2106 = vmatprep.mubr.bf16.mxu0 0
      %2107 = vmatmul.mubr.bf16.gmra.mxu0 %v1256
      %v2108 = vpop.f32.mrf.mxu0
      %v2109 = vadd.f32 0.0, %v2108
      %v2110 = vpop.f32.mrf.mxu0
      %v2111 = vpop.f32.mrf.mxu0
      %v2112 = vadd.f32 0.0, %v2111
      %v2113 = vpop.f32.mrf.mxu0
      %2114 = vmatprep.mubr.bf16.mxu0 0
      %2115 = vmatmul.mubr.bf16.gmra.mxu0 %v1259
      %v2116 = vpop.f32.mrf.mxu0
      %v2117 = vadd.f32 0.0, %v2116
      %v2118 = vpop.f32.mrf.mxu0
      %v2119 = vpop.f32.mrf.mxu0
      %v2120 = vadd.f32 0.0, %v2119
      %v2121 = vpop.f32.mrf.mxu0
      %2122 = vmatprep.mubr.bf16.mxu0 0
      %2123 = vmatmul.mubr.bf16.gmra.mxu0 %v1262
      %v2124 = vpop.f32.mrf.mxu0
      %v2125 = vadd.f32 0.0, %v2124
      %v2126 = vpop.f32.mrf.mxu0
      %v2127 = vpop.f32.mrf.mxu0
      %v2128 = vadd.f32 0.0, %v2127
      %v2129 = vpop.f32.mrf.mxu0
      %2130 = vmatprep.mubr.bf16.mxu0 0
      %2131 = vmatmul.mubr.bf16.gmra.mxu0 %v1265
      %v2132 = vpop.f32.mrf.mxu0
      %v2133 = vadd.f32 0.0, %v2132
      %v2134 = vpop.f32.mrf.mxu0
      %v2135 = vpop.f32.mrf.mxu0
      %v2136 = vadd.f32 0.0, %v2135
      %v2137 = vpop.f32.mrf.mxu0
      %2138 = vmatprep.mubr.bf16.mxu0 0
      %2139 = vmatmul.mubr.bf16.gmra.mxu0 %v1268
      %v2140 = vpop.f32.mrf.mxu0
      %v2141 = vadd.f32 0.0, %v2140
      %v2142 = vpop.f32.mrf.mxu0
      %v2143 = vpop.f32.mrf.mxu0
      %v2144 = vadd.f32 0.0, %v2143
      %v2145 = vpop.f32.mrf.mxu0
      %2146 = vmatprep.mubr.bf16.mxu0 0
      %2147 = vmatmul.mubr.bf16.gmra.mxu0 %v1271
      %v2148 = vpop.f32.mrf.mxu0
      %v2149 = vadd.f32 0.0, %v2148
      %v2150 = vpop.f32.mrf.mxu0
      %v2151 = vpop.f32.mrf.mxu0
      %v2152 = vadd.f32 0.0, %v2151
      %v2153 = vpop.f32.mrf.mxu0
      %2154 = vmatprep.mubr.bf16.mxu0 0
      %2155 = vmatmul.mubr.bf16.gmra.mxu0 %v1274
      %v2156 = vpop.f32.mrf.mxu0
      %v2157 = vadd.f32 0.0, %v2156
      %v2158 = vpop.f32.mrf.mxu0
      %v2159 = vpop.f32.mrf.mxu0
      %v2160 = vadd.f32 0.0, %v2159
      %v2161 = vpop.f32.mrf.mxu0
      %2162 = vmatprep.mubr.bf16.mxu0 0
      %2163 = vmatmul.mubr.bf16.gmra.mxu0 %v1277
      %v2164 = vpop.f32.mrf.mxu0
      %v2165 = vadd.f32 0.0, %v2164
      %v2166 = vpop.f32.mrf.mxu0
      %v2167 = vpop.f32.mrf.mxu0
      %v2168 = vadd.f32 0.0, %v2167
      %v2169 = vpop.f32.mrf.mxu0
      %2170 = vmatprep.mubr.bf16.mxu0 0
      %2171 = vmatmul.mubr.bf16.gmra.mxu0 %v2021
      %v2172 = vpop.f32.mrf.mxu0
      %v2173 = vadd.f32 0.0, %v2172
      %v2174 = vpop.f32.mrf.mxu0
      %v2175 = vpop.f32.mrf.mxu0
      %v2176 = vadd.f32 0.0, %v2175
      %v2177 = vpop.f32.mrf.mxu0
      %2178 = vmatprep.mubr.bf16.mxu0 0
      %2179 = vmatmul.mubr.bf16.gmra.mxu0 %v2024
      %v2180 = vpop.f32.mrf.mxu0
      %v2181 = vadd.f32 0.0, %v2180
      %v2182 = vpop.f32.mrf.mxu0
      %v2183 = vpop.f32.mrf.mxu0
      %v2184 = vadd.f32 0.0, %v2183
      %v2185 = vpop.f32.mrf.mxu0
      %2186 = vdwg.mxu0
      %v2187 = vadd.f32 %v1961, %v2061
      %v2188 = vadd.f32 %v1962, %v2064
      %v2189 = vadd.f32 %v1963, %v2069
      %v2190 = vadd.f32 %v1964, %v2072
      %v2191 = vadd.f32 %v1965, %v2077
      %v2192 = vadd.f32 %v1966, %v2080
      %v2193 = vadd.f32 %v1967, %v2085
      %v2194 = vadd.f32 %v1968, %v2088
      %v2195 = vadd.f32 %v1969, %v2093
      %v2196 = vadd.f32 %v1970, %v2096
      %v2197 = vadd.f32 %v1971, %v2101
      %v2198 = vadd.f32 %v1972, %v2104
      %v2199 = vadd.f32 %v1973, %v2109
      %v2200 = vadd.f32 %v1974, %v2112
      %v2201 = vadd.f32 %v1975, %v2117
      %v2202 = vadd.f32 %v1976, %v2120
      %v2203 = vadd.f32 %v1977, %v2125
      %v2204 = vadd.f32 %v1978, %v2128
      %v2205 = vadd.f32 %v1979, %v2133
      %v2206 = vadd.f32 %v1980, %v2136
      %v2207 = vadd.f32 %v1981, %v2141
      %v2208 = vadd.f32 %v1982, %v2144
      %v2209 = vadd.f32 %v1983, %v2149
      %v2210 = vadd.f32 %v1984, %v2152
      %v2211 = vadd.f32 %v1985, %v2157
      %v2212 = vadd.f32 %v1986, %v2160
      %v2213 = vadd.f32 %v1987, %v2165
      %v2214 = vadd.f32 %v1988, %v2168
      %v2215 = vadd.f32 %v1989, %v2173
      %v2216 = vadd.f32 %v1990, %v2176
      %v2217 = vadd.f32 %v1991, %v2181
      %v2218 = vadd.f32 %v1992, %v2184
      %v2219 = vrot.slane %v857, 2
      %v2220 = vrot.slane %v880, 2
      %v2221 = vsel %vm1472, %v2219, %v2220
      %v2222 = vrot.slane %v859, 2
      %v2223 = vrot.slane %v881, 2
      %v2224 = vsel %vm1472, %v2222, %v2223
      %s2225 = scalar_lea.vmem %s5, 80
      %v2226 = vld [vmem:[%s2225] sm:$0xf]
      %v2227 = vld [vmem:[%s2225 + $0x4] sm:$0xf]
      %v2228 = vld [vmem:[%s2225 + $0x8] sm:$0xf]
      %v2229 = vld [vmem:[%s2225 + $0xc] sm:$0xf]
      %v2234 = vunpack.c.l.b16 %v2226
      %v2235 = vunpack.c.l.b16 %v2227
      %v2236 = vunpack.c.l.b16 %v2228
      %v2237 = vunpack.c.l.b16 %v2229
      %v2238 = vpack.c.b16 %v2235, %v2234
      %v2239 = vpack.c.b16 %v2237, %v2236
      %v2243 = vsel %vm907, %v2221, 0
      %v2246 = vsel %vm907, %v2224, 0
      %2248 = vmatprep.subr.bf16.mxu0 0
      %2249 = vmatpush1.bf16.msra.mxu0 0
      %2250 = vmatprep.subr.bf16.mxu0 0
      %2251 = vmatpush1.bf16.msra.mxu0 0
      %2252 = vmatprep.subr.bf16.mxu0 0
      %2253 = vmatpush1.bf16.msra.mxu0 0
      %2254 = vmatprep.subr.bf16.mxu0 0
      %2255 = vmatpush1.bf16.msra.mxu0 0
      %2256 = vmatprep.subr.bf16.mxu0 0
      %2257 = vmatpush1.bf16.msra.mxu0 0
      %2258 = vmatprep.subr.bf16.mxu0 0
      %2259 = vmatpush1.bf16.msra.mxu0 0
      %2260 = vmatprep.subr.bf16.mxu0 0
      %2261 = vmatpush1.bf16.msra.mxu0 %v2239
      %2262 = vmatprep.subr.bf16.mxu0 0
      %2263 = vmatpush1.bf16.msra.mxu0 %v2238
      %2264 = vmatprep.subr.bf16.mxu0 0
      %2265 = vmatpush2.bf16.msra.mxu0 0
      %2266 = vmatprep.subr.bf16.mxu0 0
      %2267 = vmatpush2.bf16.msra.mxu0 0
      %2268 = vmatprep.subr.bf16.mxu0 0
      %2269 = vmatpush2.bf16.msra.mxu0 0
      %2270 = vmatprep.subr.bf16.mxu0 0
      %2271 = vmatpush2.bf16.msra.mxu0 0
      %2272 = vmatprep.subr.bf16.mxu0 0
      %2273 = vmatpush2.bf16.msra.mxu0 0
      %2274 = vmatprep.subr.bf16.mxu0 0
      %2275 = vmatpush2.bf16.msra.mxu0 0
      %2276 = vmatprep.subr.bf16.mxu0 0
      %2277 = vmatpush2.bf16.msra.mxu0 0
      %2278 = vmatprep.subr.bf16.mxu0 0
      %2279 = vmatpush2.bf16.msra.mxu0 0
      %2280 = vmatprep.mubr.bf16.mxu0 0
      %2281 = vmatmul.mubr.bf16.gmra.mxu0 %v1545
      %v2282 = vpop.f32.mrf.mxu0
      %v2283 = vadd.f32 0.0, %v2282
      %v2284 = vpop.f32.mrf.mxu0
      %v2285 = vpop.f32.mrf.mxu0
      %v2286 = vadd.f32 0.0, %v2285
      %v2287 = vpop.f32.mrf.mxu0
      %2288 = vmatprep.mubr.bf16.mxu0 0
      %2289 = vmatmul.mubr.bf16.gmra.mxu0 %v1548
      %v2290 = vpop.f32.mrf.mxu0
      %v2291 = vadd.f32 0.0, %v2290
      %v2292 = vpop.f32.mrf.mxu0
      %v2293 = vpop.f32.mrf.mxu0
      %v2294 = vadd.f32 0.0, %v2293
      %v2295 = vpop.f32.mrf.mxu0
      %2296 = vmatprep.mubr.bf16.mxu0 0
      %2297 = vmatmul.mubr.bf16.gmra.mxu0 %v1551
      %v2298 = vpop.f32.mrf.mxu0
      %v2299 = vadd.f32 0.0, %v2298
      %v2300 = vpop.f32.mrf.mxu0
      %v2301 = vpop.f32.mrf.mxu0
      %v2302 = vadd.f32 0.0, %v2301
      %v2303 = vpop.f32.mrf.mxu0
      %2304 = vmatprep.mubr.bf16.mxu0 0
      %2305 = vmatmul.mubr.bf16.gmra.mxu0 %v1554
      %v2306 = vpop.f32.mrf.mxu0
      %v2307 = vadd.f32 0.0, %v2306
      %v2308 = vpop.f32.mrf.mxu0
      %v2309 = vpop.f32.mrf.mxu0
      %v2310 = vadd.f32 0.0, %v2309
      %v2311 = vpop.f32.mrf.mxu0
      %2312 = vmatprep.mubr.bf16.mxu0 0
      %2313 = vmatmul.mubr.bf16.gmra.mxu0 %v1557
      %v2314 = vpop.f32.mrf.mxu0
      %v2315 = vadd.f32 0.0, %v2314
      %v2316 = vpop.f32.mrf.mxu0
      %v2317 = vpop.f32.mrf.mxu0
      %v2318 = vadd.f32 0.0, %v2317
      %v2319 = vpop.f32.mrf.mxu0
      %2320 = vmatprep.mubr.bf16.mxu0 0
      %2321 = vmatmul.mubr.bf16.gmra.mxu0 %v1560
      %v2322 = vpop.f32.mrf.mxu0
      %v2323 = vadd.f32 0.0, %v2322
      %v2324 = vpop.f32.mrf.mxu0
      %v2325 = vpop.f32.mrf.mxu0
      %v2326 = vadd.f32 0.0, %v2325
      %v2327 = vpop.f32.mrf.mxu0
      %2328 = vmatprep.mubr.bf16.mxu0 0
      %2329 = vmatmul.mubr.bf16.gmra.mxu0 %v1563
      %v2330 = vpop.f32.mrf.mxu0
      %v2331 = vadd.f32 0.0, %v2330
      %v2332 = vpop.f32.mrf.mxu0
      %v2333 = vpop.f32.mrf.mxu0
      %v2334 = vadd.f32 0.0, %v2333
      %v2335 = vpop.f32.mrf.mxu0
      %2336 = vmatprep.mubr.bf16.mxu0 0
      %2337 = vmatmul.mubr.bf16.gmra.mxu0 %v1566
      %v2338 = vpop.f32.mrf.mxu0
      %v2339 = vadd.f32 0.0, %v2338
      %v2340 = vpop.f32.mrf.mxu0
      %v2341 = vpop.f32.mrf.mxu0
      %v2342 = vadd.f32 0.0, %v2341
      %v2343 = vpop.f32.mrf.mxu0
      %2344 = vmatprep.mubr.bf16.mxu0 0
      %2345 = vmatmul.mubr.bf16.gmra.mxu0 %v1569
      %v2346 = vpop.f32.mrf.mxu0
      %v2347 = vadd.f32 0.0, %v2346
      %v2348 = vpop.f32.mrf.mxu0
      %v2349 = vpop.f32.mrf.mxu0
      %v2350 = vadd.f32 0.0, %v2349
      %v2351 = vpop.f32.mrf.mxu0
      %2352 = vmatprep.mubr.bf16.mxu0 0
      %2353 = vmatmul.mubr.bf16.gmra.mxu0 %v1572
      %v2354 = vpop.f32.mrf.mxu0
      %v2355 = vadd.f32 0.0, %v2354
      %v2356 = vpop.f32.mrf.mxu0
      %v2357 = vpop.f32.mrf.mxu0
      %v2358 = vadd.f32 0.0, %v2357
      %v2359 = vpop.f32.mrf.mxu0
      %2360 = vmatprep.mubr.bf16.mxu0 0
      %2361 = vmatmul.mubr.bf16.gmra.mxu0 %v1575
      %v2362 = vpop.f32.mrf.mxu0
      %v2363 = vadd.f32 0.0, %v2362
      %v2364 = vpop.f32.mrf.mxu0
      %v2365 = vpop.f32.mrf.mxu0
      %v2366 = vadd.f32 0.0, %v2365
      %v2367 = vpop.f32.mrf.mxu0
      %2368 = vmatprep.mubr.bf16.mxu0 0
      %2369 = vmatmul.mubr.bf16.gmra.mxu0 %v1578
      %v2370 = vpop.f32.mrf.mxu0
      %v2371 = vadd.f32 0.0, %v2370
      %v2372 = vpop.f32.mrf.mxu0
      %v2373 = vpop.f32.mrf.mxu0
      %v2374 = vadd.f32 0.0, %v2373
      %v2375 = vpop.f32.mrf.mxu0
      %2376 = vmatprep.mubr.bf16.mxu0 0
      %2377 = vmatmul.mubr.bf16.gmra.mxu0 %v1581
      %v2378 = vpop.f32.mrf.mxu0
      %v2379 = vadd.f32 0.0, %v2378
      %v2380 = vpop.f32.mrf.mxu0
      %v2381 = vpop.f32.mrf.mxu0
      %v2382 = vadd.f32 0.0, %v2381
      %v2383 = vpop.f32.mrf.mxu0
      %2384 = vmatprep.mubr.bf16.mxu0 0
      %2385 = vmatmul.mubr.bf16.gmra.mxu0 %v1584
      %v2386 = vpop.f32.mrf.mxu0
      %v2387 = vadd.f32 0.0, %v2386
      %v2388 = vpop.f32.mrf.mxu0
      %v2389 = vpop.f32.mrf.mxu0
      %v2390 = vadd.f32 0.0, %v2389
      %v2391 = vpop.f32.mrf.mxu0
      %2392 = vmatprep.mubr.bf16.mxu0 0
      %2393 = vmatmul.mubr.bf16.gmra.mxu0 %v2243
      %v2394 = vpop.f32.mrf.mxu0
      %v2395 = vadd.f32 0.0, %v2394
      %v2396 = vpop.f32.mrf.mxu0
      %v2397 = vpop.f32.mrf.mxu0
      %v2398 = vadd.f32 0.0, %v2397
      %v2399 = vpop.f32.mrf.mxu0
      %2400 = vmatprep.mubr.bf16.mxu0 0
      %2401 = vmatmul.mubr.bf16.gmra.mxu0 %v2246
      %v2402 = vpop.f32.mrf.mxu0
      %v2403 = vadd.f32 0.0, %v2402
      %v2404 = vpop.f32.mrf.mxu0
      %v2405 = vpop.f32.mrf.mxu0
      %v2406 = vadd.f32 0.0, %v2405
      %v2407 = vpop.f32.mrf.mxu0
      %2408 = vdwg.mxu0
      %v2409 = vadd.f32 %v2187, %v2283
      %v2410 = vadd.f32 %v2188, %v2286
      %v2411 = vadd.f32 %v2189, %v2291
      %v2412 = vadd.f32 %v2190, %v2294
      %v2413 = vadd.f32 %v2191, %v2299
      %v2414 = vadd.f32 %v2192, %v2302
      %v2415 = vadd.f32 %v2193, %v2307
      %v2416 = vadd.f32 %v2194, %v2310
      %v2417 = vadd.f32 %v2195, %v2315
      %v2418 = vadd.f32 %v2196, %v2318
      %v2419 = vadd.f32 %v2197, %v2323
      %v2420 = vadd.f32 %v2198, %v2326
      %v2421 = vadd.f32 %v2199, %v2331
      %v2422 = vadd.f32 %v2200, %v2334
      %v2423 = vadd.f32 %v2201, %v2339
      %v2424 = vadd.f32 %v2202, %v2342
      %v2425 = vadd.f32 %v2203, %v2347
      %v2426 = vadd.f32 %v2204, %v2350
      %v2427 = vadd.f32 %v2205, %v2355
      %v2428 = vadd.f32 %v2206, %v2358
      %v2429 = vadd.f32 %v2207, %v2363
      %v2430 = vadd.f32 %v2208, %v2366
      %v2431 = vadd.f32 %v2209, %v2371
      %v2432 = vadd.f32 %v2210, %v2374
      %v2433 = vadd.f32 %v2211, %v2379
      %v2434 = vadd.f32 %v2212, %v2382
      %v2435 = vadd.f32 %v2213, %v2387
      %v2436 = vadd.f32 %v2214, %v2390
      %v2437 = vadd.f32 %v2215, %v2395
      %v2438 = vadd.f32 %v2216, %v2398
      %v2439 = vadd.f32 %v2217, %v2403
      %v2440 = vadd.f32 %v2218, %v2406
      %s2441 = scalar_lea.vmem %s5, 96
      %v2442 = vld [vmem:[%s2441] sm:$0xf]
      %v2443 = vld [vmem:[%s2441 + $0x4] sm:$0xf]
      %v2444 = vld [vmem:[%s2441 + $0x8] sm:$0xf]
      %v2445 = vld [vmem:[%s2441 + $0xc] sm:$0xf]
      %v2450 = vunpack.c.l.b16 %v2442
      %v2451 = vunpack.c.l.b16 %v2443
      %v2452 = vunpack.c.l.b16 %v2444
      %v2453 = vunpack.c.l.b16 %v2445
      %v2454 = vpack.c.b16 %v2451, %v2450
      %v2455 = vpack.c.b16 %v2453, %v2452
      %v2458 = vsel %vm907, %v861, 0
      %v2460 = vsel %vm907, %v863, 0
      %2462 = vmatprep.subr.bf16.mxu0 0
      %2463 = vmatpush1.bf16.msra.mxu0 0
      %2464 = vmatprep.subr.bf16.mxu0 0
      %2465 = vmatpush1.bf16.msra.mxu0 0
      %2466 = vmatprep.subr.bf16.mxu0 0
      %2467 = vmatpush1.bf16.msra.mxu0 0
      %2468 = vmatprep.subr.bf16.mxu0 0
      %2469 = vmatpush1.bf16.msra.mxu0 0
      %2470 = vmatprep.subr.bf16.mxu0 0
      %2471 = vmatpush1.bf16.msra.mxu0 0
      %2472 = vmatprep.subr.bf16.mxu0 0
      %2473 = vmatpush1.bf16.msra.mxu0 0
      %2474 = vmatprep.subr.bf16.mxu0 0
      %2475 = vmatpush1.bf16.msra.mxu0 %v2455
      %2476 = vmatprep.subr.bf16.mxu0 0
      %2477 = vmatpush1.bf16.msra.mxu0 %v2454
      %2478 = vmatprep.subr.bf16.mxu0 0
      %2479 = vmatpush2.bf16.msra.mxu0 0
      %2480 = vmatprep.subr.bf16.mxu0 0
      %2481 = vmatpush2.bf16.msra.mxu0 0
      %2482 = vmatprep.subr.bf16.mxu0 0
      %2483 = vmatpush2.bf16.msra.mxu0 0
      %2484 = vmatprep.subr.bf16.mxu0 0
      %2485 = vmatpush2.bf16.msra.mxu0 0
      %2486 = vmatprep.subr.bf16.mxu0 0
      %2487 = vmatpush2.bf16.msra.mxu0 0
      %2488 = vmatprep.subr.bf16.mxu0 0
      %2489 = vmatpush2.bf16.msra.mxu0 0
      %2490 = vmatprep.subr.bf16.mxu0 0
      %2491 = vmatpush2.bf16.msra.mxu0 0
      %2492 = vmatprep.subr.bf16.mxu0 0
      %2493 = vmatpush2.bf16.msra.mxu0 0
      %2494 = vmatprep.mubr.bf16.mxu0 0
      %2495 = vmatmul.mubr.bf16.gmra.mxu0 %v916
      %v2496 = vpop.f32.mrf.mxu0
      %v2497 = vadd.f32 0.0, %v2496
      %v2498 = vpop.f32.mrf.mxu0
      %v2499 = vpop.f32.mrf.mxu0
      %v2500 = vadd.f32 0.0, %v2499
      %v2501 = vpop.f32.mrf.mxu0
      %2502 = vmatprep.mubr.bf16.mxu0 0
      %2503 = vmatmul.mubr.bf16.gmra.mxu0 %v918
      %v2504 = vpop.f32.mrf.mxu0
      %v2505 = vadd.f32 0.0, %v2504
      %v2506 = vpop.f32.mrf.mxu0
      %v2507 = vpop.f32.mrf.mxu0
      %v2508 = vadd.f32 0.0, %v2507
      %v2509 = vpop.f32.mrf.mxu0
      %2510 = vmatprep.mubr.bf16.mxu0 0
      %2511 = vmatmul.mubr.bf16.gmra.mxu0 %v920
      %v2512 = vpop.f32.mrf.mxu0
      %v2513 = vadd.f32 0.0, %v2512
      %v2514 = vpop.f32.mrf.mxu0
      %v2515 = vpop.f32.mrf.mxu0
      %v2516 = vadd.f32 0.0, %v2515
      %v2517 = vpop.f32.mrf.mxu0
      %2518 = vmatprep.mubr.bf16.mxu0 0
      %2519 = vmatmul.mubr.bf16.gmra.mxu0 %v922
      %v2520 = vpop.f32.mrf.mxu0
      %v2521 = vadd.f32 0.0, %v2520
      %v2522 = vpop.f32.mrf.mxu0
      %v2523 = vpop.f32.mrf.mxu0
      %v2524 = vadd.f32 0.0, %v2523
      %v2525 = vpop.f32.mrf.mxu0
      %2526 = vmatprep.mubr.bf16.mxu0 0
      %2527 = vmatmul.mubr.bf16.gmra.mxu0 %v924
      %v2528 = vpop.f32.mrf.mxu0
      %v2529 = vadd.f32 0.0, %v2528
      %v2530 = vpop.f32.mrf.mxu0
      %v2531 = vpop.f32.mrf.mxu0
      %v2532 = vadd.f32 0.0, %v2531
      %v2533 = vpop.f32.mrf.mxu0
      %2534 = vmatprep.mubr.bf16.mxu0 0
      %2535 = vmatmul.mubr.bf16.gmra.mxu0 %v926
      %v2536 = vpop.f32.mrf.mxu0
      %v2537 = vadd.f32 0.0, %v2536
      %v2538 = vpop.f32.mrf.mxu0
      %v2539 = vpop.f32.mrf.mxu0
      %v2540 = vadd.f32 0.0, %v2539
      %v2541 = vpop.f32.mrf.mxu0
      %2542 = vmatprep.mubr.bf16.mxu0 0
      %2543 = vmatmul.mubr.bf16.gmra.mxu0 %v928
      %v2544 = vpop.f32.mrf.mxu0
      %v2545 = vadd.f32 0.0, %v2544
      %v2546 = vpop.f32.mrf.mxu0
      %v2547 = vpop.f32.mrf.mxu0
      %v2548 = vadd.f32 0.0, %v2547
      %v2549 = vpop.f32.mrf.mxu0
      %2550 = vmatprep.mubr.bf16.mxu0 0
      %2551 = vmatmul.mubr.bf16.gmra.mxu0 %v930
      %v2552 = vpop.f32.mrf.mxu0
      %v2553 = vadd.f32 0.0, %v2552
      %v2554 = vpop.f32.mrf.mxu0
      %v2555 = vpop.f32.mrf.mxu0
      %v2556 = vadd.f32 0.0, %v2555
      %v2557 = vpop.f32.mrf.mxu0
      %2558 = vmatprep.mubr.bf16.mxu0 0
      %2559 = vmatmul.mubr.bf16.gmra.mxu0 %v932
      %v2560 = vpop.f32.mrf.mxu0
      %v2561 = vadd.f32 0.0, %v2560
      %v2562 = vpop.f32.mrf.mxu0
      %v2563 = vpop.f32.mrf.mxu0
      %v2564 = vadd.f32 0.0, %v2563
      %v2565 = vpop.f32.mrf.mxu0
      %2566 = vmatprep.mubr.bf16.mxu0 0
      %2567 = vmatmul.mubr.bf16.gmra.mxu0 %v934
      %v2568 = vpop.f32.mrf.mxu0
      %v2569 = vadd.f32 0.0, %v2568
      %v2570 = vpop.f32.mrf.mxu0
      %v2571 = vpop.f32.mrf.mxu0
      %v2572 = vadd.f32 0.0, %v2571
      %v2573 = vpop.f32.mrf.mxu0
      %2574 = vmatprep.mubr.bf16.mxu0 0
      %2575 = vmatmul.mubr.bf16.gmra.mxu0 %v936
      %v2576 = vpop.f32.mrf.mxu0
      %v2577 = vadd.f32 0.0, %v2576
      %v2578 = vpop.f32.mrf.mxu0
      %v2579 = vpop.f32.mrf.mxu0
      %v2580 = vadd.f32 0.0, %v2579
      %v2581 = vpop.f32.mrf.mxu0
      %2582 = vmatprep.mubr.bf16.mxu0 0
      %2583 = vmatmul.mubr.bf16.gmra.mxu0 %v938
      %v2584 = vpop.f32.mrf.mxu0
      %v2585 = vadd.f32 0.0, %v2584
      %v2586 = vpop.f32.mrf.mxu0
      %v2587 = vpop.f32.mrf.mxu0
      %v2588 = vadd.f32 0.0, %v2587
      %v2589 = vpop.f32.mrf.mxu0
      %2590 = vmatprep.mubr.bf16.mxu0 0
      %2591 = vmatmul.mubr.bf16.gmra.mxu0 %v1796
      %v2592 = vpop.f32.mrf.mxu0
      %v2593 = vadd.f32 0.0, %v2592
      %v2594 = vpop.f32.mrf.mxu0
      %v2595 = vpop.f32.mrf.mxu0
      %v2596 = vadd.f32 0.0, %v2595
      %v2597 = vpop.f32.mrf.mxu0
      %2598 = vmatprep.mubr.bf16.mxu0 0
      %2599 = vmatmul.mubr.bf16.gmra.mxu0 %v1798
      %v2600 = vpop.f32.mrf.mxu0
      %v2601 = vadd.f32 0.0, %v2600
      %v2602 = vpop.f32.mrf.mxu0
      %v2603 = vpop.f32.mrf.mxu0
      %v2604 = vadd.f32 0.0, %v2603
      %v2605 = vpop.f32.mrf.mxu0
      %2606 = vmatprep.mubr.bf16.mxu0 0
      %2607 = vmatmul.mubr.bf16.gmra.mxu0 %v2458
      %v2608 = vpop.f32.mrf.mxu0
      %v2609 = vadd.f32 0.0, %v2608
      %v2610 = vpop.f32.mrf.mxu0
      %v2611 = vpop.f32.mrf.mxu0
      %v2612 = vadd.f32 0.0, %v2611
      %v2613 = vpop.f32.mrf.mxu0
      %2614 = vmatprep.mubr.bf16.mxu0 0
      %2615 = vmatmul.mubr.bf16.gmra.mxu0 %v2460
      %v2616 = vpop.f32.mrf.mxu0
      %v2617 = vadd.f32 0.0, %v2616
      %v2618 = vpop.f32.mrf.mxu0
      %v2619 = vpop.f32.mrf.mxu0
      %v2620 = vadd.f32 0.0, %v2619
      %v2621 = vpop.f32.mrf.mxu0
      %2622 = vdwg.mxu0
      %v2623 = vadd.f32 %v2409, %v2497
      %v2624 = vadd.f32 %v2410, %v2500
      %v2625 = vadd.f32 %v2411, %v2505
      %v2626 = vadd.f32 %v2412, %v2508
      %v2627 = vadd.f32 %v2413, %v2513
      %v2628 = vadd.f32 %v2414, %v2516
      %v2629 = vadd.f32 %v2415, %v2521
      %v2630 = vadd.f32 %v2416, %v2524
      %v2631 = vadd.f32 %v2417, %v2529
      %v2632 = vadd.f32 %v2418, %v2532
      %v2633 = vadd.f32 %v2419, %v2537
      %v2634 = vadd.f32 %v2420, %v2540
      %v2635 = vadd.f32 %v2421, %v2545
      %v2636 = vadd.f32 %v2422, %v2548
      %v2637 = vadd.f32 %v2423, %v2553
      %v2638 = vadd.f32 %v2424, %v2556
      %v2639 = vadd.f32 %v2425, %v2561
      %v2640 = vadd.f32 %v2426, %v2564
      %v2641 = vadd.f32 %v2427, %v2569
      %v2642 = vadd.f32 %v2428, %v2572
      %v2643 = vadd.f32 %v2429, %v2577
      %v2644 = vadd.f32 %v2430, %v2580
      %v2645 = vadd.f32 %v2431, %v2585
      %v2646 = vadd.f32 %v2432, %v2588
      %v2647 = vadd.f32 %v2433, %v2593
      %v2648 = vadd.f32 %v2434, %v2596
      %v2649 = vadd.f32 %v2435, %v2601
      %v2650 = vadd.f32 %v2436, %v2604
      %v2651 = vadd.f32 %v2437, %v2609
      %v2652 = vadd.f32 %v2438, %v2612
      %v2653 = vadd.f32 %v2439, %v2617
      %v2654 = vadd.f32 %v2440, %v2620
      %v2659 = vrot.slane %v861, 1
      %v2660 = vrot.slane %v882, 1
      %v2661 = vsel %vm1165, %v2659, %v2660
      %v2662 = vrot.slane %v863, 1
      %v2663 = vrot.slane %v883, 1
      %v2664 = vsel %vm1165, %v2662, %v2663
      %s2665 = scalar_lea.vmem %s5, 112
      %v2666 = vld [vmem:[%s2665] sm:$0xf]
      %v2667 = vld [vmem:[%s2665 + $0x4] sm:$0xf]
      %v2668 = vld [vmem:[%s2665 + $0x8] sm:$0xf]
      %v2669 = vld [vmem:[%s2665 + $0xc] sm:$0xf]
      %v2674 = vunpack.c.l.b16 %v2666
      %v2675 = vunpack.c.l.b16 %v2667
      %v2676 = vunpack.c.l.b16 %v2668
      %v2677 = vunpack.c.l.b16 %v2669
      %v2678 = vpack.c.b16 %v2675, %v2674
      %v2679 = vpack.c.b16 %v2677, %v2676
      %v2683 = vsel %vm907, %v2661, 0
      %v2686 = vsel %vm907, %v2664, 0
      %2688 = vmatprep.subr.bf16.mxu0 0
      %2689 = vmatpush1.bf16.msra.mxu0 0
      %2690 = vmatprep.subr.bf16.mxu0 0
      %2691 = vmatpush1.bf16.msra.mxu0 0
      %2692 = vmatprep.subr.bf16.mxu0 0
      %2693 = vmatpush1.bf16.msra.mxu0 0
      %2694 = vmatprep.subr.bf16.mxu0 0
      %2695 = vmatpush1.bf16.msra.mxu0 0
      %2696 = vmatprep.subr.bf16.mxu0 0
      %2697 = vmatpush1.bf16.msra.mxu0 0
      %2698 = vmatprep.subr.bf16.mxu0 0
      %2699 = vmatpush1.bf16.msra.mxu0 0
      %2700 = vmatprep.subr.bf16.mxu0 0
      %2701 = vmatpush1.bf16.msra.mxu0 %v2679
      %2702 = vmatprep.subr.bf16.mxu0 0
      %2703 = vmatpush1.bf16.msra.mxu0 %v2678
      %2704 = vmatprep.subr.bf16.mxu0 0
      %2705 = vmatpush2.bf16.msra.mxu0 0
      %2706 = vmatprep.subr.bf16.mxu0 0
      %2707 = vmatpush2.bf16.msra.mxu0 0
      %2708 = vmatprep.subr.bf16.mxu0 0
      %2709 = vmatpush2.bf16.msra.mxu0 0
      %2710 = vmatprep.subr.bf16.mxu0 0
      %2711 = vmatpush2.bf16.msra.mxu0 0
      %2712 = vmatprep.subr.bf16.mxu0 0
      %2713 = vmatpush2.bf16.msra.mxu0 0
      %2714 = vmatprep.subr.bf16.mxu0 0
      %2715 = vmatpush2.bf16.msra.mxu0 0
      %2716 = vmatprep.subr.bf16.mxu0 0
      %2717 = vmatpush2.bf16.msra.mxu0 0
      %2718 = vmatprep.subr.bf16.mxu0 0
      %2719 = vmatpush2.bf16.msra.mxu0 0
      %2720 = vmatprep.mubr.bf16.mxu0 0
      %2721 = vmatmul.mubr.bf16.gmra.mxu0 %v1244
      %v2722 = vpop.f32.mrf.mxu0
      %v2723 = vadd.f32 0.0, %v2722
      %v2724 = vpop.f32.mrf.mxu0
      %v2725 = vpop.f32.mrf.mxu0
      %v2726 = vadd.f32 0.0, %v2725
      %v2727 = vpop.f32.mrf.mxu0
      %2728 = vmatprep.mubr.bf16.mxu0 0
      %2729 = vmatmul.mubr.bf16.gmra.mxu0 %v1247
      %v2730 = vpop.f32.mrf.mxu0
      %v2731 = vadd.f32 0.0, %v2730
      %v2732 = vpop.f32.mrf.mxu0
      %v2733 = vpop.f32.mrf.mxu0
      %v2734 = vadd.f32 0.0, %v2733
      %v2735 = vpop.f32.mrf.mxu0
      %2736 = vmatprep.mubr.bf16.mxu0 0
      %2737 = vmatmul.mubr.bf16.gmra.mxu0 %v1250
      %v2738 = vpop.f32.mrf.mxu0
      %v2739 = vadd.f32 0.0, %v2738
      %v2740 = vpop.f32.mrf.mxu0
      %v2741 = vpop.f32.mrf.mxu0
      %v2742 = vadd.f32 0.0, %v2741
      %v2743 = vpop.f32.mrf.mxu0
      %2744 = vmatprep.mubr.bf16.mxu0 0
      %2745 = vmatmul.mubr.bf16.gmra.mxu0 %v1253
      %v2746 = vpop.f32.mrf.mxu0
      %v2747 = vadd.f32 0.0, %v2746
      %v2748 = vpop.f32.mrf.mxu0
      %v2749 = vpop.f32.mrf.mxu0
      %v2750 = vadd.f32 0.0, %v2749
      %v2751 = vpop.f32.mrf.mxu0
      %2752 = vmatprep.mubr.bf16.mxu0 0
      %2753 = vmatmul.mubr.bf16.gmra.mxu0 %v1256
      %v2754 = vpop.f32.mrf.mxu0
      %v2755 = vadd.f32 0.0, %v2754
      %v2756 = vpop.f32.mrf.mxu0
      %v2757 = vpop.f32.mrf.mxu0
      %v2758 = vadd.f32 0.0, %v2757
      %v2759 = vpop.f32.mrf.mxu0
      %2760 = vmatprep.mubr.bf16.mxu0 0
      %2761 = vmatmul.mubr.bf16.gmra.mxu0 %v1259
      %v2762 = vpop.f32.mrf.mxu0
      %v2763 = vadd.f32 0.0, %v2762
      %v2764 = vpop.f32.mrf.mxu0
      %v2765 = vpop.f32.mrf.mxu0
      %v2766 = vadd.f32 0.0, %v2765
      %v2767 = vpop.f32.mrf.mxu0
      %2768 = vmatprep.mubr.bf16.mxu0 0
      %2769 = vmatmul.mubr.bf16.gmra.mxu0 %v1262
      %v2770 = vpop.f32.mrf.mxu0
      %v2771 = vadd.f32 0.0, %v2770
      %v2772 = vpop.f32.mrf.mxu0
      %v2773 = vpop.f32.mrf.mxu0
      %v2774 = vadd.f32 0.0, %v2773
      %v2775 = vpop.f32.mrf.mxu0
      %2776 = vmatprep.mubr.bf16.mxu0 0
      %2777 = vmatmul.mubr.bf16.gmra.mxu0 %v1265
      %v2778 = vpop.f32.mrf.mxu0
      %v2779 = vadd.f32 0.0, %v2778
      %v2780 = vpop.f32.mrf.mxu0
      %v2781 = vpop.f32.mrf.mxu0
      %v2782 = vadd.f32 0.0, %v2781
      %v2783 = vpop.f32.mrf.mxu0
      %2784 = vmatprep.mubr.bf16.mxu0 0
      %2785 = vmatmul.mubr.bf16.gmra.mxu0 %v1268
      %v2786 = vpop.f32.mrf.mxu0
      %v2787 = vadd.f32 0.0, %v2786
      %v2788 = vpop.f32.mrf.mxu0
      %v2789 = vpop.f32.mrf.mxu0
      %v2790 = vadd.f32 0.0, %v2789
      %v2791 = vpop.f32.mrf.mxu0
      %2792 = vmatprep.mubr.bf16.mxu0 0
      %2793 = vmatmul.mubr.bf16.gmra.mxu0 %v1271
      %v2794 = vpop.f32.mrf.mxu0
      %v2795 = vadd.f32 0.0, %v2794
      %v2796 = vpop.f32.mrf.mxu0
      %v2797 = vpop.f32.mrf.mxu0
      %v2798 = vadd.f32 0.0, %v2797
      %v2799 = vpop.f32.mrf.mxu0
      %2800 = vmatprep.mubr.bf16.mxu0 0
      %2801 = vmatmul.mubr.bf16.gmra.mxu0 %v1274
      %v2802 = vpop.f32.mrf.mxu0
      %v2803 = vadd.f32 0.0, %v2802
      %v2804 = vpop.f32.mrf.mxu0
      %v2805 = vpop.f32.mrf.mxu0
      %v2806 = vadd.f32 0.0, %v2805
      %v2807 = vpop.f32.mrf.mxu0
      %2808 = vmatprep.mubr.bf16.mxu0 0
      %2809 = vmatmul.mubr.bf16.gmra.mxu0 %v1277
      %v2810 = vpop.f32.mrf.mxu0
      %v2811 = vadd.f32 0.0, %v2810
      %v2812 = vpop.f32.mrf.mxu0
      %v2813 = vpop.f32.mrf.mxu0
      %v2814 = vadd.f32 0.0, %v2813
      %v2815 = vpop.f32.mrf.mxu0
      %2816 = vmatprep.mubr.bf16.mxu0 0
      %2817 = vmatmul.mubr.bf16.gmra.mxu0 %v2021
      %v2818 = vpop.f32.mrf.mxu0
      %v2819 = vadd.f32 0.0, %v2818
      %v2820 = vpop.f32.mrf.mxu0
      %v2821 = vpop.f32.mrf.mxu0
      %v2822 = vadd.f32 0.0, %v2821
      %v2823 = vpop.f32.mrf.mxu0
      %2824 = vmatprep.mubr.bf16.mxu0 0
      %2825 = vmatmul.mubr.bf16.gmra.mxu0 %v2024
      %v2826 = vpop.f32.mrf.mxu0
      %v2827 = vadd.f32 0.0, %v2826
      %v2828 = vpop.f32.mrf.mxu0
      %v2829 = vpop.f32.mrf.mxu0
      %v2830 = vadd.f32 0.0, %v2829
      %v2831 = vpop.f32.mrf.mxu0
      %2832 = vmatprep.mubr.bf16.mxu0 0
      %2833 = vmatmul.mubr.bf16.gmra.mxu0 %v2683
      %v2834 = vpop.f32.mrf.mxu0
      %v2835 = vadd.f32 0.0, %v2834
      %v2836 = vpop.f32.mrf.mxu0
      %v2837 = vpop.f32.mrf.mxu0
      %v2838 = vadd.f32 0.0, %v2837
      %v2839 = vpop.f32.mrf.mxu0
      %2840 = vmatprep.mubr.bf16.mxu0 0
      %2841 = vmatmul.mubr.bf16.gmra.mxu0 %v2686
      %v2842 = vpop.f32.mrf.mxu0
      %v2843 = vadd.f32 0.0, %v2842
      %v2844 = vpop.f32.mrf.mxu0
      %v2845 = vpop.f32.mrf.mxu0
      %v2846 = vadd.f32 0.0, %v2845
      %v2847 = vpop.f32.mrf.mxu0
      %2848 = vdwg.mxu0
      %v2849 = vadd.f32 %v2623, %v2723
      %v2850 = vadd.f32 %v2624, %v2726
      %v2851 = vadd.f32 %v2625, %v2731
      %v2852 = vadd.f32 %v2626, %v2734
      %v2853 = vadd.f32 %v2627, %v2739
      %v2854 = vadd.f32 %v2628, %v2742
      %v2855 = vadd.f32 %v2629, %v2747
      %v2856 = vadd.f32 %v2630, %v2750
      %v2857 = vadd.f32 %v2631, %v2755
      %v2858 = vadd.f32 %v2632, %v2758
      %v2859 = vadd.f32 %v2633, %v2763
      %v2860 = vadd.f32 %v2634, %v2766
      %v2861 = vadd.f32 %v2635, %v2771
      %v2862 = vadd.f32 %v2636, %v2774
      %v2863 = vadd.f32 %v2637, %v2779
      %v2864 = vadd.f32 %v2638, %v2782
      %v2865 = vadd.f32 %v2639, %v2787
      %v2866 = vadd.f32 %v2640, %v2790
      %v2867 = vadd.f32 %v2641, %v2795
      %v2868 = vadd.f32 %v2642, %v2798
      %v2869 = vadd.f32 %v2643, %v2803
      %v2870 = vadd.f32 %v2644, %v2806
      %v2871 = vadd.f32 %v2645, %v2811
      %v2872 = vadd.f32 %v2646, %v2814
      %v2873 = vadd.f32 %v2647, %v2819
      %v2874 = vadd.f32 %v2648, %v2822
      %v2875 = vadd.f32 %v2649, %v2827
      %v2876 = vadd.f32 %v2650, %v2830
      %v2877 = vadd.f32 %v2651, %v2835
      %v2878 = vadd.f32 %v2652, %v2838
      %v2879 = vadd.f32 %v2653, %v2843
      %v2880 = vadd.f32 %v2654, %v2846
      %v2881 = vrot.slane %v861, 2
      %v2882 = vrot.slane %v882, 2
      %v2883 = vsel %vm1472, %v2881, %v2882
      %v2884 = vrot.slane %v863, 2
      %v2885 = vrot.slane %v883, 2
      %v2886 = vsel %vm1472, %v2884, %v2885
      %s2887 = scalar_lea.vmem %s5, 128
      %v2888 = vld [vmem:[%s2887] sm:$0xf]
      %v2889 = vld [vmem:[%s2887 + $0x4] sm:$0xf]
      %v2890 = vld [vmem:[%s2887 + $0x8] sm:$0xf]
      %v2891 = vld [vmem:[%s2887 + $0xc] sm:$0xf]
      %v2896 = vunpack.c.l.b16 %v2888
      %v2897 = vunpack.c.l.b16 %v2889
      %v2898 = vunpack.c.l.b16 %v2890
      %v2899 = vunpack.c.l.b16 %v2891
      %v2900 = vpack.c.b16 %v2897, %v2896
      %v2901 = vpack.c.b16 %v2899, %v2898
      %v2905 = vsel %vm907, %v2883, 0
      %v2908 = vsel %vm907, %v2886, 0
      %2910 = vmatprep.subr.bf16.mxu0 0
      %2911 = vmatpush1.bf16.msra.mxu0 0
      %2912 = vmatprep.subr.bf16.mxu0 0
      %2913 = vmatpush1.bf16.msra.mxu0 0
      %2914 = vmatprep.subr.bf16.mxu0 0
      %2915 = vmatpush1.bf16.msra.mxu0 0
      %2916 = vmatprep.subr.bf16.mxu0 0
      %2917 = vmatpush1.bf16.msra.mxu0 0
      %2918 = vmatprep.subr.bf16.mxu0 0
      %2919 = vmatpush1.bf16.msra.mxu0 0
      %2920 = vmatprep.subr.bf16.mxu0 0
      %2921 = vmatpush1.bf16.msra.mxu0 0
      %2922 = vmatprep.subr.bf16.mxu0 0
      %2923 = vmatpush1.bf16.msra.mxu0 %v2901
      %2924 = vmatprep.subr.bf16.mxu0 0
      %2925 = vmatpush1.bf16.msra.mxu0 %v2900
      %2926 = vmatprep.subr.bf16.mxu0 0
      %2927 = vmatpush2.bf16.msra.mxu0 0
      %2928 = vmatprep.subr.bf16.mxu0 0
      %2929 = vmatpush2.bf16.msra.mxu0 0
      %2930 = vmatprep.subr.bf16.mxu0 0
      %2931 = vmatpush2.bf16.msra.mxu0 0
      %2932 = vmatprep.subr.bf16.mxu0 0
      %2933 = vmatpush2.bf16.msra.mxu0 0
      %2934 = vmatprep.subr.bf16.mxu0 0
      %2935 = vmatpush2.bf16.msra.mxu0 0
      %2936 = vmatprep.subr.bf16.mxu0 0
      %2937 = vmatpush2.bf16.msra.mxu0 0
      %2938 = vmatprep.subr.bf16.mxu0 0
      %2939 = vmatpush2.bf16.msra.mxu0 0
      %2940 = vmatprep.subr.bf16.mxu0 0
      %2941 = vmatpush2.bf16.msra.mxu0 0
      %2942 = vmatprep.mubr.bf16.mxu0 0
      %2943 = vmatmul.mubr.bf16.gmra.mxu0 %v1551
      %v2944 = vpop.f32.mrf.mxu0
      %v2945 = vadd.f32 0.0, %v2944
      %v2946 = vpop.f32.mrf.mxu0
      %v2947 = vpop.f32.mrf.mxu0
      %v2948 = vadd.f32 0.0, %v2947
      %v2949 = vpop.f32.mrf.mxu0
      %2950 = vmatprep.mubr.bf16.mxu0 0
      %2951 = vmatmul.mubr.bf16.gmra.mxu0 %v1554
      %v2952 = vpop.f32.mrf.mxu0
      %v2953 = vadd.f32 0.0, %v2952
      %v2954 = vpop.f32.mrf.mxu0
      %v2955 = vpop.f32.mrf.mxu0
      %v2956 = vadd.f32 0.0, %v2955
      %v2957 = vpop.f32.mrf.mxu0
      %2958 = vmatprep.mubr.bf16.mxu0 0
      %2959 = vmatmul.mubr.bf16.gmra.mxu0 %v1557
      %v2960 = vpop.f32.mrf.mxu0
      %v2961 = vadd.f32 0.0, %v2960
      %v2962 = vpop.f32.mrf.mxu0
      %v2963 = vpop.f32.mrf.mxu0
      %v2964 = vadd.f32 0.0, %v2963
      %v2965 = vpop.f32.mrf.mxu0
      %2966 = vmatprep.mubr.bf16.mxu0 0
      %2967 = vmatmul.mubr.bf16.gmra.mxu0 %v1560
      %v2968 = vpop.f32.mrf.mxu0
      %v2969 = vadd.f32 0.0, %v2968
      %v2970 = vpop.f32.mrf.mxu0
      %v2971 = vpop.f32.mrf.mxu0
      %v2972 = vadd.f32 0.0, %v2971
      %v2973 = vpop.f32.mrf.mxu0
      %2974 = vmatprep.mubr.bf16.mxu0 0
      %2975 = vmatmul.mubr.bf16.gmra.mxu0 %v1563
      %v2976 = vpop.f32.mrf.mxu0
      %v2977 = vadd.f32 0.0, %v2976
      %v2978 = vpop.f32.mrf.mxu0
      %v2979 = vpop.f32.mrf.mxu0
      %v2980 = vadd.f32 0.0, %v2979
      %v2981 = vpop.f32.mrf.mxu0
      %2982 = vmatprep.mubr.bf16.mxu0 0
      %2983 = vmatmul.mubr.bf16.gmra.mxu0 %v1566
      %v2984 = vpop.f32.mrf.mxu0
      %v2985 = vadd.f32 0.0, %v2984
      %v2986 = vpop.f32.mrf.mxu0
      %v2987 = vpop.f32.mrf.mxu0
      %v2988 = vadd.f32 0.0, %v2987
      %v2989 = vpop.f32.mrf.mxu0
      %2990 = vmatprep.mubr.bf16.mxu0 0
      %2991 = vmatmul.mubr.bf16.gmra.mxu0 %v1569
      %v2992 = vpop.f32.mrf.mxu0
      %v2993 = vadd.f32 0.0, %v2992
      %v2994 = vpop.f32.mrf.mxu0
      %v2995 = vpop.f32.mrf.mxu0
      %v2996 = vadd.f32 0.0, %v2995
      %v2997 = vpop.f32.mrf.mxu0
      %2998 = vmatprep.mubr.bf16.mxu0 0
      %2999 = vmatmul.mubr.bf16.gmra.mxu0 %v1572
      %v3000 = vpop.f32.mrf.mxu0
      %v3001 = vadd.f32 0.0, %v3000
      %v3002 = vpop.f32.mrf.mxu0
      %v3003 = vpop.f32.mrf.mxu0
      %v3004 = vadd.f32 0.0, %v3003
      %v3005 = vpop.f32.mrf.mxu0
      %3006 = vmatprep.mubr.bf16.mxu0 0
      %3007 = vmatmul.mubr.bf16.gmra.mxu0 %v1575
      %v3008 = vpop.f32.mrf.mxu0
      %v3009 = vadd.f32 0.0, %v3008
      %v3010 = vpop.f32.mrf.mxu0
      %v3011 = vpop.f32.mrf.mxu0
      %v3012 = vadd.f32 0.0, %v3011
      %v3013 = vpop.f32.mrf.mxu0
      %3014 = vmatprep.mubr.bf16.mxu0 0
      %3015 = vmatmul.mubr.bf16.gmra.mxu0 %v1578
      %v3016 = vpop.f32.mrf.mxu0
      %v3017 = vadd.f32 0.0, %v3016
      %v3018 = vpop.f32.mrf.mxu0
      %v3019 = vpop.f32.mrf.mxu0
      %v3020 = vadd.f32 0.0, %v3019
      %v3021 = vpop.f32.mrf.mxu0
      %3022 = vmatprep.mubr.bf16.mxu0 0
      %3023 = vmatmul.mubr.bf16.gmra.mxu0 %v1581
      %v3024 = vpop.f32.mrf.mxu0
      %v3025 = vadd.f32 0.0, %v3024
      %v3026 = vpop.f32.mrf.mxu0
      %v3027 = vpop.f32.mrf.mxu0
      %v3028 = vadd.f32 0.0, %v3027
      %v3029 = vpop.f32.mrf.mxu0
      %3030 = vmatprep.mubr.bf16.mxu0 0
      %3031 = vmatmul.mubr.bf16.gmra.mxu0 %v1584
      %v3032 = vpop.f32.mrf.mxu0
      %v3033 = vadd.f32 0.0, %v3032
      %v3034 = vpop.f32.mrf.mxu0
      %v3035 = vpop.f32.mrf.mxu0
      %v3036 = vadd.f32 0.0, %v3035
      %v3037 = vpop.f32.mrf.mxu0
      %3038 = vmatprep.mubr.bf16.mxu0 0
      %3039 = vmatmul.mubr.bf16.gmra.mxu0 %v2243
      %v3040 = vpop.f32.mrf.mxu0
      %v3041 = vadd.f32 0.0, %v3040
      %v3042 = vpop.f32.mrf.mxu0
      %v3043 = vpop.f32.mrf.mxu0
      %v3044 = vadd.f32 0.0, %v3043
      %v3045 = vpop.f32.mrf.mxu0
      %3046 = vmatprep.mubr.bf16.mxu0 0
      %3047 = vmatmul.mubr.bf16.gmra.mxu0 %v2246
      %v3048 = vpop.f32.mrf.mxu0
      %v3049 = vadd.f32 0.0, %v3048
      %v3050 = vpop.f32.mrf.mxu0
      %v3051 = vpop.f32.mrf.mxu0
      %v3052 = vadd.f32 0.0, %v3051
      %v3053 = vpop.f32.mrf.mxu0
      %3054 = vmatprep.mubr.bf16.mxu0 0
      %3055 = vmatmul.mubr.bf16.gmra.mxu0 %v2905
      %v3056 = vpop.f32.mrf.mxu0
      %v3057 = vadd.f32 0.0, %v3056
      %v3058 = vpop.f32.mrf.mxu0
      %v3059 = vpop.f32.mrf.mxu0
      %v3060 = vadd.f32 0.0, %v3059
      %v3061 = vpop.f32.mrf.mxu0
      %3062 = vmatprep.mubr.bf16.mxu0 0
      %3063 = vmatmul.mubr.bf16.gmra.mxu0 %v2908
      %v3064 = vpop.f32.mrf.mxu0
      %v3065 = vadd.f32 0.0, %v3064
      %v3066 = vpop.f32.mrf.mxu0
      %v3067 = vpop.f32.mrf.mxu0
      %v3068 = vadd.f32 0.0, %v3067
      %v3069 = vpop.f32.mrf.mxu0
      %3070 = vdwg.mxu0
      %v3071 = vadd.f32 %v2849, %v2945
      %v3072 = vadd.f32 %v2850, %v2948
      %v3073 = vadd.f32 %v2851, %v2953
      %v3074 = vadd.f32 %v2852, %v2956
      %v3075 = vadd.f32 %v2853, %v2961
      %v3076 = vadd.f32 %v2854, %v2964
      %v3077 = vadd.f32 %v2855, %v2969
      %v3078 = vadd.f32 %v2856, %v2972
      %v3079 = vadd.f32 %v2857, %v2977
      %v3080 = vadd.f32 %v2858, %v2980
      %v3081 = vadd.f32 %v2859, %v2985
      %v3082 = vadd.f32 %v2860, %v2988
      %v3083 = vadd.f32 %v2861, %v2993
      %v3084 = vadd.f32 %v2862, %v2996
      %v3085 = vadd.f32 %v2863, %v3001
      %v3086 = vadd.f32 %v2864, %v3004
      %v3087 = vadd.f32 %v2865, %v3009
      %v3088 = vadd.f32 %v2866, %v3012
      %v3089 = vadd.f32 %v2867, %v3017
      %v3090 = vadd.f32 %v2868, %v3020
      %v3091 = vadd.f32 %v2869, %v3025
      %v3092 = vadd.f32 %v2870, %v3028
      %v3093 = vadd.f32 %v2871, %v3033
      %v3094 = vadd.f32 %v2872, %v3036
      %v3095 = vadd.f32 %v2873, %v3041
      %v3096 = vadd.f32 %v2874, %v3044
      %v3097 = vadd.f32 %v2875, %v3049
      %v3098 = vadd.f32 %v2876, %v3052
      %v3099 = vadd.f32 %v2877, %v3057
      %v3100 = vadd.f32 %v2878, %v3060
      %v3101 = vadd.f32 %v2879, %v3065
      %v3102 = vadd.f32 %v2880, %v3068
      %v3103 = vpack.c.bf16 %v3072, %v3071
      %v3104 = vpack.c.bf16 %v3074, %v3073
      %v3105 = vpack.c.bf16 %v3076, %v3075
      %v3106 = vpack.c.bf16 %v3078, %v3077
      %v3107 = vpack.c.bf16 %v3080, %v3079
      %v3108 = vpack.c.bf16 %v3082, %v3081
      %v3109 = vpack.c.bf16 %v3084, %v3083
      %v3110 = vpack.c.bf16 %v3086, %v3085
      %v3111 = vpack.c.bf16 %v3088, %v3087
      %v3112 = vpack.c.bf16 %v3090, %v3089
      %v3113 = vpack.c.bf16 %v3092, %v3091
      %v3114 = vpack.c.bf16 %v3094, %v3093
      %v3115 = vpack.c.bf16 %v3096, %v3095
      %v3116 = vpack.c.bf16 %v3098, %v3097
      %v3117 = vpack.c.bf16 %v3100, %v3099
      %v3118 = vpack.c.bf16 %v3102, %v3101
      %v3135 = vunpack.c.l.b16 %v3103
      %v3136 = vunpack.c.h.b16 %v3103
      %v3137 = vunpack.c.l.b16 %v3104
      %v3138 = vunpack.c.h.b16 %v3104
      %v3139 = vunpack.c.l.b16 %v3105
      %v3140 = vunpack.c.h.b16 %v3105
      %v3141 = vunpack.c.l.b16 %v3106
      %v3142 = vunpack.c.h.b16 %v3106
      %v3143 = vunpack.c.l.b16 %v3107
      %v3144 = vunpack.c.h.b16 %v3107
      %v3145 = vunpack.c.l.b16 %v3108
      %v3146 = vunpack.c.h.b16 %v3108
      %v3147 = vunpack.c.l.b16 %v3109
      %v3148 = vunpack.c.h.b16 %v3109
      %v3149 = vunpack.c.l.b16 %v3110
      %v3150 = vunpack.c.h.b16 %v3110
      %v3151 = vunpack.c.l.b16 %v3111
      %v3152 = vunpack.c.h.b16 %v3111
      %v3153 = vunpack.c.l.b16 %v3112
      %v3154 = vunpack.c.h.b16 %v3112
      %v3155 = vunpack.c.l.b16 %v3113
      %v3156 = vunpack.c.h.b16 %v3113
      %v3157 = vunpack.c.l.b16 %v3114
      %v3158 = vunpack.c.h.b16 %v3114
      %v3159 = vunpack.c.l.b16 %v3115
      %v3160 = vunpack.c.h.b16 %v3115
      %v3161 = vunpack.c.l.b16 %v3116
      %v3162 = vunpack.c.h.b16 %v3116
      %v3163 = vunpack.c.l.b16 %v3117
      %v3164 = vunpack.c.h.b16 %v3117
      %v3165 = vunpack.c.l.b16 %v3118
      %v3166 = vunpack.c.h.b16 %v3118
      %v3167 = vpack.c.b16 %v3135, %v3135
      %v3168 = vpack.c.b16 %v3136, %v3136
      %v3169 = vpack.c.b16 %v3137, %v3137
      %v3170 = vpack.c.b16 %v3138, %v3138
      %v3171 = vpack.c.b16 %v3139, %v3139
      %v3172 = vpack.c.b16 %v3140, %v3140
      %v3173 = vpack.c.b16 %v3141, %v3141
      %v3174 = vpack.c.b16 %v3142, %v3142
      %v3175 = vpack.c.b16 %v3143, %v3143
      %v3176 = vpack.c.b16 %v3144, %v3144
      %v3177 = vpack.c.b16 %v3145, %v3145
      %v3178 = vpack.c.b16 %v3146, %v3146
      %v3179 = vpack.c.b16 %v3147, %v3147
      %v3180 = vpack.c.b16 %v3148, %v3148
      %v3181 = vpack.c.b16 %v3149, %v3149
      %v3182 = vpack.c.b16 %v3150, %v3150
      %v3183 = vpack.c.b16 %v3151, %v3151
      %v3184 = vpack.c.b16 %v3152, %v3152
      %v3185 = vpack.c.b16 %v3153, %v3153
      %v3186 = vpack.c.b16 %v3154, %v3154
      %v3187 = vpack.c.b16 %v3155, %v3155
      %v3188 = vpack.c.b16 %v3156, %v3156
      %v3189 = vpack.c.b16 %v3157, %v3157
      %v3190 = vpack.c.b16 %v3158, %v3158
      %v3191 = vpack.c.b16 %v3159, %v3159
      %v3192 = vpack.c.b16 %v3160, %v3160
      %v3193 = vpack.c.b16 %v3161, %v3161
      %v3194 = vpack.c.b16 %v3162, %v3162
      %v3195 = vpack.c.b16 %v3163, %v3163
      %v3196 = vpack.c.b16 %v3164, %v3164
      %v3197 = vpack.c.b16 %v3165, %v3165
      %v3198 = vpack.c.b16 %v3166, %v3166
      %vm3231 = vcmask 257024
      %3232 = vst.msk [vmem:[%s522] sm:$0xf] %vm3231, %v3167
      %3233 = vst.msk [vmem:[%s522 + $0x4] sm:$0xf] %vm3231, %v3168
      %3234 = vst.msk [vmem:[%s522 + $0x8] sm:$0xf] %vm3231, %v3169
      %3235 = vst.msk [vmem:[%s522 + $0xc] sm:$0xf] %vm3231, %v3170
      %3236 = vst.msk [vmem:[%s522 + $0x10] sm:$0xf] %vm3231, %v3171
      %3237 = vst.msk [vmem:[%s522 + $0x14] sm:$0xf] %vm3231, %v3172
      %3238 = vst.msk [vmem:[%s522 + $0x18] sm:$0xf] %vm3231, %v3173
      %3239 = vst.msk [vmem:[%s522 + $0x1c] sm:$0xf] %vm3231, %v3174
      %3240 = vst.msk [vmem:[%s522 + $0x20] sm:$0xf] %vm3231, %v3175
      %3241 = vst.msk [vmem:[%s522 + $0x24] sm:$0xf] %vm3231, %v3176
      %3242 = vst.msk [vmem:[%s522 + $0x28] sm:$0xf] %vm3231, %v3177
      %3243 = vst.msk [vmem:[%s522 + $0x2c] sm:$0xf] %vm3231, %v3178
      %3244 = vst.msk [vmem:[%s522 + $0x30] sm:$0xf] %vm3231, %v3179
      %3245 = vst.msk [vmem:[%s522 + $0x34] sm:$0xf] %vm3231, %v3180
      %3246 = vst.msk [vmem:[%s522 + $0x38] sm:$0xf] %vm3231, %v3181
      %3247 = vst.msk [vmem:[%s522 + $0x3c] sm:$0xf] %vm3231, %v3182
      %3248 = vst.msk [vmem:[%s522 + $0x40] sm:$0xf] %vm3231, %v3183
      %3249 = vst.msk [vmem:[%s522 + $0x44] sm:$0xf] %vm3231, %v3184
      %3250 = vst.msk [vmem:[%s522 + $0x48] sm:$0xf] %vm3231, %v3185
      %3251 = vst.msk [vmem:[%s522 + $0x4c] sm:$0xf] %vm3231, %v3186
      %3252 = vst.msk [vmem:[%s522 + $0x50] sm:$0xf] %vm3231, %v3187
      %3253 = vst.msk [vmem:[%s522 + $0x54] sm:$0xf] %vm3231, %v3188
      %3254 = vst.msk [vmem:[%s522 + $0x58] sm:$0xf] %vm3231, %v3189
      %3255 = vst.msk [vmem:[%s522 + $0x5c] sm:$0xf] %vm3231, %v3190
      %3256 = vst.msk [vmem:[%s522 + $0x60] sm:$0xf] %vm3231, %v3191
      %3257 = vst.msk [vmem:[%s522 + $0x64] sm:$0xf] %vm3231, %v3192
      %3258 = vst.msk [vmem:[%s522 + $0x68] sm:$0xf] %vm3231, %v3193
      %3259 = vst.msk [vmem:[%s522 + $0x6c] sm:$0xf] %vm3231, %v3194
      %3260 = vst.msk [vmem:[%s522 + $0x70] sm:$0xf] %vm3231, %v3195
      %3261 = vst.msk [vmem:[%s522 + $0x74] sm:$0xf] %vm3231, %v3196
      %3262 = vst.msk [vmem:[%s522 + $0x78] sm:$0xf] %vm3231, %v3197
      %3263 = vst.msk [vmem:[%s522 + $0x7c] sm:$0xf] %vm3231, %v3198
      %v3264 = vunpack.c.l.bf16 %v3103
      %v3265 = vunpack.c.h.bf16 %v3103
      %v3266 = vunpack.c.l.bf16 %v3104
      %v3267 = vunpack.c.h.bf16 %v3104
      %v3268 = vunpack.c.l.bf16 %v3105
      %v3269 = vunpack.c.h.bf16 %v3105
      %v3270 = vunpack.c.l.bf16 %v3106
      %v3271 = vunpack.c.h.bf16 %v3106
      %v3272 = vunpack.c.l.bf16 %v3107
      %v3273 = vunpack.c.h.bf16 %v3107
      %v3274 = vunpack.c.l.bf16 %v3108
      %v3275 = vunpack.c.h.bf16 %v3108
      %v3276 = vunpack.c.l.bf16 %v3109
      %v3277 = vunpack.c.h.bf16 %v3109
      %v3278 = vunpack.c.l.bf16 %v3110
      %v3279 = vunpack.c.h.bf16 %v3110
      %v3280 = vunpack.c.l.bf16 %v3111
      %v3281 = vunpack.c.h.bf16 %v3111
      %v3282 = vunpack.c.l.bf16 %v3112
      %v3283 = vunpack.c.h.bf16 %v3112
      %v3284 = vunpack.c.l.bf16 %v3113
      %v3285 = vunpack.c.h.bf16 %v3113
      %v3286 = vunpack.c.l.bf16 %v3114
      %v3287 = vunpack.c.h.bf16 %v3114
      %v3288 = vunpack.c.l.bf16 %v3115
      %v3289 = vunpack.c.h.bf16 %v3115
      %v3290 = vunpack.c.l.bf16 %v3116
      %v3291 = vunpack.c.h.bf16 %v3116
      %v3292 = vunpack.c.l.bf16 %v3117
      %v3293 = vunpack.c.h.bf16 %v3117
      %v3294 = vunpack.c.l.bf16 %v3118
      %v3295 = vunpack.c.h.bf16 %v3118
      %v3296 = vsel %vm907, %v3264, 0.0
      %v3297 = vsel %vm907, %v3265, 0.0
      %v3298 = vadd.f32 %v3296, %v3297
      %v3299 = vsel %vm907, %v3266, 0.0
      %v3300 = vadd.f32 %v3298, %v3299
      %v3301 = vsel %vm907, %v3267, 0.0
      %v3302 = vadd.f32 %v3300, %v3301
      %v3303 = vsel %vm907, %v3268, 0.0
      %v3304 = vadd.f32 %v3302, %v3303
      %v3305 = vsel %vm907, %v3269, 0.0
      %v3306 = vadd.f32 %v3304, %v3305
      %v3307 = vsel %vm907, %v3270, 0.0
      %v3308 = vadd.f32 %v3306, %v3307
      %v3309 = vsel %vm907, %v3271, 0.0
      %v3310 = vadd.f32 %v3308, %v3309
      %v3311 = vsel %vm907, %v3272, 0.0
      %v3312 = vadd.f32 %v3310, %v3311
      %v3313 = vsel %vm907, %v3273, 0.0
      %v3314 = vadd.f32 %v3312, %v3313
      %v3315 = vsel %vm907, %v3274, 0.0
      %v3316 = vadd.f32 %v3314, %v3315
      %v3317 = vsel %vm907, %v3275, 0.0
      %v3318 = vadd.f32 %v3316, %v3317
      %v3319 = vsel %vm907, %v3276, 0.0
      %v3320 = vadd.f32 %v3318, %v3319
      %v3321 = vsel %vm907, %v3277, 0.0
      %v3322 = vadd.f32 %v3320, %v3321
      %v3323 = vsel %vm907, %v3278, 0.0
      %v3324 = vadd.f32 %v3322, %v3323
      %v3325 = vsel %vm907, %v3279, 0.0
      %v3326 = vadd.f32 %v3324, %v3325
      %v3327 = vsel %vm907, %v3280, 0.0
      %v3328 = vadd.f32 %v3326, %v3327
      %v3329 = vsel %vm907, %v3281, 0.0
      %v3330 = vadd.f32 %v3328, %v3329
      %v3331 = vsel %vm907, %v3282, 0.0
      %v3332 = vadd.f32 %v3330, %v3331
      %v3333 = vsel %vm907, %v3283, 0.0
      %v3334 = vadd.f32 %v3332, %v3333
      %v3335 = vsel %vm907, %v3284, 0.0
      %v3336 = vadd.f32 %v3334, %v3335
      %v3337 = vsel %vm907, %v3285, 0.0
      %v3338 = vadd.f32 %v3336, %v3337
      %v3339 = vsel %vm907, %v3286, 0.0
      %v3340 = vadd.f32 %v3338, %v3339
      %v3341 = vsel %vm907, %v3287, 0.0
      %v3342 = vadd.f32 %v3340, %v3341
      %v3343 = vsel %vm907, %v3288, 0.0
      %v3344 = vadd.f32 %v3342, %v3343
      %v3345 = vsel %vm907, %v3289, 0.0
      %v3346 = vadd.f32 %v3344, %v3345
      %v3347 = vsel %vm907, %v3290, 0.0
      %v3348 = vadd.f32 %v3346, %v3347
      %v3349 = vsel %vm907, %v3291, 0.0
      %v3350 = vadd.f32 %v3348, %v3349
      %v3351 = vsel %vm907, %v3292, 0.0
      %v3352 = vadd.f32 %v3350, %v3351
      %v3353 = vsel %vm907, %v3293, 0.0
      %v3354 = vadd.f32 %v3352, %v3353
      %v3355 = vsel %vm907, %v3294, 0.0
      %v3356 = vadd.f32 %v3354, %v3355
      %v3357 = vsel %vm907, %v3295, 0.0
      %v3358 = vadd.f32 %v3356, %v3357
      %v3359 = vrot.slane %v3358, 4
      %v3360 = vadd.f32 %v3358, %v3359
      %v3361 = vrot.slane %v3360, 2
      %v3362 = vadd.f32 %v3360, %v3361
      %v3363 = vrot.slane %v3362, 1
      %v3364 = vadd.f32 %v3362, %v3363
      %v3365 = vmul.f32 %v3264, %v3264
      %v3366 = vmul.f32 %v3265, %v3265
      %v3367 = vmul.f32 %v3266, %v3266
      %v3368 = vmul.f32 %v3267, %v3267
      %v3369 = vmul.f32 %v3268, %v3268
      %v3370 = vmul.f32 %v3269, %v3269
      %v3371 = vmul.f32 %v3270, %v3270
      %v3372 = vmul.f32 %v3271, %v3271
      %v3373 = vmul.f32 %v3272, %v3272
      %v3374 = vmul.f32 %v3273, %v3273
      %v3375 = vmul.f32 %v3274, %v3274
      %v3376 = vmul.f32 %v3275, %v3275
      %v3377 = vmul.f32 %v3276, %v3276
      %v3378 = vmul.f32 %v3277, %v3277
      %v3379 = vmul.f32 %v3278, %v3278
      %v3380 = vmul.f32 %v3279, %v3279
      %v3381 = vmul.f32 %v3280, %v3280
      %v3382 = vmul.f32 %v3281, %v3281
      %v3383 = vmul.f32 %v3282, %v3282
      %v3384 = vmul.f32 %v3283, %v3283
      %v3385 = vmul.f32 %v3284, %v3284
      %v3386 = vmul.f32 %v3285, %v3285
      %v3387 = vmul.f32 %v3286, %v3286
      %v3388 = vmul.f32 %v3287, %v3287
      %v3389 = vmul.f32 %v3288, %v3288
      %v3390 = vmul.f32 %v3289, %v3289
      %v3391 = vmul.f32 %v3290, %v3290
      %v3392 = vmul.f32 %v3291, %v3291
      %v3393 = vmul.f32 %v3292, %v3292
      %v3394 = vmul.f32 %v3293, %v3293
      %v3395 = vmul.f32 %v3294, %v3294
      %v3396 = vmul.f32 %v3295, %v3295
      %v3397 = vsel %vm907, %v3365, 0.0
      %v3398 = vsel %vm907, %v3366, 0.0
      %v3399 = vadd.f32 %v3397, %v3398
      %v3400 = vsel %vm907, %v3367, 0.0
      %v3401 = vadd.f32 %v3399, %v3400
      %v3402 = vsel %vm907, %v3368, 0.0
      %v3403 = vadd.f32 %v3401, %v3402
      %v3404 = vsel %vm907, %v3369, 0.0
      %v3405 = vadd.f32 %v3403, %v3404
      %v3406 = vsel %vm907, %v3370, 0.0
      %v3407 = vadd.f32 %v3405, %v3406
      %v3408 = vsel %vm907, %v3371, 0.0
      %v3409 = vadd.f32 %v3407, %v3408
      %v3410 = vsel %vm907, %v3372, 0.0
      %v3411 = vadd.f32 %v3409, %v3410
      %v3412 = vsel %vm907, %v3373, 0.0
      %v3413 = vadd.f32 %v3411, %v3412
      %v3414 = vsel %vm907, %v3374, 0.0
      %v3415 = vadd.f32 %v3413, %v3414
      %v3416 = vsel %vm907, %v3375, 0.0
      %v3417 = vadd.f32 %v3415, %v3416
      %v3418 = vsel %vm907, %v3376, 0.0
      %v3419 = vadd.f32 %v3417, %v3418
      %v3420 = vsel %vm907, %v3377, 0.0
      %v3421 = vadd.f32 %v3419, %v3420
      %v3422 = vsel %vm907, %v3378, 0.0
      %v3423 = vadd.f32 %v3421, %v3422
      %v3424 = vsel %vm907, %v3379, 0.0
      %v3425 = vadd.f32 %v3423, %v3424
      %v3426 = vsel %vm907, %v3380, 0.0
      %v3427 = vadd.f32 %v3425, %v3426
      %v3428 = vsel %vm907, %v3381, 0.0
      %v3429 = vadd.f32 %v3427, %v3428
      %v3430 = vsel %vm907, %v3382, 0.0
      %v3431 = vadd.f32 %v3429, %v3430
      %v3432 = vsel %vm907, %v3383, 0.0
      %v3433 = vadd.f32 %v3431, %v3432
      %v3434 = vsel %vm907, %v3384, 0.0
      %v3435 = vadd.f32 %v3433, %v3434
      %v3436 = vsel %vm907, %v3385, 0.0
      %v3437 = vadd.f32 %v3435, %v3436
      %v3438 = vsel %vm907, %v3386, 0.0
      %v3439 = vadd.f32 %v3437, %v3438
      %v3440 = vsel %vm907, %v3387, 0.0
      %v3441 = vadd.f32 %v3439, %v3440
      %v3442 = vsel %vm907, %v3388, 0.0
      %v3443 = vadd.f32 %v3441, %v3442
      %v3444 = vsel %vm907, %v3389, 0.0
      %v3445 = vadd.f32 %v3443, %v3444
      %v3446 = vsel %vm907, %v3390, 0.0
      %v3447 = vadd.f32 %v3445, %v3446
      %v3448 = vsel %vm907, %v3391, 0.0
      %v3449 = vadd.f32 %v3447, %v3448
      %v3450 = vsel %vm907, %v3392, 0.0
      %v3451 = vadd.f32 %v3449, %v3450
      %v3452 = vsel %vm907, %v3393, 0.0
      %v3453 = vadd.f32 %v3451, %v3452
      %v3454 = vsel %vm907, %v3394, 0.0
      %v3455 = vadd.f32 %v3453, %v3454
      %v3456 = vsel %vm907, %v3395, 0.0
      %v3457 = vadd.f32 %v3455, %v3456
      %v3458 = vsel %vm907, %v3396, 0.0
      %v3459 = vadd.f32 %v3457, %v3458
      %v3460 = vrot.slane %v3459, 4
      %v3461 = vadd.f32 %v3459, %v3460
      %v3462 = vrot.slane %v3461, 2
      %v3463 = vadd.f32 %v3461, %v3462
      %v3464 = vrot.slane %v3463, 1
      %v3465 = vadd.f32 %v3463, %v3464
      %v3466 = vsel %vm822, %v3364, %v3465
      %vm3467 = vcmask 254976
      %3468 = vst.msk [vmem:[%s530] sm:$0x3] %vm3467, %v3466
      %s3469 = smul.u32 16, %s25
      %p3470 = scmp.lt.s32.totalorder %s24, 1
      %s3471 = scalar_select %p3470, %s24, 1
      %p3472 = scmp.lt.s32.totalorder %s3469, 15
      %s3473 = scalar_select %p3472, %s3469, 15
      %s3474 = smul.addr %s3473, 2
      %s3475 = smul.addr %s3471, 32
      %s3476 = sadd.s32 %s3474, %s3475
      %s3477 = smul.addr %s3476, 4
      %s3478 = scalar_lea.vmem %s7, %s3477
      %p3479 = scmp.lt.s32.totalorder %s24, 1
      %s3480 = scalar_select %p3479, %s24, 1
      %p3481 = scmp.lt.s32.totalorder %s25, 0
      %s3482 = scalar_select %p3481, %s25, 0
      %s3483 = sadd.s32 %s3482, %s3480
      %s3484 = smul.addr %s3483, 2
      %s3485 = scalar_lea.vmem %s8, %s3484
      // Predicated region
      $region49: #{rru_double_conv.3} parent=47 // pred_check
        %p3486 = pneg %p246
      $region50: #{rru_double_conv.3} parent=47 // pred_check_branch
        %3488 = sbr.rel (%p3486) target = $region52
      $region51: #{rru_double_conv.3} parent=47 // pred_region
        %s3489 = smul.u32 16, %s25
      $region52: #{rru_double_conv.3} parent=47 // pred_fallthru
        _
      // Predicated region
      $region53: #{rru_double_conv.3} parent=47 // pred_check
        %p3490 = pneg %p274
      $region54: #{rru_double_conv.3} parent=47 // pred_check_branch
        %3492 = sbr.rel (%p3490) target = $region56
      $region55: #{rru_double_conv.3} parent=47 // pred_region
        _
      $region56: #{rru_double_conv.3} parent=47 // pred_fallthru
        _
    $region48: #{rru_double_conv.3} parent=5 // pred_fallthru
      _
    %p3493 = scmp.le.s32.totalorder 2, %s15
    // Predicated region
    $region57: #{rru_double_conv.3} parent=5 // pred_check
      %p3494 = pneg %p3493
    $region58: #{rru_double_conv.3} parent=5 // pred_check_branch
      %3496 = sbr.rel (%p3494) target = $region60
    $region59: #{rru_double_conv.3} parent=5 // pred_region
      %s3497 = ssub.s32 %s15, 2
      // Predicated region
      $region61: #{rru_double_conv.3} parent=59 // pred_check
        %p3498 = pneg %p252
      $region62: #{rru_double_conv.3} parent=59 // pred_check_branch
        %3500 = sbr.rel (%p3498) target = $region64
      $region63: #{rru_double_conv.3} parent=59 // pred_region
        %s3501 = smul.u32 16, %s27
        %p3502 = scmp.lt.s32.totalorder %s26, 1
        %s3503 = scalar_select %p3502, %s26, 1
        %p3504 = scmp.lt.s32.totalorder %s3501, 15
        %s3505 = scalar_select %p3504, %s3501, 15
        %s3506 = smul.addr %s3505, 2
        %s3507 = smul.addr %s3503, 32
        %s3508 = sadd.s32 %s3506, %s3507
        %s3509 = smul.addr %s3508, 4
        %s3510 = scalar_lea.vmem %s7, %s3509
      $region64: #{rru_double_conv.3} parent=59 // pred_fallthru
        _
      // Predicated region
      $region65: #{rru_double_conv.3} parent=59 // pred_check
        %p3511 = pneg %p280
      $region66: #{rru_double_conv.3} parent=59 // pred_check_branch
        %3513 = sbr.rel (%p3511) target = $region68
      $region67: #{rru_double_conv.3} parent=59 // pred_region
        %p3514 = scmp.lt.s32.totalorder %s26, 1
        %s3515 = scalar_select %p3514, %s26, 1
        %p3516 = scmp.lt.s32.totalorder %s27, 0
        %s3517 = scalar_select %p3516, %s27, 0
        %s3518 = sadd.s32 %s3517, %s3515
        %s3519 = smul.addr %s3518, 2
        %s3520 = scalar_lea.vmem %s8, %s3519
      $region68: #{rru_double_conv.3} parent=59 // pred_fallthru
        _
    $region60: #{rru_double_conv.3} parent=5 // pred_fallthru
      _
  $region6: #{rru_double_conv.3} parent=0 // loop_footer
    %s19 = sadd.s32 1, %s15
  $region7: #{rru_double_conv.3} parent=0 // loop_footer_branch
    %14 = sbr.rel target = $region3
  $region8: #{rru_double_conv.3} parent=0 // loop_exit
    _

</llo_original>
